<compile_context>
chip_gen: v6e
topology: v6e:2x2x1
jax: 0.10.0
libtpu: 0.0.40
codegen_flags: <defaults>
</compile_context>

<pallas_src>
import jax
import jax.numpy as jnp
from jax import lax
from jax.experimental import pallas as pl
from jax.experimental.pallas import tpu as pltpu


# ---------------------------------------------------------------------------
# tiling helpers
# ---------------------------------------------------------------------------
def _pick_channel_tile(C, W):
    """Channel tile for the warp kernel: small (<=32) so the block-diagonal
    reduce stays cheap, and TC*W stays a lane-legal block width."""
    if C <= 32:
        return C
    for t in (32, 16, 8):
        if C % t == 0 and (t * W) % 128 == 0:
            return t
    return C


def _pick_hw_tile(HW):
    """Spatial (HW) tile for the warp kernel; multiple of 128 for lane-dense
    output stores, sized so intermediates fit comfortably in scoped VMEM."""
    if HW <= 512:
        return HW
    for t in (512, 384, 256, 128):
        if HW % t == 0:
            return t
    return HW


# ---------------------------------------------------------------------------
# Kernel A: depthwise 3x3 stride-2 conv + BN(eval) + ReLU (channels-last)
# ---------------------------------------------------------------------------
def dw_bn_relu_kernel(xph_ref, w_ref, sc_ref, sh_ref, o_ref):
    # xph_ref: (4, Hp, Wp, TC) stride-2 phase planes of one batch element
    # w_ref: (9, TC); sc_ref/sh_ref: (1, TC); o_ref: (1, Ho, Wo, TC)
    _, Ho, Wo, TC = o_ref.shape
    acc = jnp.zeros((Ho, Wo, TC), jnp.float32)
    for kh in range(3):                        # 9 static taps
        for kw in range(3):
            ph = (kh % 2) * 2 + (kw % 2)
            dh, dw = kh // 2, kw // 2
            k = kh * 3 + kw
            tap = xph_ref[ph, dh:dh + Ho, dw:dw + Wo, :]     # (Ho, Wo, TC)
            acc = acc + tap * w_ref[k:k + 1, :]              # * (1, TC)
    o_ref[0] = jnp.maximum(acc * sc_ref[...] + sh_ref[...], 0.0)


def _phase_split(x_nhwc):
    """Fold the 2x2 stride phase split into the relayout (one XLA copy)."""
    N, H, W, C = x_nhwc.shape
    Ho = (H - 3) // 2 + 1
    Wo = (W - 3) // 2 + 1
    Hp, Wp = Ho + 1, Wo + 1
    xp = jnp.pad(x_nhwc, ((0, 0), (0, 2 * Hp - H), (0, 2 * Wp - W), (0, 0)))
    xph = (xp.reshape(N, Hp, 2, Wp, 2, C)
             .transpose(0, 2, 4, 1, 3, 5)
             .reshape(N * 4, Hp, Wp, C))
    return xph, Ho, Wo


def dw_conv_bn_relu(x_nhwc, w, bias, gamma, beta, rmean, rvar, eps=1e-5):
    # x_nhwc: (N, H, W, C); w: (C, 3, 3) depthwise (groups=C, stride=2, pad=0)
    N, H, W, C = x_nhwc.shape
    xph, Ho, Wo = _phase_split(x_nhwc)
    Hp, Wp = Ho + 1, Wo + 1

    w9 = w.reshape(C, 9).T                                    # (9, C), no N dup
    scale = gamma / jnp.sqrt(rvar + eps)                      # BN(eval) fold
    shift = (bias - rmean) * scale + beta
    sc = scale.reshape(1, C)
    sh = shift.reshape(1, C)

    TC = 128 if C % 128 == 0 else C
    out = pl.pallas_call(
        dw_bn_relu_kernel,
        grid=(N, C // TC),
        in_specs=[
            pl.BlockSpec((4, Hp, Wp, TC), lambda n, c: (n, 0, 0, c)),
            pl.BlockSpec((9, TC), lambda n, c: (0, c)),
            pl.BlockSpec((1, TC), lambda n, c: (0, c)),
            pl.BlockSpec((1, TC), lambda n, c: (0, c)),
        ],
        out_specs=pl.BlockSpec((1, Ho, Wo, TC), lambda n, c: (n, 0, 0, c)),
        out_shape=jax.ShapeDtypeStruct((N, Ho, Wo, C), jnp.float32),
        compiler_params=pltpu.CompilerParams(
            dimension_semantics=("parallel", "parallel")),
    )(xph, w9, sc, sh)
    return out


# ---------------------------------------------------------------------------
# Kernel B: fused bilinear upsample (align_corners=True) + 3x3 pad-1 flow conv
#           -> per-pixel sample coordinates.  seg_down never touches HBM.
# ---------------------------------------------------------------------------
def flow_coords_kernel(xpad_ref, d2_ref, k_ref, wfx_ref, wfs_ref, const_ref,
                       coord_ref, spad_ref):
    # xpad_ref: (1, H+2, W+2, C) zero-padded NHWC x
    # d2_ref: (1, h2*w2, C); k_ref: (HW, h2*w2); wfx/wfs: (9, C, 2)
    # const_ref: (HW, 2); coord_ref: (1, HW, 2); spad_ref: (H+2, W+2, C) scratch
    Hp2, Wp2, C = spad_ref.shape
    H, W = Hp2 - 2, Wp2 - 2
    HW = k_ref.shape[0]

    # --- upsample: one fat MXU matmul, result stays in VMEM
    seg_down = jnp.dot(k_ref[...], d2_ref[0],
                       preferred_element_type=jnp.float32)          # (HW, C)
    spad_ref[...] = jnp.zeros(spad_ref.shape, jnp.float32)
    spad_ref[1:H + 1, 1:W + 1, :] = seg_down.reshape(H, W, C)

    # --- flow_make: 3x3 pad-1 conv over cat([x, seg_down]) as 2x9 matmuls
    fl = jnp.zeros((HW, 2), jnp.float32)
    for t in range(9):                                               # static taps
        kh, kw = t // 3, t % 3
        xs = xpad_ref[0, kh:kh + H, kw:kw + W, :].reshape(HW, C)
        ss = spad_ref[kh:kh + H, kw:kw + W, :].reshape(HW, C)
        fl = fl + jnp.dot(xs, wfx_ref[t], preferred_element_type=jnp.float32)
        fl = fl + jnp.dot(ss, wfs_ref[t], preferred_element_type=jnp.float32)

    # --- sample coordinates: px = cx + 0.5*flow_x ; py = cy + 0.5*flow_y
    coord_ref[0] = const_ref[...] + 0.5 * fl


def _interp_matrix(out_size, in_size):
    """align_corners=True bilinear interpolation matrix (out_size, in_size)."""
    if in_size == 1:
        return jnp.ones((out_size, 1), jnp.float32)
    src = (jnp.arange(out_size, dtype=jnp.float32)
           * (in_size - 1) / max(out_size - 1, 1))
    i0f = jnp.floor(src)
    frac = src - i0f
    i0 = i0f.astype(jnp.int32)
    i1 = jnp.minimum(i0 + 1, in_size - 1)
    return (jax.nn.one_hot(i0, in_size, dtype=jnp.float32) * (1.0 - frac)[:, None]
            + jax.nn.one_hot(i1, in_size, dtype=jnp.float32) * frac[:, None])


def flow_coords(x, d2_nhwc, w_flow):
    N, C, H, W = x.shape
    HW = H * W
    _, h2, w2, _ = d2_nhwc.shape

    xpad_nhwc = jnp.pad(jnp.transpose(x, (0, 2, 3, 1)),
                        ((0, 0), (1, 1), (1, 1), (0, 0)))            # (N,H+2,W+2,C)
    d2v = d2_nhwc.reshape(N, h2 * w2, C)                             # free view
    K = jnp.kron(_interp_matrix(H, h2), _interp_matrix(W, w2))       # (HW, h2*w2)

    wf = jnp.transpose(w_flow, (2, 3, 1, 0)).reshape(9, 2 * C, 2)
    wfx = wf[:, :C, :]                                               # x half
    wfs = wf[:, C:, :]                                               # seg_down half

    # per-pixel coordinate constants: linspace base grid (as in the PyTorch code)
    # + grid_sample(align_corners=False) unnormalization folded together
    jj = jnp.arange(W, dtype=jnp.float32)
    ii = jnp.arange(H, dtype=jnp.float32)
    base_x = -1.0 + 2.0 * jj / max(W - 1, 1)
    base_y = -1.0 + 2.0 * ii / max(H - 1, 1)
    cx = 0.5 * ((base_x + 1.0) * W - 1.0)
    cy = 0.5 * ((base_y + 1.0) * H - 1.0)
    const = jnp.stack([jnp.tile(cx, H), jnp.repeat(cy, W)], axis=1)  # (HW, 2)

    coords = pl.pallas_call(
        flow_coords_kernel,
        grid=(N,),
        in_specs=[
            pl.BlockSpec((1, H + 2, W + 2, C), lambda n: (n, 0, 0, 0)),
            pl.BlockSpec((1, h2 * w2, C), lambda n: (n, 0, 0)),
            pl.BlockSpec((HW, h2 * w2), lambda n: (0, 0)),
            pl.BlockSpec((9, C, 2), lambda n: (0, 0, 0)),
            pl.BlockSpec((9, C, 2), lambda n: (0, 0, 0)),
            pl.BlockSpec((HW, 2), lambda n: (0, 0)),
        ],
        out_specs=pl.BlockSpec((1, HW, 2), lambda n: (n, 0, 0)),
        out_shape=jax.ShapeDtypeStruct((N, HW, 2), jnp.float32),
        scratch_shapes=[pltpu.VMEM((H + 2, W + 2, C), jnp.float32)],
        compiler_params=pltpu.CompilerParams(dimension_semantics=("parallel",)),
    )(xpad_nhwc, d2v, K, wfx, wfs, const)
    return coords


# ---------------------------------------------------------------------------
# Kernel C: grid_sample warp + edge, fully parallel grid (N, HW tiles, C tiles)
# ---------------------------------------------------------------------------
def warp_edge_kernel(coord_ref, xhcw_ref, xcp_ref, g_ref, warp_ref, edge_ref):
    # coord_ref: (1, THW, 2); xhcw_ref: (1, H, TC*W); xcp_ref: (1, TC, THW)
    # g_ref: (TC*W, TC) block-diagonal reduce; outputs: (1, TC, THW)
    THW = coord_ref.shape[1]
    H = xhcw_ref.shape[1]
    TCW, TC = g_ref.shape
    W = TCW // TC

    px = coord_ref[0, :, 0:1]                     # (THW, 1)
    py = coord_ref[0, :, 1:2]
    x0 = jnp.floor(px)
    y0 = jnp.floor(py)
    ax = px - x0
    ay = py - y0
    x0i = x0.astype(jnp.int32)
    y0i = y0.astype(jnp.int32)
    yi = lax.broadcasted_iota(jnp.int32, (THW, H), 1)
    xi = lax.broadcasted_iota(jnp.int32, (THW, W), 1)
    # zeros padding: out-of-range corners never match the iota -> weight 0
    wy = (jnp.where(yi == y0i, 1.0 - ay, 0.0)
          + jnp.where(yi == y0i + 1, ay, 0.0))    # (THW, H)
    wx = (jnp.where(xi == x0i, 1.0 - ax, 0.0)
          + jnp.where(xi == x0i + 1, ax, 0.0))    # (THW, W)

    # row contraction: one fat MXU matmul
    tmp = jnp.dot(wy, xhcw_ref[0], preferred_element_type=jnp.float32)  # (THW, TC*W)
    # column contraction: multiply + small block-diagonal reduce (TC <= 32)
    prod = tmp * jnp.tile(wx, (1, TC))
    warped = jnp.dot(prod, g_ref[...], preferred_element_type=jnp.float32)  # (THW, TC)

    wt = warped.T                                  # (TC, THW) lane-dense output
    warp_ref[0] = wt
    edge_ref[0] = xcp_ref[0] - wt


def warp_and_edge(x, coords):
    N, C, H, W = x.shape
    HW = H * W
    x_hcw = jnp.transpose(x, (0, 2, 1, 3)).reshape(N, H, C * W)  # warp operand
    x_cp = x.reshape(N, C, HW)                                   # free view (edge)

    TC = _pick_channel_tile(C, W)
    THW = _pick_hw_tile(HW)
    g = ((jnp.arange(TC * W) // W)[:, None]
         == jnp.arange(TC)[None, :]).astype(jnp.float32)         # (TC*W, TC)

    warp, edge = pl.pallas_call(
        warp_edge_kernel,
        grid=(N, HW // THW, C // TC),
        in_specs=[
            pl.BlockSpec((1, THW, 2), lambda n, h, c: (n, h, 0)),
            pl.BlockSpec((1, H, TC * W), lambda n, h, c: (n, 0, c)),
            pl.BlockSpec((1, TC, THW), lambda n, h, c: (n, c, h)),
            pl.BlockSpec((TC * W, TC), lambda n, h, c: (0, 0)),
        ],
        out_specs=(pl.BlockSpec((1, TC, THW), lambda n, h, c: (n, c, h)),
                   pl.BlockSpec((1, TC, THW), lambda n, h, c: (n, c, h))),
        out_shape=(jax.ShapeDtypeStruct((N, C, HW), jnp.float32),
                   jax.ShapeDtypeStruct((N, C, HW), jnp.float32)),
        compiler_params=pltpu.CompilerParams(
            dimension_semantics=("parallel", "parallel", "parallel")),
    )(coords, x_hcw, x_cp, g)
    # (N, C, HW) -> (N, C, H, W) is a free reshape (no transpose)
    return warp.reshape(N, C, H, W), edge.reshape(N, C, H, W)


# ---------------------------------------------------------------------------
# full forward
# ---------------------------------------------------------------------------
def squeeze_body_edge_forward(x, params):
    # self.down : dwconv(s2) -> BN -> ReLU -> dwconv(s2) -> BN -> ReLU
    x_nhwc = jnp.transpose(x, (0, 2, 3, 1))
    d1 = dw_conv_bn_relu(x_nhwc, params["w_dw1"], params["b_dw1"],
                         params["bn1_gamma"], params["bn1_beta"],
                         params["bn1_mean"], params["bn1_var"])
    d2 = dw_conv_bn_relu(d1, params["w_dw2"], params["b_dw2"],
                         params["bn2_gamma"], params["bn2_beta"],
                         params["bn2_mean"], params["bn2_var"])
    # upsample + flow_make fused into the coords kernel; warp + edge fused too
    coords = flow_coords(x, d2, params["w_flow"])
    seg_flow_warp, seg_edge = warp_and_edge(x, coords)
    return seg_flow_warp, seg_edge


if __name__ == "__main__":
    key = jax.random.PRNGKey(0)
    kx, k1, k2, k3, k4, k5 = jax.random.split(key, 6)
    N, C, H, W = 2, 4, 16, 16   # inplane = 4

    x = jax.random.normal(kx, (N, C, H, W), jnp.float32)

    params = dict(
        w_dw1=jax.random.normal(k1, (C, 3, 3), jnp.float32) * 0.2,
        b_dw1=jax.random.normal(k2, (C,), jnp.float32) * 0.1,
        w_dw2=jax.random.normal(k3, (C, 3, 3), jnp.float32) * 0.2,
        b_dw2=jax.random.normal(k4, (C,), jnp.float32) * 0.1,
        w_flow=jax.random.normal(k5, (2, 2 * C, 3, 3), jnp.float32) * 0.1,
        bn1_gamma=jnp.ones((C,), jnp.float32),
        bn1_beta=jnp.zeros((C,), jnp.float32),
        bn1_mean=jnp.zeros((C,), jnp.float32),
        bn1_var=jnp.ones((C,), jnp.float32),
        bn2_gamma=jnp.ones((C,), jnp.float32),
        bn2_beta=jnp.zeros((C,), jnp.float32),
        bn2_mean=jnp.zeros((C,), jnp.float32),
        bn2_var=jnp.ones((C,), jnp.float32),
    )

    seg_flow_warp, seg_edge = jax.jit(squeeze_body_edge_forward)(x, params)
    jax.block_until_ready((seg_flow_warp, seg_edge))
    assert seg_flow_warp.shape == (N, C, H, W)
    assert seg_edge.shape == (N, C, H, W)
    print("KERNEL_OK")
</pallas_src>

<mosaic_0001>
module attributes {stable_mosaic.version = 11 : i64} {
  func.func @dw_bn_relu_kernel(%arg0: i32, %arg1: i32, %arg2: memref<4x4x4x4xf32, #tpu.memory_space<vmem>>, %arg3: memref<9x4xf32, #tpu.memory_space<vmem>>, %arg4: memref<1x4xf32, #tpu.memory_space<vmem>>, %arg5: memref<1x4xf32, #tpu.memory_space<vmem>>, %arg6: memref<1x3x3x4xf32, #tpu.memory_space<vmem>>) attributes {dimension_semantics = [#tpu.dimension_semantics<parallel>, #tpu.dimension_semantics<parallel>], iteration_bounds = array<i64: 2, 1>, scalar_prefetch = 0 : i64, scratch_operands = 0 : i64, tpu.core_type = #tpu.core_type<tc>, window_params = [{transform_indices = @transform_0, window_bounds = array<i64: 4, 4, 4, 4>}, {transform_indices = @transform_1, window_bounds = array<i64: 9, 4>}, {transform_indices = @transform_2, window_bounds = array<i64: 1, 4>}, {transform_indices = @transform_3, window_bounds = array<i64: 1, 4>}, {transform_indices = @transform_4, window_bounds = array<i64: 1, 3, 3, 4>}]} {
    %cst = arith.constant 0.000000e+00 : f32
    %0 = vector.broadcast %cst : f32 to vector<3x3x4xf32>
    %c0 = arith.constant 0 : index
    %c0_0 = arith.constant 0 : index
    %c0_1 = arith.constant 0 : index
    %c0_2 = arith.constant 0 : index
    %1 = vector.load %arg2[%c0, %c0_0, %c0_1, %c0_2] : memref<4x4x4x4xf32, #tpu.memory_space<vmem>>, vector<1x3x3x4xf32>
    %2 = vector.shape_cast %1 : vector<1x3x3x4xf32> to vector<3x3x4xf32>
    %c0_3 = arith.constant 0 : index
    %c0_4 = arith.constant 0 : index
    %3 = vector.load %arg3[%c0_3, %c0_4] : memref<9x4xf32, #tpu.memory_space<vmem>>, vector<1x4xf32>
    %4 = vector.shape_cast %3 : vector<1x4xf32> to vector<1x1x4xf32>
    %5 = vector.broadcast %4 : vector<1x1x4xf32> to vector<3x3x4xf32>
    %6 = arith.mulf %2, %5 : vector<3x3x4xf32>
    %7 = arith.addf %0, %6 : vector<3x3x4xf32>
    %c1 = arith.constant 1 : index
    %c0_5 = arith.constant 0 : index
    %c0_6 = arith.constant 0 : index
    %c0_7 = arith.constant 0 : index
    %8 = vector.load %arg2[%c1, %c0_5, %c0_6, %c0_7] : memref<4x4x4x4xf32, #tpu.memory_space<vmem>>, vector<1x3x3x4xf32>
    %9 = vector.shape_cast %8 : vector<1x3x3x4xf32> to vector<3x3x4xf32>
    %c1_8 = arith.constant 1 : index
    %c0_9 = arith.constant 0 : index
    %10 = vector.load %arg3[%c1_8, %c0_9] : memref<9x4xf32, #tpu.memory_space<vmem>>, vector<1x4xf32>
    %11 = vector.shape_cast %10 : vector<1x4xf32> to vector<1x1x4xf32>
    %12 = vector.broadcast %11 : vector<1x1x4xf32> to vector<3x3x4xf32>
    %13 = arith.mulf %9, %12 : vector<3x3x4xf32>
    %14 = arith.addf %7, %13 : vector<3x3x4xf32>
    %c0_10 = arith.constant 0 : index
    %c0_11 = arith.constant 0 : index
    %c1_12 = arith.constant 1 : index
    %c0_13 = arith.constant 0 : index
    %15 = vector.load %arg2[%c0_10, %c0_11, %c1_12, %c0_13] : memref<4x4x4x4xf32, #tpu.memory_space<vmem>>, vector<1x3x3x4xf32>
    %16 = vector.shape_cast %15 : vector<1x3x3x4xf32> to vector<3x3x4xf32>
    %c2 = arith.constant 2 : index
    %c0_14 = arith.constant 0 : index
    %17 = vector.load %arg3[%c2, %c0_14] : memref<9x4xf32, #tpu.memory_space<vmem>>, vector<1x4xf32>
    %18 = vector.shape_cast %17 : vector<1x4xf32> to vector<1x1x4xf32>
    %19 = vector.broadcast %18 : vector<1x1x4xf32> to vector<3x3x4xf32>
    %20 = arith.mulf %16, %19 : vector<3x3x4xf32>
    %21 = arith.addf %14, %20 : vector<3x3x4xf32>
    %c2_15 = arith.constant 2 : index
    %c0_16 = arith.constant 0 : index
    %c0_17 = arith.constant 0 : index
    %c0_18 = arith.constant 0 : index
    %22 = vector.load %arg2[%c2_15, %c0_16, %c0_17, %c0_18] : memref<4x4x4x4xf32, #tpu.memory_space<vmem>>, vector<1x3x3x4xf32>
    %23 = vector.shape_cast %22 : vector<1x3x3x4xf32> to vector<3x3x4xf32>
    %c3 = arith.constant 3 : index
    %c0_19 = arith.constant 0 : index
    %24 = vector.load %arg3[%c3, %c0_19] : memref<9x4xf32, #tpu.memory_space<vmem>>, vector<1x4xf32>
    %25 = vector.shape_cast %24 : vector<1x4xf32> to vector<1x1x4xf32>
    %26 = vector.broadcast %25 : vector<1x1x4xf32> to vector<3x3x4xf32>
    %27 = arith.mulf %23, %26 : vector<3x3x4xf32>
    %28 = arith.addf %21, %27 : vector<3x3x4xf32>
    %c3_20 = arith.constant 3 : index
    %c0_21 = arith.constant 0 : index
    %c0_22 = arith.constant 0 : index
    %c0_23 = arith.constant 0 : index
    %29 = vector.load %arg2[%c3_20, %c0_21, %c0_22, %c0_23] : memref<4x4x4x4xf32, #tpu.memory_space<vmem>>, vector<1x3x3x4xf32>
    %30 = vector.shape_cast %29 : vector<1x3x3x4xf32> to vector<3x3x4xf32>
    %c4 = arith.constant 4 : index
    %c0_24 = arith.constant 0 : index
    %31 = vector.load %arg3[%c4, %c0_24] : memref<9x4xf32, #tpu.memory_space<vmem>>, vector<1x4xf32>
    %32 = vector.shape_cast %31 : vector<1x4xf32> to vector<1x1x4xf32>
    %33 = vector.broadcast %32 : vector<1x1x4xf32> to vector<3x3x4xf32>
    %34 = arith.mulf %30, %33 : vector<3x3x4xf32>
    %35 = arith.addf %28, %34 : vector<3x3x4xf32>
    %c2_25 = arith.constant 2 : index
    %c0_26 = arith.constant 0 : index
    %c1_27 = arith.constant 1 : index
    %c0_28 = arith.constant 0 : index
    %36 = vector.load %arg2[%c2_25, %c0_26, %c1_27, %c0_28] : memref<4x4x4x4xf32, #tpu.memory_space<vmem>>, vector<1x3x3x4xf32>
    %37 = vector.shape_cast %36 : vector<1x3x3x4xf32> to vector<3x3x4xf32>
    %c5 = arith.constant 5 : index
    %c0_29 = arith.constant 0 : index
    %38 = vector.load %arg3[%c5, %c0_29] : memref<9x4xf32, #tpu.memory_space<vmem>>, vector<1x4xf32>
    %39 = vector.shape_cast %38 : vector<1x4xf32> to vector<1x1x4xf32>
    %40 = vector.broadcast %39 : vector<1x1x4xf32> to vector<3x3x4xf32>
    %41 = arith.mulf %37, %40 : vector<3x3x4xf32>
    %42 = arith.addf %35, %41 : vector<3x3x4xf32>
    %c0_30 = arith.constant 0 : index
    %c1_31 = arith.constant 1 : index
    %c0_32 = arith.constant 0 : index
    %c0_33 = arith.constant 0 : index
    %43 = vector.load %arg2[%c0_30, %c1_31, %c0_32, %c0_33] : memref<4x4x4x4xf32, #tpu.memory_space<vmem>>, vector<1x3x3x4xf32>
    %44 = vector.shape_cast %43 : vector<1x3x3x4xf32> to vector<3x3x4xf32>
    %c6 = arith.constant 6 : index
    %c0_34 = arith.constant 0 : index
    %45 = vector.load %arg3[%c6, %c0_34] : memref<9x4xf32, #tpu.memory_space<vmem>>, vector<1x4xf32>
    %46 = vector.shape_cast %45 : vector<1x4xf32> to vector<1x1x4xf32>
    %47 = vector.broadcast %46 : vector<1x1x4xf32> to vector<3x3x4xf32>
    %48 = arith.mulf %44, %47 : vector<3x3x4xf32>
    %49 = arith.addf %42, %48 : vector<3x3x4xf32>
    %c1_35 = arith.constant 1 : index
    %c1_36 = arith.constant 1 : index
    %c0_37 = arith.constant 0 : index
    %c0_38 = arith.constant 0 : index
    %50 = vector.load %arg2[%c1_35, %c1_36, %c0_37, %c0_38] : memref<4x4x4x4xf32, #tpu.memory_space<vmem>>, vector<1x3x3x4xf32>
    %51 = vector.shape_cast %50 : vector<1x3x3x4xf32> to vector<3x3x4xf32>
    %c7 = arith.constant 7 : index
    %c0_39 = arith.constant 0 : index
    %52 = vector.load %arg3[%c7, %c0_39] : memref<9x4xf32, #tpu.memory_space<vmem>>, vector<1x4xf32>
    %53 = vector.shape_cast %52 : vector<1x4xf32> to vector<1x1x4xf32>
    %54 = vector.broadcast %53 : vector<1x1x4xf32> to vector<3x3x4xf32>
    %55 = arith.mulf %51, %54 : vector<3x3x4xf32>
    %56 = arith.addf %49, %55 : vector<3x3x4xf32>
    %c0_40 = arith.constant 0 : index
    %c1_41 = arith.constant 1 : index
    %c1_42 = arith.constant 1 : index
    %c0_43 = arith.constant 0 : index
    %57 = vector.load %arg2[%c0_40, %c1_41, %c1_42, %c0_43] : memref<4x4x4x4xf32, #tpu.memory_space<vmem>>, vector<1x3x3x4xf32>
    %58 = vector.shape_cast %57 : vector<1x3x3x4xf32> to vector<3x3x4xf32>
    %c8 = arith.constant 8 : index
    %c0_44 = arith.constant 0 : index
    %59 = vector.load %arg3[%c8, %c0_44] : memref<9x4xf32, #tpu.memory_space<vmem>>, vector<1x4xf32>
    %60 = vector.shape_cast %59 : vector<1x4xf32> to vector<1x1x4xf32>
    %61 = vector.broadcast %60 : vector<1x1x4xf32> to vector<3x3x4xf32>
    %62 = arith.mulf %58, %61 : vector<3x3x4xf32>
    %63 = arith.addf %56, %62 : vector<3x3x4xf32>
    %c0_45 = arith.constant 0 : index
    %c0_46 = arith.constant 0 : index
    %64 = vector.load %arg4[%c0_45, %c0_46] : memref<1x4xf32, #tpu.memory_space<vmem>>, vector<1x4xf32>
    %65 = vector.shape_cast %64 : vector<1x4xf32> to vector<1x1x4xf32>
    %66 = vector.broadcast %65 : vector<1x1x4xf32> to vector<3x3x4xf32>
    %67 = arith.mulf %63, %66 : vector<3x3x4xf32>
    %c0_47 = arith.constant 0 : index
    %c0_48 = arith.constant 0 : index
    %68 = vector.load %arg5[%c0_47, %c0_48] : memref<1x4xf32, #tpu.memory_space<vmem>>, vector<1x4xf32>
    %69 = vector.shape_cast %68 : vector<1x4xf32> to vector<1x1x4xf32>
    %70 = vector.broadcast %69 : vector<1x1x4xf32> to vector<3x3x4xf32>
    %71 = arith.addf %67, %70 : vector<3x3x4xf32>
    %cst_49 = arith.constant 0.000000e+00 : f32
    %72 = vector.broadcast %cst_49 : f32 to vector<3x3x4xf32>
    %73 = arith.maximumf %71, %72 : vector<3x3x4xf32>
    %c0_50 = arith.constant 0 : index
    %c0_51 = arith.constant 0 : index
    %c0_52 = arith.constant 0 : index
    %c0_53 = arith.constant 0 : index
    %74 = vector.load %arg6[%c0_50, %c0_51, %c0_52, %c0_53] : memref<1x3x3x4xf32, #tpu.memory_space<vmem>>, vector<1x3x3x4xf32>
    %75 = vector.shape_cast %74 : vector<1x3x3x4xf32> to vector<3x3x4xf32>
    %76 = vector.shape_cast %73 : vector<3x3x4xf32> to vector<1x3x3x4xf32>
    tpu.vector_store %arg6[%c0_50, %c0_51, %c0_52, %c0_53], %76 {strides = array<i32>} : memref<1x3x3x4xf32, #tpu.memory_space<vmem>>, vector<1x3x3x4xf32>,
    return
  }
  func.func @transform_0(%arg0: i32, %arg1: i32) -> (i32, i32, i32, i32) {
    %c0_i32 = arith.constant 0 : i32
    %c0_i32_0 = arith.constant 0 : i32
    %c0_i32_1 = arith.constant 0 : i32
    return %arg0, %c0_i32, %c0_i32_0, %arg1 : i32, i32, i32, i32
  }
  func.func @transform_1(%arg0: i32, %arg1: i32) -> (i32, i32) {
    %c0_i32 = arith.constant 0 : i32
    %c0_i32_0 = arith.constant 0 : i32
    return %c0_i32, %arg1 : i32, i32
  }
  func.func @transform_2(%arg0: i32, %arg1: i32) -> (i32, i32) {
    %c0_i32 = arith.constant 0 : i32
    %c0_i32_0 = arith.constant 0 : i32
    return %c0_i32, %arg1 : i32, i32
  }
  func.func @transform_3(%arg0: i32, %arg1: i32) -> (i32, i32) {
    %c0_i32 = arith.constant 0 : i32
    %c0_i32_0 = arith.constant 0 : i32
    return %c0_i32, %arg1 : i32, i32
  }
  func.func @transform_4(%arg0: i32, %arg1: i32) -> (i32, i32, i32, i32) {
    %c0_i32 = arith.constant 0 : i32
    %c0_i32_0 = arith.constant 0 : i32
    %c0_i32_1 = arith.constant 0 : i32
    return %arg0, %c0_i32, %c0_i32_0, %arg1 : i32, i32, i32, i32
  }
}

module attributes {stable_mosaic.version = 11 : i64} {
  func.func @dw_bn_relu_kernel(%arg0: i32, %arg1: i32, %arg2: memref<4x8x8x4xf32, #tpu.memory_space<vmem>>, %arg3: memref<9x4xf32, #tpu.memory_space<vmem>>, %arg4: memref<1x4xf32, #tpu.memory_space<vmem>>, %arg5: memref<1x4xf32, #tpu.memory_space<vmem>>, %arg6: memref<1x7x7x4xf32, #tpu.memory_space<vmem>>) attributes {dimension_semantics = [#tpu.dimension_semantics<parallel>, #tpu.dimension_semantics<parallel>], iteration_bounds = array<i64: 2, 1>, scalar_prefetch = 0 : i64, scratch_operands = 0 : i64, tpu.core_type = #tpu.core_type<tc>, window_params = [{transform_indices = @transform_0, window_bounds = array<i64: 4, 8, 8, 4>}, {transform_indices = @transform_1, window_bounds = array<i64: 9, 4>}, {transform_indices = @transform_2, window_bounds = array<i64: 1, 4>}, {transform_indices = @transform_3, window_bounds = array<i64: 1, 4>}, {transform_indices = @transform_4, window_bounds = array<i64: 1, 7, 7, 4>}]} {
    %cst = arith.constant 0.000000e+00 : f32
    %0 = vector.broadcast %cst : f32 to vector<7x7x4xf32>
    %c0 = arith.constant 0 : index
    %c0_0 = arith.constant 0 : index
    %c0_1 = arith.constant 0 : index
    %c0_2 = arith.constant 0 : index
    %1 = vector.load %arg2[%c0, %c0_0, %c0_1, %c0_2] : memref<4x8x8x4xf32, #tpu.memory_space<vmem>>, vector<1x7x7x4xf32>
    %2 = vector.shape_cast %1 : vector<1x7x7x4xf32> to vector<7x7x4xf32>
    %c0_3 = arith.constant 0 : index
    %c0_4 = arith.constant 0 : index
    %3 = vector.load %arg3[%c0_3, %c0_4] : memref<9x4xf32, #tpu.memory_space<vmem>>, vector<1x4xf32>
    %4 = vector.shape_cast %3 : vector<1x4xf32> to vector<1x1x4xf32>
    %5 = vector.broadcast %4 : vector<1x1x4xf32> to vector<7x7x4xf32>
    %6 = arith.mulf %2, %5 : vector<7x7x4xf32>
    %7 = arith.addf %0, %6 : vector<7x7x4xf32>
    %c1 = arith.constant 1 : index
    %c0_5 = arith.constant 0 : index
    %c0_6 = arith.constant 0 : index
    %c0_7 = arith.constant 0 : index
    %8 = vector.load %arg2[%c1, %c0_5, %c0_6, %c0_7] : memref<4x8x8x4xf32, #tpu.memory_space<vmem>>, vector<1x7x7x4xf32>
    %9 = vector.shape_cast %8 : vector<1x7x7x4xf32> to vector<7x7x4xf32>
    %c1_8 = arith.constant 1 : index
    %c0_9 = arith.constant 0 : index
    %10 = vector.load %arg3[%c1_8, %c0_9] : memref<9x4xf32, #tpu.memory_space<vmem>>, vector<1x4xf32>
    %11 = vector.shape_cast %10 : vector<1x4xf32> to vector<1x1x4xf32>
    %12 = vector.broadcast %11 : vector<1x1x4xf32> to vector<7x7x4xf32>
    %13 = arith.mulf %9, %12 : vector<7x7x4xf32>
    %14 = arith.addf %7, %13 : vector<7x7x4xf32>
    %c0_10 = arith.constant 0 : index
    %c0_11 = arith.constant 0 : index
    %c1_12 = arith.constant 1 : index
    %c0_13 = arith.constant 0 : index
    %15 = vector.load %arg2[%c0_10, %c0_11, %c1_12, %c0_13] : memref<4x8x8x4xf32, #tpu.memory_space<vmem>>, vector<1x7x7x4xf32>
    %16 = vector.shape_cast %15 : vector<1x7x7x4xf32> to vector<7x7x4xf32>
    %c2 = arith.constant 2 : index
    %c0_14 = arith.constant 0 : index
    %17 = vector.load %arg3[%c2, %c0_14] : memref<9x4xf32, #tpu.memory_space<vmem>>, vector<1x4xf32>
    %18 = vector.shape_cast %17 : vector<1x4xf32> to vector<1x1x4xf32>
    %19 = vector.broadcast %18 : vector<1x1x4xf32> to vector<7x7x4xf32>
    %20 = arith.mulf %16, %19 : vector<7x7x4xf32>
    %21 = arith.addf %14, %20 : vector<7x7x4xf32>
    %c2_15 = arith.constant 2 : index
    %c0_16 = arith.constant 0 : index
    %c0_17 = arith.constant 0 : index
    %c0_18 = arith.constant 0 : index
    %22 = vector.load %arg2[%c2_15, %c0_16, %c0_17, %c0_18] : memref<4x8x8x4xf32, #tpu.memory_space<vmem>>, vector<1x7x7x4xf32>
    %23 = vector.shape_cast %22 : vector<1x7x7x4xf32> to vector<7x7x4xf32>
    %c3 = arith.constant 3 : index
    %c0_19 = arith.constant 0 : index
    %24 = vector.load %arg3[%c3, %c0_19] : memref<9x4xf32, #tpu.memory_space<vmem>>, vector<1x4xf32>
    %25 = vector.shape_cast %24 : vector<1x4xf32> to vector<1x1x4xf32>
    %26 = vector.broadcast %25 : vector<1x1x4xf32> to vector<7x7x4xf32>
    %27 = arith.mulf %23, %26 : vector<7x7x4xf32>
    %28 = arith.addf %21, %27 : vector<7x7x4xf32>
    %c3_20 = arith.constant 3 : index
    %c0_21 = arith.constant 0 : index
    %c0_22 = arith.constant 0 : index
    %c0_23 = arith.constant 0 : index
    %29 = vector.load %arg2[%c3_20, %c0_21, %c0_22, %c0_23] : memref<4x8x8x4xf32, #tpu.memory_space<vmem>>, vector<1x7x7x4xf32>
    %30 = vector.shape_cast %29 : vector<1x7x7x4xf32> to vector<7x7x4xf32>
    %c4 = arith.constant 4 : index
    %c0_24 = arith.constant 0 : index
    %31 = vector.load %arg3[%c4, %c0_24] : memref<9x4xf32, #tpu.memory_space<vmem>>, vector<1x4xf32>
    %32 = vector.shape_cast %31 : vector<1x4xf32> to vector<1x1x4xf32>
    %33 = vector.broadcast %32 : vector<1x1x4xf32> to vector<7x7x4xf32>
    %34 = arith.mulf %30, %33 : vector<7x7x4xf32>
    %35 = arith.addf %28, %34 : vector<7x7x4xf32>
    %c2_25 = arith.constant 2 : index
    %c0_26 = arith.constant 0 : index
    %c1_27 = arith.constant 1 : index
    %c0_28 = arith.constant 0 : index
    %36 = vector.load %arg2[%c2_25, %c0_26, %c1_27, %c0_28] : memref<4x8x8x4xf32, #tpu.memory_space<vmem>>, vector<1x7x7x4xf32>
    %37 = vector.shape_cast %36 : vector<1x7x7x4xf32> to vector<7x7x4xf32>
    %c5 = arith.constant 5 : index
    %c0_29 = arith.constant 0 : index
    %38 = vector.load %arg3[%c5, %c0_29] : memref<9x4xf32, #tpu.memory_space<vmem>>, vector<1x4xf32>
    %39 = vector.shape_cast %38 : vector<1x4xf32> to vector<1x1x4xf32>
    %40 = vector.broadcast %39 : vector<1x1x4xf32> to vector<7x7x4xf32>
    %41 = arith.mulf %37, %40 : vector<7x7x4xf32>
    %42 = arith.addf %35, %41 : vector<7x7x4xf32>
    %c0_30 = arith.constant 0 : index
    %c1_31 = arith.constant 1 : index
    %c0_32 = arith.constant 0 : index
    %c0_33 = arith.constant 0 : index
    %43 = vector.load %arg2[%c0_30, %c1_31, %c0_32, %c0_33] : memref<4x8x8x4xf32, #tpu.memory_space<vmem>>, vector<1x7x7x4xf32>
    %44 = vector.shape_cast %43 : vector<1x7x7x4xf32> to vector<7x7x4xf32>
    %c6 = arith.constant 6 : index
    %c0_34 = arith.constant 0 : index
    %45 = vector.load %arg3[%c6, %c0_34] : memref<9x4xf32, #tpu.memory_space<vmem>>, vector<1x4xf32>
    %46 = vector.shape_cast %45 : vector<1x4xf32> to vector<1x1x4xf32>
    %47 = vector.broadcast %46 : vector<1x1x4xf32> to vector<7x7x4xf32>
    %48 = arith.mulf %44, %47 : vector<7x7x4xf32>
    %49 = arith.addf %42, %48 : vector<7x7x4xf32>
    %c1_35 = arith.constant 1 : index
    %c1_36 = arith.constant 1 : index
    %c0_37 = arith.constant 0 : index
    %c0_38 = arith.constant 0 : index
    %50 = vector.load %arg2[%c1_35, %c1_36, %c0_37, %c0_38] : memref<4x8x8x4xf32, #tpu.memory_space<vmem>>, vector<1x7x7x4xf32>
    %51 = vector.shape_cast %50 : vector<1x7x7x4xf32> to vector<7x7x4xf32>
    %c7 = arith.constant 7 : index
    %c0_39 = arith.constant 0 : index
    %52 = vector.load %arg3[%c7, %c0_39] : memref<9x4xf32, #tpu.memory_space<vmem>>, vector<1x4xf32>
    %53 = vector.shape_cast %52 : vector<1x4xf32> to vector<1x1x4xf32>
    %54 = vector.broadcast %53 : vector<1x1x4xf32> to vector<7x7x4xf32>
    %55 = arith.mulf %51, %54 : vector<7x7x4xf32>
    %56 = arith.addf %49, %55 : vector<7x7x4xf32>
    %c0_40 = arith.constant 0 : index
    %c1_41 = arith.constant 1 : index
    %c1_42 = arith.constant 1 : index
    %c0_43 = arith.constant 0 : index
    %57 = vector.load %arg2[%c0_40, %c1_41, %c1_42, %c0_43] : memref<4x8x8x4xf32, #tpu.memory_space<vmem>>, vector<1x7x7x4xf32>
    %58 = vector.shape_cast %57 : vector<1x7x7x4xf32> to vector<7x7x4xf32>
    %c8 = arith.constant 8 : index
    %c0_44 = arith.constant 0 : index
    %59 = vector.load %arg3[%c8, %c0_44] : memref<9x4xf32, #tpu.memory_space<vmem>>, vector<1x4xf32>
    %60 = vector.shape_cast %59 : vector<1x4xf32> to vector<1x1x4xf32>
    %61 = vector.broadcast %60 : vector<1x1x4xf32> to vector<7x7x4xf32>
    %62 = arith.mulf %58, %61 : vector<7x7x4xf32>
    %63 = arith.addf %56, %62 : vector<7x7x4xf32>
    %c0_45 = arith.constant 0 : index
    %c0_46 = arith.constant 0 : index
    %64 = vector.load %arg4[%c0_45, %c0_46] : memref<1x4xf32, #tpu.memory_space<vmem>>, vector<1x4xf32>
    %65 = vector.shape_cast %64 : vector<1x4xf32> to vector<1x1x4xf32>
    %66 = vector.broadcast %65 : vector<1x1x4xf32> to vector<7x7x4xf32>
    %67 = arith.mulf %63, %66 : vector<7x7x4xf32>
    %c0_47 = arith.constant 0 : index
    %c0_48 = arith.constant 0 : index
    %68 = vector.load %arg5[%c0_47, %c0_48] : memref<1x4xf32, #tpu.memory_space<vmem>>, vector<1x4xf32>
    %69 = vector.shape_cast %68 : vector<1x4xf32> to vector<1x1x4xf32>
    %70 = vector.broadcast %69 : vector<1x1x4xf32> to vector<7x7x4xf32>
    %71 = arith.addf %67, %70 : vector<7x7x4xf32>
    %cst_49 = arith.constant 0.000000e+00 : f32
    %72 = vector.broadcast %cst_49 : f32 to vector<7x7x4xf32>
    %73 = arith.maximumf %71, %72 : vector<7x7x4xf32>
    %c0_50 = arith.constant 0 : index
    %c0_51 = arith.constant 0 : index
    %c0_52 = arith.constant 0 : index
    %c0_53 = arith.constant 0 : index
    %74 = vector.load %arg6[%c0_50, %c0_51, %c0_52, %c0_53] : memref<1x7x7x4xf32, #tpu.memory_space<vmem>>, vector<1x7x7x4xf32>
    %75 = vector.shape_cast %74 : vector<1x7x7x4xf32> to vector<7x7x4xf32>
    %76 = vector.shape_cast %73 : vector<7x7x4xf32> to vector<1x7x7x4xf32>
    tpu.vector_store %arg6[%c0_50, %c0_51, %c0_52, %c0_53], %76 {strides = array<i32>} : memref<1x7x7x4xf32, #tpu.memory_space<vmem>>, vector<1x7x7x4xf32>,
    return
  }
  func.func @transform_0(%arg0: i32, %arg1: i32) -> (i32, i32, i32, i32) {
    %c0_i32 = arith.constant 0 : i32
    %c0_i32_0 = arith.constant 0 : i32
    %c0_i32_1 = arith.constant 0 : i32
    return %arg0, %c0_i32, %c0_i32_0, %arg1 : i32, i32, i32, i32
  }
  func.func @transform_1(%arg0: i32, %arg1: i32) -> (i32, i32) {
    %c0_i32 = arith.constant 0 : i32
    %c0_i32_0 = arith.constant 0 : i32
    return %c0_i32, %arg1 : i32, i32
  }
  func.func @transform_2(%arg0: i32, %arg1: i32) -> (i32, i32) {
    %c0_i32 = arith.constant 0 : i32
    %c0_i32_0 = arith.constant 0 : i32
    return %c0_i32, %arg1 : i32, i32
  }
  func.func @transform_3(%arg0: i32, %arg1: i32) -> (i32, i32) {
    %c0_i32 = arith.constant 0 : i32
    %c0_i32_0 = arith.constant 0 : i32
    return %c0_i32, %arg1 : i32, i32
  }
  func.func @transform_4(%arg0: i32, %arg1: i32) -> (i32, i32, i32, i32) {
    %c0_i32 = arith.constant 0 : i32
    %c0_i32_0 = arith.constant 0 : i32
    %c0_i32_1 = arith.constant 0 : i32
    return %arg0, %c0_i32, %c0_i32_0, %arg1 : i32, i32, i32, i32
  }
}

module attributes {stable_mosaic.version = 11 : i64} {
  func.func @flow_coords_kernel(%arg0: i32, %arg1: memref<1x18x18x4xf32, #tpu.memory_space<vmem>>, %arg2: memref<1x9x4xf32, #tpu.memory_space<vmem>>, %arg3: memref<256x9xf32, #tpu.memory_space<vmem>>, %arg4: memref<9x4x2xf32, #tpu.memory_space<vmem>>, %arg5: memref<9x4x2xf32, #tpu.memory_space<vmem>>, %arg6: memref<256x2xf32, #tpu.memory_space<vmem>>, %arg7: memref<1x256x2xf32, #tpu.memory_space<vmem>>, %arg8: memref<18x18x4xf32, #tpu.memory_space<vmem>>) attributes {dimension_semantics = [#tpu.dimension_semantics<parallel>], iteration_bounds = array<i64: 2>, scalar_prefetch = 0 : i64, scratch_operands = 1 : i64, tpu.core_type = #tpu.core_type<tc>, window_params = [{transform_indices = @transform_0, window_bounds = array<i64: 1, 18, 18, 4>}, {transform_indices = @transform_1, window_bounds = array<i64: 1, 9, 4>}, {pipeline_mode = #tpu.pipeline_mode<synchronous>, transform_indices = @transform_2, window_bounds = array<i64: 256, 9>}, {pipeline_mode = #tpu.pipeline_mode<synchronous>, transform_indices = @transform_3, window_bounds = array<i64: 9, 4, 2>}, {pipeline_mode = #tpu.pipeline_mode<synchronous>, transform_indices = @transform_4, window_bounds = array<i64: 9, 4, 2>}, {pipeline_mode = #tpu.pipeline_mode<synchronous>, transform_indices = @transform_5, window_bounds = array<i64: 256, 2>}, {transform_indices = @transform_6, window_bounds = array<i64: 1, 256, 2>}]} {
    %c0 = arith.constant 0 : index
    %c0_0 = arith.constant 0 : index
    %0 = vector.load %arg3[%c0, %c0_0] : memref<256x9xf32, #tpu.memory_space<vmem>>, vector<256x9xf32>
    %c0_1 = arith.constant 0 : index
    %c0_2 = arith.constant 0 : index
    %c0_3 = arith.constant 0 : index
    %1 = vector.load %arg2[%c0_1, %c0_2, %c0_3] : memref<1x9x4xf32, #tpu.memory_space<vmem>>, vector<1x9x4xf32>
    %2 = vector.shape_cast %1 : vector<1x9x4xf32> to vector<9x4xf32>
    %cst = arith.constant dense<0.000000e+00> : vector<256x4xf32>
    %3 = tpu.matmul %0, %2, %cst {dimension_numbers = #tpu.dot_dimension_numbers<[1], [0], [0], [1], [0, 0, 1, 1], [], []>} : vector<256x9xf32>, vector<9x4xf32>, vector<256x4xf32> -> vector<256x4xf32>
    %cst_4 = arith.constant 0.000000e+00 : f32
    %4 = vector.broadcast %cst_4 : f32 to vector<18x18x4xf32>
    %c0_5 = arith.constant 0 : index
    %c0_6 = arith.constant 0 : index
    %c0_7 = arith.constant 0 : index
    %5 = vector.load %arg8[%c0_5, %c0_6, %c0_7] : memref<18x18x4xf32, #tpu.memory_space<vmem>>, vector<18x18x4xf32>
    tpu.vector_store %arg8[%c0_5, %c0_6, %c0_7], %4 {strides = array<i32>} : memref<18x18x4xf32, #tpu.memory_space<vmem>>, vector<18x18x4xf32>,
    %6 = vector.shape_cast %3 : vector<256x4xf32> to vector<16x16x4xf32>
    %c1 = arith.constant 1 : index
    %c1_8 = arith.constant 1 : index
    %c0_9 = arith.constant 0 : index
    %7 = vector.load %arg8[%c1, %c1_8, %c0_9] : memref<18x18x4xf32, #tpu.memory_space<vmem>>, vector<16x16x4xf32>
    tpu.vector_store %arg8[%c1, %c1_8, %c0_9], %6 {strides = array<i32>} : memref<18x18x4xf32, #tpu.memory_space<vmem>>, vector<16x16x4xf32>,
    %cst_10 = arith.constant 0.000000e+00 : f32
    %8 = vector.broadcast %cst_10 : f32 to vector<256x2xf32>
    %c0_11 = arith.constant 0 : index
    %c0_12 = arith.constant 0 : index
    %c0_13 = arith.constant 0 : index
    %c0_14 = arith.constant 0 : index
    %9 = vector.load %arg1[%c0_11, %c0_12, %c0_13, %c0_14] : memref<1x18x18x4xf32, #tpu.memory_space<vmem>>, vector<1x16x16x4xf32>
    %10 = vector.shape_cast %9 : vector<1x16x16x4xf32> to vector<16x16x4xf32>
    %11 = vector.shape_cast %10 : vector<16x16x4xf32> to vector<256x4xf32>
    %c0_15 = arith.constant 0 : index
    %c0_16 = arith.constant 0 : index
    %c0_17 = arith.constant 0 : index
    %12 = vector.load %arg8[%c0_15, %c0_16, %c0_17] : memref<18x18x4xf32, #tpu.memory_space<vmem>>, vector<16x16x4xf32>
    %13 = vector.shape_cast %12 : vector<16x16x4xf32> to vector<256x4xf32>
    %c0_18 = arith.constant 0 : index
    %c0_19 = arith.constant 0 : index
    %c0_20 = arith.constant 0 : index
    %14 = vector.load %arg4[%c0_18, %c0_19, %c0_20] : memref<9x4x2xf32, #tpu.memory_space<vmem>>, vector<1x4x2xf32>
    %15 = vector.shape_cast %14 : vector<1x4x2xf32> to vector<4x2xf32>
    %cst_21 = arith.constant dense<0.000000e+00> : vector<256x2xf32>
    %16 = tpu.matmul %11, %15, %cst_21 {dimension_numbers = #tpu.dot_dimension_numbers<[1], [0], [0], [1], [0, 0, 1, 1], [], []>} : vector<256x4xf32>, vector<4x2xf32>, vector<256x2xf32> -> vector<256x2xf32>
    %17 = arith.addf %8, %16 : vector<256x2xf32>
    %c0_22 = arith.constant 0 : index
    %c0_23 = arith.constant 0 : index
    %c0_24 = arith.constant 0 : index
    %18 = vector.load %arg5[%c0_22, %c0_23, %c0_24] : memref<9x4x2xf32, #tpu.memory_space<vmem>>, vector<1x4x2xf32>
    %19 = vector.shape_cast %18 : vector<1x4x2xf32> to vector<4x2xf32>
    %cst_25 = arith.constant dense<0.000000e+00> : vector<256x2xf32>
    %20 = tpu.matmul %13, %19, %cst_25 {dimension_numbers = #tpu.dot_dimension_numbers<[1], [0], [0], [1], [0, 0, 1, 1], [], []>} : vector<256x4xf32>, vector<4x2xf32>, vector<256x2xf32> -> vector<256x2xf32>
    %21 = arith.addf %17, %20 : vector<256x2xf32>
    %c0_26 = arith.constant 0 : index
    %c0_27 = arith.constant 0 : index
    %c1_28 = arith.constant 1 : index
    %c0_29 = arith.constant 0 : index
    %22 = vector.load %arg1[%c0_26, %c0_27, %c1_28, %c0_29] : memref<1x18x18x4xf32, #tpu.memory_space<vmem>>, vector<1x16x16x4xf32>
    %23 = vector.shape_cast %22 : vector<1x16x16x4xf32> to vector<16x16x4xf32>
    %24 = vector.shape_cast %23 : vector<16x16x4xf32> to vector<256x4xf32>
    %c0_30 = arith.constant 0 : index
    %c1_31 = arith.constant 1 : index
    %c0_32 = arith.constant 0 : index
    %25 = vector.load %arg8[%c0_30, %c1_31, %c0_32] : memref<18x18x4xf32, #tpu.memory_space<vmem>>, vector<16x16x4xf32>
    %26 = vector.shape_cast %25 : vector<16x16x4xf32> to vector<256x4xf32>
    %c1_33 = arith.constant 1 : index
    %c0_34 = arith.constant 0 : index
    %c0_35 = arith.constant 0 : index
    %27 = vector.load %arg4[%c1_33, %c0_34, %c0_35] : memref<9x4x2xf32, #tpu.memory_space<vmem>>, vector<1x4x2xf32>
    %28 = vector.shape_cast %27 : vector<1x4x2xf32> to vector<4x2xf32>
    %cst_36 = arith.constant dense<0.000000e+00> : vector<256x2xf32>
    %29 = tpu.matmul %24, %28, %cst_36 {dimension_numbers = #tpu.dot_dimension_numbers<[1], [0], [0], [1], [0, 0, 1, 1], [], []>} : vector<256x4xf32>, vector<4x2xf32>, vector<256x2xf32> -> vector<256x2xf32>
    %30 = arith.addf %21, %29 : vector<256x2xf32>
    %c1_37 = arith.constant 1 : index
    %c0_38 = arith.constant 0 : index
    %c0_39 = arith.constant 0 : index
    %31 = vector.load %arg5[%c1_37, %c0_38, %c0_39] : memref<9x4x2xf32, #tpu.memory_space<vmem>>, vector<1x4x2xf32>
    %32 = vector.shape_cast %31 : vector<1x4x2xf32> to vector<4x2xf32>
    %cst_40 = arith.constant dense<0.000000e+00> : vector<256x2xf32>
    %33 = tpu.matmul %26, %32, %cst_40 {dimension_numbers = #tpu.dot_dimension_numbers<[1], [0], [0], [1], [0, 0, 1, 1], [], []>} : vector<256x4xf32>, vector<4x2xf32>, vector<256x2xf32> -> vector<256x2xf32>
    %34 = arith.addf %30, %33 : vector<256x2xf32>
    %c0_41 = arith.constant 0 : index
    %c0_42 = arith.constant 0 : index
    %c2 = arith.constant 2 : index
    %c0_43 = arith.constant 0 : index
    %35 = vector.load %arg1[%c0_41, %c0_42, %c2, %c0_43] : memref<1x18x18x4xf32, #tpu.memory_space<vmem>>, vector<1x16x16x4xf32>
    %36 = vector.shape_cast %35 : vector<1x16x16x4xf32> to vector<16x16x4xf32>
    %37 = vector.shape_cast %36 : vector<16x16x4xf32> to vector<256x4xf32>
    %c0_44 = arith.constant 0 : index
    %c2_45 = arith.constant 2 : index
    %c0_46 = arith.constant 0 : index
    %38 = vector.load %arg8[%c0_44, %c2_45, %c0_46] : memref<18x18x4xf32, #tpu.memory_space<vmem>>, vector<16x16x4xf32>
    %39 = vector.shape_cast %38 : vector<16x16x4xf32> to vector<256x4xf32>
    %c2_47 = arith.constant 2 : index
    %c0_48 = arith.constant 0 : index
    %c0_49 = arith.constant 0 : index
    %40 = vector.load %arg4[%c2_47, %c0_48, %c0_49] : memref<9x4x2xf32, #tpu.memory_space<vmem>>, vector<1x4x2xf32>
    %41 = vector.shape_cast %40 : vector<1x4x2xf32> to vector<4x2xf32>
    %cst_50 = arith.constant dense<0.000000e+00> : vector<256x2xf32>
    %42 = tpu.matmul %37, %41, %cst_50 {dimension_numbers = #tpu.dot_dimension_numbers<[1], [0], [0], [1], [0, 0, 1, 1], [], []>} : vector<256x4xf32>, vector<4x2xf32>, vector<256x2xf32> -> vector<256x2xf32>
    %43 = arith.addf %34, %42 : vector<256x2xf32>
    %c2_51 = arith.constant 2 : index
    %c0_52 = arith.constant 0 : index
    %c0_53 = arith.constant 0 : index
    %44 = vector.load %arg5[%c2_51, %c0_52, %c0_53] : memref<9x4x2xf32, #tpu.memory_space<vmem>>, vector<1x4x2xf32>
    %45 = vector.shape_cast %44 : vector<1x4x2xf32> to vector<4x2xf32>
    %cst_54 = arith.constant dense<0.000000e+00> : vector<256x2xf32>
    %46 = tpu.matmul %39, %45, %cst_54 {dimension_numbers = #tpu.dot_dimension_numbers<[1], [0], [0], [1], [0, 0, 1, 1], [], []>} : vector<256x4xf32>, vector<4x2xf32>, vector<256x2xf32> -> vector<256x2xf32>
    %47 = arith.addf %43, %46 : vector<256x2xf32>
    %c0_55 = arith.constant 0 : index
    %c1_56 = arith.constant 1 : index
    %c0_57 = arith.constant 0 : index
    %c0_58 = arith.constant 0 : index
    %48 = vector.load %arg1[%c0_55, %c1_56, %c0_57, %c0_58] : memref<1x18x18x4xf32, #tpu.memory_space<vmem>>, vector<1x16x16x4xf32>
    %49 = vector.shape_cast %48 : vector<1x16x16x4xf32> to vector<16x16x4xf32>
    %50 = vector.shape_cast %49 : vector<16x16x4xf32> to vector<256x4xf32>
    %c1_59 = arith.constant 1 : index
    %c0_60 = arith.constant 0 : index
    %c0_61 = arith.constant 0 : index
    %51 = vector.load %arg8[%c1_59, %c0_60, %c0_61] : memref<18x18x4xf32, #tpu.memory_space<vmem>>, vector<16x16x4xf32>
    %52 = vector.shape_cast %51 : vector<16x16x4xf32> to vector<256x4xf32>
    %c3 = arith.constant 3 : index
    %c0_62 = arith.constant 0 : index
    %c0_63 = arith.constant 0 : index
    %53 = vector.load %arg4[%c3, %c0_62, %c0_63] : memref<9x4x2xf32, #tpu.memory_space<vmem>>, vector<1x4x2xf32>
    %54 = vector.shape_cast %53 : vector<1x4x2xf32> to vector<4x2xf32>
    %cst_64 = arith.constant dense<0.000000e+00> : vector<256x2xf32>
    %55 = tpu.matmul %50, %54, %cst_64 {dimension_numbers = #tpu.dot_dimension_numbers<[1], [0], [0], [1], [0, 0, 1, 1], [], []>} : vector<256x4xf32>, vector<4x2xf32>, vector<256x2xf32> -> vector<256x2xf32>
    %56 = arith.addf %47, %55 : vector<256x2xf32>
    %c3_65 = arith.constant 3 : index
    %c0_66 = arith.constant 0 : index
    %c0_67 = arith.constant 0 : index
    %57 = vector.load %arg5[%c3_65, %c0_66, %c0_67] : memref<9x4x2xf32, #tpu.memory_space<vmem>>, vector<1x4x2xf32>
    %58 = vector.shape_cast %57 : vector<1x4x2xf32> to vector<4x2xf32>
    %cst_68 = arith.constant dense<0.000000e+00> : vector<256x2xf32>
    %59 = tpu.matmul %52, %58, %cst_68 {dimension_numbers = #tpu.dot_dimension_numbers<[1], [0], [0], [1], [0, 0, 1, 1], [], []>} : vector<256x4xf32>, vector<4x2xf32>, vector<256x2xf32> -> vector<256x2xf32>
    %60 = arith.addf %56, %59 : vector<256x2xf32>
    %c0_69 = arith.constant 0 : index
    %c1_70 = arith.constant 1 : index
    %c1_71 = arith.constant 1 : index
    %c0_72 = arith.constant 0 : index
    %61 = vector.load %arg1[%c0_69, %c1_70, %c1_71, %c0_72] : memref<1x18x18x4xf32, #tpu.memory_space<vmem>>, vector<1x16x16x4xf32>
    %62 = vector.shape_cast %61 : vector<1x16x16x4xf32> to vector<16x16x4xf32>
    %63 = vector.shape_cast %62 : vector<16x16x4xf32> to vector<256x4xf32>
    %c1_73 = arith.constant 1 : index
    %c1_74 = arith.constant 1 : index
    %c0_75 = arith.constant 0 : index
    %64 = vector.load %arg8[%c1_73, %c1_74, %c0_75] : memref<18x18x4xf32, #tpu.memory_space<vmem>>, vector<16x16x4xf32>
    %65 = vector.shape_cast %64 : vector<16x16x4xf32> to vector<256x4xf32>
    %c4 = arith.constant 4 : index
    %c0_76 = arith.constant 0 : index
    %c0_77 = arith.constant 0 : index
    %66 = vector.load %arg4[%c4, %c0_76, %c0_77] : memref<9x4x2xf32, #tpu.memory_space<vmem>>, vector<1x4x2xf32>
    %67 = vector.shape_cast %66 : vector<1x4x2xf32> to vector<4x2xf32>
    %cst_78 = arith.constant dense<0.000000e+00> : vector<256x2xf32>
    %68 = tpu.matmul %63, %67, %cst_78 {dimension_numbers = #tpu.dot_dimension_numbers<[1], [0], [0], [1], [0, 0, 1, 1], [], []>} : vector<256x4xf32>, vector<4x2xf32>, vector<256x2xf32> -> vector<256x2xf32>
    %69 = arith.addf %60, %68 : vector<256x2xf32>
    %c4_79 = arith.constant 4 : index
    %c0_80 = arith.constant 0 : index
    %c0_81 = arith.constant 0 : index
    %70 = vector.load %arg5[%c4_79, %c0_80, %c0_81] : memref<9x4x2xf32, #tpu.memory_space<vmem>>, vector<1x4x2xf32>
    %71 = vector.shape_cast %70 : vector<1x4x2xf32> to vector<4x2xf32>
    %cst_82 = arith.constant dense<0.000000e+00> : vector<256x2xf32>
    %72 = tpu.matmul %65, %71, %cst_82 {dimension_numbers = #tpu.dot_dimension_numbers<[1], [0], [0], [1], [0, 0, 1, 1], [], []>} : vector<256x4xf32>, vector<4x2xf32>, vector<256x2xf32> -> vector<256x2xf32>
    %73 = arith.addf %69, %72 : vector<256x2xf32>
    %c0_83 = arith.constant 0 : index
    %c1_84 = arith.constant 1 : index
    %c2_85 = arith.constant 2 : index
    %c0_86 = arith.constant 0 : index
    %74 = vector.load %arg1[%c0_83, %c1_84, %c2_85, %c0_86] : memref<1x18x18x4xf32, #tpu.memory_space<vmem>>, vector<1x16x16x4xf32>
    %75 = vector.shape_cast %74 : vector<1x16x16x4xf32> to vector<16x16x4xf32>
    %76 = vector.shape_cast %75 : vector<16x16x4xf32> to vector<256x4xf32>
    %c1_87 = arith.constant 1 : index
    %c2_88 = arith.constant 2 : index
    %c0_89 = arith.constant 0 : index
    %77 = vector.load %arg8[%c1_87, %c2_88, %c0_89] : memref<18x18x4xf32, #tpu.memory_space<vmem>>, vector<16x16x4xf32>
    %78 = vector.shape_cast %77 : vector<16x16x4xf32> to vector<256x4xf32>
    %c5 = arith.constant 5 : index
    %c0_90 = arith.constant 0 : index
    %c0_91 = arith.constant 0 : index
    %79 = vector.load %arg4[%c5, %c0_90, %c0_91] : memref<9x4x2xf32, #tpu.memory_space<vmem>>, vector<1x4x2xf32>
    %80 = vector.shape_cast %79 : vector<1x4x2xf32> to vector<4x2xf32>
    %cst_92 = arith.constant dense<0.000000e+00> : vector<256x2xf32>
    %81 = tpu.matmul %76, %80, %cst_92 {dimension_numbers = #tpu.dot_dimension_numbers<[1], [0], [0], [1], [0, 0, 1, 1], [], []>} : vector<256x4xf32>, vector<4x2xf32>, vector<256x2xf32> -> vector<256x2xf32>
    %82 = arith.addf %73, %81 : vector<256x2xf32>
    %c5_93 = arith.constant 5 : index
    %c0_94 = arith.constant 0 : index
    %c0_95 = arith.constant 0 : index
    %83 = vector.load %arg5[%c5_93, %c0_94, %c0_95] : memref<9x4x2xf32, #tpu.memory_space<vmem>>, vector<1x4x2xf32>
    %84 = vector.shape_cast %83 : vector<1x4x2xf32> to vector<4x2xf32>
    %cst_96 = arith.constant dense<0.000000e+00> : vector<256x2xf32>
    %85 = tpu.matmul %78, %84, %cst_96 {dimension_numbers = #tpu.dot_dimension_numbers<[1], [0], [0], [1], [0, 0, 1, 1], [], []>} : vector<256x4xf32>, vector<4x2xf32>, vector<256x2xf32> -> vector<256x2xf32>
    %86 = arith.addf %82, %85 : vector<256x2xf32>
    %c0_97 = arith.constant 0 : index
    %c2_98 = arith.constant 2 : index
    %c0_99 = arith.constant 0 : index
    %c0_100 = arith.constant 0 : index
    %87 = vector.load %arg1[%c0_97, %c2_98, %c0_99, %c0_100] : memref<1x18x18x4xf32, #tpu.memory_space<vmem>>, vector<1x16x16x4xf32>
    %88 = vector.shape_cast %87 : vector<1x16x16x4xf32> to vector<16x16x4xf32>
    %89 = vector.shape_cast %88 : vector<16x16x4xf32> to vector<256x4xf32>
    %c2_101 = arith.constant 2 : index
    %c0_102 = arith.constant 0 : index
    %c0_103 = arith.constant 0 : index
    %90 = vector.load %arg8[%c2_101, %c0_102, %c0_103] : memref<18x18x4xf32, #tpu.memory_space<vmem>>, vector<16x16x4xf32>
    %91 = vector.shape_cast %90 : vector<16x16x4xf32> to vector<256x4xf32>
    %c6 = arith.constant 6 : index
    %c0_104 = arith.constant 0 : index
    %c0_105 = arith.constant 0 : index
    %92 = vector.load %arg4[%c6, %c0_104, %c0_105] : memref<9x4x2xf32, #tpu.memory_space<vmem>>, vector<1x4x2xf32>
    %93 = vector.shape_cast %92 : vector<1x4x2xf32> to vector<4x2xf32>
    %cst_106 = arith.constant dense<0.000000e+00> : vector<256x2xf32>
    %94 = tpu.matmul %89, %93, %cst_106 {dimension_numbers = #tpu.dot_dimension_numbers<[1], [0], [0], [1], [0, 0, 1, 1], [], []>} : vector<256x4xf32>, vector<4x2xf32>, vector<256x2xf32> -> vector<256x2xf32>
    %95 = arith.addf %86, %94 : vector<256x2xf32>
    %c6_107 = arith.constant 6 : index
    %c0_108 = arith.constant 0 : index
    %c0_109 = arith.constant 0 : index
    %96 = vector.load %arg5[%c6_107, %c0_108, %c0_109] : memref<9x4x2xf32, #tpu.memory_space<vmem>>, vector<1x4x2xf32>
    %97 = vector.shape_cast %96 : vector<1x4x2xf32> to vector<4x2xf32>
    %cst_110 = arith.constant dense<0.000000e+00> : vector<256x2xf32>
    %98 = tpu.matmul %91, %97, %cst_110 {dimension_numbers = #tpu.dot_dimension_numbers<[1], [0], [0], [1], [0, 0, 1, 1], [], []>} : vector<256x4xf32>, vector<4x2xf32>, vector<256x2xf32> -> vector<256x2xf32>
    %99 = arith.addf %95, %98 : vector<256x2xf32>
    %c0_111 = arith.constant 0 : index
    %c2_112 = arith.constant 2 : index
    %c1_113 = arith.constant 1 : index
    %c0_114 = arith.constant 0 : index
    %100 = vector.load %arg1[%c0_111, %c2_112, %c1_113, %c0_114] : memref<1x18x18x4xf32, #tpu.memory_space<vmem>>, vector<1x16x16x4xf32>
    %101 = vector.shape_cast %100 : vector<1x16x16x4xf32> to vector<16x16x4xf32>
    %102 = vector.shape_cast %101 : vector<16x16x4xf32> to vector<256x4xf32>
    %c2_115 = arith.constant 2 : index
    %c1_116 = arith.constant 1 : index
    %c0_117 = arith.constant 0 : index
    %103 = vector.load %arg8[%c2_115, %c1_116, %c0_117] : memref<18x18x4xf32, #tpu.memory_space<vmem>>, vector<16x16x4xf32>
    %104 = vector.shape_cast %103 : vector<16x16x4xf32> to vector<256x4xf32>
    %c7 = arith.constant 7 : index
    %c0_118 = arith.constant 0 : index
    %c0_119 = arith.constant 0 : index
    %105 = vector.load %arg4[%c7, %c0_118, %c0_119] : memref<9x4x2xf32, #tpu.memory_space<vmem>>, vector<1x4x2xf32>
    %106 = vector.shape_cast %105 : vector<1x4x2xf32> to vector<4x2xf32>
    %cst_120 = arith.constant dense<0.000000e+00> : vector<256x2xf32>
    %107 = tpu.matmul %102, %106, %cst_120 {dimension_numbers = #tpu.dot_dimension_numbers<[1], [0], [0], [1], [0, 0, 1, 1], [], []>} : vector<256x4xf32>, vector<4x2xf32>, vector<256x2xf32> -> vector<256x2xf32>
    %108 = arith.addf %99, %107 : vector<256x2xf32>
    %c7_121 = arith.constant 7 : index
    %c0_122 = arith.constant 0 : index
    %c0_123 = arith.constant 0 : index
    %109 = vector.load %arg5[%c7_121, %c0_122, %c0_123] : memref<9x4x2xf32, #tpu.memory_space<vmem>>, vector<1x4x2xf32>
    %110 = vector.shape_cast %109 : vector<1x4x2xf32> to vector<4x2xf32>
    %cst_124 = arith.constant dense<0.000000e+00> : vector<256x2xf32>
    %111 = tpu.matmul %104, %110, %cst_124 {dimension_numbers = #tpu.dot_dimension_numbers<[1], [0], [0], [1], [0, 0, 1, 1], [], []>} : vector<256x4xf32>, vector<4x2xf32>, vector<256x2xf32> -> vector<256x2xf32>
    %112 = arith.addf %108, %111 : vector<256x2xf32>
    %c0_125 = arith.constant 0 : index
    %c2_126 = arith.constant 2 : index
    %c2_127 = arith.constant 2 : index
    %c0_128 = arith.constant 0 : index
    %113 = vector.load %arg1[%c0_125, %c2_126, %c2_127, %c0_128] : memref<1x18x18x4xf32, #tpu.memory_space<vmem>>, vector<1x16x16x4xf32>
    %114 = vector.shape_cast %113 : vector<1x16x16x4xf32> to vector<16x16x4xf32>
    %115 = vector.shape_cast %114 : vector<16x16x4xf32> to vector<256x4xf32>
    %c2_129 = arith.constant 2 : index
    %c2_130 = arith.constant 2 : index
    %c0_131 = arith.constant 0 : index
    %116 = vector.load %arg8[%c2_129, %c2_130, %c0_131] : memref<18x18x4xf32, #tpu.memory_space<vmem>>, vector<16x16x4xf32>
    %117 = vector.shape_cast %116 : vector<16x16x4xf32> to vector<256x4xf32>
    %c8 = arith.constant 8 : index
    %c0_132 = arith.constant 0 : index
    %c0_133 = arith.constant 0 : index
    %118 = vector.load %arg4[%c8, %c0_132, %c0_133] : memref<9x4x2xf32, #tpu.memory_space<vmem>>, vector<1x4x2xf32>
    %119 = vector.shape_cast %118 : vector<1x4x2xf32> to vector<4x2xf32>
    %cst_134 = arith.constant dense<0.000000e+00> : vector<256x2xf32>
    %120 = tpu.matmul %115, %119, %cst_134 {dimension_numbers = #tpu.dot_dimension_numbers<[1], [0], [0], [1], [0, 0, 1, 1], [], []>} : vector<256x4xf32>, vector<4x2xf32>, vector<256x2xf32> -> vector<256x2xf32>
    %121 = arith.addf %112, %120 : vector<256x2xf32>
    %c8_135 = arith.constant 8 : index
    %c0_136 = arith.constant 0 : index
    %c0_137 = arith.constant 0 : index
    %122 = vector.load %arg5[%c8_135, %c0_136, %c0_137] : memref<9x4x2xf32, #tpu.memory_space<vmem>>, vector<1x4x2xf32>
    %123 = vector.shape_cast %122 : vector<1x4x2xf32> to vector<4x2xf32>
    %cst_138 = arith.constant dense<0.000000e+00> : vector<256x2xf32>
    %124 = tpu.matmul %117, %123, %cst_138 {dimension_numbers = #tpu.dot_dimension_numbers<[1], [0], [0], [1], [0, 0, 1, 1], [], []>} : vector<256x4xf32>, vector<4x2xf32>, vector<256x2xf32> -> vector<256x2xf32>
    %125 = arith.addf %121, %124 : vector<256x2xf32>
    %c0_139 = arith.constant 0 : index
    %c0_140 = arith.constant 0 : index
    %126 = vector.load %arg6[%c0_139, %c0_140] : memref<256x2xf32, #tpu.memory_space<vmem>>, vector<256x2xf32>
    %cst_141 = arith.constant 5.000000e-01 : f32
    %127 = vector.broadcast %cst_141 : f32 to vector<256x2xf32>
    %128 = arith.mulf %127, %125 : vector<256x2xf32>
    %129 = arith.addf %126, %128 : vector<256x2xf32>
    %c0_142 = arith.constant 0 : index
    %c0_143 = arith.constant 0 : index
    %c0_144 = arith.constant 0 : index
    %130 = vector.load %arg7[%c0_142, %c0_143, %c0_144] : memref<1x256x2xf32, #tpu.memory_space<vmem>>, vector<1x256x2xf32>
    %131 = vector.shape_cast %130 : vector<1x256x2xf32> to vector<256x2xf32>
    %132 = vector.shape_cast %129 : vector<256x2xf32> to vector<1x256x2xf32>
    tpu.vector_store %arg7[%c0_142, %c0_143, %c0_144], %132 {strides = array<i32>} : memref<1x256x2xf32, #tpu.memory_space<vmem>>, vector<1x256x2xf32>,
    return
  }
  func.func @transform_0(%arg0: i32) -> (i32, i32, i32, i32) {
    %c0_i32 = arith.constant 0 : i32
    %c0_i32_0 = arith.constant 0 : i32
    %c0_i32_1 = arith.constant 0 : i32
    %c0_i32_2 = arith.constant 0 : i32
    return %arg0, %c0_i32, %c0_i32_0, %c0_i32_1 : i32, i32, i32, i32
  }
  func.func @transform_1(%arg0: i32) -> (i32, i32, i32) {
    %c0_i32 = arith.constant 0 : i32
    %c0_i32_0 = arith.constant 0 : i32
    %c0_i32_1 = arith.constant 0 : i32
    return %arg0, %c0_i32, %c0_i32_0 : i32, i32, i32
  }
  func.func @transform_2(%arg0: i32) -> (i32, i32) {
    %c0_i32 = arith.constant 0 : i32
    %c0_i32_0 = arith.constant 0 : i32
    %c0_i32_1 = arith.constant 0 : i32
    return %c0_i32, %c0_i32_0 : i32, i32
  }
  func.func @transform_3(%arg0: i32) -> (i32, i32, i32) {
    %c0_i32 = arith.constant 0 : i32
    %c0_i32_0 = arith.constant 0 : i32
    %c0_i32_1 = arith.constant 0 : i32
    %c0_i32_2 = arith.constant 0 : i32
    return %c0_i32, %c0_i32_0, %c0_i32_1 : i32, i32, i32
  }
  func.func @transform_4(%arg0: i32) -> (i32, i32, i32) {
    %c0_i32 = arith.constant 0 : i32
    %c0_i32_0 = arith.constant 0 : i32
    %c0_i32_1 = arith.constant 0 : i32
    %c0_i32_2 = arith.constant 0 : i32
    return %c0_i32, %c0_i32_0, %c0_i32_1 : i32, i32, i32
  }
  func.func @transform_5(%arg0: i32) -> (i32, i32) {
    %c0_i32 = arith.constant 0 : i32
    %c0_i32_0 = arith.constant 0 : i32
    %c0_i32_1 = arith.constant 0 : i32
    return %c0_i32, %c0_i32_0 : i32, i32
  }
  func.func @transform_6(%arg0: i32) -> (i32, i32, i32) {
    %c0_i32 = arith.constant 0 : i32
    %c0_i32_0 = arith.constant 0 : i32
    %c0_i32_1 = arith.constant 0 : i32
    return %arg0, %c0_i32, %c0_i32_0 : i32, i32, i32
  }
}

module attributes {stable_mosaic.version = 11 : i64} {
  func.func @warp_edge_kernel(%arg0: i32, %arg1: i32, %arg2: i32, %arg3: memref<1x256x2xf32, #tpu.memory_space<vmem>>, %arg4: memref<1x16x64xf32, #tpu.memory_space<vmem>>, %arg5: memref<1x4x256xf32, #tpu.memory_space<vmem>>, %arg6: memref<64x4xf32, #tpu.memory_space<vmem>>, %arg7: memref<1x4x256xf32, #tpu.memory_space<vmem>>, %arg8: memref<1x4x256xf32, #tpu.memory_space<vmem>>) attributes {dimension_semantics = [#tpu.dimension_semantics<parallel>, #tpu.dimension_semantics<parallel>, #tpu.dimension_semantics<parallel>], iteration_bounds = array<i64: 2, 1, 1>, scalar_prefetch = 0 : i64, scratch_operands = 0 : i64, tpu.core_type = #tpu.core_type<tc>, window_params = [{transform_indices = @transform_0, window_bounds = array<i64: 1, 256, 2>}, {transform_indices = @transform_1, window_bounds = array<i64: 1, 16, 64>}, {transform_indices = @transform_2, window_bounds = array<i64: 1, 4, 256>}, {pipeline_mode = #tpu.pipeline_mode<synchronous>, transform_indices = @transform_3, window_bounds = array<i64: 64, 4>}, {transform_indices = @transform_4, window_bounds = array<i64: 1, 4, 256>}, {transform_indices = @transform_5, window_bounds = array<i64: 1, 4, 256>}]} {
    %c0 = arith.constant 0 : index
    %c0_0 = arith.constant 0 : index
    %c0_1 = arith.constant 0 : index
    %0 = vector.load %arg3[%c0, %c0_0, %c0_1] : memref<1x256x2xf32, #tpu.memory_space<vmem>>, vector<1x256x1xf32>
    %1 = vector.shape_cast %0 : vector<1x256x1xf32> to vector<256x1xf32>
    %c0_2 = arith.constant 0 : index
    %c0_3 = arith.constant 0 : index
    %c1 = arith.constant 1 : index
    %2 = vector.load %arg3[%c0_2, %c0_3, %c1] : memref<1x256x2xf32, #tpu.memory_space<vmem>>, vector<1x256x1xf32>
    %3 = vector.shape_cast %2 : vector<1x256x1xf32> to vector<256x1xf32>
    %4 = math.floor %1 : vector<256x1xf32>
    %5 = math.floor %3 : vector<256x1xf32>
    %6 = arith.subf %1, %4 : vector<256x1xf32>
    %7 = arith.subf %3, %5 : vector<256x1xf32>
    %8 = arith.fptosi %4 : vector<256x1xf32> to vector<256x1xi32>
    %9 = arith.fptosi %5 : vector<256x1xf32> to vector<256x1xi32>
    %10 = tpu.iota {dimensions = array<i32: 1>} : vector<256x16xi32>
    %11 = tpu.iota {dimensions = array<i32: 1>} : vector<256x16xi32>
    %12 = vector.broadcast %9 : vector<256x1xi32> to vector<256x16xi32>
    %13 = arith.cmpi eq, %10, %12 : vector<256x16xi32>
    %cst = arith.constant 1.000000e+00 : f32
    %14 = vector.broadcast %cst : f32 to vector<256x1xf32>
    %15 = arith.subf %14, %7 : vector<256x1xf32>
    %cst_4 = arith.constant 0.000000e+00 : f32
    %16 = vector.shape_cast %15 : vector<256x1xf32> to vector<256x1xf32>
    %17 = vector.broadcast %16 : vector<256x1xf32> to vector<256x16xf32>
    %18 = vector.broadcast %cst_4 : f32 to vector<256x16xf32>
    %19 = arith.select %13, %17, %18 : vector<256x16xi1>, vector<256x16xf32>
    %c1_i32 = arith.constant 1 : i32
    %20 = vector.broadcast %c1_i32 : i32 to vector<256x1xi32>
    %21 = arith.addi %9, %20 : vector<256x1xi32>
    %22 = vector.broadcast %21 : vector<256x1xi32> to vector<256x16xi32>
    %23 = arith.cmpi eq, %10, %22 : vector<256x16xi32>
    %cst_5 = arith.constant 0.000000e+00 : f32
    %24 = vector.shape_cast %7 : vector<256x1xf32> to vector<256x1xf32>
    %25 = vector.broadcast %24 : vector<256x1xf32> to vector<256x16xf32>
    %26 = vector.broadcast %cst_5 : f32 to vector<256x16xf32>
    %27 = arith.select %23, %25, %26 : vector<256x16xi1>, vector<256x16xf32>
    %28 = arith.addf %19, %27 : vector<256x16xf32>
    %29 = vector.broadcast %8 : vector<256x1xi32> to vector<256x16xi32>
    %30 = arith.cmpi eq, %11, %29 : vector<256x16xi32>
    %cst_6 = arith.constant 1.000000e+00 : f32
    %31 = vector.broadcast %cst_6 : f32 to vector<256x1xf32>
    %32 = arith.subf %31, %6 : vector<256x1xf32>
    %cst_7 = arith.constant 0.000000e+00 : f32
    %33 = vector.shape_cast %32 : vector<256x1xf32> to vector<256x1xf32>
    %34 = vector.broadcast %33 : vector<256x1xf32> to vector<256x16xf32>
    %35 = vector.broadcast %cst_7 : f32 to vector<256x16xf32>
    %36 = arith.select %30, %34, %35 : vector<256x16xi1>, vector<256x16xf32>
    %c1_i32_8 = arith.constant 1 : i32
    %37 = vector.broadcast %c1_i32_8 : i32 to vector<256x1xi32>
    %38 = arith.addi %8, %37 : vector<256x1xi32>
    %39 = vector.broadcast %38 : vector<256x1xi32> to vector<256x16xi32>
    %40 = arith.cmpi eq, %11, %39 : vector<256x16xi32>
    %cst_9 = arith.constant 0.000000e+00 : f32
    %41 = vector.shape_cast %6 : vector<256x1xf32> to vector<256x1xf32>
    %42 = vector.broadcast %41 : vector<256x1xf32> to vector<256x16xf32>
    %43 = vector.broadcast %cst_9 : f32 to vector<256x16xf32>
    %44 = arith.select %40, %42, %43 : vector<256x16xi1>, vector<256x16xf32>
    %45 = arith.addf %36, %44 : vector<256x16xf32>
    %c0_10 = arith.constant 0 : index
    %c0_11 = arith.constant 0 : index
    %c0_12 = arith.constant 0 : index
    %46 = vector.load %arg4[%c0_10, %c0_11, %c0_12] : memref<1x16x64xf32, #tpu.memory_space<vmem>>, vector<1x16x64xf32>
    %47 = vector.shape_cast %46 : vector<1x16x64xf32> to vector<16x64xf32>
    %cst_13 = arith.constant dense<0.000000e+00> : vector<256x64xf32>
    %48 = tpu.matmul %28, %47, %cst_13 {dimension_numbers = #tpu.dot_dimension_numbers<[1], [0], [0], [1], [0, 0, 1, 1], [], []>} : vector<256x16xf32>, vector<16x64xf32>, vector<256x64xf32> -> vector<256x64xf32>
    %49 = tpu.concatenate %45, %45, %45, %45 in 1 : vector<256x16xf32>, vector<256x16xf32>, vector<256x16xf32>, vector<256x16xf32> -> vector<256x64xf32>
    %50 = arith.mulf %48, %49 : vector<256x64xf32>
    %c0_14 = arith.constant 0 : index
    %c0_15 = arith.constant 0 : index
    %51 = vector.load %arg6[%c0_14, %c0_15] : memref<64x4xf32, #tpu.memory_space<vmem>>, vector<64x4xf32>
    %cst_16 = arith.constant dense<0.000000e+00> : vector<256x4xf32>
    %52 = tpu.matmul %50, %51, %cst_16 {dimension_numbers = #tpu.dot_dimension_numbers<[1], [0], [0], [1], [0, 0, 1, 1], [], []>} : vector<256x64xf32>, vector<64x4xf32>, vector<256x4xf32> -> vector<256x4xf32>
    %53 = tpu.transpose %52, [1, 0] : vector<256x4xf32> -> vector<4x256xf32>
    %c0_17 = arith.constant 0 : index
    %c0_18 = arith.constant 0 : index
    %c0_19 = arith.constant 0 : index
    %54 = vector.load %arg7[%c0_17, %c0_18, %c0_19] : memref<1x4x256xf32, #tpu.memory_space<vmem>>, vector<1x4x256xf32>
    %55 = vector.shape_cast %54 : vector<1x4x256xf32> to vector<4x256xf32>
    %56 = vector.shape_cast %53 : vector<4x256xf32> to vector<1x4x256xf32>
    tpu.vector_store %arg7[%c0_17, %c0_18, %c0_19], %56 {strides = array<i32>} : memref<1x4x256xf32, #tpu.memory_space<vmem>>, vector<1x4x256xf32>,
    %c0_20 = arith.constant 0 : index
    %c0_21 = arith.constant 0 : index
    %c0_22 = arith.constant 0 : index
    %57 = vector.load %arg5[%c0_20, %c0_21, %c0_22] : memref<1x4x256xf32, #tpu.memory_space<vmem>>, vector<1x4x256xf32>
    %58 = vector.shape_cast %57 : vector<1x4x256xf32> to vector<4x256xf32>
    %59 = arith.subf %58, %53 : vector<4x256xf32>
    %c0_23 = arith.constant 0 : index
    %c0_24 = arith.constant 0 : index
    %c0_25 = arith.constant 0 : index
    %60 = vector.load %arg8[%c0_23, %c0_24, %c0_25] : memref<1x4x256xf32, #tpu.memory_space<vmem>>, vector<1x4x256xf32>
    %61 = vector.shape_cast %60 : vector<1x4x256xf32> to vector<4x256xf32>
    %62 = vector.shape_cast %59 : vector<4x256xf32> to vector<1x4x256xf32>
    tpu.vector_store %arg8[%c0_23, %c0_24, %c0_25], %62 {strides = array<i32>} : memref<1x4x256xf32, #tpu.memory_space<vmem>>, vector<1x4x256xf32>,
    return
  }
  func.func @transform_0(%arg0: i32, %arg1: i32, %arg2: i32) -> (i32, i32, i32) {
    %c0_i32 = arith.constant 0 : i32
    %c0_i32_0 = arith.constant 0 : i32
    return %arg0, %arg1, %c0_i32 : i32, i32, i32
  }
  func.func @transform_1(%arg0: i32, %arg1: i32, %arg2: i32) -> (i32, i32, i32) {
    %c0_i32 = arith.constant 0 : i32
    %c0_i32_0 = arith.constant 0 : i32
    return %arg0, %c0_i32, %arg2 : i32, i32, i32
  }
  func.func @transform_2(%arg0: i32, %arg1: i32, %arg2: i32) -> (i32, i32, i32) {
    %c0_i32 = arith.constant 0 : i32
    return %arg0, %arg2, %arg1 : i32, i32, i32
  }
  func.func @transform_3(%arg0: i32, %arg1: i32, %arg2: i32) -> (i32, i32) {
    %c0_i32 = arith.constant 0 : i32
    %c0_i32_0 = arith.constant 0 : i32
    %c0_i32_1 = arith.constant 0 : i32
    return %c0_i32, %c0_i32_0 : i32, i32
  }
  func.func @transform_4(%arg0: i32, %arg1: i32, %arg2: i32) -> (i32, i32, i32) {
    %c0_i32 = arith.constant 0 : i32
    return %arg0, %arg2, %arg1 : i32, i32, i32
  }
  func.func @transform_5(%arg0: i32, %arg1: i32, %arg2: i32) -> (i32, i32, i32) {
    %c0_i32 = arith.constant 0 : i32
    return %arg0, %arg2, %arg1 : i32, i32, i32
  }
}

</mosaic_0001>

<llo_original>
// kernel: tile.8
$region0: #{tile.8}
  #allocation0 [shape = 's32[1]{0}', space=sflag, size = 0x4, scoped, tag = 'scoped memory for tile.8']
  %s0 = inlined_call_operand.vmem [shape: f32[16], index: 0, kind: input, shape index: {}]
  %s1 = inlined_call_operand.vmem [shape: f32[16,16], index: 1, kind: output, shape index: {}]
  // Predicated region
  $region2: #{tile.8} parent=0 // pred_check
    _
  $region3: #{tile.8} parent=0 // pred_check_branch
    %3 = sbr.rel (0) target = $region5
  $region4: #{tile.8} parent=0 // pred_region
    _
  $region5: #{tile.8} parent=0 // pred_fallthru
    _
  %v4 = vld [vmem:[%s0] ss:$0 sm:$0xff]
  %5 = vst [vmem:[%s1] sm:$0xff] %v4
  %s6 = scalar_lea.vmem %s1, 8
  %7 = vst [vmem:[%s6] sm:$0xff] %v4

// kernel: squeeze_body_edge_forward.5
$region0: #{squeeze_body_edge_forward.5}
  #allocation0 [shape = 'u32[]', space=smem, size = 0x4, offset = 0x4, fixed_abs, tag = 'smem constant byte address 0x4 - core index']
  #allocation1 [shape = 'u32[144,128]{1,0:T(1,128)}', space=vmem, size = 0x12000, scoped, tag = 'internal scratch']
  %s0 = inlined_call_operand.vmem [shape: f32[8,4,4,4], index: 0, kind: input, shape index: {}]
  %s1 = inlined_call_operand.vmem [shape: f32[9,4], index: 1, kind: input, shape index: {}]
  %s2 = inlined_call_operand.vmem [shape: f32[1,4], index: 2, kind: input, shape index: {}]
  %s3 = inlined_call_operand.vmem [shape: f32[1,4], index: 3, kind: input, shape index: {}]
  %s4 = inlined_call_operand.vmem [shape: f32[2,3,3,4], index: 4, kind: output, shape index: {}]
  %s5 = sld [smem:[#allocation0]]
  $region49: #{squeeze_body_edge_forward.5} parent=0
    _
  %s7 = ssub.s32 1, %s5
  %s8 = scalar_select 0, %s7, %s5
  loop: start=0, step=1, limit=4
  $region2: #{squeeze_body_edge_forward.5} parent=0 // loop_pre_header
    _
  $region3: #{squeeze_body_edge_forward.5} parent=0 // loop_header
    %s10 = sphi 0, %s14
    %p11 = scmp.ge.s32.totalorder %s10, 4
    %s17 = sphi 0, %s29
    %s18 = sphi 0, %s25
    %s19 = sphi 0, %s17
    %s20 = sphi 0, %s18
    %s21 = sphi 0, %s19
    %s22 = sphi 0, %s20
    %s34 = sphi 0, %s36
    %s37 = sphi 0, %s34
    %s38 = sphi 0, %s37
    %s54 = sphi 0, %s38
    %s60 = sphi 0, %s62
    %s63 = sphi 0, %s60
    %s64 = sphi 0, %s63
    %s80 = sphi 0, %s64
    %s86 = sphi 0, %s88
    %s89 = sphi 0, %s86
    %s90 = sphi 0, %s89
    %s106 = sphi 0, %s90
    %s112 = sphi 0, %s114
    %s115 = sphi 0, %s112
    %s116 = sphi 0, %s115
    %s132 = sphi 0, %s116
    %s140 = sphi 0, %s142
    %s143 = sphi 0, %s140
    %s144 = sphi 0, %s143
    %s160 = sphi 0, %s144
  $region4: #{squeeze_body_edge_forward.5} parent=0 // loop_header_branch
    %13 = sbr.rel (%p11) target = $region8
  $region5: #{squeeze_body_edge_forward.5} parent=0 // loop_body
    %s15 = ssub.s32 %s10, 1
    %s16 = ssub.s32 %s10, 2
    %s23 = sadd.s32 1, %s18
    %p24 = scmp.ge.s32.totalorder %s23, 1
    %s25 = scalar_select %p24, 0, %s23
    %s26 = sadd.s32 1, %s17
    %s27 = scalar_select %p24, %s26, %s17
    %p28 = scmp.ge.s32.totalorder %s27, 2
    %s29 = scalar_select %p28, 0, %s27
    %s30 = ssub.s32 %s17, %s29
    %s31 = ssub.s32 %s18, %s25
    %s32 = sor.u32 %s30, %s31
    %p33 = scmp.eq.s32.totalorder %s32, 0
    %s35 = sadd.s32 %s34, 1
    %s36 = scalar_select %p33, %s34, %s35
    %p39 = pneg %p33
    %p40 = scmp.eq.s32.totalorder %s10, 1
    %p41 = por %p39, %p40
    %p42 = scmp.ne.s32.totalorder %s34, %s37
    %p43 = scmp.eq.s32.totalorder %s10, 0
    %p44 = por %p42, %p43
    %p45 = scmp.ne.s32.totalorder %s34, %s37
    %p46 = scmp.eq.s32.totalorder %s15, 1
    %p47 = por %p45, %p46
    %p48 = scmp.ne.s32.totalorder %s37, %s38
    %p49 = scmp.eq.s32.totalorder %s15, 0
    %p50 = por %p48, %p49
    %p51 = scmp.ne.s32.totalorder %s37, %s38
    %p52 = scmp.eq.s32.totalorder %s16, 1
    %p53 = por %p51, %p52
    %p55 = scmp.ne.s32.totalorder %s38, %s54
    %p56 = scmp.eq.s32.totalorder %s16, 0
    %p57 = por %p55, %p56
    %s58 = ssub.s32 %s18, %s25
    %p59 = scmp.eq.s32.totalorder %s58, 0
    %s61 = sadd.s32 %s60, 1
    %s62 = scalar_select %p59, %s60, %s61
    %p65 = pneg %p59
    %p66 = scmp.eq.s32.totalorder %s10, 1
    %p67 = por %p65, %p66
    %p68 = scmp.ne.s32.totalorder %s60, %s63
    %p69 = scmp.eq.s32.totalorder %s10, 0
    %p70 = por %p68, %p69
    %p71 = scmp.ne.s32.totalorder %s60, %s63
    %p72 = scmp.eq.s32.totalorder %s15, 1
    %p73 = por %p71, %p72
    %p74 = scmp.ne.s32.totalorder %s63, %s64
    %p75 = scmp.eq.s32.totalorder %s15, 0
    %p76 = por %p74, %p75
    %p77 = scmp.ne.s32.totalorder %s63, %s64
    %p78 = scmp.eq.s32.totalorder %s16, 1
    %p79 = por %p77, %p78
    %p81 = scmp.ne.s32.totalorder %s64, %s80
    %p82 = scmp.eq.s32.totalorder %s16, 0
    %p83 = por %p81, %p82
    %s84 = ssub.s32 %s18, %s25
    %p85 = scmp.eq.s32.totalorder %s84, 0
    %s87 = sadd.s32 %s86, 1
    %s88 = scalar_select %p85, %s86, %s87
    %p91 = pneg %p85
    %p92 = scmp.eq.s32.totalorder %s10, 1
    %p93 = por %p91, %p92
    %p94 = scmp.ne.s32.totalorder %s86, %s89
    %p95 = scmp.eq.s32.totalorder %s10, 0
    %p96 = por %p94, %p95
    %p97 = scmp.ne.s32.totalorder %s86, %s89
    %p98 = scmp.eq.s32.totalorder %s15, 1
    %p99 = por %p97, %p98
    %p100 = scmp.ne.s32.totalorder %s89, %s90
    %p101 = scmp.eq.s32.totalorder %s15, 0
    %p102 = por %p100, %p101
    %p103 = scmp.ne.s32.totalorder %s89, %s90
    %p104 = scmp.eq.s32.totalorder %s16, 1
    %p105 = por %p103, %p104
    %p107 = scmp.ne.s32.totalorder %s90, %s106
    %p108 = scmp.eq.s32.totalorder %s16, 0
    %p109 = por %p107, %p108
    %s110 = ssub.s32 %s18, %s25
    %p111 = scmp.eq.s32.totalorder %s110, 0
    %s113 = sadd.s32 %s112, 1
    %s114 = scalar_select %p111, %s112, %s113
    %p117 = pneg %p111
    %p118 = scmp.eq.s32.totalorder %s10, 1
    %p119 = por %p117, %p118
    %p120 = scmp.ne.s32.totalorder %s112, %s115
    %p121 = scmp.eq.s32.totalorder %s10, 0
    %p122 = por %p120, %p121
    %p123 = scmp.ne.s32.totalorder %s112, %s115
    %p124 = scmp.eq.s32.totalorder %s15, 1
    %p125 = por %p123, %p124
    %p126 = scmp.ne.s32.totalorder %s115, %s116
    %p127 = scmp.eq.s32.totalorder %s15, 0
    %p128 = por %p126, %p127
    %p129 = scmp.ne.s32.totalorder %s115, %s116
    %p130 = scmp.eq.s32.totalorder %s16, 1
    %p131 = por %p129, %p130
    %p133 = scmp.ne.s32.totalorder %s116, %s132
    %p134 = scmp.eq.s32.totalorder %s16, 0
    %p135 = por %p133, %p134
    %s136 = ssub.s32 %s17, %s29
    %s137 = ssub.s32 %s18, %s25
    %s138 = sor.u32 %s136, %s137
    %p139 = scmp.eq.s32.totalorder %s138, 0
    %s141 = sadd.s32 %s140, 1
    %s142 = scalar_select %p139, %s140, %s141
    %p145 = pneg %p139
    %p146 = scmp.eq.s32.totalorder %s10, 1
    %p147 = por %p145, %p146
    %p148 = scmp.ne.s32.totalorder %s140, %s143
    %p149 = scmp.eq.s32.totalorder %s10, 0
    %p150 = por %p148, %p149
    %p151 = scmp.ne.s32.totalorder %s140, %s143
    %p152 = scmp.eq.s32.totalorder %s15, 1
    %p153 = por %p151, %p152
    %p154 = scmp.ne.s32.totalorder %s143, %s144
    %p155 = scmp.eq.s32.totalorder %s15, 0
    %p156 = por %p154, %p155
    %p157 = scmp.ne.s32.totalorder %s143, %s144
    %p158 = scmp.eq.s32.totalorder %s16, 1
    %p159 = por %p157, %p158
    %p161 = scmp.ne.s32.totalorder %s144, %s160
    %p162 = scmp.eq.s32.totalorder %s16, 0
    %p163 = por %p161, %p162
    %p164 = scmp.le.s32.totalorder 1, %s10
    %p165 = scmp.lt.s32.totalorder %s10, 3
    %p166 = pnand %p164, %p165
    %p167 = pneg %p166
    // Predicated region
    $region9: #{squeeze_body_edge_forward.5} parent=5 // pred_check
      _
    $region10: #{squeeze_body_edge_forward.5} parent=5 // pred_check_branch
      %169 = sbr.rel (%p166) target = $region12
    $region11: #{squeeze_body_edge_forward.5} parent=5 // pred_region
      %s170 = ssub.s32 %s10, 1
      // Predicated region
      $region13: #{squeeze_body_edge_forward.5} parent=11 // pred_check
        %p171 = pneg %p76
      $region14: #{squeeze_body_edge_forward.5} parent=11 // pred_check_branch
        %173 = sbr.rel (%p171) target = $region16
      $region15: #{squeeze_body_edge_forward.5} parent=11 // pred_region
        %p174 = scmp.lt.s32.totalorder %s20, 0
        %s175 = scalar_select %p174, %s20, 0
        %s176 = smul.addr %s175, 8
        %s177 = scalar_lea.vmem %s1, %s176
      $region16: #{squeeze_body_edge_forward.5} parent=11 // pred_fallthru
        _
      // Predicated region
      $region17: #{squeeze_body_edge_forward.5} parent=11 // pred_check
        %p178 = pneg %p102
      $region18: #{squeeze_body_edge_forward.5} parent=11 // pred_check_branch
        %180 = sbr.rel (%p178) target = $region20
      $region19: #{squeeze_body_edge_forward.5} parent=11 // pred_region
        %p181 = scmp.lt.s32.totalorder %s20, 0
        %s182 = scalar_select %p181, %s20, 0
        %s183 = scalar_lea.vmem %s2, %s182
      $region20: #{squeeze_body_edge_forward.5} parent=11 // pred_fallthru
        _
      // Predicated region
      $region21: #{squeeze_body_edge_forward.5} parent=11 // pred_check
        %p184 = pneg %p128
      $region22: #{squeeze_body_edge_forward.5} parent=11 // pred_check_branch
        %186 = sbr.rel (%p184) target = $region24
      $region23: #{squeeze_body_edge_forward.5} parent=11 // pred_region
        %p187 = scmp.lt.s32.totalorder %s20, 0
        %s188 = scalar_select %p187, %s20, 0
        %s189 = scalar_lea.vmem %s3, %s188
      $region24: #{squeeze_body_edge_forward.5} parent=11 // pred_fallthru
        _
    $region12: #{squeeze_body_edge_forward.5} parent=5 // pred_fallthru
      _
    %p190 = scmp.lt.s32.totalorder %s10, 2
    // Predicated region
    $region25: #{squeeze_body_edge_forward.5} parent=5 // pred_check
      %p191 = pneg %p190
    $region26: #{squeeze_body_edge_forward.5} parent=5 // pred_check_branch
      %193 = sbr.rel (%p191) target = $region28
    $region27: #{squeeze_body_edge_forward.5} parent=5 // pred_region
      // Predicated region
      $region29: #{squeeze_body_edge_forward.5} parent=27 // pred_check
        %p194 = pneg %p44
      $region30: #{squeeze_body_edge_forward.5} parent=27 // pred_check_branch
        %196 = sbr.rel (%p194) target = $region32
      $region31: #{squeeze_body_edge_forward.5} parent=27 // pred_region
        %s197 = smul.u32 4, %s17
        %p198 = scmp.lt.s32.totalorder %s197, 7
        %s199 = scalar_select %p198, %s197, 7
        %p200 = scmp.lt.s32.totalorder %s18, 0
        %s201 = scalar_select %p200, %s18, 0
        %s202 = smul.addr %s199, 4
        %s203 = sadd.s32 %s201, %s202
        %s204 = smul.addr %s203, 4
        %s205 = scalar_lea.vmem %s0, %s204
        %s206 = smul.u32 4, %s17
      $region32: #{squeeze_body_edge_forward.5} parent=27 // pred_fallthru
        _
    $region28: #{squeeze_body_edge_forward.5} parent=5 // pred_fallthru
      _
    %p207 = scmp.le.s32.totalorder 1, %s10
    %p208 = scmp.lt.s32.totalorder %s10, 3
    %p209 = pnand %p207, %p208
    %p210 = pneg %p209
    // Predicated region
    $region33: #{squeeze_body_edge_forward.5} parent=5 // pred_check
      _
    $region34: #{squeeze_body_edge_forward.5} parent=5 // pred_check_branch
      %212 = sbr.rel (%p209) target = $region36
    $region35: #{squeeze_body_edge_forward.5} parent=5 // pred_region
      %s213 = ssub.s32 %s10, 1
      %s214 = smul.u32 4, %s19
      %p215 = scmp.lt.s32.totalorder %s214, 7
      %s216 = scalar_select %p215, %s214, 7
      %p217 = scmp.lt.s32.totalorder %s20, 0
      %s218 = scalar_select %p217, %s20, 0
      %s219 = smul.addr %s216, 4
      %s220 = sadd.s32 %s218, %s219
      %s221 = smul.addr %s220, 4
      %s222 = scalar_lea.vmem %s0, %s221
      %p223 = pneg %p50
      %p224 = pneg %p47
      %p225 = scmp.lt.s32.totalorder %s20, 0
      %s226 = scalar_select %p225, %s20, 0
      %s227 = smul.addr %s226, 8
      %s228 = scalar_lea.vmem %s1, %s227
      %p229 = pneg %p76
      %p230 = pneg %p73
      %p231 = scmp.lt.s32.totalorder %s20, 0
      %s232 = scalar_select %p231, %s20, 0
      %s233 = scalar_lea.vmem %s2, %s232
      %p234 = pneg %p102
      %p235 = pneg %p99
      %p236 = scmp.lt.s32.totalorder %s20, 0
      %s237 = scalar_select %p236, %s20, 0
      %s238 = scalar_lea.vmem %s3, %s237
      %p239 = pneg %p128
      %p240 = pneg %p125
      %p241 = pneg %p156
      %p242 = pneg %p153
      %p243 = scmp.lt.s32.totalorder %s19, 1
      %s244 = scalar_select %p243, %s19, 1
      %p245 = scmp.lt.s32.totalorder %s20, 0
      %s246 = scalar_select %p245, %s20, 0
      %s247 = smul.addr %s244, 3
      %s248 = sadd.s32 %s246, %s247
      %s249 = smul.addr %s248, 4
      %s250 = scalar_lea.vmem %s4, %s249
      %s251 = smul.u32 4, %s19
      %p252 = scmp.lt.s32.totalorder %s251, 7
      %s253 = scalar_select %p252, %s251, 7
      %p254 = scmp.lt.s32.totalorder %s20, 0
      %s255 = scalar_select %p254, %s20, 0
      %s256 = smul.addr %s253, 4
      %s257 = sadd.s32 %s255, %s256
      %s258 = smul.addr %s257, 4
      %s259 = scalar_lea.vmem %s0, %s258
      %s260 = smul.u32 4, %s19
      %p261 = scmp.lt.s32.totalorder %s20, 0
      %s262 = scalar_select %p261, %s20, 0
      %s263 = smul.addr %s262, 8
      %s264 = scalar_lea.vmem %s1, %s263
      %p265 = scmp.lt.s32.totalorder %s20, 0
      %s266 = scalar_select %p265, %s20, 0
      %s267 = scalar_lea.vmem %s2, %s266
      %p268 = scmp.lt.s32.totalorder %s20, 0
      %s269 = scalar_select %p268, %s20, 0
      %s270 = scalar_lea.vmem %s3, %s269
      %p271 = scmp.lt.s32.totalorder %s19, 1
      %s272 = scalar_select %p271, %s19, 1
      %p273 = scmp.lt.s32.totalorder %s20, 0
      %s274 = scalar_select %p273, %s20, 0
      %s275 = smul.addr %s272, 3
      %s276 = sadd.s32 %s274, %s275
      %s277 = smul.addr %s276, 4
      %s278 = scalar_lea.vmem %s4, %s277
      %v279 = vld [vmem:[%s259] sm:$0x7]
      %v280 = vld [vmem:[%s259 + $0x4] sm:$0x7]
      %v281 = vld [vmem:[%s259 + $0x8] sm:$0x7]
      %v282 = vld [vmem:[%s264] sm:$0x1]
      %v283 = vlaneseq
      %v284 = vshrl.u32 %v283, 7
      %v285 = vsub.s32 0, %v284
      %v286 = vrot.slane %v282, %v285
      %v287 = vmul.f32 %v279, %v286
      %v288 = vmul.f32 %v280, %v286
      %v289 = vmul.f32 %v281, %v286
      %v290 = vadd.f32 %v287, 0.0
      %v291 = vadd.f32 %v288, 0.0
      %v292 = vadd.f32 %v289, 0.0
      %s293 = scalar_lea.vmem %s259, 16
      %v294 = vld [vmem:[%s293] sm:$0x7]
      %v295 = vld [vmem:[%s293 + $0x4] sm:$0x7]
      %v296 = vld [vmem:[%s293 + $0x8] sm:$0x7]
      %v297 = vld [vmem:[%s264 + $0x1] sm:$0x1]
      %v298 = vlaneseq
      %v299 = vshrl.u32 %v298, 7
      %v300 = vsub.s32 0, %v299
      %v301 = vrot.slane %v297, %v300
      %v302 = vmul.f32 %v294, %v301
      %v303 = vmul.f32 %v295, %v301
      %v304 = vmul.f32 %v296, %v301
      %v305 = vadd.f32 %v290, %v302
      %v306 = vadd.f32 %v291, %v303
      %v307 = vadd.f32 %v292, %v304
      %v308 = vld [vmem:[%s259 + $0x1] sm:$0x7]
      %v309 = vld [vmem:[%s259 + $0x5] sm:$0x7]
      %v310 = vld [vmem:[%s259 + $0x9] sm:$0x7]
      %v311 = vld [vmem:[%s264 + $0x2] sm:$0x1]
      %v312 = vlaneseq
      %v313 = vshrl.u32 %v312, 7
      %v314 = vsub.s32 0, %v313
      %v315 = vrot.slane %v311, %v314
      %v316 = vmul.f32 %v308, %v315
      %v317 = vmul.f32 %v309, %v315
      %v318 = vmul.f32 %v310, %v315
      %v319 = vadd.f32 %v305, %v316
      %v320 = vadd.f32 %v306, %v317
      %v321 = vadd.f32 %v307, %v318
      %s322 = scalar_lea.vmem %s259, 32
      %v323 = vld [vmem:[%s322] sm:$0x7]
      %v324 = vld [vmem:[%s322 + $0x4] sm:$0x7]
      %v325 = vld [vmem:[%s322 + $0x8] sm:$0x7]
      %v326 = vld [vmem:[%s264 + $0x3] sm:$0x1]
      %v327 = vlaneseq
      %v328 = vshrl.u32 %v327, 7
      %v329 = vsub.s32 0, %v328
      %v330 = vrot.slane %v326, %v329
      %v331 = vmul.f32 %v323, %v330
      %v332 = vmul.f32 %v324, %v330
      %v333 = vmul.f32 %v325, %v330
      %v334 = vadd.f32 %v319, %v331
      %v335 = vadd.f32 %v320, %v332
      %v336 = vadd.f32 %v321, %v333
      %s337 = scalar_lea.vmem %s259, 48
      %v338 = vld [vmem:[%s337] sm:$0x7]
      %v339 = vld [vmem:[%s337 + $0x4] sm:$0x7]
      %v340 = vld [vmem:[%s337 + $0x8] sm:$0x7]
      %v341 = vld [vmem:[%s264 + $0x4] sm:$0x1]
      %v342 = vlaneseq
      %v343 = vshrl.u32 %v342, 7
      %v344 = vsub.s32 0, %v343
      %v345 = vrot.slane %v341, %v344
      %v346 = vmul.f32 %v338, %v345
      %v347 = vmul.f32 %v339, %v345
      %v348 = vmul.f32 %v340, %v345
      %v349 = vadd.f32 %v334, %v346
      %v350 = vadd.f32 %v335, %v347
      %v351 = vadd.f32 %v336, %v348
      %v352 = vld [vmem:[%s322 + $0x1] sm:$0x7]
      %v353 = vld [vmem:[%s322 + $0x5] sm:$0x7]
      %v354 = vld [vmem:[%s322 + $0x9] sm:$0x7]
      %v355 = vld [vmem:[%s264 + $0x5] sm:$0x1]
      %v356 = vlaneseq
      %v357 = vshrl.u32 %v356, 7
      %v358 = vsub.s32 0, %v357
      %v359 = vrot.slane %v355, %v358
      %v360 = vmul.f32 %v352, %v359
      %v361 = vmul.f32 %v353, %v359
      %v362 = vmul.f32 %v354, %v359
      %v363 = vadd.f32 %v349, %v360
      %v364 = vadd.f32 %v350, %v361
      %v365 = vadd.f32 %v351, %v362
      %s366 = scalar_lea.vmem %s259, 4
      %v367 = vld [vmem:[%s366] sm:$0x7]
      %v368 = vld [vmem:[%s366 + $0x4] sm:$0x7]
      %v369 = vld [vmem:[%s366 + $0x8] sm:$0x7]
      %v370 = vld [vmem:[%s264 + $0x6] sm:$0x1]
      %v371 = vlaneseq
      %v372 = vshrl.u32 %v371, 7
      %v373 = vsub.s32 0, %v372
      %v374 = vrot.slane %v370, %v373
      %v375 = vmul.f32 %v367, %v374
      %v376 = vmul.f32 %v368, %v374
      %v377 = vmul.f32 %v369, %v374
      %v378 = vadd.f32 %v363, %v375
      %v379 = vadd.f32 %v364, %v376
      %v380 = vadd.f32 %v365, %v377
      %s381 = scalar_lea.vmem %s259, 20
      %v382 = vld [vmem:[%s381] sm:$0x7]
      %v383 = vld [vmem:[%s381 + $0x4] sm:$0x7]
      %v384 = vld [vmem:[%s381 + $0x8] sm:$0x7]
      %v385 = vld [vmem:[%s264 + $0x7] sm:$0x1]
      %v386 = vlaneseq
      %v387 = vshrl.u32 %v386, 7
      %v388 = vsub.s32 0, %v387
      %v389 = vrot.slane %v385, %v388
      %v390 = vmul.f32 %v382, %v389
      %v391 = vmul.f32 %v383, %v389
      %v392 = vmul.f32 %v384, %v389
      %v393 = vadd.f32 %v378, %v390
      %v394 = vadd.f32 %v379, %v391
      %v395 = vadd.f32 %v380, %v392
      %v396 = vld [vmem:[%s366 + $0x1] sm:$0x7]
      %v397 = vld [vmem:[%s366 + $0x5] sm:$0x7]
      %v398 = vld [vmem:[%s366 + $0x9] sm:$0x7]
      %v399 = vld [vmem:[%s264 + $0x8] sm:$0x1]
      %v400 = vlaneseq
      %v401 = vshrl.u32 %v400, 7
      %v402 = vsub.s32 0, %v401
      %v403 = vrot.slane %v399, %v402
      %v404 = vmul.f32 %v396, %v403
      %v405 = vmul.f32 %v397, %v403
      %v406 = vmul.f32 %v398, %v403
      %v407 = vadd.f32 %v393, %v404
      %v408 = vadd.f32 %v394, %v405
      %v409 = vadd.f32 %v395, %v406
      %v410 = vld [vmem:[%s267] sm:$0x1]
      %v412 = vlaneseq
      %v413 = vshrl.u32 %v412, 7
      %v414 = vsub.s32 0, %v413
      %v415 = vrot.slane %v410, %v414
      %v417 = vmul.f32 %v407, %v415
      %v418 = vmul.f32 %v408, %v415
      %v419 = vmul.f32 %v409, %v415
      %v420 = vld [vmem:[%s270] sm:$0x1]
      %v422 = vlaneseq
      %v423 = vshrl.u32 %v422, 7
      %v424 = vsub.s32 0, %v423
      %v425 = vrot.slane %v420, %v424
      %v427 = vadd.f32 %v417, %v425
      %v428 = vadd.f32 %v418, %v425
      %v429 = vadd.f32 %v419, %v425
      %v430 = vmax.f32 %v427, 0.0
      %v431 = vmax.f32 %v428, 0.0
      %v432 = vmax.f32 %v429, 0.0
      %vm433 = vcmask 26624
      %434 = vst.msk [vmem:[%s278] sm:$0x7] %vm433, %v430
      %435 = vst.msk [vmem:[%s278 + $0x4] sm:$0x7] %vm433, %v431
      %436 = vst.msk [vmem:[%s278 + $0x8] sm:$0x7] %vm433, %v432
      %p437 = scmp.lt.s32.totalorder %s19, 1
      %s438 = scalar_select %p437, %s19, 1
      %p439 = scmp.lt.s32.totalorder %s20, 0
      %s440 = scalar_select %p439, %s20, 0
      %s441 = smul.addr %s438, 3
      %s442 = sadd.s32 %s440, %s441
      %s443 = smul.addr %s442, 4
      %s444 = scalar_lea.vmem %s4, %s443
      // Predicated region
      $region37: #{squeeze_body_edge_forward.5} parent=35 // pred_check
        %p445 = pneg %p153
      $region38: #{squeeze_body_edge_forward.5} parent=35 // pred_check_branch
        %447 = sbr.rel (%p445) target = $region40
      $region39: #{squeeze_body_edge_forward.5} parent=35 // pred_region
        _
      $region40: #{squeeze_body_edge_forward.5} parent=35 // pred_fallthru
        _
    $region36: #{squeeze_body_edge_forward.5} parent=5 // pred_fallthru
      _
    %p448 = scmp.le.s32.totalorder 2, %s10
    // Predicated region
    $region41: #{squeeze_body_edge_forward.5} parent=5 // pred_check
      %p449 = pneg %p448
    $region42: #{squeeze_body_edge_forward.5} parent=5 // pred_check_branch
      %451 = sbr.rel (%p449) target = $region44
    $region43: #{squeeze_body_edge_forward.5} parent=5 // pred_region
      %s452 = ssub.s32 %s10, 2
      // Predicated region
      $region45: #{squeeze_body_edge_forward.5} parent=43 // pred_check
        %p453 = pneg %p159
      $region46: #{squeeze_body_edge_forward.5} parent=43 // pred_check_branch
        %455 = sbr.rel (%p453) target = $region48
      $region47: #{squeeze_body_edge_forward.5} parent=43 // pred_region
        %p456 = scmp.lt.s32.totalorder %s21, 1
        %s457 = scalar_select %p456, %s21, 1
        %p458 = scmp.lt.s32.totalorder %s22, 0
        %s459 = scalar_select %p458, %s22, 0
        %s460 = smul.addr %s457, 3
        %s461 = sadd.s32 %s459, %s460
        %s462 = smul.addr %s461, 4
        %s463 = scalar_lea.vmem %s4, %s462
      $region48: #{squeeze_body_edge_forward.5} parent=43 // pred_fallthru
        _
    $region44: #{squeeze_body_edge_forward.5} parent=5 // pred_fallthru
      _
  $region6: #{squeeze_body_edge_forward.5} parent=0 // loop_footer
    %s14 = sadd.s32 1, %s10
  $region7: #{squeeze_body_edge_forward.5} parent=0 // loop_footer_branch
    %9 = sbr.rel target = $region3
  $region8: #{squeeze_body_edge_forward.5} parent=0 // loop_exit
    _

// kernel: squeeze_body_edge_forward.4
$region0: #{squeeze_body_edge_forward.4}
  #allocation0 [shape = 'u32[]', space=smem, size = 0x4, offset = 0x4, fixed_abs, tag = 'smem constant byte address 0x4 - core index']
  #allocation1 [shape = 'u32[144,128]{1,0:T(1,128)}', space=vmem, size = 0x12000, scoped, tag = 'internal scratch']
  %s0 = inlined_call_operand.vmem [shape: f32[8,8,8,4], index: 0, kind: input, shape index: {}]
  %s1 = inlined_call_operand.vmem [shape: f32[9,4], index: 1, kind: input, shape index: {}]
  %s2 = inlined_call_operand.vmem [shape: f32[1,4], index: 2, kind: input, shape index: {}]
  %s3 = inlined_call_operand.vmem [shape: f32[1,4], index: 3, kind: input, shape index: {}]
  %s4 = inlined_call_operand.vmem [shape: f32[2,7,7,4], index: 4, kind: output, shape index: {}]
  %s5 = sld [smem:[#allocation0]]
  $region49: #{squeeze_body_edge_forward.4} parent=0
    _
  %s7 = ssub.s32 1, %s5
  %s8 = scalar_select 0, %s7, %s5
  loop: start=0, step=1, limit=4
  $region2: #{squeeze_body_edge_forward.4} parent=0 // loop_pre_header
    _
  $region3: #{squeeze_body_edge_forward.4} parent=0 // loop_header
    %s10 = sphi 0, %s14
    %p11 = scmp.ge.s32.totalorder %s10, 4
    %s17 = sphi 0, %s29
    %s18 = sphi 0, %s25
    %s19 = sphi 0, %s17
    %s20 = sphi 0, %s18
    %s21 = sphi 0, %s19
    %s22 = sphi 0, %s20
    %s34 = sphi 0, %s36
    %s37 = sphi 0, %s34
    %s38 = sphi 0, %s37
    %s54 = sphi 0, %s38
    %s60 = sphi 0, %s62
    %s63 = sphi 0, %s60
    %s64 = sphi 0, %s63
    %s80 = sphi 0, %s64
    %s86 = sphi 0, %s88
    %s89 = sphi 0, %s86
    %s90 = sphi 0, %s89
    %s106 = sphi 0, %s90
    %s112 = sphi 0, %s114
    %s115 = sphi 0, %s112
    %s116 = sphi 0, %s115
    %s132 = sphi 0, %s116
    %s140 = sphi 0, %s142
    %s143 = sphi 0, %s140
    %s144 = sphi 0, %s143
    %s160 = sphi 0, %s144
  $region4: #{squeeze_body_edge_forward.4} parent=0 // loop_header_branch
    %13 = sbr.rel (%p11) target = $region8
  $region5: #{squeeze_body_edge_forward.4} parent=0 // loop_body
    %s15 = ssub.s32 %s10, 1
    %s16 = ssub.s32 %s10, 2
    %s23 = sadd.s32 1, %s18
    %p24 = scmp.ge.s32.totalorder %s23, 1
    %s25 = scalar_select %p24, 0, %s23
    %s26 = sadd.s32 1, %s17
    %s27 = scalar_select %p24, %s26, %s17
    %p28 = scmp.ge.s32.totalorder %s27, 2
    %s29 = scalar_select %p28, 0, %s27
    %s30 = ssub.s32 %s17, %s29
    %s31 = ssub.s32 %s18, %s25
    %s32 = sor.u32 %s30, %s31
    %p33 = scmp.eq.s32.totalorder %s32, 0
    %s35 = sadd.s32 %s34, 1
    %s36 = scalar_select %p33, %s34, %s35
    %p39 = pneg %p33
    %p40 = scmp.eq.s32.totalorder %s10, 1
    %p41 = por %p39, %p40
    %p42 = scmp.ne.s32.totalorder %s34, %s37
    %p43 = scmp.eq.s32.totalorder %s10, 0
    %p44 = por %p42, %p43
    %p45 = scmp.ne.s32.totalorder %s34, %s37
    %p46 = scmp.eq.s32.totalorder %s15, 1
    %p47 = por %p45, %p46
    %p48 = scmp.ne.s32.totalorder %s37, %s38
    %p49 = scmp.eq.s32.totalorder %s15, 0
    %p50 = por %p48, %p49
    %p51 = scmp.ne.s32.totalorder %s37, %s38
    %p52 = scmp.eq.s32.totalorder %s16, 1
    %p53 = por %p51, %p52
    %p55 = scmp.ne.s32.totalorder %s38, %s54
    %p56 = scmp.eq.s32.totalorder %s16, 0
    %p57 = por %p55, %p56
    %s58 = ssub.s32 %s18, %s25
    %p59 = scmp.eq.s32.totalorder %s58, 0
    %s61 = sadd.s32 %s60, 1
    %s62 = scalar_select %p59, %s60, %s61
    %p65 = pneg %p59
    %p66 = scmp.eq.s32.totalorder %s10, 1
    %p67 = por %p65, %p66
    %p68 = scmp.ne.s32.totalorder %s60, %s63
    %p69 = scmp.eq.s32.totalorder %s10, 0
    %p70 = por %p68, %p69
    %p71 = scmp.ne.s32.totalorder %s60, %s63
    %p72 = scmp.eq.s32.totalorder %s15, 1
    %p73 = por %p71, %p72
    %p74 = scmp.ne.s32.totalorder %s63, %s64
    %p75 = scmp.eq.s32.totalorder %s15, 0
    %p76 = por %p74, %p75
    %p77 = scmp.ne.s32.totalorder %s63, %s64
    %p78 = scmp.eq.s32.totalorder %s16, 1
    %p79 = por %p77, %p78
    %p81 = scmp.ne.s32.totalorder %s64, %s80
    %p82 = scmp.eq.s32.totalorder %s16, 0
    %p83 = por %p81, %p82
    %s84 = ssub.s32 %s18, %s25
    %p85 = scmp.eq.s32.totalorder %s84, 0
    %s87 = sadd.s32 %s86, 1
    %s88 = scalar_select %p85, %s86, %s87
    %p91 = pneg %p85
    %p92 = scmp.eq.s32.totalorder %s10, 1
    %p93 = por %p91, %p92
    %p94 = scmp.ne.s32.totalorder %s86, %s89
    %p95 = scmp.eq.s32.totalorder %s10, 0
    %p96 = por %p94, %p95
    %p97 = scmp.ne.s32.totalorder %s86, %s89
    %p98 = scmp.eq.s32.totalorder %s15, 1
    %p99 = por %p97, %p98
    %p100 = scmp.ne.s32.totalorder %s89, %s90
    %p101 = scmp.eq.s32.totalorder %s15, 0
    %p102 = por %p100, %p101
    %p103 = scmp.ne.s32.totalorder %s89, %s90
    %p104 = scmp.eq.s32.totalorder %s16, 1
    %p105 = por %p103, %p104
    %p107 = scmp.ne.s32.totalorder %s90, %s106
    %p108 = scmp.eq.s32.totalorder %s16, 0
    %p109 = por %p107, %p108
    %s110 = ssub.s32 %s18, %s25
    %p111 = scmp.eq.s32.totalorder %s110, 0
    %s113 = sadd.s32 %s112, 1
    %s114 = scalar_select %p111, %s112, %s113
    %p117 = pneg %p111
    %p118 = scmp.eq.s32.totalorder %s10, 1
    %p119 = por %p117, %p118
    %p120 = scmp.ne.s32.totalorder %s112, %s115
    %p121 = scmp.eq.s32.totalorder %s10, 0
    %p122 = por %p120, %p121
    %p123 = scmp.ne.s32.totalorder %s112, %s115
    %p124 = scmp.eq.s32.totalorder %s15, 1
    %p125 = por %p123, %p124
    %p126 = scmp.ne.s32.totalorder %s115, %s116
    %p127 = scmp.eq.s32.totalorder %s15, 0
    %p128 = por %p126, %p127
    %p129 = scmp.ne.s32.totalorder %s115, %s116
    %p130 = scmp.eq.s32.totalorder %s16, 1
    %p131 = por %p129, %p130
    %p133 = scmp.ne.s32.totalorder %s116, %s132
    %p134 = scmp.eq.s32.totalorder %s16, 0
    %p135 = por %p133, %p134
    %s136 = ssub.s32 %s17, %s29
    %s137 = ssub.s32 %s18, %s25
    %s138 = sor.u32 %s136, %s137
    %p139 = scmp.eq.s32.totalorder %s138, 0
    %s141 = sadd.s32 %s140, 1
    %s142 = scalar_select %p139, %s140, %s141
    %p145 = pneg %p139
    %p146 = scmp.eq.s32.totalorder %s10, 1
    %p147 = por %p145, %p146
    %p148 = scmp.ne.s32.totalorder %s140, %s143
    %p149 = scmp.eq.s32.totalorder %s10, 0
    %p150 = por %p148, %p149
    %p151 = scmp.ne.s32.totalorder %s140, %s143
    %p152 = scmp.eq.s32.totalorder %s15, 1
    %p153 = por %p151, %p152
    %p154 = scmp.ne.s32.totalorder %s143, %s144
    %p155 = scmp.eq.s32.totalorder %s15, 0
    %p156 = por %p154, %p155
    %p157 = scmp.ne.s32.totalorder %s143, %s144
    %p158 = scmp.eq.s32.totalorder %s16, 1
    %p159 = por %p157, %p158
    %p161 = scmp.ne.s32.totalorder %s144, %s160
    %p162 = scmp.eq.s32.totalorder %s16, 0
    %p163 = por %p161, %p162
    %p164 = scmp.le.s32.totalorder 1, %s10
    %p165 = scmp.lt.s32.totalorder %s10, 3
    %p166 = pnand %p164, %p165
    %p167 = pneg %p166
    // Predicated region
    $region9: #{squeeze_body_edge_forward.4} parent=5 // pred_check
      _
    $region10: #{squeeze_body_edge_forward.4} parent=5 // pred_check_branch
      %169 = sbr.rel (%p166) target = $region12
    $region11: #{squeeze_body_edge_forward.4} parent=5 // pred_region
      %s170 = ssub.s32 %s10, 1
      // Predicated region
      $region13: #{squeeze_body_edge_forward.4} parent=11 // pred_check
        %p171 = pneg %p76
      $region14: #{squeeze_body_edge_forward.4} parent=11 // pred_check_branch
        %173 = sbr.rel (%p171) target = $region16
      $region15: #{squeeze_body_edge_forward.4} parent=11 // pred_region
        %p174 = scmp.lt.s32.totalorder %s20, 0
        %s175 = scalar_select %p174, %s20, 0
        %s176 = smul.addr %s175, 8
        %s177 = scalar_lea.vmem %s1, %s176
      $region16: #{squeeze_body_edge_forward.4} parent=11 // pred_fallthru
        _
      // Predicated region
      $region17: #{squeeze_body_edge_forward.4} parent=11 // pred_check
        %p178 = pneg %p102
      $region18: #{squeeze_body_edge_forward.4} parent=11 // pred_check_branch
        %180 = sbr.rel (%p178) target = $region20
      $region19: #{squeeze_body_edge_forward.4} parent=11 // pred_region
        %p181 = scmp.lt.s32.totalorder %s20, 0
        %s182 = scalar_select %p181, %s20, 0
        %s183 = scalar_lea.vmem %s2, %s182
      $region20: #{squeeze_body_edge_forward.4} parent=11 // pred_fallthru
        _
      // Predicated region
      $region21: #{squeeze_body_edge_forward.4} parent=11 // pred_check
        %p184 = pneg %p128
      $region22: #{squeeze_body_edge_forward.4} parent=11 // pred_check_branch
        %186 = sbr.rel (%p184) target = $region24
      $region23: #{squeeze_body_edge_forward.4} parent=11 // pred_region
        %p187 = scmp.lt.s32.totalorder %s20, 0
        %s188 = scalar_select %p187, %s20, 0
        %s189 = scalar_lea.vmem %s3, %s188
      $region24: #{squeeze_body_edge_forward.4} parent=11 // pred_fallthru
        _
    $region12: #{squeeze_body_edge_forward.4} parent=5 // pred_fallthru
      _
    %p190 = scmp.lt.s32.totalorder %s10, 2
    // Predicated region
    $region25: #{squeeze_body_edge_forward.4} parent=5 // pred_check
      %p191 = pneg %p190
    $region26: #{squeeze_body_edge_forward.4} parent=5 // pred_check_branch
      %193 = sbr.rel (%p191) target = $region28
    $region27: #{squeeze_body_edge_forward.4} parent=5 // pred_region
      // Predicated region
      $region29: #{squeeze_body_edge_forward.4} parent=27 // pred_check
        %p194 = pneg %p44
      $region30: #{squeeze_body_edge_forward.4} parent=27 // pred_check_branch
        %196 = sbr.rel (%p194) target = $region32
      $region31: #{squeeze_body_edge_forward.4} parent=27 // pred_region
        %s197 = smul.u32 4, %s17
        %p198 = scmp.lt.s32.totalorder %s197, 7
        %s199 = scalar_select %p198, %s197, 7
        %p200 = scmp.lt.s32.totalorder %s18, 0
        %s201 = scalar_select %p200, %s18, 0
        %s202 = smul.addr %s199, 8
        %s203 = sadd.s32 %s201, %s202
        %s204 = smul.addr %s203, 8
        %s205 = scalar_lea.vmem %s0, %s204
        %s206 = smul.u32 4, %s17
      $region32: #{squeeze_body_edge_forward.4} parent=27 // pred_fallthru
        _
    $region28: #{squeeze_body_edge_forward.4} parent=5 // pred_fallthru
      _
    %p207 = scmp.le.s32.totalorder 1, %s10
    %p208 = scmp.lt.s32.totalorder %s10, 3
    %p209 = pnand %p207, %p208
    %p210 = pneg %p209
    // Predicated region
    $region33: #{squeeze_body_edge_forward.4} parent=5 // pred_check
      _
    $region34: #{squeeze_body_edge_forward.4} parent=5 // pred_check_branch
      %212 = sbr.rel (%p209) target = $region36
    $region35: #{squeeze_body_edge_forward.4} parent=5 // pred_region
      %s213 = ssub.s32 %s10, 1
      %s214 = smul.u32 4, %s19
      %p215 = scmp.lt.s32.totalorder %s214, 7
      %s216 = scalar_select %p215, %s214, 7
      %p217 = scmp.lt.s32.totalorder %s20, 0
      %s218 = scalar_select %p217, %s20, 0
      %s219 = smul.addr %s216, 8
      %s220 = sadd.s32 %s218, %s219
      %s221 = smul.addr %s220, 8
      %s222 = scalar_lea.vmem %s0, %s221
      %p223 = pneg %p50
      %p224 = pneg %p47
      %p225 = scmp.lt.s32.totalorder %s20, 0
      %s226 = scalar_select %p225, %s20, 0
      %s227 = smul.addr %s226, 8
      %s228 = scalar_lea.vmem %s1, %s227
      %p229 = pneg %p76
      %p230 = pneg %p73
      %p231 = scmp.lt.s32.totalorder %s20, 0
      %s232 = scalar_select %p231, %s20, 0
      %s233 = scalar_lea.vmem %s2, %s232
      %p234 = pneg %p102
      %p235 = pneg %p99
      %p236 = scmp.lt.s32.totalorder %s20, 0
      %s237 = scalar_select %p236, %s20, 0
      %s238 = scalar_lea.vmem %s3, %s237
      %p239 = pneg %p128
      %p240 = pneg %p125
      %p241 = pneg %p156
      %p242 = pneg %p153
      %p243 = scmp.lt.s32.totalorder %s19, 1
      %s244 = scalar_select %p243, %s19, 1
      %p245 = scmp.lt.s32.totalorder %s20, 0
      %s246 = scalar_select %p245, %s20, 0
      %s247 = smul.addr %s244, 7
      %s248 = sadd.s32 %s246, %s247
      %s249 = smul.addr %s248, 8
      %s250 = scalar_lea.vmem %s4, %s249
      %s251 = smul.u32 4, %s19
      %p252 = scmp.lt.s32.totalorder %s251, 7
      %s253 = scalar_select %p252, %s251, 7
      %p254 = scmp.lt.s32.totalorder %s20, 0
      %s255 = scalar_select %p254, %s20, 0
      %s256 = smul.addr %s253, 8
      %s257 = sadd.s32 %s255, %s256
      %s258 = smul.addr %s257, 8
      %s259 = scalar_lea.vmem %s0, %s258
      %s260 = smul.u32 4, %s19
      %p261 = scmp.lt.s32.totalorder %s20, 0
      %s262 = scalar_select %p261, %s20, 0
      %s263 = smul.addr %s262, 8
      %s264 = scalar_lea.vmem %s1, %s263
      %p265 = scmp.lt.s32.totalorder %s20, 0
      %s266 = scalar_select %p265, %s20, 0
      %s267 = scalar_lea.vmem %s2, %s266
      %p268 = scmp.lt.s32.totalorder %s20, 0
      %s269 = scalar_select %p268, %s20, 0
      %s270 = scalar_lea.vmem %s3, %s269
      %p271 = scmp.lt.s32.totalorder %s19, 1
      %s272 = scalar_select %p271, %s19, 1
      %p273 = scmp.lt.s32.totalorder %s20, 0
      %s274 = scalar_select %p273, %s20, 0
      %s275 = smul.addr %s272, 7
      %s276 = sadd.s32 %s274, %s275
      %s277 = smul.addr %s276, 8
      %s278 = scalar_lea.vmem %s4, %s277
      %v279 = vld [vmem:[%s259] sm:$0x7f]
      %v280 = vld [vmem:[%s259 + $0x8] sm:$0x7f]
      %v281 = vld [vmem:[%s259 + $0x10] sm:$0x7f]
      %v282 = vld [vmem:[%s259 + $0x18] sm:$0x7f]
      %v283 = vld [vmem:[%s259 + $0x20] sm:$0x7f]
      %v284 = vld [vmem:[%s259 + $0x28] sm:$0x7f]
      %v285 = vld [vmem:[%s259 + $0x30] sm:$0x7f]
      %v286 = vld [vmem:[%s264] sm:$0x1]
      %v287 = vlaneseq
      %v288 = vshrl.u32 %v287, 7
      %v289 = vsub.s32 0, %v288
      %v290 = vrot.slane %v286, %v289
      %v291 = vmul.f32 %v279, %v290
      %v292 = vmul.f32 %v280, %v290
      %v293 = vmul.f32 %v281, %v290
      %v294 = vmul.f32 %v282, %v290
      %v295 = vmul.f32 %v283, %v290
      %v296 = vmul.f32 %v284, %v290
      %v297 = vmul.f32 %v285, %v290
      %v298 = vadd.f32 %v291, 0.0
      %v299 = vadd.f32 %v292, 0.0
      %v300 = vadd.f32 %v293, 0.0
      %v301 = vadd.f32 %v294, 0.0
      %v302 = vadd.f32 %v295, 0.0
      %v303 = vadd.f32 %v296, 0.0
      %v304 = vadd.f32 %v297, 0.0
      %s305 = scalar_lea.vmem %s259, 64
      %v306 = vld [vmem:[%s305] sm:$0x7f]
      %v307 = vld [vmem:[%s305 + $0x8] sm:$0x7f]
      %v308 = vld [vmem:[%s305 + $0x10] sm:$0x7f]
      %v309 = vld [vmem:[%s305 + $0x18] sm:$0x7f]
      %v310 = vld [vmem:[%s305 + $0x20] sm:$0x7f]
      %v311 = vld [vmem:[%s305 + $0x28] sm:$0x7f]
      %v312 = vld [vmem:[%s305 + $0x30] sm:$0x7f]
      %v313 = vld [vmem:[%s264 + $0x1] sm:$0x1]
      %v314 = vlaneseq
      %v315 = vshrl.u32 %v314, 7
      %v316 = vsub.s32 0, %v315
      %v317 = vrot.slane %v313, %v316
      %v318 = vmul.f32 %v306, %v317
      %v319 = vmul.f32 %v307, %v317
      %v320 = vmul.f32 %v308, %v317
      %v321 = vmul.f32 %v309, %v317
      %v322 = vmul.f32 %v310, %v317
      %v323 = vmul.f32 %v311, %v317
      %v324 = vmul.f32 %v312, %v317
      %v325 = vadd.f32 %v298, %v318
      %v326 = vadd.f32 %v299, %v319
      %v327 = vadd.f32 %v300, %v320
      %v328 = vadd.f32 %v301, %v321
      %v329 = vadd.f32 %v302, %v322
      %v330 = vadd.f32 %v303, %v323
      %v331 = vadd.f32 %v304, %v324
      %v332 = vld [vmem:[%s259 + $0x1] sm:$0x7f]
      %v333 = vld [vmem:[%s259 + $0x9] sm:$0x7f]
      %v334 = vld [vmem:[%s259 + $0x11] sm:$0x7f]
      %v335 = vld [vmem:[%s259 + $0x19] sm:$0x7f]
      %v336 = vld [vmem:[%s259 + $0x21] sm:$0x7f]
      %v337 = vld [vmem:[%s259 + $0x29] sm:$0x7f]
      %v338 = vld [vmem:[%s259 + $0x31] sm:$0x7f]
      %v339 = vld [vmem:[%s264 + $0x2] sm:$0x1]
      %v340 = vlaneseq
      %v341 = vshrl.u32 %v340, 7
      %v342 = vsub.s32 0, %v341
      %v343 = vrot.slane %v339, %v342
      %v344 = vmul.f32 %v332, %v343
      %v345 = vmul.f32 %v333, %v343
      %v346 = vmul.f32 %v334, %v343
      %v347 = vmul.f32 %v335, %v343
      %v348 = vmul.f32 %v336, %v343
      %v349 = vmul.f32 %v337, %v343
      %v350 = vmul.f32 %v338, %v343
      %v351 = vadd.f32 %v325, %v344
      %v352 = vadd.f32 %v326, %v345
      %v353 = vadd.f32 %v327, %v346
      %v354 = vadd.f32 %v328, %v347
      %v355 = vadd.f32 %v329, %v348
      %v356 = vadd.f32 %v330, %v349
      %v357 = vadd.f32 %v331, %v350
      %s358 = scalar_lea.vmem %s259, 128
      %v359 = vld [vmem:[%s358] sm:$0x7f]
      %v360 = vld [vmem:[%s358 + $0x8] sm:$0x7f]
      %v361 = vld [vmem:[%s358 + $0x10] sm:$0x7f]
      %v362 = vld [vmem:[%s358 + $0x18] sm:$0x7f]
      %v363 = vld [vmem:[%s358 + $0x20] sm:$0x7f]
      %v364 = vld [vmem:[%s358 + $0x28] sm:$0x7f]
      %v365 = vld [vmem:[%s358 + $0x30] sm:$0x7f]
      %v366 = vld [vmem:[%s264 + $0x3] sm:$0x1]
      %v367 = vlaneseq
      %v368 = vshrl.u32 %v367, 7
      %v369 = vsub.s32 0, %v368
      %v370 = vrot.slane %v366, %v369
      %v371 = vmul.f32 %v359, %v370
      %v372 = vmul.f32 %v360, %v370
      %v373 = vmul.f32 %v361, %v370
      %v374 = vmul.f32 %v362, %v370
      %v375 = vmul.f32 %v363, %v370
      %v376 = vmul.f32 %v364, %v370
      %v377 = vmul.f32 %v365, %v370
      %v378 = vadd.f32 %v351, %v371
      %v379 = vadd.f32 %v352, %v372
      %v380 = vadd.f32 %v353, %v373
      %v381 = vadd.f32 %v354, %v374
      %v382 = vadd.f32 %v355, %v375
      %v383 = vadd.f32 %v356, %v376
      %v384 = vadd.f32 %v357, %v377
      %s385 = scalar_lea.vmem %s259, 192
      %v386 = vld [vmem:[%s385] sm:$0x7f]
      %v387 = vld [vmem:[%s385 + $0x8] sm:$0x7f]
      %v388 = vld [vmem:[%s385 + $0x10] sm:$0x7f]
      %v389 = vld [vmem:[%s385 + $0x18] sm:$0x7f]
      %v390 = vld [vmem:[%s385 + $0x20] sm:$0x7f]
      %v391 = vld [vmem:[%s385 + $0x28] sm:$0x7f]
      %v392 = vld [vmem:[%s385 + $0x30] sm:$0x7f]
      %v393 = vld [vmem:[%s264 + $0x4] sm:$0x1]
      %v394 = vlaneseq
      %v395 = vshrl.u32 %v394, 7
      %v396 = vsub.s32 0, %v395
      %v397 = vrot.slane %v393, %v396
      %v398 = vmul.f32 %v386, %v397
      %v399 = vmul.f32 %v387, %v397
      %v400 = vmul.f32 %v388, %v397
      %v401 = vmul.f32 %v389, %v397
      %v402 = vmul.f32 %v390, %v397
      %v403 = vmul.f32 %v391, %v397
      %v404 = vmul.f32 %v392, %v397
      %v405 = vadd.f32 %v378, %v398
      %v406 = vadd.f32 %v379, %v399
      %v407 = vadd.f32 %v380, %v400
      %v408 = vadd.f32 %v381, %v401
      %v409 = vadd.f32 %v382, %v402
      %v410 = vadd.f32 %v383, %v403
      %v411 = vadd.f32 %v384, %v404
      %v412 = vld [vmem:[%s358 + $0x1] sm:$0x7f]
      %v413 = vld [vmem:[%s358 + $0x9] sm:$0x7f]
      %v414 = vld [vmem:[%s358 + $0x11] sm:$0x7f]
      %v415 = vld [vmem:[%s358 + $0x19] sm:$0x7f]
      %v416 = vld [vmem:[%s358 + $0x21] sm:$0x7f]
      %v417 = vld [vmem:[%s358 + $0x29] sm:$0x7f]
      %v418 = vld [vmem:[%s358 + $0x31] sm:$0x7f]
      %v419 = vld [vmem:[%s264 + $0x5] sm:$0x1]
      %v420 = vlaneseq
      %v421 = vshrl.u32 %v420, 7
      %v422 = vsub.s32 0, %v421
      %v423 = vrot.slane %v419, %v422
      %v424 = vmul.f32 %v412, %v423
      %v425 = vmul.f32 %v413, %v423
      %v426 = vmul.f32 %v414, %v423
      %v427 = vmul.f32 %v415, %v423
      %v428 = vmul.f32 %v416, %v423
      %v429 = vmul.f32 %v417, %v423
      %v430 = vmul.f32 %v418, %v423
      %v431 = vadd.f32 %v405, %v424
      %v432 = vadd.f32 %v406, %v425
      %v433 = vadd.f32 %v407, %v426
      %v434 = vadd.f32 %v408, %v427
      %v435 = vadd.f32 %v409, %v428
      %v436 = vadd.f32 %v410, %v429
      %v437 = vadd.f32 %v411, %v430
      %s438 = scalar_lea.vmem %s259, 8
      %v439 = vld [vmem:[%s438] sm:$0x7f]
      %v440 = vld [vmem:[%s438 + $0x8] sm:$0x7f]
      %v441 = vld [vmem:[%s438 + $0x10] sm:$0x7f]
      %v442 = vld [vmem:[%s438 + $0x18] sm:$0x7f]
      %v443 = vld [vmem:[%s438 + $0x20] sm:$0x7f]
      %v444 = vld [vmem:[%s438 + $0x28] sm:$0x7f]
      %v445 = vld [vmem:[%s438 + $0x30] sm:$0x7f]
      %v446 = vld [vmem:[%s264 + $0x6] sm:$0x1]
      %v447 = vlaneseq
      %v448 = vshrl.u32 %v447, 7
      %v449 = vsub.s32 0, %v448
      %v450 = vrot.slane %v446, %v449
      %v451 = vmul.f32 %v439, %v450
      %v452 = vmul.f32 %v440, %v450
      %v453 = vmul.f32 %v441, %v450
      %v454 = vmul.f32 %v442, %v450
      %v455 = vmul.f32 %v443, %v450
      %v456 = vmul.f32 %v444, %v450
      %v457 = vmul.f32 %v445, %v450
      %v458 = vadd.f32 %v431, %v451
      %v459 = vadd.f32 %v432, %v452
      %v460 = vadd.f32 %v433, %v453
      %v461 = vadd.f32 %v434, %v454
      %v462 = vadd.f32 %v435, %v455
      %v463 = vadd.f32 %v436, %v456
      %v464 = vadd.f32 %v437, %v457
      %s465 = scalar_lea.vmem %s259, 72
      %v466 = vld [vmem:[%s465] sm:$0x7f]
      %v467 = vld [vmem:[%s465 + $0x8] sm:$0x7f]
      %v468 = vld [vmem:[%s465 + $0x10] sm:$0x7f]
      %v469 = vld [vmem:[%s465 + $0x18] sm:$0x7f]
      %v470 = vld [vmem:[%s465 + $0x20] sm:$0x7f]
      %v471 = vld [vmem:[%s465 + $0x28] sm:$0x7f]
      %v472 = vld [vmem:[%s465 + $0x30] sm:$0x7f]
      %v473 = vld [vmem:[%s264 + $0x7] sm:$0x1]
      %v474 = vlaneseq
      %v475 = vshrl.u32 %v474, 7
      %v476 = vsub.s32 0, %v475
      %v477 = vrot.slane %v473, %v476
      %v478 = vmul.f32 %v466, %v477
      %v479 = vmul.f32 %v467, %v477
      %v480 = vmul.f32 %v468, %v477
      %v481 = vmul.f32 %v469, %v477
      %v482 = vmul.f32 %v470, %v477
      %v483 = vmul.f32 %v471, %v477
      %v484 = vmul.f32 %v472, %v477
      %v485 = vadd.f32 %v458, %v478
      %v486 = vadd.f32 %v459, %v479
      %v487 = vadd.f32 %v460, %v480
      %v488 = vadd.f32 %v461, %v481
      %v489 = vadd.f32 %v462, %v482
      %v490 = vadd.f32 %v463, %v483
      %v491 = vadd.f32 %v464, %v484
      %v492 = vld [vmem:[%s438 + $0x1] sm:$0x7f]
      %v493 = vld [vmem:[%s438 + $0x9] sm:$0x7f]
      %v494 = vld [vmem:[%s438 + $0x11] sm:$0x7f]
      %v495 = vld [vmem:[%s438 + $0x19] sm:$0x7f]
      %v496 = vld [vmem:[%s438 + $0x21] sm:$0x7f]
      %v497 = vld [vmem:[%s438 + $0x29] sm:$0x7f]
      %v498 = vld [vmem:[%s438 + $0x31] sm:$0x7f]
      %v499 = vld [vmem:[%s264 + $0x8] sm:$0x1]
      %v500 = vlaneseq
      %v501 = vshrl.u32 %v500, 7
      %v502 = vsub.s32 0, %v501
      %v503 = vrot.slane %v499, %v502
      %v504 = vmul.f32 %v492, %v503
      %v505 = vmul.f32 %v493, %v503
      %v506 = vmul.f32 %v494, %v503
      %v507 = vmul.f32 %v495, %v503
      %v508 = vmul.f32 %v496, %v503
      %v509 = vmul.f32 %v497, %v503
      %v510 = vmul.f32 %v498, %v503
      %v511 = vadd.f32 %v485, %v504
      %v512 = vadd.f32 %v486, %v505
      %v513 = vadd.f32 %v487, %v506
      %v514 = vadd.f32 %v488, %v507
      %v515 = vadd.f32 %v489, %v508
      %v516 = vadd.f32 %v490, %v509
      %v517 = vadd.f32 %v491, %v510
      %v518 = vld [vmem:[%s267] sm:$0x1]
      %v520 = vlaneseq
      %v521 = vshrl.u32 %v520, 7
      %v522 = vsub.s32 0, %v521
      %v523 = vrot.slane %v518, %v522
      %v525 = vmul.f32 %v511, %v523
      %v526 = vmul.f32 %v512, %v523
      %v527 = vmul.f32 %v513, %v523
      %v528 = vmul.f32 %v514, %v523
      %v529 = vmul.f32 %v515, %v523
      %v530 = vmul.f32 %v516, %v523
      %v531 = vmul.f32 %v517, %v523
      %v532 = vld [vmem:[%s270] sm:$0x1]
      %v534 = vlaneseq
      %v535 = vshrl.u32 %v534, 7
      %v536 = vsub.s32 0, %v535
      %v537 = vrot.slane %v532, %v536
      %v539 = vadd.f32 %v525, %v537
      %v540 = vadd.f32 %v526, %v537
      %v541 = vadd.f32 %v527, %v537
      %v542 = vadd.f32 %v528, %v537
      %v543 = vadd.f32 %v529, %v537
      %v544 = vadd.f32 %v530, %v537
      %v545 = vadd.f32 %v531, %v537
      %v546 = vmax.f32 %v539, 0.0
      %v547 = vmax.f32 %v540, 0.0
      %v548 = vmax.f32 %v541, 0.0
      %v549 = vmax.f32 %v542, 0.0
      %v550 = vmax.f32 %v543, 0.0
      %v551 = vmax.f32 %v544, 0.0
      %v552 = vmax.f32 %v545, 0.0
      %vm553 = vcmask 30720
      %554 = vst.msk [vmem:[%s278] sm:$0x7f] %vm553, %v546
      %555 = vst.msk [vmem:[%s278 + $0x8] sm:$0x7f] %vm553, %v547
      %556 = vst.msk [vmem:[%s278 + $0x10] sm:$0x7f] %vm553, %v548
      %557 = vst.msk [vmem:[%s278 + $0x18] sm:$0x7f] %vm553, %v549
      %558 = vst.msk [vmem:[%s278 + $0x20] sm:$0x7f] %vm553, %v550
      %559 = vst.msk [vmem:[%s278 + $0x28] sm:$0x7f] %vm553, %v551
      %560 = vst.msk [vmem:[%s278 + $0x30] sm:$0x7f] %vm553, %v552
      %p561 = scmp.lt.s32.totalorder %s19, 1
      %s562 = scalar_select %p561, %s19, 1
      %p563 = scmp.lt.s32.totalorder %s20, 0
      %s564 = scalar_select %p563, %s20, 0
      %s565 = smul.addr %s562, 7
      %s566 = sadd.s32 %s564, %s565
      %s567 = smul.addr %s566, 8
      %s568 = scalar_lea.vmem %s4, %s567
      // Predicated region
      $region37: #{squeeze_body_edge_forward.4} parent=35 // pred_check
        %p569 = pneg %p153
      $region38: #{squeeze_body_edge_forward.4} parent=35 // pred_check_branch
        %571 = sbr.rel (%p569) target = $region40
      $region39: #{squeeze_body_edge_forward.4} parent=35 // pred_region
        _
      $region40: #{squeeze_body_edge_forward.4} parent=35 // pred_fallthru
        _
    $region36: #{squeeze_body_edge_forward.4} parent=5 // pred_fallthru
      _
    %p572 = scmp.le.s32.totalorder 2, %s10
    // Predicated region
    $region41: #{squeeze_body_edge_forward.4} parent=5 // pred_check
      %p573 = pneg %p572
    $region42: #{squeeze_body_edge_forward.4} parent=5 // pred_check_branch
      %575 = sbr.rel (%p573) target = $region44
    $region43: #{squeeze_body_edge_forward.4} parent=5 // pred_region
      %s576 = ssub.s32 %s10, 2
      // Predicated region
      $region45: #{squeeze_body_edge_forward.4} parent=43 // pred_check
        %p577 = pneg %p159
      $region46: #{squeeze_body_edge_forward.4} parent=43 // pred_check_branch
        %579 = sbr.rel (%p577) target = $region48
      $region47: #{squeeze_body_edge_forward.4} parent=43 // pred_region
        %p580 = scmp.lt.s32.totalorder %s21, 1
        %s581 = scalar_select %p580, %s21, 1
        %p582 = scmp.lt.s32.totalorder %s22, 0
        %s583 = scalar_select %p582, %s22, 0
        %s584 = smul.addr %s581, 7
        %s585 = sadd.s32 %s583, %s584
        %s586 = smul.addr %s585, 8
        %s587 = scalar_lea.vmem %s4, %s586
      $region48: #{squeeze_body_edge_forward.4} parent=43 // pred_fallthru
        _
    $region44: #{squeeze_body_edge_forward.4} parent=5 // pred_fallthru
      _
  $region6: #{squeeze_body_edge_forward.4} parent=0 // loop_footer
    %s14 = sadd.s32 1, %s10
  $region7: #{squeeze_body_edge_forward.4} parent=0 // loop_footer_branch
    %9 = sbr.rel target = $region3
  $region8: #{squeeze_body_edge_forward.4} parent=0 // loop_exit
    _

// kernel: squeeze_body_edge_forward.7
$region0: #{squeeze_body_edge_forward.7}
  #allocation0 [shape = 'u32[]', space=smem, size = 0x4, offset = 0x4, fixed_abs, tag = 'smem constant byte address 0x4 - core index']
  #allocation1 [shape = 'u32[144,128]{1,0:T(1,128)}', space=vmem, size = 0x12000, scoped, tag = 'internal scratch']
  %s0 = inlined_call_operand.vmem [shape: f32[2,256,2], index: 0, kind: input, shape index: {}]
  %s1 = inlined_call_operand.vmem [shape: f32[2,16,64], index: 1, kind: input, shape index: {}]
  %s2 = inlined_call_operand.vmem [shape: f32[2,4,256], index: 2, kind: input, shape index: {}]
  %s3 = inlined_call_operand.vmem [shape: f32[64,4], index: 3, kind: input, shape index: {}]
  %s4 = inlined_call_operand.vmem [shape: f32[2,4,256], index: 4, kind: output, shape index: {0}]
  %s5 = inlined_call_operand.vmem [shape: f32[2,4,256], index: 5, kind: output, shape index: {1}]
  %6 = xla_tuple %s4, %s5
  %s7 = sld [smem:[#allocation0]]
  $region57: #{squeeze_body_edge_forward.7} parent=0
    _
  %s9 = ssub.s32 1, %s7
  %s10 = scalar_select 0, %s9, %s7
  loop: start=0, step=1, limit=4
  $region2: #{squeeze_body_edge_forward.7} parent=0 // loop_pre_header
    _
  $region3: #{squeeze_body_edge_forward.7} parent=0 // loop_header
    %s12 = sphi 0, %s16
    %p13 = scmp.ge.s32.totalorder %s12, 4
    %s19 = sphi 0, %s38
    %s20 = sphi 0, %s34
    %s21 = sphi 0, %s30
    %s22 = sphi 0, %s19
    %s23 = sphi 0, %s20
    %s24 = sphi 0, %s21
    %s25 = sphi 0, %s22
    %s26 = sphi 0, %s23
    %s27 = sphi 0, %s24
    %s43 = sphi 0, %s45
    %s46 = sphi 0, %s43
    %s47 = sphi 0, %s46
    %s63 = sphi 0, %s47
    %s71 = sphi 0, %s73
    %s74 = sphi 0, %s71
    %s75 = sphi 0, %s74
    %s91 = sphi 0, %s75
    %s101 = sphi 0, %s103
    %s104 = sphi 0, %s101
    %s105 = sphi 0, %s104
    %s121 = sphi 0, %s105
    %s125 = sphi 0, %s125
    %s127 = sphi 0, %s125
    %s128 = sphi 0, %s127
    %s142 = sphi 0, %s128
    %s152 = sphi 0, %s154
    %s155 = sphi 0, %s152
    %s156 = sphi 0, %s155
    %s172 = sphi 0, %s156
    %s182 = sphi 0, %s184
    %s185 = sphi 0, %s182
    %s186 = sphi 0, %s185
    %s202 = sphi 0, %s186
  $region4: #{squeeze_body_edge_forward.7} parent=0 // loop_header_branch
    %15 = sbr.rel (%p13) target = $region8
  $region5: #{squeeze_body_edge_forward.7} parent=0 // loop_body
    %s17 = ssub.s32 %s12, 1
    %s18 = ssub.s32 %s12, 2
    %s28 = sadd.s32 1, %s21
    %p29 = scmp.ge.s32.totalorder %s28, 1
    %s30 = scalar_select %p29, 0, %s28
    %s31 = sadd.s32 1, %s20
    %s32 = scalar_select %p29, %s31, %s20
    %p33 = scmp.ge.s32.totalorder %s32, 1
    %s34 = scalar_select %p33, 0, %s32
    %s35 = sadd.s32 1, %s19
    %s36 = scalar_select %p33, %s35, %s19
    %p37 = scmp.ge.s32.totalorder %s36, 2
    %s38 = scalar_select %p37, 0, %s36
    %s39 = ssub.s32 %s19, %s38
    %s40 = ssub.s32 %s20, %s34
    %s41 = sor.u32 %s39, %s40
    %p42 = scmp.eq.s32.totalorder %s41, 0
    %s44 = sadd.s32 %s43, 1
    %s45 = scalar_select %p42, %s43, %s44
    %p48 = pneg %p42
    %p49 = scmp.eq.s32.totalorder %s12, 1
    %p50 = por %p48, %p49
    %p51 = scmp.ne.s32.totalorder %s43, %s46
    %p52 = scmp.eq.s32.totalorder %s12, 0
    %p53 = por %p51, %p52
    %p54 = scmp.ne.s32.totalorder %s43, %s46
    %p55 = scmp.eq.s32.totalorder %s17, 1
    %p56 = por %p54, %p55
    %p57 = scmp.ne.s32.totalorder %s46, %s47
    %p58 = scmp.eq.s32.totalorder %s17, 0
    %p59 = por %p57, %p58
    %p60 = scmp.ne.s32.totalorder %s46, %s47
    %p61 = scmp.eq.s32.totalorder %s18, 1
    %p62 = por %p60, %p61
    %p64 = scmp.ne.s32.totalorder %s47, %s63
    %p65 = scmp.eq.s32.totalorder %s18, 0
    %p66 = por %p64, %p65
    %s67 = ssub.s32 %s19, %s38
    %s68 = ssub.s32 %s21, %s30
    %s69 = sor.u32 %s67, %s68
    %p70 = scmp.eq.s32.totalorder %s69, 0
    %s72 = sadd.s32 %s71, 1
    %s73 = scalar_select %p70, %s71, %s72
    %p76 = pneg %p70
    %p77 = scmp.eq.s32.totalorder %s12, 1
    %p78 = por %p76, %p77
    %p79 = scmp.ne.s32.totalorder %s71, %s74
    %p80 = scmp.eq.s32.totalorder %s12, 0
    %p81 = por %p79, %p80
    %p82 = scmp.ne.s32.totalorder %s71, %s74
    %p83 = scmp.eq.s32.totalorder %s17, 1
    %p84 = por %p82, %p83
    %p85 = scmp.ne.s32.totalorder %s74, %s75
    %p86 = scmp.eq.s32.totalorder %s17, 0
    %p87 = por %p85, %p86
    %p88 = scmp.ne.s32.totalorder %s74, %s75
    %p89 = scmp.eq.s32.totalorder %s18, 1
    %p90 = por %p88, %p89
    %p92 = scmp.ne.s32.totalorder %s75, %s91
    %p93 = scmp.eq.s32.totalorder %s18, 0
    %p94 = por %p92, %p93
    %s95 = ssub.s32 %s19, %s38
    %s96 = ssub.s32 %s21, %s30
    %s97 = sor.u32 %s95, %s96
    %s98 = ssub.s32 %s20, %s34
    %s99 = sor.u32 %s97, %s98
    %p100 = scmp.eq.s32.totalorder %s99, 0
    %s102 = sadd.s32 %s101, 1
    %s103 = scalar_select %p100, %s101, %s102
    %p106 = pneg %p100
    %p107 = scmp.eq.s32.totalorder %s12, 1
    %p108 = por %p106, %p107
    %p109 = scmp.ne.s32.totalorder %s101, %s104
    %p110 = scmp.eq.s32.totalorder %s12, 0
    %p111 = por %p109, %p110
    %p112 = scmp.ne.s32.totalorder %s101, %s104
    %p113 = scmp.eq.s32.totalorder %s17, 1
    %p114 = por %p112, %p113
    %p115 = scmp.ne.s32.totalorder %s104, %s105
    %p116 = scmp.eq.s32.totalorder %s17, 0
    %p117 = por %p115, %p116
    %p118 = scmp.ne.s32.totalorder %s104, %s105
    %p119 = scmp.eq.s32.totalorder %s18, 1
    %p120 = por %p118, %p119
    %p122 = scmp.ne.s32.totalorder %s105, %s121
    %p123 = scmp.eq.s32.totalorder %s18, 0
    %p124 = por %p122, %p123
    %s126 = sadd.s32 %s125, 1
    %p129 = scmp.eq.s32.totalorder %s12, 1
    %p130 = scmp.ne.s32.totalorder %s125, %s127
    %p131 = scmp.eq.s32.totalorder %s12, 0
    %p132 = por %p130, %p131
    %p133 = scmp.ne.s32.totalorder %s125, %s127
    %p134 = scmp.eq.s32.totalorder %s17, 1
    %p135 = por %p133, %p134
    %p136 = scmp.ne.s32.totalorder %s127, %s128
    %p137 = scmp.eq.s32.totalorder %s17, 0
    %p138 = por %p136, %p137
    %p139 = scmp.ne.s32.totalorder %s127, %s128
    %p140 = scmp.eq.s32.totalorder %s18, 1
    %p141 = por %p139, %p140
    %p143 = scmp.ne.s32.totalorder %s128, %s142
    %p144 = scmp.eq.s32.totalorder %s18, 0
    %p145 = por %p143, %p144
    %s146 = ssub.s32 %s19, %s38
    %s147 = ssub.s32 %s21, %s30
    %s148 = sor.u32 %s146, %s147
    %s149 = ssub.s32 %s20, %s34
    %s150 = sor.u32 %s148, %s149
    %p151 = scmp.eq.s32.totalorder %s150, 0
    %s153 = sadd.s32 %s152, 1
    %s154 = scalar_select %p151, %s152, %s153
    %p157 = pneg %p151
    %p158 = scmp.eq.s32.totalorder %s12, 1
    %p159 = por %p157, %p158
    %p160 = scmp.ne.s32.totalorder %s152, %s155
    %p161 = scmp.eq.s32.totalorder %s12, 0
    %p162 = por %p160, %p161
    %p163 = scmp.ne.s32.totalorder %s152, %s155
    %p164 = scmp.eq.s32.totalorder %s17, 1
    %p165 = por %p163, %p164
    %p166 = scmp.ne.s32.totalorder %s155, %s156
    %p167 = scmp.eq.s32.totalorder %s17, 0
    %p168 = por %p166, %p167
    %p169 = scmp.ne.s32.totalorder %s155, %s156
    %p170 = scmp.eq.s32.totalorder %s18, 1
    %p171 = por %p169, %p170
    %p173 = scmp.ne.s32.totalorder %s156, %s172
    %p174 = scmp.eq.s32.totalorder %s18, 0
    %p175 = por %p173, %p174
    %s176 = ssub.s32 %s19, %s38
    %s177 = ssub.s32 %s21, %s30
    %s178 = sor.u32 %s176, %s177
    %s179 = ssub.s32 %s20, %s34
    %s180 = sor.u32 %s178, %s179
    %p181 = scmp.eq.s32.totalorder %s180, 0
    %s183 = sadd.s32 %s182, 1
    %s184 = scalar_select %p181, %s182, %s183
    %p187 = pneg %p181
    %p188 = scmp.eq.s32.totalorder %s12, 1
    %p189 = por %p187, %p188
    %p190 = scmp.ne.s32.totalorder %s182, %s185
    %p191 = scmp.eq.s32.totalorder %s12, 0
    %p192 = por %p190, %p191
    %p193 = scmp.ne.s32.totalorder %s182, %s185
    %p194 = scmp.eq.s32.totalorder %s17, 1
    %p195 = por %p193, %p194
    %p196 = scmp.ne.s32.totalorder %s185, %s186
    %p197 = scmp.eq.s32.totalorder %s17, 0
    %p198 = por %p196, %p197
    %p199 = scmp.ne.s32.totalorder %s185, %s186
    %p200 = scmp.eq.s32.totalorder %s18, 1
    %p201 = por %p199, %p200
    %p203 = scmp.ne.s32.totalorder %s186, %s202
    %p204 = scmp.eq.s32.totalorder %s18, 0
    %p205 = por %p203, %p204
    %p206 = scmp.le.s32.totalorder 1, %s12
    %p207 = scmp.lt.s32.totalorder %s12, 3
    %p208 = pnand %p206, %p207
    %p209 = pneg %p208
    // Predicated region
    $region9: #{squeeze_body_edge_forward.7} parent=5 // pred_check
      _
    $region10: #{squeeze_body_edge_forward.7} parent=5 // pred_check_branch
      %211 = sbr.rel (%p208) target = $region12
    $region11: #{squeeze_body_edge_forward.7} parent=5 // pred_region
      %s212 = ssub.s32 %s12, 1
      // Predicated region
      $region13: #{squeeze_body_edge_forward.7} parent=11 // pred_check
        %p213 = pneg %p138
      $region14: #{squeeze_body_edge_forward.7} parent=11 // pred_check_branch
        %215 = sbr.rel (%p213) target = $region16
      $region15: #{squeeze_body_edge_forward.7} parent=11 // pred_region
        _
      $region16: #{squeeze_body_edge_forward.7} parent=11 // pred_fallthru
        _
    $region12: #{squeeze_body_edge_forward.7} parent=5 // pred_fallthru
      _
    %p216 = scmp.lt.s32.totalorder %s12, 2
    // Predicated region
    $region17: #{squeeze_body_edge_forward.7} parent=5 // pred_check
      %p217 = pneg %p216
    $region18: #{squeeze_body_edge_forward.7} parent=5 // pred_check_branch
      %219 = sbr.rel (%p217) target = $region20
    $region19: #{squeeze_body_edge_forward.7} parent=5 // pred_region
      // Predicated region
      $region21: #{squeeze_body_edge_forward.7} parent=19 // pred_check
        %p220 = pneg %p53
      $region22: #{squeeze_body_edge_forward.7} parent=19 // pred_check_branch
        %222 = sbr.rel (%p220) target = $region24
      $region23: #{squeeze_body_edge_forward.7} parent=19 // pred_region
        %s223 = smul.u32 32, %s20
        %p224 = scmp.lt.s32.totalorder %s19, 1
        %s225 = scalar_select %p224, %s19, 1
        %p226 = scmp.lt.s32.totalorder %s223, 31
        %s227 = scalar_select %p226, %s223, 31
        %s228 = smul.addr %s225, 32
        %s229 = sadd.s32 %s227, %s228
        %s230 = smul.addr %s229, 8
        %s231 = scalar_lea.vmem %s0, %s230
        %s232 = smul.u32 32, %s20
      $region24: #{squeeze_body_edge_forward.7} parent=19 // pred_fallthru
        _
      // Predicated region
      $region25: #{squeeze_body_edge_forward.7} parent=19 // pred_check
        %p233 = pneg %p81
      $region26: #{squeeze_body_edge_forward.7} parent=19 // pred_check_branch
        %235 = sbr.rel (%p233) target = $region28
      $region27: #{squeeze_body_edge_forward.7} parent=19 // pred_region
        %p236 = scmp.lt.s32.totalorder %s19, 1
        %s237 = scalar_select %p236, %s19, 1
        %p238 = scmp.lt.s32.totalorder %s21, 0
        %s239 = scalar_select %p238, %s21, 0
        %s240 = smul.addr %s237, 2
        %s241 = sadd.s32 %s239, %s240
        %s242 = smul.addr %s241, 8
        %s243 = scalar_lea.vmem %s1, %s242
      $region28: #{squeeze_body_edge_forward.7} parent=19 // pred_fallthru
        _
      // Predicated region
      $region29: #{squeeze_body_edge_forward.7} parent=19 // pred_check
        %p244 = pneg %p111
      $region30: #{squeeze_body_edge_forward.7} parent=19 // pred_check_branch
        %246 = sbr.rel (%p244) target = $region32
      $region31: #{squeeze_body_edge_forward.7} parent=19 // pred_region
        %s247 = smul.u32 2, %s20
        %p248 = scmp.lt.s32.totalorder %s19, 1
        %s249 = scalar_select %p248, %s19, 1
        %p250 = scmp.lt.s32.totalorder %s21, 0
        %s251 = scalar_select %p250, %s21, 0
        %p252 = scmp.lt.s32.totalorder %s247, 1
        %s253 = scalar_select %p252, %s247, 1
        %s254 = smul.addr %s251, 2
        %s255 = sadd.s32 %s253, %s254
        %s256 = smul.addr %s249, 2
        %s257 = sadd.s32 %s255, %s256
        %s258 = smul.addr %s257, 4
        %s259 = scalar_lea.vmem %s2, %s258
        %s260 = smul.u32 2, %s20
      $region32: #{squeeze_body_edge_forward.7} parent=19 // pred_fallthru
        _
    $region20: #{squeeze_body_edge_forward.7} parent=5 // pred_fallthru
      _
    %p261 = scmp.le.s32.totalorder 1, %s12
    %p262 = scmp.lt.s32.totalorder %s12, 3
    %p263 = pnand %p261, %p262
    %p264 = pneg %p263
    // Predicated region
    $region33: #{squeeze_body_edge_forward.7} parent=5 // pred_check
      _
    $region34: #{squeeze_body_edge_forward.7} parent=5 // pred_check_branch
      %266 = sbr.rel (%p263) target = $region36
    $region35: #{squeeze_body_edge_forward.7} parent=5 // pred_region
      %s267 = ssub.s32 %s12, 1
      %s268 = smul.u32 32, %s23
      %p269 = scmp.lt.s32.totalorder %s22, 1
      %s270 = scalar_select %p269, %s22, 1
      %p271 = scmp.lt.s32.totalorder %s268, 31
      %s272 = scalar_select %p271, %s268, 31
      %s273 = smul.addr %s270, 32
      %s274 = sadd.s32 %s272, %s273
      %s275 = smul.addr %s274, 8
      %s276 = scalar_lea.vmem %s0, %s275
      %p277 = pneg %p59
      %p278 = pneg %p56
      %p279 = scmp.lt.s32.totalorder %s22, 1
      %s280 = scalar_select %p279, %s22, 1
      %p281 = scmp.lt.s32.totalorder %s24, 0
      %s282 = scalar_select %p281, %s24, 0
      %s283 = smul.addr %s280, 2
      %s284 = sadd.s32 %s282, %s283
      %s285 = smul.addr %s284, 8
      %s286 = scalar_lea.vmem %s1, %s285
      %p287 = pneg %p87
      %p288 = pneg %p84
      %s289 = smul.u32 2, %s23
      %p290 = scmp.lt.s32.totalorder %s22, 1
      %s291 = scalar_select %p290, %s22, 1
      %p292 = scmp.lt.s32.totalorder %s24, 0
      %s293 = scalar_select %p292, %s24, 0
      %p294 = scmp.lt.s32.totalorder %s289, 1
      %s295 = scalar_select %p294, %s289, 1
      %s296 = smul.addr %s293, 2
      %s297 = sadd.s32 %s295, %s296
      %s298 = smul.addr %s291, 2
      %s299 = sadd.s32 %s297, %s298
      %s300 = smul.addr %s299, 4
      %s301 = scalar_lea.vmem %s2, %s300
      %p302 = pneg %p117
      %p303 = pneg %p114
      %p304 = pneg %p138
      %p305 = pneg %p135
      %p306 = pneg %p168
      %p307 = pneg %p165
      %s308 = smul.u32 2, %s23
      %p309 = scmp.lt.s32.totalorder %s22, 1
      %s310 = scalar_select %p309, %s22, 1
      %p311 = scmp.lt.s32.totalorder %s24, 0
      %s312 = scalar_select %p311, %s24, 0
      %p313 = scmp.lt.s32.totalorder %s308, 1
      %s314 = scalar_select %p313, %s308, 1
      %s315 = smul.addr %s312, 2
      %s316 = sadd.s32 %s314, %s315
      %s317 = smul.addr %s310, 2
      %s318 = sadd.s32 %s316, %s317
      %s319 = smul.addr %s318, 4
      %s320 = scalar_lea.vmem %s4, %s319
      %p321 = pneg %p198
      %p322 = pneg %p195
      %s323 = smul.u32 2, %s23
      %p324 = scmp.lt.s32.totalorder %s22, 1
      %s325 = scalar_select %p324, %s22, 1
      %p326 = scmp.lt.s32.totalorder %s24, 0
      %s327 = scalar_select %p326, %s24, 0
      %p328 = scmp.lt.s32.totalorder %s323, 1
      %s329 = scalar_select %p328, %s323, 1
      %s330 = smul.addr %s327, 2
      %s331 = sadd.s32 %s329, %s330
      %s332 = smul.addr %s325, 2
      %s333 = sadd.s32 %s331, %s332
      %s334 = smul.addr %s333, 4
      %s335 = scalar_lea.vmem %s5, %s334
      %s336 = smul.u32 32, %s23
      %p337 = scmp.lt.s32.totalorder %s22, 1
      %s338 = scalar_select %p337, %s22, 1
      %p339 = scmp.lt.s32.totalorder %s336, 31
      %s340 = scalar_select %p339, %s336, 31
      %s341 = smul.addr %s338, 32
      %s342 = sadd.s32 %s340, %s341
      %s343 = smul.addr %s342, 8
      %s344 = scalar_lea.vmem %s0, %s343
      %s345 = smul.u32 32, %s23
      %p346 = scmp.lt.s32.totalorder %s22, 1
      %s347 = scalar_select %p346, %s22, 1
      %p348 = scmp.lt.s32.totalorder %s24, 0
      %s349 = scalar_select %p348, %s24, 0
      %s350 = smul.addr %s347, 2
      %s351 = sadd.s32 %s349, %s350
      %s352 = smul.addr %s351, 8
      %s353 = scalar_lea.vmem %s1, %s352
      %s354 = smul.u32 2, %s23
      %p355 = scmp.lt.s32.totalorder %s22, 1
      %s356 = scalar_select %p355, %s22, 1
      %p357 = scmp.lt.s32.totalorder %s24, 0
      %s358 = scalar_select %p357, %s24, 0
      %p359 = scmp.lt.s32.totalorder %s354, 1
      %s360 = scalar_select %p359, %s354, 1
      %s361 = smul.addr %s358, 2
      %s362 = sadd.s32 %s360, %s361
      %s363 = smul.addr %s356, 2
      %s364 = sadd.s32 %s362, %s363
      %s365 = smul.addr %s364, 4
      %s366 = scalar_lea.vmem %s2, %s365
      %s367 = smul.u32 2, %s23
      %s368 = smul.u32 2, %s23
      %p369 = scmp.lt.s32.totalorder %s22, 1
      %s370 = scalar_select %p369, %s22, 1
      %p371 = scmp.lt.s32.totalorder %s24, 0
      %s372 = scalar_select %p371, %s24, 0
      %p373 = scmp.lt.s32.totalorder %s368, 1
      %s374 = scalar_select %p373, %s368, 1
      %s375 = smul.addr %s372, 2
      %s376 = sadd.s32 %s374, %s375
      %s377 = smul.addr %s370, 2
      %s378 = sadd.s32 %s376, %s377
      %s379 = smul.addr %s378, 4
      %s380 = scalar_lea.vmem %s4, %s379
      %s381 = smul.u32 2, %s23
      %s382 = smul.u32 2, %s23
      %p383 = scmp.lt.s32.totalorder %s22, 1
      %s384 = scalar_select %p383, %s22, 1
      %p385 = scmp.lt.s32.totalorder %s24, 0
      %s386 = scalar_select %p385, %s24, 0
      %p387 = scmp.lt.s32.totalorder %s382, 1
      %s388 = scalar_select %p387, %s382, 1
      %s389 = smul.addr %s386, 2
      %s390 = sadd.s32 %s388, %s389
      %s391 = smul.addr %s384, 2
      %s392 = sadd.s32 %s390, %s391
      %s393 = smul.addr %s392, 4
      %s394 = scalar_lea.vmem %s5, %s393
      %s395 = smul.u32 2, %s23
      %v396 = vld [vmem:[%s344] sm:$0xff]
      %v397 = vld [vmem:[%s344 + $0x8] sm:$0xff]
      %v398 = vld [vmem:[%s344 + $0x10] sm:$0xff]
      %v399 = vld [vmem:[%s344 + $0x18] sm:$0xff]
      %v400 = vld [vmem:[%s344 + $0x20] sm:$0xff]
      %v401 = vld [vmem:[%s344 + $0x28] sm:$0xff]
      %v402 = vld [vmem:[%s344 + $0x30] sm:$0xff]
      %v403 = vld [vmem:[%s344 + $0x38] sm:$0xff]
      %v404 = vld [vmem:[%s344 + $0x40] sm:$0xff]
      %v405 = vld [vmem:[%s344 + $0x48] sm:$0xff]
      %v406 = vld [vmem:[%s344 + $0x50] sm:$0xff]
      %v407 = vld [vmem:[%s344 + $0x58] sm:$0xff]
      %v408 = vld [vmem:[%s344 + $0x60] sm:$0xff]
      %v409 = vld [vmem:[%s344 + $0x68] sm:$0xff]
      %v410 = vld [vmem:[%s344 + $0x70] sm:$0xff]
      %v411 = vld [vmem:[%s344 + $0x78] sm:$0xff]
      %v412 = vld [vmem:[%s344 + $0x80] sm:$0xff]
      %v413 = vld [vmem:[%s344 + $0x88] sm:$0xff]
      %v414 = vld [vmem:[%s344 + $0x90] sm:$0xff]
      %v415 = vld [vmem:[%s344 + $0x98] sm:$0xff]
      %v416 = vld [vmem:[%s344 + $0xa0] sm:$0xff]
      %v417 = vld [vmem:[%s344 + $0xa8] sm:$0xff]
      %v418 = vld [vmem:[%s344 + $0xb0] sm:$0xff]
      %v419 = vld [vmem:[%s344 + $0xb8] sm:$0xff]
      %v420 = vld [vmem:[%s344 + $0xc0] sm:$0xff]
      %v421 = vld [vmem:[%s344 + $0xc8] sm:$0xff]
      %v422 = vld [vmem:[%s344 + $0xd0] sm:$0xff]
      %v423 = vld [vmem:[%s344 + $0xd8] sm:$0xff]
      %v424 = vld [vmem:[%s344 + $0xe0] sm:$0xff]
      %v425 = vld [vmem:[%s344 + $0xe8] sm:$0xff]
      %v426 = vld [vmem:[%s344 + $0xf0] sm:$0xff]
      %v427 = vld [vmem:[%s344 + $0xf8] sm:$0xff]
      %v428 = vfloor.f32 %v396
      %v429 = vfloor.f32 %v397
      %v430 = vfloor.f32 %v398
      %v431 = vfloor.f32 %v399
      %v432 = vfloor.f32 %v400
      %v433 = vfloor.f32 %v401
      %v434 = vfloor.f32 %v402
      %v435 = vfloor.f32 %v403
      %v436 = vfloor.f32 %v404
      %v437 = vfloor.f32 %v405
      %v438 = vfloor.f32 %v406
      %v439 = vfloor.f32 %v407
      %v440 = vfloor.f32 %v408
      %v441 = vfloor.f32 %v409
      %v442 = vfloor.f32 %v410
      %v443 = vfloor.f32 %v411
      %v444 = vfloor.f32 %v412
      %v445 = vfloor.f32 %v413
      %v446 = vfloor.f32 %v414
      %v447 = vfloor.f32 %v415
      %v448 = vfloor.f32 %v416
      %v449 = vfloor.f32 %v417
      %v450 = vfloor.f32 %v418
      %v451 = vfloor.f32 %v419
      %v452 = vfloor.f32 %v420
      %v453 = vfloor.f32 %v421
      %v454 = vfloor.f32 %v422
      %v455 = vfloor.f32 %v423
      %v456 = vfloor.f32 %v424
      %v457 = vfloor.f32 %v425
      %v458 = vfloor.f32 %v426
      %v459 = vfloor.f32 %v427
      %v460 = vsub.f32 %v396, %v428
      %v461 = vsub.f32 %v397, %v429
      %v462 = vsub.f32 %v398, %v430
      %v463 = vsub.f32 %v399, %v431
      %v464 = vsub.f32 %v400, %v432
      %v465 = vsub.f32 %v401, %v433
      %v466 = vsub.f32 %v402, %v434
      %v467 = vsub.f32 %v403, %v435
      %v468 = vsub.f32 %v404, %v436
      %v469 = vsub.f32 %v405, %v437
      %v470 = vsub.f32 %v406, %v438
      %v471 = vsub.f32 %v407, %v439
      %v472 = vsub.f32 %v408, %v440
      %v473 = vsub.f32 %v409, %v441
      %v474 = vsub.f32 %v410, %v442
      %v475 = vsub.f32 %v411, %v443
      %v476 = vsub.f32 %v412, %v444
      %v477 = vsub.f32 %v413, %v445
      %v478 = vsub.f32 %v414, %v446
      %v479 = vsub.f32 %v415, %v447
      %v480 = vsub.f32 %v416, %v448
      %v481 = vsub.f32 %v417, %v449
      %v482 = vsub.f32 %v418, %v450
      %v483 = vsub.f32 %v419, %v451
      %v484 = vsub.f32 %v420, %v452
      %v485 = vsub.f32 %v421, %v453
      %v486 = vsub.f32 %v422, %v454
      %v487 = vsub.f32 %v423, %v455
      %v488 = vsub.f32 %v424, %v456
      %v489 = vsub.f32 %v425, %v457
      %v490 = vsub.f32 %v426, %v458
      %v491 = vsub.f32 %v427, %v459
      %v492 = vcvt.f32.s32.to.zero.pseudo %v428
      %v493 = vcvt.f32.s32.to.zero.pseudo %v429
      %v494 = vcvt.f32.s32.to.zero.pseudo %v430
      %v495 = vcvt.f32.s32.to.zero.pseudo %v431
      %v496 = vcvt.f32.s32.to.zero.pseudo %v432
      %v497 = vcvt.f32.s32.to.zero.pseudo %v433
      %v498 = vcvt.f32.s32.to.zero.pseudo %v434
      %v499 = vcvt.f32.s32.to.zero.pseudo %v435
      %v500 = vcvt.f32.s32.to.zero.pseudo %v436
      %v501 = vcvt.f32.s32.to.zero.pseudo %v437
      %v502 = vcvt.f32.s32.to.zero.pseudo %v438
      %v503 = vcvt.f32.s32.to.zero.pseudo %v439
      %v504 = vcvt.f32.s32.to.zero.pseudo %v440
      %v505 = vcvt.f32.s32.to.zero.pseudo %v441
      %v506 = vcvt.f32.s32.to.zero.pseudo %v442
      %v507 = vcvt.f32.s32.to.zero.pseudo %v443
      %v508 = vcvt.f32.s32.to.zero.pseudo %v444
      %v509 = vcvt.f32.s32.to.zero.pseudo %v445
      %v510 = vcvt.f32.s32.to.zero.pseudo %v446
      %v511 = vcvt.f32.s32.to.zero.pseudo %v447
      %v512 = vcvt.f32.s32.to.zero.pseudo %v448
      %v513 = vcvt.f32.s32.to.zero.pseudo %v449
      %v514 = vcvt.f32.s32.to.zero.pseudo %v450
      %v515 = vcvt.f32.s32.to.zero.pseudo %v451
      %v516 = vcvt.f32.s32.to.zero.pseudo %v452
      %v517 = vcvt.f32.s32.to.zero.pseudo %v453
      %v518 = vcvt.f32.s32.to.zero.pseudo %v454
      %v519 = vcvt.f32.s32.to.zero.pseudo %v455
      %v520 = vcvt.f32.s32.to.zero.pseudo %v456
      %v521 = vcvt.f32.s32.to.zero.pseudo %v457
      %v522 = vcvt.f32.s32.to.zero.pseudo %v458
      %v523 = vcvt.f32.s32.to.zero.pseudo %v459
      %v524 = vlaneseq
      %v525 = vand.u32 %v524, 127
      %526 = vset.pattern.permute.xlu0 1
      %527 = vperm.xlu0 %526, %v492
      %v528 = vpop.permute.xlu0 %527
      %529 = vset.pattern.permute.xlu0 1
      %530 = vperm.xlu0 %529, %v493
      %v531 = vpop.permute.xlu0 %530
      %532 = vset.pattern.permute.xlu0 1
      %533 = vperm.xlu0 %532, %v494
      %v534 = vpop.permute.xlu0 %533
      %535 = vset.pattern.permute.xlu0 1
      %536 = vperm.xlu0 %535, %v495
      %v537 = vpop.permute.xlu0 %536
      %538 = vset.pattern.permute.xlu0 1
      %539 = vperm.xlu0 %538, %v496
      %v540 = vpop.permute.xlu0 %539
      %541 = vset.pattern.permute.xlu0 1
      %542 = vperm.xlu0 %541, %v497
      %v543 = vpop.permute.xlu0 %542
      %544 = vset.pattern.permute.xlu0 1
      %545 = vperm.xlu0 %544, %v498
      %v546 = vpop.permute.xlu0 %545
      %547 = vset.pattern.permute.xlu0 1
      %548 = vperm.xlu0 %547, %v499
      %v549 = vpop.permute.xlu0 %548
      %550 = vset.pattern.permute.xlu0 1
      %551 = vperm.xlu0 %550, %v500
      %v552 = vpop.permute.xlu0 %551
      %553 = vset.pattern.permute.xlu0 1
      %554 = vperm.xlu0 %553, %v501
      %v555 = vpop.permute.xlu0 %554
      %556 = vset.pattern.permute.xlu0 1
      %557 = vperm.xlu0 %556, %v502
      %v558 = vpop.permute.xlu0 %557
      %559 = vset.pattern.permute.xlu0 1
      %560 = vperm.xlu0 %559, %v503
      %v561 = vpop.permute.xlu0 %560
      %562 = vset.pattern.permute.xlu0 1
      %563 = vperm.xlu0 %562, %v504
      %v564 = vpop.permute.xlu0 %563
      %565 = vset.pattern.permute.xlu0 1
      %566 = vperm.xlu0 %565, %v505
      %v567 = vpop.permute.xlu0 %566
      %568 = vset.pattern.permute.xlu0 1
      %569 = vperm.xlu0 %568, %v506
      %v570 = vpop.permute.xlu0 %569
      %571 = vset.pattern.permute.xlu0 1
      %572 = vperm.xlu0 %571, %v507
      %v573 = vpop.permute.xlu0 %572
      %574 = vset.pattern.permute.xlu0 1
      %575 = vperm.xlu0 %574, %v508
      %v576 = vpop.permute.xlu0 %575
      %577 = vset.pattern.permute.xlu0 1
      %578 = vperm.xlu0 %577, %v509
      %v579 = vpop.permute.xlu0 %578
      %580 = vset.pattern.permute.xlu0 1
      %581 = vperm.xlu0 %580, %v510
      %v582 = vpop.permute.xlu0 %581
      %583 = vset.pattern.permute.xlu0 1
      %584 = vperm.xlu0 %583, %v511
      %v585 = vpop.permute.xlu0 %584
      %586 = vset.pattern.permute.xlu0 1
      %587 = vperm.xlu0 %586, %v512
      %v588 = vpop.permute.xlu0 %587
      %589 = vset.pattern.permute.xlu0 1
      %590 = vperm.xlu0 %589, %v513
      %v591 = vpop.permute.xlu0 %590
      %592 = vset.pattern.permute.xlu0 1
      %593 = vperm.xlu0 %592, %v514
      %v594 = vpop.permute.xlu0 %593
      %595 = vset.pattern.permute.xlu0 1
      %596 = vperm.xlu0 %595, %v515
      %v597 = vpop.permute.xlu0 %596
      %598 = vset.pattern.permute.xlu0 1
      %599 = vperm.xlu0 %598, %v516
      %v600 = vpop.permute.xlu0 %599
      %601 = vset.pattern.permute.xlu0 1
      %602 = vperm.xlu0 %601, %v517
      %v603 = vpop.permute.xlu0 %602
      %604 = vset.pattern.permute.xlu0 1
      %605 = vperm.xlu0 %604, %v518
      %v606 = vpop.permute.xlu0 %605
      %607 = vset.pattern.permute.xlu0 1
      %608 = vperm.xlu0 %607, %v519
      %v609 = vpop.permute.xlu0 %608
      %610 = vset.pattern.permute.xlu0 1
      %611 = vperm.xlu0 %610, %v520
      %v612 = vpop.permute.xlu0 %611
      %613 = vset.pattern.permute.xlu0 1
      %614 = vperm.xlu0 %613, %v521
      %v615 = vpop.permute.xlu0 %614
      %616 = vset.pattern.permute.xlu0 1
      %617 = vperm.xlu0 %616, %v522
      %v618 = vpop.permute.xlu0 %617
      %619 = vset.pattern.permute.xlu0 1
      %620 = vperm.xlu0 %619, %v523
      %v621 = vpop.permute.xlu0 %620
      %vm622 = vcmp.eq.s32.totalorder %v525, %v528
      %vm623 = vcmp.eq.s32.totalorder %v525, %v531
      %vm624 = vcmp.eq.s32.totalorder %v525, %v534
      %vm625 = vcmp.eq.s32.totalorder %v525, %v537
      %vm626 = vcmp.eq.s32.totalorder %v525, %v540
      %vm627 = vcmp.eq.s32.totalorder %v525, %v543
      %vm628 = vcmp.eq.s32.totalorder %v525, %v546
      %vm629 = vcmp.eq.s32.totalorder %v525, %v549
      %vm630 = vcmp.eq.s32.totalorder %v525, %v552
      %vm631 = vcmp.eq.s32.totalorder %v525, %v555
      %vm632 = vcmp.eq.s32.totalorder %v525, %v558
      %vm633 = vcmp.eq.s32.totalorder %v525, %v561
      %vm634 = vcmp.eq.s32.totalorder %v525, %v564
      %vm635 = vcmp.eq.s32.totalorder %v525, %v567
      %vm636 = vcmp.eq.s32.totalorder %v525, %v570
      %vm637 = vcmp.eq.s32.totalorder %v525, %v573
      %vm638 = vcmp.eq.s32.totalorder %v525, %v576
      %vm639 = vcmp.eq.s32.totalorder %v525, %v579
      %vm640 = vcmp.eq.s32.totalorder %v525, %v582
      %vm641 = vcmp.eq.s32.totalorder %v525, %v585
      %vm642 = vcmp.eq.s32.totalorder %v525, %v588
      %vm643 = vcmp.eq.s32.totalorder %v525, %v591
      %vm644 = vcmp.eq.s32.totalorder %v525, %v594
      %vm645 = vcmp.eq.s32.totalorder %v525, %v597
      %vm646 = vcmp.eq.s32.totalorder %v525, %v600
      %vm647 = vcmp.eq.s32.totalorder %v525, %v603
      %vm648 = vcmp.eq.s32.totalorder %v525, %v606
      %vm649 = vcmp.eq.s32.totalorder %v525, %v609
      %vm650 = vcmp.eq.s32.totalorder %v525, %v612
      %vm651 = vcmp.eq.s32.totalorder %v525, %v615
      %vm652 = vcmp.eq.s32.totalorder %v525, %v618
      %vm653 = vcmp.eq.s32.totalorder %v525, %v621
      %v654 = vsub.f32 1.0, %v460
      %v655 = vsub.f32 1.0, %v461
      %v656 = vsub.f32 1.0, %v462
      %v657 = vsub.f32 1.0, %v463
      %v658 = vsub.f32 1.0, %v464
      %v659 = vsub.f32 1.0, %v465
      %v660 = vsub.f32 1.0, %v466
      %v661 = vsub.f32 1.0, %v467
      %v662 = vsub.f32 1.0, %v468
      %v663 = vsub.f32 1.0, %v469
      %v664 = vsub.f32 1.0, %v470
      %v665 = vsub.f32 1.0, %v471
      %v666 = vsub.f32 1.0, %v472
      %v667 = vsub.f32 1.0, %v473
      %v668 = vsub.f32 1.0, %v474
      %v669 = vsub.f32 1.0, %v475
      %v670 = vsub.f32 1.0, %v476
      %v671 = vsub.f32 1.0, %v477
      %v672 = vsub.f32 1.0, %v478
      %v673 = vsub.f32 1.0, %v479
      %v674 = vsub.f32 1.0, %v480
      %v675 = vsub.f32 1.0, %v481
      %v676 = vsub.f32 1.0, %v482
      %v677 = vsub.f32 1.0, %v483
      %v678 = vsub.f32 1.0, %v484
      %v679 = vsub.f32 1.0, %v485
      %v680 = vsub.f32 1.0, %v486
      %v681 = vsub.f32 1.0, %v487
      %v682 = vsub.f32 1.0, %v488
      %v683 = vsub.f32 1.0, %v489
      %v684 = vsub.f32 1.0, %v490
      %v685 = vsub.f32 1.0, %v491
      %687 = vset.pattern.permute.xlu0 1
      %688 = vperm.xlu0 %687, %v654
      %v689 = vpop.permute.xlu0 %688
      %692 = vset.pattern.permute.xlu0 1
      %693 = vperm.xlu0 %692, %v655
      %v694 = vpop.permute.xlu0 %693
      %697 = vset.pattern.permute.xlu0 1
      %698 = vperm.xlu0 %697, %v656
      %v699 = vpop.permute.xlu0 %698
      %702 = vset.pattern.permute.xlu0 1
      %703 = vperm.xlu0 %702, %v657
      %v704 = vpop.permute.xlu0 %703
      %707 = vset.pattern.permute.xlu0 1
      %708 = vperm.xlu0 %707, %v658
      %v709 = vpop.permute.xlu0 %708
      %712 = vset.pattern.permute.xlu0 1
      %713 = vperm.xlu0 %712, %v659
      %v714 = vpop.permute.xlu0 %713
      %717 = vset.pattern.permute.xlu0 1
      %718 = vperm.xlu0 %717, %v660
      %v719 = vpop.permute.xlu0 %718
      %722 = vset.pattern.permute.xlu0 1
      %723 = vperm.xlu0 %722, %v661
      %v724 = vpop.permute.xlu0 %723
      %727 = vset.pattern.permute.xlu0 1
      %728 = vperm.xlu0 %727, %v662
      %v729 = vpop.permute.xlu0 %728
      %732 = vset.pattern.permute.xlu0 1
      %733 = vperm.xlu0 %732, %v663
      %v734 = vpop.permute.xlu0 %733
      %737 = vset.pattern.permute.xlu0 1
      %738 = vperm.xlu0 %737, %v664
      %v739 = vpop.permute.xlu0 %738
      %742 = vset.pattern.permute.xlu0 1
      %743 = vperm.xlu0 %742, %v665
      %v744 = vpop.permute.xlu0 %743
      %747 = vset.pattern.permute.xlu0 1
      %748 = vperm.xlu0 %747, %v666
      %v749 = vpop.permute.xlu0 %748
      %752 = vset.pattern.permute.xlu0 1
      %753 = vperm.xlu0 %752, %v667
      %v754 = vpop.permute.xlu0 %753
      %757 = vset.pattern.permute.xlu0 1
      %758 = vperm.xlu0 %757, %v668
      %v759 = vpop.permute.xlu0 %758
      %762 = vset.pattern.permute.xlu0 1
      %763 = vperm.xlu0 %762, %v669
      %v764 = vpop.permute.xlu0 %763
      %767 = vset.pattern.permute.xlu0 1
      %768 = vperm.xlu0 %767, %v670
      %v769 = vpop.permute.xlu0 %768
      %772 = vset.pattern.permute.xlu0 1
      %773 = vperm.xlu0 %772, %v671
      %v774 = vpop.permute.xlu0 %773
      %777 = vset.pattern.permute.xlu0 1
      %778 = vperm.xlu0 %777, %v672
      %v779 = vpop.permute.xlu0 %778
      %782 = vset.pattern.permute.xlu0 1
      %783 = vperm.xlu0 %782, %v673
      %v784 = vpop.permute.xlu0 %783
      %787 = vset.pattern.permute.xlu0 1
      %788 = vperm.xlu0 %787, %v674
      %v789 = vpop.permute.xlu0 %788
      %792 = vset.pattern.permute.xlu0 1
      %793 = vperm.xlu0 %792, %v675
      %v794 = vpop.permute.xlu0 %793
      %797 = vset.pattern.permute.xlu0 1
      %798 = vperm.xlu0 %797, %v676
      %v799 = vpop.permute.xlu0 %798
      %802 = vset.pattern.permute.xlu0 1
      %803 = vperm.xlu0 %802, %v677
      %v804 = vpop.permute.xlu0 %803
      %807 = vset.pattern.permute.xlu0 1
      %808 = vperm.xlu0 %807, %v678
      %v809 = vpop.permute.xlu0 %808
      %812 = vset.pattern.permute.xlu0 1
      %813 = vperm.xlu0 %812, %v679
      %v814 = vpop.permute.xlu0 %813
      %817 = vset.pattern.permute.xlu0 1
      %818 = vperm.xlu0 %817, %v680
      %v819 = vpop.permute.xlu0 %818
      %822 = vset.pattern.permute.xlu0 1
      %823 = vperm.xlu0 %822, %v681
      %v824 = vpop.permute.xlu0 %823
      %827 = vset.pattern.permute.xlu0 1
      %828 = vperm.xlu0 %827, %v682
      %v829 = vpop.permute.xlu0 %828
      %832 = vset.pattern.permute.xlu0 1
      %833 = vperm.xlu0 %832, %v683
      %v834 = vpop.permute.xlu0 %833
      %837 = vset.pattern.permute.xlu0 1
      %838 = vperm.xlu0 %837, %v684
      %v839 = vpop.permute.xlu0 %838
      %842 = vset.pattern.permute.xlu0 1
      %843 = vperm.xlu0 %842, %v685
      %v844 = vpop.permute.xlu0 %843
      %v846 = vsel %vm622, %v689, 0.0
      %v847 = vsel %vm623, %v694, 0.0
      %v848 = vsel %vm624, %v699, 0.0
      %v849 = vsel %vm625, %v704, 0.0
      %v850 = vsel %vm626, %v709, 0.0
      %v851 = vsel %vm627, %v714, 0.0
      %v852 = vsel %vm628, %v719, 0.0
      %v853 = vsel %vm629, %v724, 0.0
      %v854 = vsel %vm630, %v729, 0.0
      %v855 = vsel %vm631, %v734, 0.0
      %v856 = vsel %vm632, %v739, 0.0
      %v857 = vsel %vm633, %v744, 0.0
      %v858 = vsel %vm634, %v749, 0.0
      %v859 = vsel %vm635, %v754, 0.0
      %v860 = vsel %vm636, %v759, 0.0
      %v861 = vsel %vm637, %v764, 0.0
      %v862 = vsel %vm638, %v769, 0.0
      %v863 = vsel %vm639, %v774, 0.0
      %v864 = vsel %vm640, %v779, 0.0
      %v865 = vsel %vm641, %v784, 0.0
      %v866 = vsel %vm642, %v789, 0.0
      %v867 = vsel %vm643, %v794, 0.0
      %v868 = vsel %vm644, %v799, 0.0
      %v869 = vsel %vm645, %v804, 0.0
      %v870 = vsel %vm646, %v809, 0.0
      %v871 = vsel %vm647, %v814, 0.0
      %v872 = vsel %vm648, %v819, 0.0
      %v873 = vsel %vm649, %v824, 0.0
      %v874 = vsel %vm650, %v829, 0.0
      %v875 = vsel %vm651, %v834, 0.0
      %v876 = vsel %vm652, %v839, 0.0
      %v877 = vsel %vm653, %v844, 0.0
      %v878 = vadd.s32 %v492, 1
      %v879 = vadd.s32 %v493, 1
      %v880 = vadd.s32 %v494, 1
      %v881 = vadd.s32 %v495, 1
      %v882 = vadd.s32 %v496, 1
      %v883 = vadd.s32 %v497, 1
      %v884 = vadd.s32 %v498, 1
      %v885 = vadd.s32 %v499, 1
      %v886 = vadd.s32 %v500, 1
      %v887 = vadd.s32 %v501, 1
      %v888 = vadd.s32 %v502, 1
      %v889 = vadd.s32 %v503, 1
      %v890 = vadd.s32 %v504, 1
      %v891 = vadd.s32 %v505, 1
      %v892 = vadd.s32 %v506, 1
      %v893 = vadd.s32 %v507, 1
      %v894 = vadd.s32 %v508, 1
      %v895 = vadd.s32 %v509, 1
      %v896 = vadd.s32 %v510, 1
      %v897 = vadd.s32 %v511, 1
      %v898 = vadd.s32 %v512, 1
      %v899 = vadd.s32 %v513, 1
      %v900 = vadd.s32 %v514, 1
      %v901 = vadd.s32 %v515, 1
      %v902 = vadd.s32 %v516, 1
      %v903 = vadd.s32 %v517, 1
      %v904 = vadd.s32 %v518, 1
      %v905 = vadd.s32 %v519, 1
      %v906 = vadd.s32 %v520, 1
      %v907 = vadd.s32 %v521, 1
      %v908 = vadd.s32 %v522, 1
      %v909 = vadd.s32 %v523, 1
      %910 = vset.pattern.permute.xlu0 1
      %911 = vperm.xlu0 %910, %v878
      %v912 = vpop.permute.xlu0 %911
      %913 = vset.pattern.permute.xlu0 1
      %914 = vperm.xlu0 %913, %v879
      %v915 = vpop.permute.xlu0 %914
      %916 = vset.pattern.permute.xlu0 1
      %917 = vperm.xlu0 %916, %v880
      %v918 = vpop.permute.xlu0 %917
      %919 = vset.pattern.permute.xlu0 1
      %920 = vperm.xlu0 %919, %v881
      %v921 = vpop.permute.xlu0 %920
      %922 = vset.pattern.permute.xlu0 1
      %923 = vperm.xlu0 %922, %v882
      %v924 = vpop.permute.xlu0 %923
      %925 = vset.pattern.permute.xlu0 1
      %926 = vperm.xlu0 %925, %v883
      %v927 = vpop.permute.xlu0 %926
      %928 = vset.pattern.permute.xlu0 1
      %929 = vperm.xlu0 %928, %v884
      %v930 = vpop.permute.xlu0 %929
      %931 = vset.pattern.permute.xlu0 1
      %932 = vperm.xlu0 %931, %v885
      %v933 = vpop.permute.xlu0 %932
      %934 = vset.pattern.permute.xlu0 1
      %935 = vperm.xlu0 %934, %v886
      %v936 = vpop.permute.xlu0 %935
      %937 = vset.pattern.permute.xlu0 1
      %938 = vperm.xlu0 %937, %v887
      %v939 = vpop.permute.xlu0 %938
      %940 = vset.pattern.permute.xlu0 1
      %941 = vperm.xlu0 %940, %v888
      %v942 = vpop.permute.xlu0 %941
      %943 = vset.pattern.permute.xlu0 1
      %944 = vperm.xlu0 %943, %v889
      %v945 = vpop.permute.xlu0 %944
      %946 = vset.pattern.permute.xlu0 1
      %947 = vperm.xlu0 %946, %v890
      %v948 = vpop.permute.xlu0 %947
      %949 = vset.pattern.permute.xlu0 1
      %950 = vperm.xlu0 %949, %v891
      %v951 = vpop.permute.xlu0 %950
      %952 = vset.pattern.permute.xlu0 1
      %953 = vperm.xlu0 %952, %v892
      %v954 = vpop.permute.xlu0 %953
      %955 = vset.pattern.permute.xlu0 1
      %956 = vperm.xlu0 %955, %v893
      %v957 = vpop.permute.xlu0 %956
      %958 = vset.pattern.permute.xlu0 1
      %959 = vperm.xlu0 %958, %v894
      %v960 = vpop.permute.xlu0 %959
      %961 = vset.pattern.permute.xlu0 1
      %962 = vperm.xlu0 %961, %v895
      %v963 = vpop.permute.xlu0 %962
      %964 = vset.pattern.permute.xlu0 1
      %965 = vperm.xlu0 %964, %v896
      %v966 = vpop.permute.xlu0 %965
      %967 = vset.pattern.permute.xlu0 1
      %968 = vperm.xlu0 %967, %v897
      %v969 = vpop.permute.xlu0 %968
      %970 = vset.pattern.permute.xlu0 1
      %971 = vperm.xlu0 %970, %v898
      %v972 = vpop.permute.xlu0 %971
      %973 = vset.pattern.permute.xlu0 1
      %974 = vperm.xlu0 %973, %v899
      %v975 = vpop.permute.xlu0 %974
      %976 = vset.pattern.permute.xlu0 1
      %977 = vperm.xlu0 %976, %v900
      %v978 = vpop.permute.xlu0 %977
      %979 = vset.pattern.permute.xlu0 1
      %980 = vperm.xlu0 %979, %v901
      %v981 = vpop.permute.xlu0 %980
      %982 = vset.pattern.permute.xlu0 1
      %983 = vperm.xlu0 %982, %v902
      %v984 = vpop.permute.xlu0 %983
      %985 = vset.pattern.permute.xlu0 1
      %986 = vperm.xlu0 %985, %v903
      %v987 = vpop.permute.xlu0 %986
      %988 = vset.pattern.permute.xlu0 1
      %989 = vperm.xlu0 %988, %v904
      %v990 = vpop.permute.xlu0 %989
      %991 = vset.pattern.permute.xlu0 1
      %992 = vperm.xlu0 %991, %v905
      %v993 = vpop.permute.xlu0 %992
      %994 = vset.pattern.permute.xlu0 1
      %995 = vperm.xlu0 %994, %v906
      %v996 = vpop.permute.xlu0 %995
      %997 = vset.pattern.permute.xlu0 1
      %998 = vperm.xlu0 %997, %v907
      %v999 = vpop.permute.xlu0 %998
      %1000 = vset.pattern.permute.xlu0 1
      %1001 = vperm.xlu0 %1000, %v908
      %v1002 = vpop.permute.xlu0 %1001
      %1003 = vset.pattern.permute.xlu0 1
      %1004 = vperm.xlu0 %1003, %v909
      %v1005 = vpop.permute.xlu0 %1004
      %vm1006 = vcmp.eq.s32.totalorder %v525, %v912
      %vm1007 = vcmp.eq.s32.totalorder %v525, %v915
      %vm1008 = vcmp.eq.s32.totalorder %v525, %v918
      %vm1009 = vcmp.eq.s32.totalorder %v525, %v921
      %vm1010 = vcmp.eq.s32.totalorder %v525, %v924
      %vm1011 = vcmp.eq.s32.totalorder %v525, %v927
      %vm1012 = vcmp.eq.s32.totalorder %v525, %v930
      %vm1013 = vcmp.eq.s32.totalorder %v525, %v933
      %vm1014 = vcmp.eq.s32.totalorder %v525, %v936
      %vm1015 = vcmp.eq.s32.totalorder %v525, %v939
      %vm1016 = vcmp.eq.s32.totalorder %v525, %v942
      %vm1017 = vcmp.eq.s32.totalorder %v525, %v945
      %vm1018 = vcmp.eq.s32.totalorder %v525, %v948
      %vm1019 = vcmp.eq.s32.totalorder %v525, %v951
      %vm1020 = vcmp.eq.s32.totalorder %v525, %v954
      %vm1021 = vcmp.eq.s32.totalorder %v525, %v957
      %vm1022 = vcmp.eq.s32.totalorder %v525, %v960
      %vm1023 = vcmp.eq.s32.totalorder %v525, %v963
      %vm1024 = vcmp.eq.s32.totalorder %v525, %v966
      %vm1025 = vcmp.eq.s32.totalorder %v525, %v969
      %vm1026 = vcmp.eq.s32.totalorder %v525, %v972
      %vm1027 = vcmp.eq.s32.totalorder %v525, %v975
      %vm1028 = vcmp.eq.s32.totalorder %v525, %v978
      %vm1029 = vcmp.eq.s32.totalorder %v525, %v981
      %vm1030 = vcmp.eq.s32.totalorder %v525, %v984
      %vm1031 = vcmp.eq.s32.totalorder %v525, %v987
      %vm1032 = vcmp.eq.s32.totalorder %v525, %v990
      %vm1033 = vcmp.eq.s32.totalorder %v525, %v993
      %vm1034 = vcmp.eq.s32.totalorder %v525, %v996
      %vm1035 = vcmp.eq.s32.totalorder %v525, %v999
      %vm1036 = vcmp.eq.s32.totalorder %v525, %v1002
      %vm1037 = vcmp.eq.s32.totalorder %v525, %v1005
      %1039 = vset.pattern.permute.xlu0 1
      %1040 = vperm.xlu0 %1039, %v460
      %v1041 = vpop.permute.xlu0 %1040
      %1044 = vset.pattern.permute.xlu0 1
      %1045 = vperm.xlu0 %1044, %v461
      %v1046 = vpop.permute.xlu0 %1045
      %1049 = vset.pattern.permute.xlu0 1
      %1050 = vperm.xlu0 %1049, %v462
      %v1051 = vpop.permute.xlu0 %1050
      %1054 = vset.pattern.permute.xlu0 1
      %1055 = vperm.xlu0 %1054, %v463
      %v1056 = vpop.permute.xlu0 %1055
      %1059 = vset.pattern.permute.xlu0 1
      %1060 = vperm.xlu0 %1059, %v464
      %v1061 = vpop.permute.xlu0 %1060
      %1064 = vset.pattern.permute.xlu0 1
      %1065 = vperm.xlu0 %1064, %v465
      %v1066 = vpop.permute.xlu0 %1065
      %1069 = vset.pattern.permute.xlu0 1
      %1070 = vperm.xlu0 %1069, %v466
      %v1071 = vpop.permute.xlu0 %1070
      %1074 = vset.pattern.permute.xlu0 1
      %1075 = vperm.xlu0 %1074, %v467
      %v1076 = vpop.permute.xlu0 %1075
      %1079 = vset.pattern.permute.xlu0 1
      %1080 = vperm.xlu0 %1079, %v468
      %v1081 = vpop.permute.xlu0 %1080
      %1084 = vset.pattern.permute.xlu0 1
      %1085 = vperm.xlu0 %1084, %v469
      %v1086 = vpop.permute.xlu0 %1085
      %1089 = vset.pattern.permute.xlu0 1
      %1090 = vperm.xlu0 %1089, %v470
      %v1091 = vpop.permute.xlu0 %1090
      %1094 = vset.pattern.permute.xlu0 1
      %1095 = vperm.xlu0 %1094, %v471
      %v1096 = vpop.permute.xlu0 %1095
      %1099 = vset.pattern.permute.xlu0 1
      %1100 = vperm.xlu0 %1099, %v472
      %v1101 = vpop.permute.xlu0 %1100
      %1104 = vset.pattern.permute.xlu0 1
      %1105 = vperm.xlu0 %1104, %v473
      %v1106 = vpop.permute.xlu0 %1105
      %1109 = vset.pattern.permute.xlu0 1
      %1110 = vperm.xlu0 %1109, %v474
      %v1111 = vpop.permute.xlu0 %1110
      %1114 = vset.pattern.permute.xlu0 1
      %1115 = vperm.xlu0 %1114, %v475
      %v1116 = vpop.permute.xlu0 %1115
      %1119 = vset.pattern.permute.xlu0 1
      %1120 = vperm.xlu0 %1119, %v476
      %v1121 = vpop.permute.xlu0 %1120
      %1124 = vset.pattern.permute.xlu0 1
      %1125 = vperm.xlu0 %1124, %v477
      %v1126 = vpop.permute.xlu0 %1125
      %1129 = vset.pattern.permute.xlu0 1
      %1130 = vperm.xlu0 %1129, %v478
      %v1131 = vpop.permute.xlu0 %1130
      %1134 = vset.pattern.permute.xlu0 1
      %1135 = vperm.xlu0 %1134, %v479
      %v1136 = vpop.permute.xlu0 %1135
      %1139 = vset.pattern.permute.xlu0 1
      %1140 = vperm.xlu0 %1139, %v480
      %v1141 = vpop.permute.xlu0 %1140
      %1144 = vset.pattern.permute.xlu0 1
      %1145 = vperm.xlu0 %1144, %v481
      %v1146 = vpop.permute.xlu0 %1145
      %1149 = vset.pattern.permute.xlu0 1
      %1150 = vperm.xlu0 %1149, %v482
      %v1151 = vpop.permute.xlu0 %1150
      %1154 = vset.pattern.permute.xlu0 1
      %1155 = vperm.xlu0 %1154, %v483
      %v1156 = vpop.permute.xlu0 %1155
      %1159 = vset.pattern.permute.xlu0 1
      %1160 = vperm.xlu0 %1159, %v484
      %v1161 = vpop.permute.xlu0 %1160
      %1164 = vset.pattern.permute.xlu0 1
      %1165 = vperm.xlu0 %1164, %v485
      %v1166 = vpop.permute.xlu0 %1165
      %1169 = vset.pattern.permute.xlu0 1
      %1170 = vperm.xlu0 %1169, %v486
      %v1171 = vpop.permute.xlu0 %1170
      %1174 = vset.pattern.permute.xlu0 1
      %1175 = vperm.xlu0 %1174, %v487
      %v1176 = vpop.permute.xlu0 %1175
      %1179 = vset.pattern.permute.xlu0 1
      %1180 = vperm.xlu0 %1179, %v488
      %v1181 = vpop.permute.xlu0 %1180
      %1184 = vset.pattern.permute.xlu0 1
      %1185 = vperm.xlu0 %1184, %v489
      %v1186 = vpop.permute.xlu0 %1185
      %1189 = vset.pattern.permute.xlu0 1
      %1190 = vperm.xlu0 %1189, %v490
      %v1191 = vpop.permute.xlu0 %1190
      %1194 = vset.pattern.permute.xlu0 1
      %1195 = vperm.xlu0 %1194, %v491
      %v1196 = vpop.permute.xlu0 %1195
      %v1198 = vsel %vm1006, %v1041, 0.0
      %v1199 = vsel %vm1007, %v1046, 0.0
      %v1200 = vsel %vm1008, %v1051, 0.0
      %v1201 = vsel %vm1009, %v1056, 0.0
      %v1202 = vsel %vm1010, %v1061, 0.0
      %v1203 = vsel %vm1011, %v1066, 0.0
      %v1204 = vsel %vm1012, %v1071, 0.0
      %v1205 = vsel %vm1013, %v1076, 0.0
      %v1206 = vsel %vm1014, %v1081, 0.0
      %v1207 = vsel %vm1015, %v1086, 0.0
      %v1208 = vsel %vm1016, %v1091, 0.0
      %v1209 = vsel %vm1017, %v1096, 0.0
      %v1210 = vsel %vm1018, %v1101, 0.0
      %v1211 = vsel %vm1019, %v1106, 0.0
      %v1212 = vsel %vm1020, %v1111, 0.0
      %v1213 = vsel %vm1021, %v1116, 0.0
      %v1214 = vsel %vm1022, %v1121, 0.0
      %v1215 = vsel %vm1023, %v1126, 0.0
      %v1216 = vsel %vm1024, %v1131, 0.0
      %v1217 = vsel %vm1025, %v1136, 0.0
      %v1218 = vsel %vm1026, %v1141, 0.0
      %v1219 = vsel %vm1027, %v1146, 0.0
      %v1220 = vsel %vm1028, %v1151, 0.0
      %v1221 = vsel %vm1029, %v1156, 0.0
      %v1222 = vsel %vm1030, %v1161, 0.0
      %v1223 = vsel %vm1031, %v1166, 0.0
      %v1224 = vsel %vm1032, %v1171, 0.0
      %v1225 = vsel %vm1033, %v1176, 0.0
      %v1226 = vsel %vm1034, %v1181, 0.0
      %v1227 = vsel %vm1035, %v1186, 0.0
      %v1228 = vsel %vm1036, %v1191, 0.0
      %v1229 = vsel %vm1037, %v1196, 0.0
      %v1230 = vadd.f32 %v846, %v1198
      %v1231 = vadd.f32 %v847, %v1199
      %v1232 = vadd.f32 %v848, %v1200
      %v1233 = vadd.f32 %v849, %v1201
      %v1234 = vadd.f32 %v850, %v1202
      %v1235 = vadd.f32 %v851, %v1203
      %v1236 = vadd.f32 %v852, %v1204
      %v1237 = vadd.f32 %v853, %v1205
      %v1238 = vadd.f32 %v854, %v1206
      %v1239 = vadd.f32 %v855, %v1207
      %v1240 = vadd.f32 %v856, %v1208
      %v1241 = vadd.f32 %v857, %v1209
      %v1242 = vadd.f32 %v858, %v1210
      %v1243 = vadd.f32 %v859, %v1211
      %v1244 = vadd.f32 %v860, %v1212
      %v1245 = vadd.f32 %v861, %v1213
      %v1246 = vadd.f32 %v862, %v1214
      %v1247 = vadd.f32 %v863, %v1215
      %v1248 = vadd.f32 %v864, %v1216
      %v1249 = vadd.f32 %v865, %v1217
      %v1250 = vadd.f32 %v866, %v1218
      %v1251 = vadd.f32 %v867, %v1219
      %v1252 = vadd.f32 %v868, %v1220
      %v1253 = vadd.f32 %v869, %v1221
      %v1254 = vadd.f32 %v870, %v1222
      %v1255 = vadd.f32 %v871, %v1223
      %v1256 = vadd.f32 %v872, %v1224
      %v1257 = vadd.f32 %v873, %v1225
      %v1258 = vadd.f32 %v874, %v1226
      %v1259 = vadd.f32 %v875, %v1227
      %v1260 = vadd.f32 %v876, %v1228
      %v1261 = vadd.f32 %v877, %v1229
      %1262 = vset.pattern.permute.xlu0 0
      %1263 = vperm.xlu0 %1262, %v492
      %v1264 = vpop.permute.xlu0 %1263
      %1265 = vset.pattern.permute.xlu0 0
      %1266 = vperm.xlu0 %1265, %v493
      %v1267 = vpop.permute.xlu0 %1266
      %1268 = vset.pattern.permute.xlu0 0
      %1269 = vperm.xlu0 %1268, %v494
      %v1270 = vpop.permute.xlu0 %1269
      %1271 = vset.pattern.permute.xlu0 0
      %1272 = vperm.xlu0 %1271, %v495
      %v1273 = vpop.permute.xlu0 %1272
      %1274 = vset.pattern.permute.xlu0 0
      %1275 = vperm.xlu0 %1274, %v496
      %v1276 = vpop.permute.xlu0 %1275
      %1277 = vset.pattern.permute.xlu0 0
      %1278 = vperm.xlu0 %1277, %v497
      %v1279 = vpop.permute.xlu0 %1278
      %1280 = vset.pattern.permute.xlu0 0
      %1281 = vperm.xlu0 %1280, %v498
      %v1282 = vpop.permute.xlu0 %1281
      %1283 = vset.pattern.permute.xlu0 0
      %1284 = vperm.xlu0 %1283, %v499
      %v1285 = vpop.permute.xlu0 %1284
      %1286 = vset.pattern.permute.xlu0 0
      %1287 = vperm.xlu0 %1286, %v500
      %v1288 = vpop.permute.xlu0 %1287
      %1289 = vset.pattern.permute.xlu0 0
      %1290 = vperm.xlu0 %1289, %v501
      %v1291 = vpop.permute.xlu0 %1290
      %1292 = vset.pattern.permute.xlu0 0
      %1293 = vperm.xlu0 %1292, %v502
      %v1294 = vpop.permute.xlu0 %1293
      %1295 = vset.pattern.permute.xlu0 0
      %1296 = vperm.xlu0 %1295, %v503
      %v1297 = vpop.permute.xlu0 %1296
      %1298 = vset.pattern.permute.xlu0 0
      %1299 = vperm.xlu0 %1298, %v504
      %v1300 = vpop.permute.xlu0 %1299
      %1301 = vset.pattern.permute.xlu0 0
      %1302 = vperm.xlu0 %1301, %v505
      %v1303 = vpop.permute.xlu0 %1302
      %1304 = vset.pattern.permute.xlu0 0
      %1305 = vperm.xlu0 %1304, %v506
      %v1306 = vpop.permute.xlu0 %1305
      %1307 = vset.pattern.permute.xlu0 0
      %1308 = vperm.xlu0 %1307, %v507
      %v1309 = vpop.permute.xlu0 %1308
      %1310 = vset.pattern.permute.xlu0 0
      %1311 = vperm.xlu0 %1310, %v508
      %v1312 = vpop.permute.xlu0 %1311
      %1313 = vset.pattern.permute.xlu0 0
      %1314 = vperm.xlu0 %1313, %v509
      %v1315 = vpop.permute.xlu0 %1314
      %1316 = vset.pattern.permute.xlu0 0
      %1317 = vperm.xlu0 %1316, %v510
      %v1318 = vpop.permute.xlu0 %1317
      %1319 = vset.pattern.permute.xlu0 0
      %1320 = vperm.xlu0 %1319, %v511
      %v1321 = vpop.permute.xlu0 %1320
      %1322 = vset.pattern.permute.xlu0 0
      %1323 = vperm.xlu0 %1322, %v512
      %v1324 = vpop.permute.xlu0 %1323
      %1325 = vset.pattern.permute.xlu0 0
      %1326 = vperm.xlu0 %1325, %v513
      %v1327 = vpop.permute.xlu0 %1326
      %1328 = vset.pattern.permute.xlu0 0
      %1329 = vperm.xlu0 %1328, %v514
      %v1330 = vpop.permute.xlu0 %1329
      %1331 = vset.pattern.permute.xlu0 0
      %1332 = vperm.xlu0 %1331, %v515
      %v1333 = vpop.permute.xlu0 %1332
      %1334 = vset.pattern.permute.xlu0 0
      %1335 = vperm.xlu0 %1334, %v516
      %v1336 = vpop.permute.xlu0 %1335
      %1337 = vset.pattern.permute.xlu0 0
      %1338 = vperm.xlu0 %1337, %v517
      %v1339 = vpop.permute.xlu0 %1338
      %1340 = vset.pattern.permute.xlu0 0
      %1341 = vperm.xlu0 %1340, %v518
      %v1342 = vpop.permute.xlu0 %1341
      %1343 = vset.pattern.permute.xlu0 0
      %1344 = vperm.xlu0 %1343, %v519
      %v1345 = vpop.permute.xlu0 %1344
      %1346 = vset.pattern.permute.xlu0 0
      %1347 = vperm.xlu0 %1346, %v520
      %v1348 = vpop.permute.xlu0 %1347
      %1349 = vset.pattern.permute.xlu0 0
      %1350 = vperm.xlu0 %1349, %v521
      %v1351 = vpop.permute.xlu0 %1350
      %1352 = vset.pattern.permute.xlu0 0
      %1353 = vperm.xlu0 %1352, %v522
      %v1354 = vpop.permute.xlu0 %1353
      %1355 = vset.pattern.permute.xlu0 0
      %1356 = vperm.xlu0 %1355, %v523
      %v1357 = vpop.permute.xlu0 %1356
      %vm1358 = vcmp.eq.s32.totalorder %v525, %v1264
      %vm1359 = vcmp.eq.s32.totalorder %v525, %v1267
      %vm1360 = vcmp.eq.s32.totalorder %v525, %v1270
      %vm1361 = vcmp.eq.s32.totalorder %v525, %v1273
      %vm1362 = vcmp.eq.s32.totalorder %v525, %v1276
      %vm1363 = vcmp.eq.s32.totalorder %v525, %v1279
      %vm1364 = vcmp.eq.s32.totalorder %v525, %v1282
      %vm1365 = vcmp.eq.s32.totalorder %v525, %v1285
      %vm1366 = vcmp.eq.s32.totalorder %v525, %v1288
      %vm1367 = vcmp.eq.s32.totalorder %v525, %v1291
      %vm1368 = vcmp.eq.s32.totalorder %v525, %v1294
      %vm1369 = vcmp.eq.s32.totalorder %v525, %v1297
      %vm1370 = vcmp.eq.s32.totalorder %v525, %v1300
      %vm1371 = vcmp.eq.s32.totalorder %v525, %v1303
      %vm1372 = vcmp.eq.s32.totalorder %v525, %v1306
      %vm1373 = vcmp.eq.s32.totalorder %v525, %v1309
      %vm1374 = vcmp.eq.s32.totalorder %v525, %v1312
      %vm1375 = vcmp.eq.s32.totalorder %v525, %v1315
      %vm1376 = vcmp.eq.s32.totalorder %v525, %v1318
      %vm1377 = vcmp.eq.s32.totalorder %v525, %v1321
      %vm1378 = vcmp.eq.s32.totalorder %v525, %v1324
      %vm1379 = vcmp.eq.s32.totalorder %v525, %v1327
      %vm1380 = vcmp.eq.s32.totalorder %v525, %v1330
      %vm1381 = vcmp.eq.s32.totalorder %v525, %v1333
      %vm1382 = vcmp.eq.s32.totalorder %v525, %v1336
      %vm1383 = vcmp.eq.s32.totalorder %v525, %v1339
      %vm1384 = vcmp.eq.s32.totalorder %v525, %v1342
      %vm1385 = vcmp.eq.s32.totalorder %v525, %v1345
      %vm1386 = vcmp.eq.s32.totalorder %v525, %v1348
      %vm1387 = vcmp.eq.s32.totalorder %v525, %v1351
      %vm1388 = vcmp.eq.s32.totalorder %v525, %v1354
      %vm1389 = vcmp.eq.s32.totalorder %v525, %v1357
      %1390 = vset.pattern.permute.xlu0 0
      %1391 = vperm.xlu0 %1390, %v654
      %v1392 = vpop.permute.xlu0 %1391
      %1394 = vset.pattern.permute.xlu0 0
      %1395 = vperm.xlu0 %1394, %v655
      %v1396 = vpop.permute.xlu0 %1395
      %1398 = vset.pattern.permute.xlu0 0
      %1399 = vperm.xlu0 %1398, %v656
      %v1400 = vpop.permute.xlu0 %1399
      %1402 = vset.pattern.permute.xlu0 0
      %1403 = vperm.xlu0 %1402, %v657
      %v1404 = vpop.permute.xlu0 %1403
      %1406 = vset.pattern.permute.xlu0 0
      %1407 = vperm.xlu0 %1406, %v658
      %v1408 = vpop.permute.xlu0 %1407
      %1410 = vset.pattern.permute.xlu0 0
      %1411 = vperm.xlu0 %1410, %v659
      %v1412 = vpop.permute.xlu0 %1411
      %1414 = vset.pattern.permute.xlu0 0
      %1415 = vperm.xlu0 %1414, %v660
      %v1416 = vpop.permute.xlu0 %1415
      %1418 = vset.pattern.permute.xlu0 0
      %1419 = vperm.xlu0 %1418, %v661
      %v1420 = vpop.permute.xlu0 %1419
      %1422 = vset.pattern.permute.xlu0 0
      %1423 = vperm.xlu0 %1422, %v662
      %v1424 = vpop.permute.xlu0 %1423
      %1426 = vset.pattern.permute.xlu0 0
      %1427 = vperm.xlu0 %1426, %v663
      %v1428 = vpop.permute.xlu0 %1427
      %1430 = vset.pattern.permute.xlu0 0
      %1431 = vperm.xlu0 %1430, %v664
      %v1432 = vpop.permute.xlu0 %1431
      %1434 = vset.pattern.permute.xlu0 0
      %1435 = vperm.xlu0 %1434, %v665
      %v1436 = vpop.permute.xlu0 %1435
      %1438 = vset.pattern.permute.xlu0 0
      %1439 = vperm.xlu0 %1438, %v666
      %v1440 = vpop.permute.xlu0 %1439
      %1442 = vset.pattern.permute.xlu0 0
      %1443 = vperm.xlu0 %1442, %v667
      %v1444 = vpop.permute.xlu0 %1443
      %1446 = vset.pattern.permute.xlu0 0
      %1447 = vperm.xlu0 %1446, %v668
      %v1448 = vpop.permute.xlu0 %1447
      %1450 = vset.pattern.permute.xlu0 0
      %1451 = vperm.xlu0 %1450, %v669
      %v1452 = vpop.permute.xlu0 %1451
      %1454 = vset.pattern.permute.xlu0 0
      %1455 = vperm.xlu0 %1454, %v670
      %v1456 = vpop.permute.xlu0 %1455
      %1458 = vset.pattern.permute.xlu0 0
      %1459 = vperm.xlu0 %1458, %v671
      %v1460 = vpop.permute.xlu0 %1459
      %1462 = vset.pattern.permute.xlu0 0
      %1463 = vperm.xlu0 %1462, %v672
      %v1464 = vpop.permute.xlu0 %1463
      %1466 = vset.pattern.permute.xlu0 0
      %1467 = vperm.xlu0 %1466, %v673
      %v1468 = vpop.permute.xlu0 %1467
      %1470 = vset.pattern.permute.xlu0 0
      %1471 = vperm.xlu0 %1470, %v674
      %v1472 = vpop.permute.xlu0 %1471
      %1474 = vset.pattern.permute.xlu0 0
      %1475 = vperm.xlu0 %1474, %v675
      %v1476 = vpop.permute.xlu0 %1475
      %1478 = vset.pattern.permute.xlu0 0
      %1479 = vperm.xlu0 %1478, %v676
      %v1480 = vpop.permute.xlu0 %1479
      %1482 = vset.pattern.permute.xlu0 0
      %1483 = vperm.xlu0 %1482, %v677
      %v1484 = vpop.permute.xlu0 %1483
      %1486 = vset.pattern.permute.xlu0 0
      %1487 = vperm.xlu0 %1486, %v678
      %v1488 = vpop.permute.xlu0 %1487
      %1490 = vset.pattern.permute.xlu0 0
      %1491 = vperm.xlu0 %1490, %v679
      %v1492 = vpop.permute.xlu0 %1491
      %1494 = vset.pattern.permute.xlu0 0
      %1495 = vperm.xlu0 %1494, %v680
      %v1496 = vpop.permute.xlu0 %1495
      %1498 = vset.pattern.permute.xlu0 0
      %1499 = vperm.xlu0 %1498, %v681
      %v1500 = vpop.permute.xlu0 %1499
      %1502 = vset.pattern.permute.xlu0 0
      %1503 = vperm.xlu0 %1502, %v682
      %v1504 = vpop.permute.xlu0 %1503
      %1506 = vset.pattern.permute.xlu0 0
      %1507 = vperm.xlu0 %1506, %v683
      %v1508 = vpop.permute.xlu0 %1507
      %1510 = vset.pattern.permute.xlu0 0
      %1511 = vperm.xlu0 %1510, %v684
      %v1512 = vpop.permute.xlu0 %1511
      %1514 = vset.pattern.permute.xlu0 0
      %1515 = vperm.xlu0 %1514, %v685
      %v1516 = vpop.permute.xlu0 %1515
      %v1518 = vsel %vm1358, %v1392, 0.0
      %v1519 = vsel %vm1359, %v1396, 0.0
      %v1520 = vsel %vm1360, %v1400, 0.0
      %v1521 = vsel %vm1361, %v1404, 0.0
      %v1522 = vsel %vm1362, %v1408, 0.0
      %v1523 = vsel %vm1363, %v1412, 0.0
      %v1524 = vsel %vm1364, %v1416, 0.0
      %v1525 = vsel %vm1365, %v1420, 0.0
      %v1526 = vsel %vm1366, %v1424, 0.0
      %v1527 = vsel %vm1367, %v1428, 0.0
      %v1528 = vsel %vm1368, %v1432, 0.0
      %v1529 = vsel %vm1369, %v1436, 0.0
      %v1530 = vsel %vm1370, %v1440, 0.0
      %v1531 = vsel %vm1371, %v1444, 0.0
      %v1532 = vsel %vm1372, %v1448, 0.0
      %v1533 = vsel %vm1373, %v1452, 0.0
      %v1534 = vsel %vm1374, %v1456, 0.0
      %v1535 = vsel %vm1375, %v1460, 0.0
      %v1536 = vsel %vm1376, %v1464, 0.0
      %v1537 = vsel %vm1377, %v1468, 0.0
      %v1538 = vsel %vm1378, %v1472, 0.0
      %v1539 = vsel %vm1379, %v1476, 0.0
      %v1540 = vsel %vm1380, %v1480, 0.0
      %v1541 = vsel %vm1381, %v1484, 0.0
      %v1542 = vsel %vm1382, %v1488, 0.0
      %v1543 = vsel %vm1383, %v1492, 0.0
      %v1544 = vsel %vm1384, %v1496, 0.0
      %v1545 = vsel %vm1385, %v1500, 0.0
      %v1546 = vsel %vm1386, %v1504, 0.0
      %v1547 = vsel %vm1387, %v1508, 0.0
      %v1548 = vsel %vm1388, %v1512, 0.0
      %v1549 = vsel %vm1389, %v1516, 0.0
      %1550 = vset.pattern.permute.xlu0 0
      %1551 = vperm.xlu0 %1550, %v878
      %v1552 = vpop.permute.xlu0 %1551
      %1553 = vset.pattern.permute.xlu0 0
      %1554 = vperm.xlu0 %1553, %v879
      %v1555 = vpop.permute.xlu0 %1554
      %1556 = vset.pattern.permute.xlu0 0
      %1557 = vperm.xlu0 %1556, %v880
      %v1558 = vpop.permute.xlu0 %1557
      %1559 = vset.pattern.permute.xlu0 0
      %1560 = vperm.xlu0 %1559, %v881
      %v1561 = vpop.permute.xlu0 %1560
      %1562 = vset.pattern.permute.xlu0 0
      %1563 = vperm.xlu0 %1562, %v882
      %v1564 = vpop.permute.xlu0 %1563
      %1565 = vset.pattern.permute.xlu0 0
      %1566 = vperm.xlu0 %1565, %v883
      %v1567 = vpop.permute.xlu0 %1566
      %1568 = vset.pattern.permute.xlu0 0
      %1569 = vperm.xlu0 %1568, %v884
      %v1570 = vpop.permute.xlu0 %1569
      %1571 = vset.pattern.permute.xlu0 0
      %1572 = vperm.xlu0 %1571, %v885
      %v1573 = vpop.permute.xlu0 %1572
      %1574 = vset.pattern.permute.xlu0 0
      %1575 = vperm.xlu0 %1574, %v886
      %v1576 = vpop.permute.xlu0 %1575
      %1577 = vset.pattern.permute.xlu0 0
      %1578 = vperm.xlu0 %1577, %v887
      %v1579 = vpop.permute.xlu0 %1578
      %1580 = vset.pattern.permute.xlu0 0
      %1581 = vperm.xlu0 %1580, %v888
      %v1582 = vpop.permute.xlu0 %1581
      %1583 = vset.pattern.permute.xlu0 0
      %1584 = vperm.xlu0 %1583, %v889
      %v1585 = vpop.permute.xlu0 %1584
      %1586 = vset.pattern.permute.xlu0 0
      %1587 = vperm.xlu0 %1586, %v890
      %v1588 = vpop.permute.xlu0 %1587
      %1589 = vset.pattern.permute.xlu0 0
      %1590 = vperm.xlu0 %1589, %v891
      %v1591 = vpop.permute.xlu0 %1590
      %1592 = vset.pattern.permute.xlu0 0
      %1593 = vperm.xlu0 %1592, %v892
      %v1594 = vpop.permute.xlu0 %1593
      %1595 = vset.pattern.permute.xlu0 0
      %1596 = vperm.xlu0 %1595, %v893
      %v1597 = vpop.permute.xlu0 %1596
      %1598 = vset.pattern.permute.xlu0 0
      %1599 = vperm.xlu0 %1598, %v894
      %v1600 = vpop.permute.xlu0 %1599
      %1601 = vset.pattern.permute.xlu0 0
      %1602 = vperm.xlu0 %1601, %v895
      %v1603 = vpop.permute.xlu0 %1602
      %1604 = vset.pattern.permute.xlu0 0
      %1605 = vperm.xlu0 %1604, %v896
      %v1606 = vpop.permute.xlu0 %1605
      %1607 = vset.pattern.permute.xlu0 0
      %1608 = vperm.xlu0 %1607, %v897
      %v1609 = vpop.permute.xlu0 %1608
      %1610 = vset.pattern.permute.xlu0 0
      %1611 = vperm.xlu0 %1610, %v898
      %v1612 = vpop.permute.xlu0 %1611
      %1613 = vset.pattern.permute.xlu0 0
      %1614 = vperm.xlu0 %1613, %v899
      %v1615 = vpop.permute.xlu0 %1614
      %1616 = vset.pattern.permute.xlu0 0
      %1617 = vperm.xlu0 %1616, %v900
      %v1618 = vpop.permute.xlu0 %1617
      %1619 = vset.pattern.permute.xlu0 0
      %1620 = vperm.xlu0 %1619, %v901
      %v1621 = vpop.permute.xlu0 %1620
      %1622 = vset.pattern.permute.xlu0 0
      %1623 = vperm.xlu0 %1622, %v902
      %v1624 = vpop.permute.xlu0 %1623
      %1625 = vset.pattern.permute.xlu0 0
      %1626 = vperm.xlu0 %1625, %v903
      %v1627 = vpop.permute.xlu0 %1626
      %1628 = vset.pattern.permute.xlu0 0
      %1629 = vperm.xlu0 %1628, %v904
      %v1630 = vpop.permute.xlu0 %1629
      %1631 = vset.pattern.permute.xlu0 0
      %1632 = vperm.xlu0 %1631, %v905
      %v1633 = vpop.permute.xlu0 %1632
      %1634 = vset.pattern.permute.xlu0 0
      %1635 = vperm.xlu0 %1634, %v906
      %v1636 = vpop.permute.xlu0 %1635
      %1637 = vset.pattern.permute.xlu0 0
      %1638 = vperm.xlu0 %1637, %v907
      %v1639 = vpop.permute.xlu0 %1638
      %1640 = vset.pattern.permute.xlu0 0
      %1641 = vperm.xlu0 %1640, %v908
      %v1642 = vpop.permute.xlu0 %1641
      %1643 = vset.pattern.permute.xlu0 0
      %1644 = vperm.xlu0 %1643, %v909
      %v1645 = vpop.permute.xlu0 %1644
      %vm1646 = vcmp.eq.s32.totalorder %v525, %v1552
      %vm1647 = vcmp.eq.s32.totalorder %v525, %v1555
      %vm1648 = vcmp.eq.s32.totalorder %v525, %v1558
      %vm1649 = vcmp.eq.s32.totalorder %v525, %v1561
      %vm1650 = vcmp.eq.s32.totalorder %v525, %v1564
      %vm1651 = vcmp.eq.s32.totalorder %v525, %v1567
      %vm1652 = vcmp.eq.s32.totalorder %v525, %v1570
      %vm1653 = vcmp.eq.s32.totalorder %v525, %v1573
      %vm1654 = vcmp.eq.s32.totalorder %v525, %v1576
      %vm1655 = vcmp.eq.s32.totalorder %v525, %v1579
      %vm1656 = vcmp.eq.s32.totalorder %v525, %v1582
      %vm1657 = vcmp.eq.s32.totalorder %v525, %v1585
      %vm1658 = vcmp.eq.s32.totalorder %v525, %v1588
      %vm1659 = vcmp.eq.s32.totalorder %v525, %v1591
      %vm1660 = vcmp.eq.s32.totalorder %v525, %v1594
      %vm1661 = vcmp.eq.s32.totalorder %v525, %v1597
      %vm1662 = vcmp.eq.s32.totalorder %v525, %v1600
      %vm1663 = vcmp.eq.s32.totalorder %v525, %v1603
      %vm1664 = vcmp.eq.s32.totalorder %v525, %v1606
      %vm1665 = vcmp.eq.s32.totalorder %v525, %v1609
      %vm1666 = vcmp.eq.s32.totalorder %v525, %v1612
      %vm1667 = vcmp.eq.s32.totalorder %v525, %v1615
      %vm1668 = vcmp.eq.s32.totalorder %v525, %v1618
      %vm1669 = vcmp.eq.s32.totalorder %v525, %v1621
      %vm1670 = vcmp.eq.s32.totalorder %v525, %v1624
      %vm1671 = vcmp.eq.s32.totalorder %v525, %v1627
      %vm1672 = vcmp.eq.s32.totalorder %v525, %v1630
      %vm1673 = vcmp.eq.s32.totalorder %v525, %v1633
      %vm1674 = vcmp.eq.s32.totalorder %v525, %v1636
      %vm1675 = vcmp.eq.s32.totalorder %v525, %v1639
      %vm1676 = vcmp.eq.s32.totalorder %v525, %v1642
      %vm1677 = vcmp.eq.s32.totalorder %v525, %v1645
      %1678 = vset.pattern.permute.xlu0 0
      %1679 = vperm.xlu0 %1678, %v460
      %v1680 = vpop.permute.xlu0 %1679
      %1682 = vset.pattern.permute.xlu0 0
      %1683 = vperm.xlu0 %1682, %v461
      %v1684 = vpop.permute.xlu0 %1683
      %1686 = vset.pattern.permute.xlu0 0
      %1687 = vperm.xlu0 %1686, %v462
      %v1688 = vpop.permute.xlu0 %1687
      %1690 = vset.pattern.permute.xlu0 0
      %1691 = vperm.xlu0 %1690, %v463
      %v1692 = vpop.permute.xlu0 %1691
      %1694 = vset.pattern.permute.xlu0 0
      %1695 = vperm.xlu0 %1694, %v464
      %v1696 = vpop.permute.xlu0 %1695
      %1698 = vset.pattern.permute.xlu0 0
      %1699 = vperm.xlu0 %1698, %v465
      %v1700 = vpop.permute.xlu0 %1699
      %1702 = vset.pattern.permute.xlu0 0
      %1703 = vperm.xlu0 %1702, %v466
      %v1704 = vpop.permute.xlu0 %1703
      %1706 = vset.pattern.permute.xlu0 0
      %1707 = vperm.xlu0 %1706, %v467
      %v1708 = vpop.permute.xlu0 %1707
      %1710 = vset.pattern.permute.xlu0 0
      %1711 = vperm.xlu0 %1710, %v468
      %v1712 = vpop.permute.xlu0 %1711
      %1714 = vset.pattern.permute.xlu0 0
      %1715 = vperm.xlu0 %1714, %v469
      %v1716 = vpop.permute.xlu0 %1715
      %1718 = vset.pattern.permute.xlu0 0
      %1719 = vperm.xlu0 %1718, %v470
      %v1720 = vpop.permute.xlu0 %1719
      %1722 = vset.pattern.permute.xlu0 0
      %1723 = vperm.xlu0 %1722, %v471
      %v1724 = vpop.permute.xlu0 %1723
      %1726 = vset.pattern.permute.xlu0 0
      %1727 = vperm.xlu0 %1726, %v472
      %v1728 = vpop.permute.xlu0 %1727
      %1730 = vset.pattern.permute.xlu0 0
      %1731 = vperm.xlu0 %1730, %v473
      %v1732 = vpop.permute.xlu0 %1731
      %1734 = vset.pattern.permute.xlu0 0
      %1735 = vperm.xlu0 %1734, %v474
      %v1736 = vpop.permute.xlu0 %1735
      %1738 = vset.pattern.permute.xlu0 0
      %1739 = vperm.xlu0 %1738, %v475
      %v1740 = vpop.permute.xlu0 %1739
      %1742 = vset.pattern.permute.xlu0 0
      %1743 = vperm.xlu0 %1742, %v476
      %v1744 = vpop.permute.xlu0 %1743
      %1746 = vset.pattern.permute.xlu0 0
      %1747 = vperm.xlu0 %1746, %v477
      %v1748 = vpop.permute.xlu0 %1747
      %1750 = vset.pattern.permute.xlu0 0
      %1751 = vperm.xlu0 %1750, %v478
      %v1752 = vpop.permute.xlu0 %1751
      %1754 = vset.pattern.permute.xlu0 0
      %1755 = vperm.xlu0 %1754, %v479
      %v1756 = vpop.permute.xlu0 %1755
      %1758 = vset.pattern.permute.xlu0 0
      %1759 = vperm.xlu0 %1758, %v480
      %v1760 = vpop.permute.xlu0 %1759
      %1762 = vset.pattern.permute.xlu0 0
      %1763 = vperm.xlu0 %1762, %v481
      %v1764 = vpop.permute.xlu0 %1763
      %1766 = vset.pattern.permute.xlu0 0
      %1767 = vperm.xlu0 %1766, %v482
      %v1768 = vpop.permute.xlu0 %1767
      %1770 = vset.pattern.permute.xlu0 0
      %1771 = vperm.xlu0 %1770, %v483
      %v1772 = vpop.permute.xlu0 %1771
      %1774 = vset.pattern.permute.xlu0 0
      %1775 = vperm.xlu0 %1774, %v484
      %v1776 = vpop.permute.xlu0 %1775
      %1778 = vset.pattern.permute.xlu0 0
      %1779 = vperm.xlu0 %1778, %v485
      %v1780 = vpop.permute.xlu0 %1779
      %1782 = vset.pattern.permute.xlu0 0
      %1783 = vperm.xlu0 %1782, %v486
      %v1784 = vpop.permute.xlu0 %1783
      %1786 = vset.pattern.permute.xlu0 0
      %1787 = vperm.xlu0 %1786, %v487
      %v1788 = vpop.permute.xlu0 %1787
      %1790 = vset.pattern.permute.xlu0 0
      %1791 = vperm.xlu0 %1790, %v488
      %v1792 = vpop.permute.xlu0 %1791
      %1794 = vset.pattern.permute.xlu0 0
      %1795 = vperm.xlu0 %1794, %v489
      %v1796 = vpop.permute.xlu0 %1795
      %1798 = vset.pattern.permute.xlu0 0
      %1799 = vperm.xlu0 %1798, %v490
      %v1800 = vpop.permute.xlu0 %1799
      %1802 = vset.pattern.permute.xlu0 0
      %1803 = vperm.xlu0 %1802, %v491
      %v1804 = vpop.permute.xlu0 %1803
      %v1806 = vsel %vm1646, %v1680, 0.0
      %v1807 = vsel %vm1647, %v1684, 0.0
      %v1808 = vsel %vm1648, %v1688, 0.0
      %v1809 = vsel %vm1649, %v1692, 0.0
      %v1810 = vsel %vm1650, %v1696, 0.0
      %v1811 = vsel %vm1651, %v1700, 0.0
      %v1812 = vsel %vm1652, %v1704, 0.0
      %v1813 = vsel %vm1653, %v1708, 0.0
      %v1814 = vsel %vm1654, %v1712, 0.0
      %v1815 = vsel %vm1655, %v1716, 0.0
      %v1816 = vsel %vm1656, %v1720, 0.0
      %v1817 = vsel %vm1657, %v1724, 0.0
      %v1818 = vsel %vm1658, %v1728, 0.0
      %v1819 = vsel %vm1659, %v1732, 0.0
      %v1820 = vsel %vm1660, %v1736, 0.0
      %v1821 = vsel %vm1661, %v1740, 0.0
      %v1822 = vsel %vm1662, %v1744, 0.0
      %v1823 = vsel %vm1663, %v1748, 0.0
      %v1824 = vsel %vm1664, %v1752, 0.0
      %v1825 = vsel %vm1665, %v1756, 0.0
      %v1826 = vsel %vm1666, %v1760, 0.0
      %v1827 = vsel %vm1667, %v1764, 0.0
      %v1828 = vsel %vm1668, %v1768, 0.0
      %v1829 = vsel %vm1669, %v1772, 0.0
      %v1830 = vsel %vm1670, %v1776, 0.0
      %v1831 = vsel %vm1671, %v1780, 0.0
      %v1832 = vsel %vm1672, %v1784, 0.0
      %v1833 = vsel %vm1673, %v1788, 0.0
      %v1834 = vsel %vm1674, %v1792, 0.0
      %v1835 = vsel %vm1675, %v1796, 0.0
      %v1836 = vsel %vm1676, %v1800, 0.0
      %v1837 = vsel %vm1677, %v1804, 0.0
      %v1838 = vadd.f32 %v1518, %v1806
      %v1839 = vadd.f32 %v1519, %v1807
      %v1840 = vadd.f32 %v1520, %v1808
      %v1841 = vadd.f32 %v1521, %v1809
      %v1842 = vadd.f32 %v1522, %v1810
      %v1843 = vadd.f32 %v1523, %v1811
      %v1844 = vadd.f32 %v1524, %v1812
      %v1845 = vadd.f32 %v1525, %v1813
      %v1846 = vadd.f32 %v1526, %v1814
      %v1847 = vadd.f32 %v1527, %v1815
      %v1848 = vadd.f32 %v1528, %v1816
      %v1849 = vadd.f32 %v1529, %v1817
      %v1850 = vadd.f32 %v1530, %v1818
      %v1851 = vadd.f32 %v1531, %v1819
      %v1852 = vadd.f32 %v1532, %v1820
      %v1853 = vadd.f32 %v1533, %v1821
      %v1854 = vadd.f32 %v1534, %v1822
      %v1855 = vadd.f32 %v1535, %v1823
      %v1856 = vadd.f32 %v1536, %v1824
      %v1857 = vadd.f32 %v1537, %v1825
      %v1858 = vadd.f32 %v1538, %v1826
      %v1859 = vadd.f32 %v1539, %v1827
      %v1860 = vadd.f32 %v1540, %v1828
      %v1861 = vadd.f32 %v1541, %v1829
      %v1862 = vadd.f32 %v1542, %v1830
      %v1863 = vadd.f32 %v1543, %v1831
      %v1864 = vadd.f32 %v1544, %v1832
      %v1865 = vadd.f32 %v1545, %v1833
      %v1866 = vadd.f32 %v1546, %v1834
      %v1867 = vadd.f32 %v1547, %v1835
      %v1868 = vadd.f32 %v1548, %v1836
      %v1869 = vadd.f32 %v1549, %v1837
      %v1870 = vld [vmem:[%s353] sm:$0xff]
      %v1871 = vld [vmem:[%s353 + $0x8] sm:$0xff]
      %vm1872 = vcmask 130048
      %v1874 = vsel %vm1872, %v1230, 0
      %v1877 = vsel %vm1872, %v1231, 0
      %v1880 = vsel %vm1872, %v1232, 0
      %v1883 = vsel %vm1872, %v1233, 0
      %v1886 = vsel %vm1872, %v1234, 0
      %v1889 = vsel %vm1872, %v1235, 0
      %v1892 = vsel %vm1872, %v1236, 0
      %v1895 = vsel %vm1872, %v1237, 0
      %v1898 = vsel %vm1872, %v1238, 0
      %v1901 = vsel %vm1872, %v1239, 0
      %v1904 = vsel %vm1872, %v1240, 0
      %v1907 = vsel %vm1872, %v1241, 0
      %v1910 = vsel %vm1872, %v1242, 0
      %v1913 = vsel %vm1872, %v1243, 0
      %v1916 = vsel %vm1872, %v1244, 0
      %v1919 = vsel %vm1872, %v1245, 0
      %v1922 = vsel %vm1872, %v1246, 0
      %v1925 = vsel %vm1872, %v1247, 0
      %v1928 = vsel %vm1872, %v1248, 0
      %v1931 = vsel %vm1872, %v1249, 0
      %v1934 = vsel %vm1872, %v1250, 0
      %v1937 = vsel %vm1872, %v1251, 0
      %v1940 = vsel %vm1872, %v1252, 0
      %v1943 = vsel %vm1872, %v1253, 0
      %v1946 = vsel %vm1872, %v1254, 0
      %v1949 = vsel %vm1872, %v1255, 0
      %v1952 = vsel %vm1872, %v1256, 0
      %v1955 = vsel %vm1872, %v1257, 0
      %v1958 = vsel %vm1872, %v1258, 0
      %v1961 = vsel %vm1872, %v1259, 0
      %v1964 = vsel %vm1872, %v1260, 0
      %v1967 = vsel %vm1872, %v1261, 0
      %1969 = vmatprep.subr.mxu0 0.0
      %1970 = vmatpush1.msra.mxu0 0.0
      %1971 = vmatprep.subr.mxu0 0.0
      %1972 = vmatpush1.msra.mxu0 0.0
      %1973 = vmatprep.subr.mxu0 0.0
      %1974 = vmatpush1.msra.mxu0 0.0
      %1975 = vmatprep.subr.mxu0 0.0
      %1976 = vmatpush1.msra.mxu0 0.0
      %1977 = vmatprep.subr.mxu0 0.0
      %1978 = vmatpush1.msra.mxu0 0.0
      %1979 = vmatprep.subr.mxu0 0.0
      %1980 = vmatpush1.msra.mxu0 0.0
      %1981 = vmatprep.subr.mxu0 0.0
      %1982 = vmatpush1.msra.mxu0 0.0
      %1983 = vmatprep.subr.mxu0 0.0
      %1984 = vmatpush1.msra.mxu0 0.0
      %1985 = vmatprep.subr.mxu0 0.0
      %1986 = vmatpush1.msra.mxu0 0.0
      %1987 = vmatprep.subr.mxu0 0.0
      %1988 = vmatpush1.msra.mxu0 0.0
      %1989 = vmatprep.subr.mxu0 0.0
      %1990 = vmatpush1.msra.mxu0 0.0
      %1991 = vmatprep.subr.mxu0 0.0
      %1992 = vmatpush1.msra.mxu0 0.0
      %1993 = vmatprep.subr.mxu0 0.0
      %1994 = vmatpush1.msra.mxu0 0.0
      %1995 = vmatprep.subr.mxu0 0.0
      %1996 = vmatpush1.msra.mxu0 0.0
      %1997 = vmatprep.subr.mxu0 0.0
      %1998 = vmatpush1.msra.mxu0 %v1871
      %1999 = vmatprep.subr.mxu0 0.0
      %2000 = vmatpush1.msra.mxu0 %v1870
      %2001 = vmatprep.subr.mxu0 0.0
      %2002 = vmatpush2.msra.mxu0 0.0
      %2003 = vmatprep.subr.mxu0 0.0
      %2004 = vmatpush2.msra.mxu0 0.0
      %2005 = vmatprep.subr.mxu0 0.0
      %2006 = vmatpush2.msra.mxu0 0.0
      %2007 = vmatprep.subr.mxu0 0.0
      %2008 = vmatpush2.msra.mxu0 0.0
      %2009 = vmatprep.subr.mxu0 0.0
      %2010 = vmatpush2.msra.mxu0 0.0
      %2011 = vmatprep.subr.mxu0 0.0
      %2012 = vmatpush2.msra.mxu0 0.0
      %2013 = vmatprep.subr.mxu0 0.0
      %2014 = vmatpush2.msra.mxu0 0.0
      %2015 = vmatprep.subr.mxu0 0.0
      %2016 = vmatpush2.msra.mxu0 0.0
      %2017 = vmatprep.subr.mxu0 0.0
      %2018 = vmatpush2.msra.mxu0 0.0
      %2019 = vmatprep.subr.mxu0 0.0
      %2020 = vmatpush2.msra.mxu0 0.0
      %2021 = vmatprep.subr.mxu0 0.0
      %2022 = vmatpush2.msra.mxu0 0.0
      %2023 = vmatprep.subr.mxu0 0.0
      %2024 = vmatpush2.msra.mxu0 0.0
      %2025 = vmatprep.subr.mxu0 0.0
      %2026 = vmatpush2.msra.mxu0 0.0
      %2027 = vmatprep.subr.mxu0 0.0
      %2028 = vmatpush2.msra.mxu0 0.0
      %2029 = vmatprep.subr.mxu0 0.0
      %2030 = vmatpush2.msra.mxu0 0.0
      %2031 = vmatprep.subr.mxu0 0.0
      %2032 = vmatpush2.msra.mxu0 0.0
      %2033 = vmatprep.mubr.f32.mxu0 0.0
      %2034 = vmatmul.mubr.f32.gmra.mxu0 %v1874
      %v2035 = vpop.f32.mrf.mxu0
      %v2036 = vadd.f32 0.0, %v2035
      %v2037 = vpop.f32.mrf.mxu0
      %2038 = vmatprep.mubr.f32.mxu0 0.0
      %2039 = vmatmul.mubr.f32.gmra.mxu0 %v1877
      %v2040 = vpop.f32.mrf.mxu0
      %v2041 = vadd.f32 0.0, %v2040
      %v2042 = vpop.f32.mrf.mxu0
      %2043 = vmatprep.mubr.f32.mxu0 0.0
      %2044 = vmatmul.mubr.f32.gmra.mxu0 %v1880
      %v2045 = vpop.f32.mrf.mxu0
      %v2046 = vadd.f32 0.0, %v2045
      %v2047 = vpop.f32.mrf.mxu0
      %2048 = vmatprep.mubr.f32.mxu0 0.0
      %2049 = vmatmul.mubr.f32.gmra.mxu0 %v1883
      %v2050 = vpop.f32.mrf.mxu0
      %v2051 = vadd.f32 0.0, %v2050
      %v2052 = vpop.f32.mrf.mxu0
      %2053 = vmatprep.mubr.f32.mxu0 0.0
      %2054 = vmatmul.mubr.f32.gmra.mxu0 %v1886
      %v2055 = vpop.f32.mrf.mxu0
      %v2056 = vadd.f32 0.0, %v2055
      %v2057 = vpop.f32.mrf.mxu0
      %2058 = vmatprep.mubr.f32.mxu0 0.0
      %2059 = vmatmul.mubr.f32.gmra.mxu0 %v1889
      %v2060 = vpop.f32.mrf.mxu0
      %v2061 = vadd.f32 0.0, %v2060
      %v2062 = vpop.f32.mrf.mxu0
      %2063 = vmatprep.mubr.f32.mxu0 0.0
      %2064 = vmatmul.mubr.f32.gmra.mxu0 %v1892
      %v2065 = vpop.f32.mrf.mxu0
      %v2066 = vadd.f32 0.0, %v2065
      %v2067 = vpop.f32.mrf.mxu0
      %2068 = vmatprep.mubr.f32.mxu0 0.0
      %2069 = vmatmul.mubr.f32.gmra.mxu0 %v1895
      %v2070 = vpop.f32.mrf.mxu0
      %v2071 = vadd.f32 0.0, %v2070
      %v2072 = vpop.f32.mrf.mxu0
      %2073 = vmatprep.mubr.f32.mxu0 0.0
      %2074 = vmatmul.mubr.f32.gmra.mxu0 %v1898
      %v2075 = vpop.f32.mrf.mxu0
      %v2076 = vadd.f32 0.0, %v2075
      %v2077 = vpop.f32.mrf.mxu0
      %2078 = vmatprep.mubr.f32.mxu0 0.0
      %2079 = vmatmul.mubr.f32.gmra.mxu0 %v1901
      %v2080 = vpop.f32.mrf.mxu0
      %v2081 = vadd.f32 0.0, %v2080
      %v2082 = vpop.f32.mrf.mxu0
      %2083 = vmatprep.mubr.f32.mxu0 0.0
      %2084 = vmatmul.mubr.f32.gmra.mxu0 %v1904
      %v2085 = vpop.f32.mrf.mxu0
      %v2086 = vadd.f32 0.0, %v2085
      %v2087 = vpop.f32.mrf.mxu0
      %2088 = vmatprep.mubr.f32.mxu0 0.0
      %2089 = vmatmul.mubr.f32.gmra.mxu0 %v1907
      %v2090 = vpop.f32.mrf.mxu0
      %v2091 = vadd.f32 0.0, %v2090
      %v2092 = vpop.f32.mrf.mxu0
      %2093 = vmatprep.mubr.f32.mxu0 0.0
      %2094 = vmatmul.mubr.f32.gmra.mxu0 %v1910
      %v2095 = vpop.f32.mrf.mxu0
      %v2096 = vadd.f32 0.0, %v2095
      %v2097 = vpop.f32.mrf.mxu0
      %2098 = vmatprep.mubr.f32.mxu0 0.0
      %2099 = vmatmul.mubr.f32.gmra.mxu0 %v1913
      %v2100 = vpop.f32.mrf.mxu0
      %v2101 = vadd.f32 0.0, %v2100
      %v2102 = vpop.f32.mrf.mxu0
      %2103 = vmatprep.mubr.f32.mxu0 0.0
      %2104 = vmatmul.mubr.f32.gmra.mxu0 %v1916
      %v2105 = vpop.f32.mrf.mxu0
      %v2106 = vadd.f32 0.0, %v2105
      %v2107 = vpop.f32.mrf.mxu0
      %2108 = vmatprep.mubr.f32.mxu0 0.0
      %2109 = vmatmul.mubr.f32.gmra.mxu0 %v1919
      %v2110 = vpop.f32.mrf.mxu0
      %v2111 = vadd.f32 0.0, %v2110
      %v2112 = vpop.f32.mrf.mxu0
      %2113 = vmatprep.mubr.f32.mxu0 0.0
      %2114 = vmatmul.mubr.f32.gmra.mxu0 %v1922
      %v2115 = vpop.f32.mrf.mxu0
      %v2116 = vadd.f32 0.0, %v2115
      %v2117 = vpop.f32.mrf.mxu0
      %2118 = vmatprep.mubr.f32.mxu0 0.0
      %2119 = vmatmul.mubr.f32.gmra.mxu0 %v1925
      %v2120 = vpop.f32.mrf.mxu0
      %v2121 = vadd.f32 0.0, %v2120
      %v2122 = vpop.f32.mrf.mxu0
      %2123 = vmatprep.mubr.f32.mxu0 0.0
      %2124 = vmatmul.mubr.f32.gmra.mxu0 %v1928
      %v2125 = vpop.f32.mrf.mxu0
      %v2126 = vadd.f32 0.0, %v2125
      %v2127 = vpop.f32.mrf.mxu0
      %2128 = vmatprep.mubr.f32.mxu0 0.0
      %2129 = vmatmul.mubr.f32.gmra.mxu0 %v1931
      %v2130 = vpop.f32.mrf.mxu0
      %v2131 = vadd.f32 0.0, %v2130
      %v2132 = vpop.f32.mrf.mxu0
      %2133 = vmatprep.mubr.f32.mxu0 0.0
      %2134 = vmatmul.mubr.f32.gmra.mxu0 %v1934
      %v2135 = vpop.f32.mrf.mxu0
      %v2136 = vadd.f32 0.0, %v2135
      %v2137 = vpop.f32.mrf.mxu0
      %2138 = vmatprep.mubr.f32.mxu0 0.0
      %2139 = vmatmul.mubr.f32.gmra.mxu0 %v1937
      %v2140 = vpop.f32.mrf.mxu0
      %v2141 = vadd.f32 0.0, %v2140
      %v2142 = vpop.f32.mrf.mxu0
      %2143 = vmatprep.mubr.f32.mxu0 0.0
      %2144 = vmatmul.mubr.f32.gmra.mxu0 %v1940
      %v2145 = vpop.f32.mrf.mxu0
      %v2146 = vadd.f32 0.0, %v2145
      %v2147 = vpop.f32.mrf.mxu0
      %2148 = vmatprep.mubr.f32.mxu0 0.0
      %2149 = vmatmul.mubr.f32.gmra.mxu0 %v1943
      %v2150 = vpop.f32.mrf.mxu0
      %v2151 = vadd.f32 0.0, %v2150
      %v2152 = vpop.f32.mrf.mxu0
      %2153 = vmatprep.mubr.f32.mxu0 0.0
      %2154 = vmatmul.mubr.f32.gmra.mxu0 %v1946
      %v2155 = vpop.f32.mrf.mxu0
      %v2156 = vadd.f32 0.0, %v2155
      %v2157 = vpop.f32.mrf.mxu0
      %2158 = vmatprep.mubr.f32.mxu0 0.0
      %2159 = vmatmul.mubr.f32.gmra.mxu0 %v1949
      %v2160 = vpop.f32.mrf.mxu0
      %v2161 = vadd.f32 0.0, %v2160
      %v2162 = vpop.f32.mrf.mxu0
      %2163 = vmatprep.mubr.f32.mxu0 0.0
      %2164 = vmatmul.mubr.f32.gmra.mxu0 %v1952
      %v2165 = vpop.f32.mrf.mxu0
      %v2166 = vadd.f32 0.0, %v2165
      %v2167 = vpop.f32.mrf.mxu0
      %2168 = vmatprep.mubr.f32.mxu0 0.0
      %2169 = vmatmul.mubr.f32.gmra.mxu0 %v1955
      %v2170 = vpop.f32.mrf.mxu0
      %v2171 = vadd.f32 0.0, %v2170
      %v2172 = vpop.f32.mrf.mxu0
      %2173 = vmatprep.mubr.f32.mxu0 0.0
      %2174 = vmatmul.mubr.f32.gmra.mxu0 %v1958
      %v2175 = vpop.f32.mrf.mxu0
      %v2176 = vadd.f32 0.0, %v2175
      %v2177 = vpop.f32.mrf.mxu0
      %2178 = vmatprep.mubr.f32.mxu0 0.0
      %2179 = vmatmul.mubr.f32.gmra.mxu0 %v1961
      %v2180 = vpop.f32.mrf.mxu0
      %v2181 = vadd.f32 0.0, %v2180
      %v2182 = vpop.f32.mrf.mxu0
      %2183 = vmatprep.mubr.f32.mxu0 0.0
      %2184 = vmatmul.mubr.f32.gmra.mxu0 %v1964
      %v2185 = vpop.f32.mrf.mxu0
      %v2186 = vadd.f32 0.0, %v2185
      %v2187 = vpop.f32.mrf.mxu0
      %2188 = vmatprep.mubr.f32.mxu0 0.0
      %2189 = vmatmul.mubr.f32.gmra.mxu0 %v1967
      %v2190 = vpop.f32.mrf.mxu0
      %v2191 = vadd.f32 0.0, %v2190
      %v2192 = vpop.f32.mrf.mxu0
      %2193 = vdwg.mxu0
      %2226 = vrot.lane.b32.xlu0 %v1838, 16
      %v2227 = vpop.permute.xlu0 %2226
      %2228 = vrot.lane.b32.xlu0 %v1839, 16
      %v2229 = vpop.permute.xlu0 %2228
      %2230 = vrot.lane.b32.xlu0 %v1840, 16
      %v2231 = vpop.permute.xlu0 %2230
      %2232 = vrot.lane.b32.xlu0 %v1841, 16
      %v2233 = vpop.permute.xlu0 %2232
      %2234 = vrot.lane.b32.xlu0 %v1842, 16
      %v2235 = vpop.permute.xlu0 %2234
      %2236 = vrot.lane.b32.xlu0 %v1843, 16
      %v2237 = vpop.permute.xlu0 %2236
      %2238 = vrot.lane.b32.xlu0 %v1844, 16
      %v2239 = vpop.permute.xlu0 %2238
      %2240 = vrot.lane.b32.xlu0 %v1845, 16
      %v2241 = vpop.permute.xlu0 %2240
      %2242 = vrot.lane.b32.xlu0 %v1846, 16
      %v2243 = vpop.permute.xlu0 %2242
      %2244 = vrot.lane.b32.xlu0 %v1847, 16
      %v2245 = vpop.permute.xlu0 %2244
      %2246 = vrot.lane.b32.xlu0 %v1848, 16
      %v2247 = vpop.permute.xlu0 %2246
      %2248 = vrot.lane.b32.xlu0 %v1849, 16
      %v2249 = vpop.permute.xlu0 %2248
      %2250 = vrot.lane.b32.xlu0 %v1850, 16
      %v2251 = vpop.permute.xlu0 %2250
      %2252 = vrot.lane.b32.xlu0 %v1851, 16
      %v2253 = vpop.permute.xlu0 %2252
      %2254 = vrot.lane.b32.xlu0 %v1852, 16
      %v2255 = vpop.permute.xlu0 %2254
      %2256 = vrot.lane.b32.xlu0 %v1853, 16
      %v2257 = vpop.permute.xlu0 %2256
      %2258 = vrot.lane.b32.xlu0 %v1854, 16
      %v2259 = vpop.permute.xlu0 %2258
      %2260 = vrot.lane.b32.xlu0 %v1855, 16
      %v2261 = vpop.permute.xlu0 %2260
      %2262 = vrot.lane.b32.xlu0 %v1856, 16
      %v2263 = vpop.permute.xlu0 %2262
      %2264 = vrot.lane.b32.xlu0 %v1857, 16
      %v2265 = vpop.permute.xlu0 %2264
      %2266 = vrot.lane.b32.xlu0 %v1858, 16
      %v2267 = vpop.permute.xlu0 %2266
      %2268 = vrot.lane.b32.xlu0 %v1859, 16
      %v2269 = vpop.permute.xlu0 %2268
      %2270 = vrot.lane.b32.xlu0 %v1860, 16
      %v2271 = vpop.permute.xlu0 %2270
      %2272 = vrot.lane.b32.xlu0 %v1861, 16
      %v2273 = vpop.permute.xlu0 %2272
      %2274 = vrot.lane.b32.xlu0 %v1862, 16
      %v2275 = vpop.permute.xlu0 %2274
      %2276 = vrot.lane.b32.xlu0 %v1863, 16
      %v2277 = vpop.permute.xlu0 %2276
      %2278 = vrot.lane.b32.xlu0 %v1864, 16
      %v2279 = vpop.permute.xlu0 %2278
      %2280 = vrot.lane.b32.xlu0 %v1865, 16
      %v2281 = vpop.permute.xlu0 %2280
      %2282 = vrot.lane.b32.xlu0 %v1866, 16
      %v2283 = vpop.permute.xlu0 %2282
      %2284 = vrot.lane.b32.xlu0 %v1867, 16
      %v2285 = vpop.permute.xlu0 %2284
      %2286 = vrot.lane.b32.xlu0 %v1868, 16
      %v2287 = vpop.permute.xlu0 %2286
      %2288 = vrot.lane.b32.xlu0 %v1869, 16
      %v2289 = vpop.permute.xlu0 %2288
      %2322 = vrot.lane.b32.xlu0 %v1838, 32
      %v2323 = vpop.permute.xlu0 %2322
      %2324 = vrot.lane.b32.xlu0 %v1839, 32
      %v2325 = vpop.permute.xlu0 %2324
      %2326 = vrot.lane.b32.xlu0 %v1840, 32
      %v2327 = vpop.permute.xlu0 %2326
      %2328 = vrot.lane.b32.xlu0 %v1841, 32
      %v2329 = vpop.permute.xlu0 %2328
      %2330 = vrot.lane.b32.xlu0 %v1842, 32
      %v2331 = vpop.permute.xlu0 %2330
      %2332 = vrot.lane.b32.xlu0 %v1843, 32
      %v2333 = vpop.permute.xlu0 %2332
      %2334 = vrot.lane.b32.xlu0 %v1844, 32
      %v2335 = vpop.permute.xlu0 %2334
      %2336 = vrot.lane.b32.xlu0 %v1845, 32
      %v2337 = vpop.permute.xlu0 %2336
      %2338 = vrot.lane.b32.xlu0 %v1846, 32
      %v2339 = vpop.permute.xlu0 %2338
      %2340 = vrot.lane.b32.xlu0 %v1847, 32
      %v2341 = vpop.permute.xlu0 %2340
      %2342 = vrot.lane.b32.xlu0 %v1848, 32
      %v2343 = vpop.permute.xlu0 %2342
      %2344 = vrot.lane.b32.xlu0 %v1849, 32
      %v2345 = vpop.permute.xlu0 %2344
      %2346 = vrot.lane.b32.xlu0 %v1850, 32
      %v2347 = vpop.permute.xlu0 %2346
      %2348 = vrot.lane.b32.xlu0 %v1851, 32
      %v2349 = vpop.permute.xlu0 %2348
      %2350 = vrot.lane.b32.xlu0 %v1852, 32
      %v2351 = vpop.permute.xlu0 %2350
      %2352 = vrot.lane.b32.xlu0 %v1853, 32
      %v2353 = vpop.permute.xlu0 %2352
      %2354 = vrot.lane.b32.xlu0 %v1854, 32
      %v2355 = vpop.permute.xlu0 %2354
      %2356 = vrot.lane.b32.xlu0 %v1855, 32
      %v2357 = vpop.permute.xlu0 %2356
      %2358 = vrot.lane.b32.xlu0 %v1856, 32
      %v2359 = vpop.permute.xlu0 %2358
      %2360 = vrot.lane.b32.xlu0 %v1857, 32
      %v2361 = vpop.permute.xlu0 %2360
      %2362 = vrot.lane.b32.xlu0 %v1858, 32
      %v2363 = vpop.permute.xlu0 %2362
      %2364 = vrot.lane.b32.xlu0 %v1859, 32
      %v2365 = vpop.permute.xlu0 %2364
      %2366 = vrot.lane.b32.xlu0 %v1860, 32
      %v2367 = vpop.permute.xlu0 %2366
      %2368 = vrot.lane.b32.xlu0 %v1861, 32
      %v2369 = vpop.permute.xlu0 %2368
      %2370 = vrot.lane.b32.xlu0 %v1862, 32
      %v2371 = vpop.permute.xlu0 %2370
      %2372 = vrot.lane.b32.xlu0 %v1863, 32
      %v2373 = vpop.permute.xlu0 %2372
      %2374 = vrot.lane.b32.xlu0 %v1864, 32
      %v2375 = vpop.permute.xlu0 %2374
      %2376 = vrot.lane.b32.xlu0 %v1865, 32
      %v2377 = vpop.permute.xlu0 %2376
      %2378 = vrot.lane.b32.xlu0 %v1866, 32
      %v2379 = vpop.permute.xlu0 %2378
      %2380 = vrot.lane.b32.xlu0 %v1867, 32
      %v2381 = vpop.permute.xlu0 %2380
      %2382 = vrot.lane.b32.xlu0 %v1868, 32
      %v2383 = vpop.permute.xlu0 %2382
      %2384 = vrot.lane.b32.xlu0 %v1869, 32
      %v2385 = vpop.permute.xlu0 %2384
      %2418 = vrot.lane.b32.xlu0 %v1838, 48
      %v2419 = vpop.permute.xlu0 %2418
      %2420 = vrot.lane.b32.xlu0 %v1839, 48
      %v2421 = vpop.permute.xlu0 %2420
      %2422 = vrot.lane.b32.xlu0 %v1840, 48
      %v2423 = vpop.permute.xlu0 %2422
      %2424 = vrot.lane.b32.xlu0 %v1841, 48
      %v2425 = vpop.permute.xlu0 %2424
      %2426 = vrot.lane.b32.xlu0 %v1842, 48
      %v2427 = vpop.permute.xlu0 %2426
      %2428 = vrot.lane.b32.xlu0 %v1843, 48
      %v2429 = vpop.permute.xlu0 %2428
      %2430 = vrot.lane.b32.xlu0 %v1844, 48
      %v2431 = vpop.permute.xlu0 %2430
      %2432 = vrot.lane.b32.xlu0 %v1845, 48
      %v2433 = vpop.permute.xlu0 %2432
      %2434 = vrot.lane.b32.xlu0 %v1846, 48
      %v2435 = vpop.permute.xlu0 %2434
      %2436 = vrot.lane.b32.xlu0 %v1847, 48
      %v2437 = vpop.permute.xlu0 %2436
      %2438 = vrot.lane.b32.xlu0 %v1848, 48
      %v2439 = vpop.permute.xlu0 %2438
      %2440 = vrot.lane.b32.xlu0 %v1849, 48
      %v2441 = vpop.permute.xlu0 %2440
      %2442 = vrot.lane.b32.xlu0 %v1850, 48
      %v2443 = vpop.permute.xlu0 %2442
      %2444 = vrot.lane.b32.xlu0 %v1851, 48
      %v2445 = vpop.permute.xlu0 %2444
      %2446 = vrot.lane.b32.xlu0 %v1852, 48
      %v2447 = vpop.permute.xlu0 %2446
      %2448 = vrot.lane.b32.xlu0 %v1853, 48
      %v2449 = vpop.permute.xlu0 %2448
      %2450 = vrot.lane.b32.xlu0 %v1854, 48
      %v2451 = vpop.permute.xlu0 %2450
      %2452 = vrot.lane.b32.xlu0 %v1855, 48
      %v2453 = vpop.permute.xlu0 %2452
      %2454 = vrot.lane.b32.xlu0 %v1856, 48
      %v2455 = vpop.permute.xlu0 %2454
      %2456 = vrot.lane.b32.xlu0 %v1857, 48
      %v2457 = vpop.permute.xlu0 %2456
      %2458 = vrot.lane.b32.xlu0 %v1858, 48
      %v2459 = vpop.permute.xlu0 %2458
      %2460 = vrot.lane.b32.xlu0 %v1859, 48
      %v2461 = vpop.permute.xlu0 %2460
      %2462 = vrot.lane.b32.xlu0 %v1860, 48
      %v2463 = vpop.permute.xlu0 %2462
      %2464 = vrot.lane.b32.xlu0 %v1861, 48
      %v2465 = vpop.permute.xlu0 %2464
      %2466 = vrot.lane.b32.xlu0 %v1862, 48
      %v2467 = vpop.permute.xlu0 %2466
      %2468 = vrot.lane.b32.xlu0 %v1863, 48
      %v2469 = vpop.permute.xlu0 %2468
      %2470 = vrot.lane.b32.xlu0 %v1864, 48
      %v2471 = vpop.permute.xlu0 %2470
      %2472 = vrot.lane.b32.xlu0 %v1865, 48
      %v2473 = vpop.permute.xlu0 %2472
      %2474 = vrot.lane.b32.xlu0 %v1866, 48
      %v2475 = vpop.permute.xlu0 %2474
      %2476 = vrot.lane.b32.xlu0 %v1867, 48
      %v2477 = vpop.permute.xlu0 %2476
      %2478 = vrot.lane.b32.xlu0 %v1868, 48
      %v2479 = vpop.permute.xlu0 %2478
      %2480 = vrot.lane.b32.xlu0 %v1869, 48
      %v2481 = vpop.permute.xlu0 %2480
      %v2514 = vsel %vm1872, %v1838, %v2227
      %v2515 = vsel %vm1872, %v1839, %v2229
      %v2516 = vsel %vm1872, %v1840, %v2231
      %v2517 = vsel %vm1872, %v1841, %v2233
      %v2518 = vsel %vm1872, %v1842, %v2235
      %v2519 = vsel %vm1872, %v1843, %v2237
      %v2520 = vsel %vm1872, %v1844, %v2239
      %v2521 = vsel %vm1872, %v1845, %v2241
      %v2522 = vsel %vm1872, %v1846, %v2243
      %v2523 = vsel %vm1872, %v1847, %v2245
      %v2524 = vsel %vm1872, %v1848, %v2247
      %v2525 = vsel %vm1872, %v1849, %v2249
      %v2526 = vsel %vm1872, %v1850, %v2251
      %v2527 = vsel %vm1872, %v1851, %v2253
      %v2528 = vsel %vm1872, %v1852, %v2255
      %v2529 = vsel %vm1872, %v1853, %v2257
      %v2530 = vsel %vm1872, %v1854, %v2259
      %v2531 = vsel %vm1872, %v1855, %v2261
      %v2532 = vsel %vm1872, %v1856, %v2263
      %v2533 = vsel %vm1872, %v1857, %v2265
      %v2534 = vsel %vm1872, %v1858, %v2267
      %v2535 = vsel %vm1872, %v1859, %v2269
      %v2536 = vsel %vm1872, %v1860, %v2271
      %v2537 = vsel %vm1872, %v1861, %v2273
      %v2538 = vsel %vm1872, %v1862, %v2275
      %v2539 = vsel %vm1872, %v1863, %v2277
      %v2540 = vsel %vm1872, %v1864, %v2279
      %v2541 = vsel %vm1872, %v1865, %v2281
      %v2542 = vsel %vm1872, %v1866, %v2283
      %v2543 = vsel %vm1872, %v1867, %v2285
      %v2544 = vsel %vm1872, %v1868, %v2287
      %v2545 = vsel %vm1872, %v1869, %v2289
      %vm2546 = vcmask 261120
      %v2547 = vsel %vm2546, %v2514, %v2323
      %v2548 = vsel %vm2546, %v2515, %v2325
      %v2549 = vsel %vm2546, %v2516, %v2327
      %v2550 = vsel %vm2546, %v2517, %v2329
      %v2551 = vsel %vm2546, %v2518, %v2331
      %v2552 = vsel %vm2546, %v2519, %v2333
      %v2553 = vsel %vm2546, %v2520, %v2335
      %v2554 = vsel %vm2546, %v2521, %v2337
      %v2555 = vsel %vm2546, %v2522, %v2339
      %v2556 = vsel %vm2546, %v2523, %v2341
      %v2557 = vsel %vm2546, %v2524, %v2343
      %v2558 = vsel %vm2546, %v2525, %v2345
      %v2559 = vsel %vm2546, %v2526, %v2347
      %v2560 = vsel %vm2546, %v2527, %v2349
      %v2561 = vsel %vm2546, %v2528, %v2351
      %v2562 = vsel %vm2546, %v2529, %v2353
      %v2563 = vsel %vm2546, %v2530, %v2355
      %v2564 = vsel %vm2546, %v2531, %v2357
      %v2565 = vsel %vm2546, %v2532, %v2359
      %v2566 = vsel %vm2546, %v2533, %v2361
      %v2567 = vsel %vm2546, %v2534, %v2363
      %v2568 = vsel %vm2546, %v2535, %v2365
      %v2569 = vsel %vm2546, %v2536, %v2367
      %v2570 = vsel %vm2546, %v2537, %v2369
      %v2571 = vsel %vm2546, %v2538, %v2371
      %v2572 = vsel %vm2546, %v2539, %v2373
      %v2573 = vsel %vm2546, %v2540, %v2375
      %v2574 = vsel %vm2546, %v2541, %v2377
      %v2575 = vsel %vm2546, %v2542, %v2379
      %v2576 = vsel %vm2546, %v2543, %v2381
      %v2577 = vsel %vm2546, %v2544, %v2383
      %v2578 = vsel %vm2546, %v2545, %v2385
      %vm2579 = vcmask 392192
      %v2580 = vsel %vm2579, %v2547, %v2419
      %v2581 = vsel %vm2579, %v2548, %v2421
      %v2582 = vsel %vm2579, %v2549, %v2423
      %v2583 = vsel %vm2579, %v2550, %v2425
      %v2584 = vsel %vm2579, %v2551, %v2427
      %v2585 = vsel %vm2579, %v2552, %v2429
      %v2586 = vsel %vm2579, %v2553, %v2431
      %v2587 = vsel %vm2579, %v2554, %v2433
      %v2588 = vsel %vm2579, %v2555, %v2435
      %v2589 = vsel %vm2579, %v2556, %v2437
      %v2590 = vsel %vm2579, %v2557, %v2439
      %v2591 = vsel %vm2579, %v2558, %v2441
      %v2592 = vsel %vm2579, %v2559, %v2443
      %v2593 = vsel %vm2579, %v2560, %v2445
      %v2594 = vsel %vm2579, %v2561, %v2447
      %v2595 = vsel %vm2579, %v2562, %v2449
      %v2596 = vsel %vm2579, %v2563, %v2451
      %v2597 = vsel %vm2579, %v2564, %v2453
      %v2598 = vsel %vm2579, %v2565, %v2455
      %v2599 = vsel %vm2579, %v2566, %v2457
      %v2600 = vsel %vm2579, %v2567, %v2459
      %v2601 = vsel %vm2579, %v2568, %v2461
      %v2602 = vsel %vm2579, %v2569, %v2463
      %v2603 = vsel %vm2579, %v2570, %v2465
      %v2604 = vsel %vm2579, %v2571, %v2467
      %v2605 = vsel %vm2579, %v2572, %v2469
      %v2606 = vsel %vm2579, %v2573, %v2471
      %v2607 = vsel %vm2579, %v2574, %v2473
      %v2608 = vsel %vm2579, %v2575, %v2475
      %v2609 = vsel %vm2579, %v2576, %v2477
      %v2610 = vsel %vm2579, %v2577, %v2479
      %v2611 = vsel %vm2579, %v2578, %v2481
      %v2612 = vmul.f32 %v2036, %v2580
      %v2613 = vmul.f32 %v2041, %v2581
      %v2614 = vmul.f32 %v2046, %v2582
      %v2615 = vmul.f32 %v2051, %v2583
      %v2616 = vmul.f32 %v2056, %v2584
      %v2617 = vmul.f32 %v2061, %v2585
      %v2618 = vmul.f32 %v2066, %v2586
      %v2619 = vmul.f32 %v2071, %v2587
      %v2620 = vmul.f32 %v2076, %v2588
      %v2621 = vmul.f32 %v2081, %v2589
      %v2622 = vmul.f32 %v2086, %v2590
      %v2623 = vmul.f32 %v2091, %v2591
      %v2624 = vmul.f32 %v2096, %v2592
      %v2625 = vmul.f32 %v2101, %v2593
      %v2626 = vmul.f32 %v2106, %v2594
      %v2627 = vmul.f32 %v2111, %v2595
      %v2628 = vmul.f32 %v2116, %v2596
      %v2629 = vmul.f32 %v2121, %v2597
      %v2630 = vmul.f32 %v2126, %v2598
      %v2631 = vmul.f32 %v2131, %v2599
      %v2632 = vmul.f32 %v2136, %v2600
      %v2633 = vmul.f32 %v2141, %v2601
      %v2634 = vmul.f32 %v2146, %v2602
      %v2635 = vmul.f32 %v2151, %v2603
      %v2636 = vmul.f32 %v2156, %v2604
      %v2637 = vmul.f32 %v2161, %v2605
      %v2638 = vmul.f32 %v2166, %v2606
      %v2639 = vmul.f32 %v2171, %v2607
      %v2640 = vmul.f32 %v2176, %v2608
      %v2641 = vmul.f32 %v2181, %v2609
      %v2642 = vmul.f32 %v2186, %v2610
      %v2643 = vmul.f32 %v2191, %v2611
      %v2644 = vld [vmem:[%s3] sm:$0xff]
      %v2645 = vld [vmem:[%s3 + $0x8] sm:$0xff]
      %v2646 = vld [vmem:[%s3 + $0x10] sm:$0xff]
      %v2647 = vld [vmem:[%s3 + $0x18] sm:$0xff]
      %v2648 = vld [vmem:[%s3 + $0x20] sm:$0xff]
      %v2649 = vld [vmem:[%s3 + $0x28] sm:$0xff]
      %v2650 = vld [vmem:[%s3 + $0x30] sm:$0xff]
      %v2651 = vld [vmem:[%s3 + $0x38] sm:$0xff]
      %vm2652 = vcmask 523264
      %v2654 = vsel %vm2652, %v2612, 0
      %v2657 = vsel %vm2652, %v2613, 0
      %v2660 = vsel %vm2652, %v2614, 0
      %v2663 = vsel %vm2652, %v2615, 0
      %v2666 = vsel %vm2652, %v2616, 0
      %v2669 = vsel %vm2652, %v2617, 0
      %v2672 = vsel %vm2652, %v2618, 0
      %v2675 = vsel %vm2652, %v2619, 0
      %v2678 = vsel %vm2652, %v2620, 0
      %v2681 = vsel %vm2652, %v2621, 0
      %v2684 = vsel %vm2652, %v2622, 0
      %v2687 = vsel %vm2652, %v2623, 0
      %v2690 = vsel %vm2652, %v2624, 0
      %v2693 = vsel %vm2652, %v2625, 0
      %v2696 = vsel %vm2652, %v2626, 0
      %v2699 = vsel %vm2652, %v2627, 0
      %v2702 = vsel %vm2652, %v2628, 0
      %v2705 = vsel %vm2652, %v2629, 0
      %v2708 = vsel %vm2652, %v2630, 0
      %v2711 = vsel %vm2652, %v2631, 0
      %v2714 = vsel %vm2652, %v2632, 0
      %v2717 = vsel %vm2652, %v2633, 0
      %v2720 = vsel %vm2652, %v2634, 0
      %v2723 = vsel %vm2652, %v2635, 0
      %v2726 = vsel %vm2652, %v2636, 0
      %v2729 = vsel %vm2652, %v2637, 0
      %v2732 = vsel %vm2652, %v2638, 0
      %v2735 = vsel %vm2652, %v2639, 0
      %v2738 = vsel %vm2652, %v2640, 0
      %v2741 = vsel %vm2652, %v2641, 0
      %v2744 = vsel %vm2652, %v2642, 0
      %v2747 = vsel %vm2652, %v2643, 0
      %2749 = vmatprep.subr.mxu0 0.0
      %2750 = vmatpush1.msra.mxu0 0.0
      %2751 = vmatprep.subr.mxu0 0.0
      %2752 = vmatpush1.msra.mxu0 0.0
      %2753 = vmatprep.subr.mxu0 0.0
      %2754 = vmatpush1.msra.mxu0 0.0
      %2755 = vmatprep.subr.mxu0 0.0
      %2756 = vmatpush1.msra.mxu0 0.0
      %2757 = vmatprep.subr.mxu0 0.0
      %2758 = vmatpush1.msra.mxu0 0.0
      %2759 = vmatprep.subr.mxu0 0.0
      %2760 = vmatpush1.msra.mxu0 0.0
      %2761 = vmatprep.subr.mxu0 0.0
      %2762 = vmatpush1.msra.mxu0 0.0
      %2763 = vmatprep.subr.mxu0 0.0
      %2764 = vmatpush1.msra.mxu0 0.0
      %2765 = vmatprep.subr.mxu0 0.0
      %2766 = vmatpush1.msra.mxu0 %v2651
      %2767 = vmatprep.subr.mxu0 0.0
      %2768 = vmatpush1.msra.mxu0 %v2650
      %2769 = vmatprep.subr.mxu0 0.0
      %2770 = vmatpush1.msra.mxu0 %v2649
      %2771 = vmatprep.subr.mxu0 0.0
      %2772 = vmatpush1.msra.mxu0 %v2648
      %2773 = vmatprep.subr.mxu0 0.0
      %2774 = vmatpush1.msra.mxu0 %v2647
      %2775 = vmatprep.subr.mxu0 0.0
      %2776 = vmatpush1.msra.mxu0 %v2646
      %2777 = vmatprep.subr.mxu0 0.0
      %2778 = vmatpush1.msra.mxu0 %v2645
      %2779 = vmatprep.subr.mxu0 0.0
      %2780 = vmatpush1.msra.mxu0 %v2644
      %2781 = vmatprep.subr.mxu0 0.0
      %2782 = vmatpush2.msra.mxu0 0.0
      %2783 = vmatprep.subr.mxu0 0.0
      %2784 = vmatpush2.msra.mxu0 0.0
      %2785 = vmatprep.subr.mxu0 0.0
      %2786 = vmatpush2.msra.mxu0 0.0
      %2787 = vmatprep.subr.mxu0 0.0
      %2788 = vmatpush2.msra.mxu0 0.0
      %2789 = vmatprep.subr.mxu0 0.0
      %2790 = vmatpush2.msra.mxu0 0.0
      %2791 = vmatprep.subr.mxu0 0.0
      %2792 = vmatpush2.msra.mxu0 0.0
      %2793 = vmatprep.subr.mxu0 0.0
      %2794 = vmatpush2.msra.mxu0 0.0
      %2795 = vmatprep.subr.mxu0 0.0
      %2796 = vmatpush2.msra.mxu0 0.0
      %2797 = vmatprep.subr.mxu0 0.0
      %2798 = vmatpush2.msra.mxu0 0.0
      %2799 = vmatprep.subr.mxu0 0.0
      %2800 = vmatpush2.msra.mxu0 0.0
      %2801 = vmatprep.subr.mxu0 0.0
      %2802 = vmatpush2.msra.mxu0 0.0
      %2803 = vmatprep.subr.mxu0 0.0
      %2804 = vmatpush2.msra.mxu0 0.0
      %2805 = vmatprep.subr.mxu0 0.0
      %2806 = vmatpush2.msra.mxu0 0.0
      %2807 = vmatprep.subr.mxu0 0.0
      %2808 = vmatpush2.msra.mxu0 0.0
      %2809 = vmatprep.subr.mxu0 0.0
      %2810 = vmatpush2.msra.mxu0 0.0
      %2811 = vmatprep.subr.mxu0 0.0
      %2812 = vmatpush2.msra.mxu0 0.0
      %2813 = vmatprep.mubr.f32.mxu0 0.0
      %2814 = vmatmul.mubr.f32.gmra.mxu0 %v2654
      %v2815 = vpop.f32.mrf.mxu0
      %v2816 = vadd.f32 0.0, %v2815
      %v2817 = vpop.f32.mrf.mxu0
      %2818 = vmatprep.mubr.f32.mxu0 0.0
      %2819 = vmatmul.mubr.f32.gmra.mxu0 %v2657
      %v2820 = vpop.f32.mrf.mxu0
      %v2821 = vadd.f32 0.0, %v2820
      %v2822 = vpop.f32.mrf.mxu0
      %2823 = vmatprep.mubr.f32.mxu0 0.0
      %2824 = vmatmul.mubr.f32.gmra.mxu0 %v2660
      %v2825 = vpop.f32.mrf.mxu0
      %v2826 = vadd.f32 0.0, %v2825
      %v2827 = vpop.f32.mrf.mxu0
      %2828 = vmatprep.mubr.f32.mxu0 0.0
      %2829 = vmatmul.mubr.f32.gmra.mxu0 %v2663
      %v2830 = vpop.f32.mrf.mxu0
      %v2831 = vadd.f32 0.0, %v2830
      %v2832 = vpop.f32.mrf.mxu0
      %2833 = vmatprep.mubr.f32.mxu0 0.0
      %2834 = vmatmul.mubr.f32.gmra.mxu0 %v2666
      %v2835 = vpop.f32.mrf.mxu0
      %v2836 = vadd.f32 0.0, %v2835
      %v2837 = vpop.f32.mrf.mxu0
      %2838 = vmatprep.mubr.f32.mxu0 0.0
      %2839 = vmatmul.mubr.f32.gmra.mxu0 %v2669
      %v2840 = vpop.f32.mrf.mxu0
      %v2841 = vadd.f32 0.0, %v2840
      %v2842 = vpop.f32.mrf.mxu0
      %2843 = vmatprep.mubr.f32.mxu0 0.0
      %2844 = vmatmul.mubr.f32.gmra.mxu0 %v2672
      %v2845 = vpop.f32.mrf.mxu0
      %v2846 = vadd.f32 0.0, %v2845
      %v2847 = vpop.f32.mrf.mxu0
      %2848 = vmatprep.mubr.f32.mxu0 0.0
      %2849 = vmatmul.mubr.f32.gmra.mxu0 %v2675
      %v2850 = vpop.f32.mrf.mxu0
      %v2851 = vadd.f32 0.0, %v2850
      %v2852 = vpop.f32.mrf.mxu0
      %2853 = vmatprep.mubr.f32.mxu0 0.0
      %2854 = vmatmul.mubr.f32.gmra.mxu0 %v2678
      %v2855 = vpop.f32.mrf.mxu0
      %v2856 = vadd.f32 0.0, %v2855
      %v2857 = vpop.f32.mrf.mxu0
      %2858 = vmatprep.mubr.f32.mxu0 0.0
      %2859 = vmatmul.mubr.f32.gmra.mxu0 %v2681
      %v2860 = vpop.f32.mrf.mxu0
      %v2861 = vadd.f32 0.0, %v2860
      %v2862 = vpop.f32.mrf.mxu0
      %2863 = vmatprep.mubr.f32.mxu0 0.0
      %2864 = vmatmul.mubr.f32.gmra.mxu0 %v2684
      %v2865 = vpop.f32.mrf.mxu0
      %v2866 = vadd.f32 0.0, %v2865
      %v2867 = vpop.f32.mrf.mxu0
      %2868 = vmatprep.mubr.f32.mxu0 0.0
      %2869 = vmatmul.mubr.f32.gmra.mxu0 %v2687
      %v2870 = vpop.f32.mrf.mxu0
      %v2871 = vadd.f32 0.0, %v2870
      %v2872 = vpop.f32.mrf.mxu0
      %2873 = vmatprep.mubr.f32.mxu0 0.0
      %2874 = vmatmul.mubr.f32.gmra.mxu0 %v2690
      %v2875 = vpop.f32.mrf.mxu0
      %v2876 = vadd.f32 0.0, %v2875
      %v2877 = vpop.f32.mrf.mxu0
      %2878 = vmatprep.mubr.f32.mxu0 0.0
      %2879 = vmatmul.mubr.f32.gmra.mxu0 %v2693
      %v2880 = vpop.f32.mrf.mxu0
      %v2881 = vadd.f32 0.0, %v2880
      %v2882 = vpop.f32.mrf.mxu0
      %2883 = vmatprep.mubr.f32.mxu0 0.0
      %2884 = vmatmul.mubr.f32.gmra.mxu0 %v2696
      %v2885 = vpop.f32.mrf.mxu0
      %v2886 = vadd.f32 0.0, %v2885
      %v2887 = vpop.f32.mrf.mxu0
      %2888 = vmatprep.mubr.f32.mxu0 0.0
      %2889 = vmatmul.mubr.f32.gmra.mxu0 %v2699
      %v2890 = vpop.f32.mrf.mxu0
      %v2891 = vadd.f32 0.0, %v2890
      %v2892 = vpop.f32.mrf.mxu0
      %2893 = vmatprep.mubr.f32.mxu0 0.0
      %2894 = vmatmul.mubr.f32.gmra.mxu0 %v2702
      %v2895 = vpop.f32.mrf.mxu0
      %v2896 = vadd.f32 0.0, %v2895
      %v2897 = vpop.f32.mrf.mxu0
      %2898 = vmatprep.mubr.f32.mxu0 0.0
      %2899 = vmatmul.mubr.f32.gmra.mxu0 %v2705
      %v2900 = vpop.f32.mrf.mxu0
      %v2901 = vadd.f32 0.0, %v2900
      %v2902 = vpop.f32.mrf.mxu0
      %2903 = vmatprep.mubr.f32.mxu0 0.0
      %2904 = vmatmul.mubr.f32.gmra.mxu0 %v2708
      %v2905 = vpop.f32.mrf.mxu0
      %v2906 = vadd.f32 0.0, %v2905
      %v2907 = vpop.f32.mrf.mxu0
      %2908 = vmatprep.mubr.f32.mxu0 0.0
      %2909 = vmatmul.mubr.f32.gmra.mxu0 %v2711
      %v2910 = vpop.f32.mrf.mxu0
      %v2911 = vadd.f32 0.0, %v2910
      %v2912 = vpop.f32.mrf.mxu0
      %2913 = vmatprep.mubr.f32.mxu0 0.0
      %2914 = vmatmul.mubr.f32.gmra.mxu0 %v2714
      %v2915 = vpop.f32.mrf.mxu0
      %v2916 = vadd.f32 0.0, %v2915
      %v2917 = vpop.f32.mrf.mxu0
      %2918 = vmatprep.mubr.f32.mxu0 0.0
      %2919 = vmatmul.mubr.f32.gmra.mxu0 %v2717
      %v2920 = vpop.f32.mrf.mxu0
      %v2921 = vadd.f32 0.0, %v2920
      %v2922 = vpop.f32.mrf.mxu0
      %2923 = vmatprep.mubr.f32.mxu0 0.0
      %2924 = vmatmul.mubr.f32.gmra.mxu0 %v2720
      %v2925 = vpop.f32.mrf.mxu0
      %v2926 = vadd.f32 0.0, %v2925
      %v2927 = vpop.f32.mrf.mxu0
      %2928 = vmatprep.mubr.f32.mxu0 0.0
      %2929 = vmatmul.mubr.f32.gmra.mxu0 %v2723
      %v2930 = vpop.f32.mrf.mxu0
      %v2931 = vadd.f32 0.0, %v2930
      %v2932 = vpop.f32.mrf.mxu0
      %2933 = vmatprep.mubr.f32.mxu0 0.0
      %2934 = vmatmul.mubr.f32.gmra.mxu0 %v2726
      %v2935 = vpop.f32.mrf.mxu0
      %v2936 = vadd.f32 0.0, %v2935
      %v2937 = vpop.f32.mrf.mxu0
      %2938 = vmatprep.mubr.f32.mxu0 0.0
      %2939 = vmatmul.mubr.f32.gmra.mxu0 %v2729
      %v2940 = vpop.f32.mrf.mxu0
      %v2941 = vadd.f32 0.0, %v2940
      %v2942 = vpop.f32.mrf.mxu0
      %2943 = vmatprep.mubr.f32.mxu0 0.0
      %2944 = vmatmul.mubr.f32.gmra.mxu0 %v2732
      %v2945 = vpop.f32.mrf.mxu0
      %v2946 = vadd.f32 0.0, %v2945
      %v2947 = vpop.f32.mrf.mxu0
      %2948 = vmatprep.mubr.f32.mxu0 0.0
      %2949 = vmatmul.mubr.f32.gmra.mxu0 %v2735
      %v2950 = vpop.f32.mrf.mxu0
      %v2951 = vadd.f32 0.0, %v2950
      %v2952 = vpop.f32.mrf.mxu0
      %2953 = vmatprep.mubr.f32.mxu0 0.0
      %2954 = vmatmul.mubr.f32.gmra.mxu0 %v2738
      %v2955 = vpop.f32.mrf.mxu0
      %v2956 = vadd.f32 0.0, %v2955
      %v2957 = vpop.f32.mrf.mxu0
      %2958 = vmatprep.mubr.f32.mxu0 0.0
      %2959 = vmatmul.mubr.f32.gmra.mxu0 %v2741
      %v2960 = vpop.f32.mrf.mxu0
      %v2961 = vadd.f32 0.0, %v2960
      %v2962 = vpop.f32.mrf.mxu0
      %2963 = vmatprep.mubr.f32.mxu0 0.0
      %2964 = vmatmul.mubr.f32.gmra.mxu0 %v2744
      %v2965 = vpop.f32.mrf.mxu0
      %v2966 = vadd.f32 0.0, %v2965
      %v2967 = vpop.f32.mrf.mxu0
      %2968 = vmatprep.mubr.f32.mxu0 0.0
      %2969 = vmatmul.mubr.f32.gmra.mxu0 %v2747
      %v2970 = vpop.f32.mrf.mxu0
      %v2971 = vadd.f32 0.0, %v2970
      %v2972 = vpop.f32.mrf.mxu0
      %2973 = vdwg.mxu0
      %2974 = vxpose.xlu0.b32.start [1/16] %v2816, 128
      %2975 = vxpose.xlu0.b32.cont [2/16] %v2821, 128
      %2976 = vxpose.xlu0.b32.cont [3/16] %v2826, 128
      %2977 = vxpose.xlu0.b32.cont [4/16] %v2831, 128
      %2978 = vxpose.xlu0.b32.cont [5/16] %v2836, 128
      %2979 = vxpose.xlu0.b32.cont [6/16] %v2841, 128
      %2980 = vxpose.xlu0.b32.cont [7/16] %v2846, 128
      %2981 = vxpose.xlu0.b32.cont [8/16] %v2851, 128
      %2982 = vxpose.xlu0.b32.cont [9/16] %v2856, 128
      %2983 = vxpose.xlu0.b32.cont [10/16] %v2861, 128
      %2984 = vxpose.xlu0.b32.cont [11/16] %v2866, 128
      %2985 = vxpose.xlu0.b32.cont [12/16] %v2871, 128
      %2986 = vxpose.xlu0.b32.cont [13/16] %v2876, 128
      %2987 = vxpose.xlu0.b32.cont [14/16] %v2881, 128
      %2988 = vxpose.xlu0.b32.cont [15/16] %v2886, 128
      %2989 = vxpose.xlu0.b32.end [16/16] %v2891, 128
      %v2990 = vpop.trf.xlu0
      %v2991 = vpop.trf.xlu0
      %v2992 = vpop.trf.xlu0
      %v2993 = vpop.trf.xlu0
      %v2994 = vpop.trf.xlu0
      %v2995 = vpop.trf.xlu0
      %v2996 = vpop.trf.xlu0
      %v2997 = vpop.trf.xlu0
      %v2998 = vpop.trf.xlu0
      %v2999 = vpop.trf.xlu0
      %v3000 = vpop.trf.xlu0
      %v3001 = vpop.trf.xlu0
      %v3002 = vpop.trf.xlu0
      %v3003 = vpop.trf.xlu0
      %v3004 = vpop.trf.xlu0
      %v3005 = vpop.trf.xlu0
      %3006 = vxpose.xlu0.b32.start [1/16] %v2896, 128
      %3007 = vxpose.xlu0.b32.cont [2/16] %v2901, 128
      %3008 = vxpose.xlu0.b32.cont [3/16] %v2906, 128
      %3009 = vxpose.xlu0.b32.cont [4/16] %v2911, 128
      %3010 = vxpose.xlu0.b32.cont [5/16] %v2916, 128
      %3011 = vxpose.xlu0.b32.cont [6/16] %v2921, 128
      %3012 = vxpose.xlu0.b32.cont [7/16] %v2926, 128
      %3013 = vxpose.xlu0.b32.cont [8/16] %v2931, 128
      %3014 = vxpose.xlu0.b32.cont [9/16] %v2936, 128
      %3015 = vxpose.xlu0.b32.cont [10/16] %v2941, 128
      %3016 = vxpose.xlu0.b32.cont [11/16] %v2946, 128
      %3017 = vxpose.xlu0.b32.cont [12/16] %v2951, 128
      %3018 = vxpose.xlu0.b32.cont [13/16] %v2956, 128
      %3019 = vxpose.xlu0.b32.cont [14/16] %v2961, 128
      %3020 = vxpose.xlu0.b32.cont [15/16] %v2966, 128
      %3021 = vxpose.xlu0.b32.end [16/16] %v2971, 128
      %v3022 = vpop.trf.xlu0
      %v3023 = vpop.trf.xlu0
      %v3024 = vpop.trf.xlu0
      %v3025 = vpop.trf.xlu0
      %v3026 = vpop.trf.xlu0
      %v3027 = vpop.trf.xlu0
      %v3028 = vpop.trf.xlu0
      %v3029 = vpop.trf.xlu0
      %v3030 = vpop.trf.xlu0
      %v3031 = vpop.trf.xlu0
      %v3032 = vpop.trf.xlu0
      %v3033 = vpop.trf.xlu0
      %v3034 = vpop.trf.xlu0
      %v3035 = vpop.trf.xlu0
      %v3036 = vpop.trf.xlu0
      %v3037 = vpop.trf.xlu0
      %v3040 = vcombine.low %v2990, %v3022
      %3042 = vst [vmem:[%s380] sm:$0xff] %v3040
      %v3043 = vld [vmem:[%s366] sm:$0xff]
      %v3044 = vsub.f32 %v3043, %v3040
      %3045 = vst [vmem:[%s394] sm:$0xff] %v3044
      %s3046 = smul.u32 2, %s23
      %p3047 = scmp.lt.s32.totalorder %s22, 1
      %s3048 = scalar_select %p3047, %s22, 1
      %p3049 = scmp.lt.s32.totalorder %s24, 0
      %s3050 = scalar_select %p3049, %s24, 0
      %p3051 = scmp.lt.s32.totalorder %s3046, 1
      %s3052 = scalar_select %p3051, %s3046, 1
      %s3053 = smul.addr %s3050, 2
      %s3054 = sadd.s32 %s3052, %s3053
      %s3055 = smul.addr %s3048, 2
      %s3056 = sadd.s32 %s3054, %s3055
      %s3057 = smul.addr %s3056, 4
      %s3058 = scalar_lea.vmem %s4, %s3057
      %s3059 = smul.u32 2, %s23
      %p3060 = scmp.lt.s32.totalorder %s22, 1
      %s3061 = scalar_select %p3060, %s22, 1
      %p3062 = scmp.lt.s32.totalorder %s24, 0
      %s3063 = scalar_select %p3062, %s24, 0
      %p3064 = scmp.lt.s32.totalorder %s3059, 1
      %s3065 = scalar_select %p3064, %s3059, 1
      %s3066 = smul.addr %s3063, 2
      %s3067 = sadd.s32 %s3065, %s3066
      %s3068 = smul.addr %s3061, 2
      %s3069 = sadd.s32 %s3067, %s3068
      %s3070 = smul.addr %s3069, 4
      %s3071 = scalar_lea.vmem %s5, %s3070
      // Predicated region
      $region37: #{squeeze_body_edge_forward.7} parent=35 // pred_check
        %p3072 = pneg %p165
      $region38: #{squeeze_body_edge_forward.7} parent=35 // pred_check_branch
        %3074 = sbr.rel (%p3072) target = $region40
      $region39: #{squeeze_body_edge_forward.7} parent=35 // pred_region
        %s3075 = smul.u32 2, %s23
      $region40: #{squeeze_body_edge_forward.7} parent=35 // pred_fallthru
        _
      // Predicated region
      $region41: #{squeeze_body_edge_forward.7} parent=35 // pred_check
        %p3076 = pneg %p195
      $region42: #{squeeze_body_edge_forward.7} parent=35 // pred_check_branch
        %3078 = sbr.rel (%p3076) target = $region44
      $region43: #{squeeze_body_edge_forward.7} parent=35 // pred_region
        %s3079 = smul.u32 2, %s23
      $region44: #{squeeze_body_edge_forward.7} parent=35 // pred_fallthru
        _
    $region36: #{squeeze_body_edge_forward.7} parent=5 // pred_fallthru
      _
    %p3080 = scmp.le.s32.totalorder 2, %s12
    // Predicated region
    $region45: #{squeeze_body_edge_forward.7} parent=5 // pred_check
      %p3081 = pneg %p3080
    $region46: #{squeeze_body_edge_forward.7} parent=5 // pred_check_branch
      %3083 = sbr.rel (%p3081) target = $region48
    $region47: #{squeeze_body_edge_forward.7} parent=5 // pred_region
      %s3084 = ssub.s32 %s12, 2
      // Predicated region
      $region49: #{squeeze_body_edge_forward.7} parent=47 // pred_check
        %p3085 = pneg %p171
      $region50: #{squeeze_body_edge_forward.7} parent=47 // pred_check_branch
        %3087 = sbr.rel (%p3085) target = $region52
      $region51: #{squeeze_body_edge_forward.7} parent=47 // pred_region
        %s3088 = smul.u32 2, %s26
        %p3089 = scmp.lt.s32.totalorder %s25, 1
        %s3090 = scalar_select %p3089, %s25, 1
        %p3091 = scmp.lt.s32.totalorder %s27, 0
        %s3092 = scalar_select %p3091, %s27, 0
        %p3093 = scmp.lt.s32.totalorder %s3088, 1
        %s3094 = scalar_select %p3093, %s3088, 1
        %s3095 = smul.addr %s3092, 2
        %s3096 = sadd.s32 %s3094, %s3095
        %s3097 = smul.addr %s3090, 2
        %s3098 = sadd.s32 %s3096, %s3097
        %s3099 = smul.addr %s3098, 4
        %s3100 = scalar_lea.vmem %s4, %s3099
      $region52: #{squeeze_body_edge_forward.7} parent=47 // pred_fallthru
        _
      // Predicated region
      $region53: #{squeeze_body_edge_forward.7} parent=47 // pred_check
        %p3101 = pneg %p201
      $region54: #{squeeze_body_edge_forward.7} parent=47 // pred_check_branch
        %3103 = sbr.rel (%p3101) target = $region56
      $region55: #{squeeze_body_edge_forward.7} parent=47 // pred_region
        %s3104 = smul.u32 2, %s26
        %p3105 = scmp.lt.s32.totalorder %s25, 1
        %s3106 = scalar_select %p3105, %s25, 1
        %p3107 = scmp.lt.s32.totalorder %s27, 0
        %s3108 = scalar_select %p3107, %s27, 0
        %p3109 = scmp.lt.s32.totalorder %s3104, 1
        %s3110 = scalar_select %p3109, %s3104, 1
        %s3111 = smul.addr %s3108, 2
        %s3112 = sadd.s32 %s3110, %s3111
        %s3113 = smul.addr %s3106, 2
        %s3114 = sadd.s32 %s3112, %s3113
        %s3115 = smul.addr %s3114, 4
        %s3116 = scalar_lea.vmem %s5, %s3115
      $region56: #{squeeze_body_edge_forward.7} parent=47 // pred_fallthru
        _
    $region48: #{squeeze_body_edge_forward.7} parent=5 // pred_fallthru
      _
  $region6: #{squeeze_body_edge_forward.7} parent=0 // loop_footer
    %s16 = sadd.s32 1, %s12
  $region7: #{squeeze_body_edge_forward.7} parent=0 // loop_footer_branch
    %11 = sbr.rel target = $region3
  $region8: #{squeeze_body_edge_forward.7} parent=0 // loop_exit
    _

// kernel: squeeze_body_edge_forward.6
$region0: #{squeeze_body_edge_forward.6}
  #allocation0 [shape = 'u32[]', space=smem, size = 0x4, offset = 0x4, fixed_abs, tag = 'smem constant byte address 0x4 - core index']
  #allocation1 [shape = 'u32[144,128]{1,0:T(1,128)}', space=vmem, size = 0x12000, scoped, tag = 'internal scratch']
  #allocation2 [shape = 'f32[18,18,4]{2,1,0:T(8,128)}', space=vmem, size = 0x36000, scoped, tag = 'scratch operand']
  %s0 = inlined_call_operand.vmem [shape: f32[2,18,18,4], index: 0, kind: input, shape index: {}]
  %s1 = inlined_call_operand.vmem [shape: f32[2,9,4], index: 1, kind: input, shape index: {}]
  %s2 = inlined_call_operand.vmem [shape: f32[256,9], index: 2, kind: input, shape index: {}]
  %s3 = inlined_call_operand.vmem [shape: f32[9,4,2], index: 3, kind: input, shape index: {}]
  %s4 = inlined_call_operand.vmem [shape: f32[9,4,2], index: 4, kind: input, shape index: {}]
  %s5 = inlined_call_operand.vmem [shape: f32[256,2], index: 5, kind: input, shape index: {}]
  %s6 = inlined_call_operand.vmem [shape: f32[2,256,2], index: 6, kind: output, shape index: {}]
  %s7 = sld [smem:[#allocation0]]
  $region57: #{squeeze_body_edge_forward.6} parent=0
    _
  %s9 = ssub.s32 1, %s7
  %s10 = scalar_select 0, %s9, %s7
  loop: start=0, step=1, limit=4
  $region2: #{squeeze_body_edge_forward.6} parent=0 // loop_pre_header
    _
  $region3: #{squeeze_body_edge_forward.6} parent=0 // loop_header
    %s12 = sphi 0, %s16
    %p13 = scmp.ge.s32.totalorder %s12, 4
    %s22 = sphi 0, %s24
    %s25 = sphi 0, %s22
    %s26 = sphi 0, %s25
    %s42 = sphi 0, %s26
    %s48 = sphi 0, %s50
    %s51 = sphi 0, %s48
    %s52 = sphi 0, %s51
    %s68 = sphi 0, %s52
    %s72 = sphi 0, %s72
    %s74 = sphi 0, %s72
    %s75 = sphi 0, %s74
    %s89 = sphi 0, %s75
    %s93 = sphi 0, %s93
    %s95 = sphi 0, %s93
    %s96 = sphi 0, %s95
    %s110 = sphi 0, %s96
    %s114 = sphi 0, %s114
    %s116 = sphi 0, %s114
    %s117 = sphi 0, %s116
    %s131 = sphi 0, %s117
    %s135 = sphi 0, %s135
    %s137 = sphi 0, %s135
    %s138 = sphi 0, %s137
    %s152 = sphi 0, %s138
    %s158 = sphi 0, %s160
    %s161 = sphi 0, %s158
    %s162 = sphi 0, %s161
    %s178 = sphi 0, %s162
  $region4: #{squeeze_body_edge_forward.6} parent=0 // loop_header_branch
    %15 = sbr.rel (%p13) target = $region8
  $region5: #{squeeze_body_edge_forward.6} parent=0 // loop_body
    %s17 = ssub.s32 %s12, 1
    %s18 = ssub.s32 %s12, 2
    %s19 = sadd.s32 %s12, 1
    %s20 = ssub.s32 %s12, %s19
    %p21 = scmp.eq.s32.totalorder %s20, 0
    %s23 = sadd.s32 %s22, 1
    %s24 = scalar_select %p21, %s22, %s23
    %p27 = pneg %p21
    %p28 = scmp.eq.s32.totalorder %s12, 1
    %p29 = por %p27, %p28
    %p30 = scmp.ne.s32.totalorder %s22, %s25
    %p31 = scmp.eq.s32.totalorder %s12, 0
    %p32 = por %p30, %p31
    %p33 = scmp.ne.s32.totalorder %s22, %s25
    %p34 = scmp.eq.s32.totalorder %s17, 1
    %p35 = por %p33, %p34
    %p36 = scmp.ne.s32.totalorder %s25, %s26
    %p37 = scmp.eq.s32.totalorder %s17, 0
    %p38 = por %p36, %p37
    %p39 = scmp.ne.s32.totalorder %s25, %s26
    %p40 = scmp.eq.s32.totalorder %s18, 1
    %p41 = por %p39, %p40
    %p43 = scmp.ne.s32.totalorder %s26, %s42
    %p44 = scmp.eq.s32.totalorder %s18, 0
    %p45 = por %p43, %p44
    %s46 = ssub.s32 %s12, %s19
    %p47 = scmp.eq.s32.totalorder %s46, 0
    %s49 = sadd.s32 %s48, 1
    %s50 = scalar_select %p47, %s48, %s49
    %p53 = pneg %p47
    %p54 = scmp.eq.s32.totalorder %s12, 1
    %p55 = por %p53, %p54
    %p56 = scmp.ne.s32.totalorder %s48, %s51
    %p57 = scmp.eq.s32.totalorder %s12, 0
    %p58 = por %p56, %p57
    %p59 = scmp.ne.s32.totalorder %s48, %s51
    %p60 = scmp.eq.s32.totalorder %s17, 1
    %p61 = por %p59, %p60
    %p62 = scmp.ne.s32.totalorder %s51, %s52
    %p63 = scmp.eq.s32.totalorder %s17, 0
    %p64 = por %p62, %p63
    %p65 = scmp.ne.s32.totalorder %s51, %s52
    %p66 = scmp.eq.s32.totalorder %s18, 1
    %p67 = por %p65, %p66
    %p69 = scmp.ne.s32.totalorder %s52, %s68
    %p70 = scmp.eq.s32.totalorder %s18, 0
    %p71 = por %p69, %p70
    %s73 = sadd.s32 %s72, 1
    %p76 = scmp.eq.s32.totalorder %s12, 1
    %p77 = scmp.ne.s32.totalorder %s72, %s74
    %p78 = scmp.eq.s32.totalorder %s12, 0
    %p79 = por %p77, %p78
    %p80 = scmp.ne.s32.totalorder %s72, %s74
    %p81 = scmp.eq.s32.totalorder %s17, 1
    %p82 = por %p80, %p81
    %p83 = scmp.ne.s32.totalorder %s74, %s75
    %p84 = scmp.eq.s32.totalorder %s17, 0
    %p85 = por %p83, %p84
    %p86 = scmp.ne.s32.totalorder %s74, %s75
    %p87 = scmp.eq.s32.totalorder %s18, 1
    %p88 = por %p86, %p87
    %p90 = scmp.ne.s32.totalorder %s75, %s89
    %p91 = scmp.eq.s32.totalorder %s18, 0
    %p92 = por %p90, %p91
    %s94 = sadd.s32 %s93, 1
    %p97 = scmp.eq.s32.totalorder %s12, 1
    %p98 = scmp.ne.s32.totalorder %s93, %s95
    %p99 = scmp.eq.s32.totalorder %s12, 0
    %p100 = por %p98, %p99
    %p101 = scmp.ne.s32.totalorder %s93, %s95
    %p102 = scmp.eq.s32.totalorder %s17, 1
    %p103 = por %p101, %p102
    %p104 = scmp.ne.s32.totalorder %s95, %s96
    %p105 = scmp.eq.s32.totalorder %s17, 0
    %p106 = por %p104, %p105
    %p107 = scmp.ne.s32.totalorder %s95, %s96
    %p108 = scmp.eq.s32.totalorder %s18, 1
    %p109 = por %p107, %p108
    %p111 = scmp.ne.s32.totalorder %s96, %s110
    %p112 = scmp.eq.s32.totalorder %s18, 0
    %p113 = por %p111, %p112
    %s115 = sadd.s32 %s114, 1
    %p118 = scmp.eq.s32.totalorder %s12, 1
    %p119 = scmp.ne.s32.totalorder %s114, %s116
    %p120 = scmp.eq.s32.totalorder %s12, 0
    %p121 = por %p119, %p120
    %p122 = scmp.ne.s32.totalorder %s114, %s116
    %p123 = scmp.eq.s32.totalorder %s17, 1
    %p124 = por %p122, %p123
    %p125 = scmp.ne.s32.totalorder %s116, %s117
    %p126 = scmp.eq.s32.totalorder %s17, 0
    %p127 = por %p125, %p126
    %p128 = scmp.ne.s32.totalorder %s116, %s117
    %p129 = scmp.eq.s32.totalorder %s18, 1
    %p130 = por %p128, %p129
    %p132 = scmp.ne.s32.totalorder %s117, %s131
    %p133 = scmp.eq.s32.totalorder %s18, 0
    %p134 = por %p132, %p133
    %s136 = sadd.s32 %s135, 1
    %p139 = scmp.eq.s32.totalorder %s12, 1
    %p140 = scmp.ne.s32.totalorder %s135, %s137
    %p141 = scmp.eq.s32.totalorder %s12, 0
    %p142 = por %p140, %p141
    %p143 = scmp.ne.s32.totalorder %s135, %s137
    %p144 = scmp.eq.s32.totalorder %s17, 1
    %p145 = por %p143, %p144
    %p146 = scmp.ne.s32.totalorder %s137, %s138
    %p147 = scmp.eq.s32.totalorder %s17, 0
    %p148 = por %p146, %p147
    %p149 = scmp.ne.s32.totalorder %s137, %s138
    %p150 = scmp.eq.s32.totalorder %s18, 1
    %p151 = por %p149, %p150
    %p153 = scmp.ne.s32.totalorder %s138, %s152
    %p154 = scmp.eq.s32.totalorder %s18, 0
    %p155 = por %p153, %p154
    %s156 = ssub.s32 %s12, %s19
    %p157 = scmp.eq.s32.totalorder %s156, 0
    %s159 = sadd.s32 %s158, 1
    %s160 = scalar_select %p157, %s158, %s159
    %p163 = pneg %p157
    %p164 = scmp.eq.s32.totalorder %s12, 1
    %p165 = por %p163, %p164
    %p166 = scmp.ne.s32.totalorder %s158, %s161
    %p167 = scmp.eq.s32.totalorder %s12, 0
    %p168 = por %p166, %p167
    %p169 = scmp.ne.s32.totalorder %s158, %s161
    %p170 = scmp.eq.s32.totalorder %s17, 1
    %p171 = por %p169, %p170
    %p172 = scmp.ne.s32.totalorder %s161, %s162
    %p173 = scmp.eq.s32.totalorder %s17, 0
    %p174 = por %p172, %p173
    %p175 = scmp.ne.s32.totalorder %s161, %s162
    %p176 = scmp.eq.s32.totalorder %s18, 1
    %p177 = por %p175, %p176
    %p179 = scmp.ne.s32.totalorder %s162, %s178
    %p180 = scmp.eq.s32.totalorder %s18, 0
    %p181 = por %p179, %p180
    %p182 = scmp.le.s32.totalorder 1, %s12
    %p183 = scmp.lt.s32.totalorder %s12, 3
    %p184 = pnand %p182, %p183
    %p185 = pneg %p184
    // Predicated region
    $region9: #{squeeze_body_edge_forward.6} parent=5 // pred_check
      _
    $region10: #{squeeze_body_edge_forward.6} parent=5 // pred_check_branch
      %187 = sbr.rel (%p184) target = $region12
    $region11: #{squeeze_body_edge_forward.6} parent=5 // pred_region
      %s188 = ssub.s32 %s12, 1
      // Predicated region
      $region13: #{squeeze_body_edge_forward.6} parent=11 // pred_check
        %p189 = pneg %p85
      $region14: #{squeeze_body_edge_forward.6} parent=11 // pred_check_branch
        %191 = sbr.rel (%p189) target = $region16
      $region15: #{squeeze_body_edge_forward.6} parent=11 // pred_region
        _
      $region16: #{squeeze_body_edge_forward.6} parent=11 // pred_fallthru
        _
      // Predicated region
      $region17: #{squeeze_body_edge_forward.6} parent=11 // pred_check
        %p192 = pneg %p106
      $region18: #{squeeze_body_edge_forward.6} parent=11 // pred_check_branch
        %194 = sbr.rel (%p192) target = $region20
      $region19: #{squeeze_body_edge_forward.6} parent=11 // pred_region
        _
      $region20: #{squeeze_body_edge_forward.6} parent=11 // pred_fallthru
        _
      // Predicated region
      $region21: #{squeeze_body_edge_forward.6} parent=11 // pred_check
        %p195 = pneg %p127
      $region22: #{squeeze_body_edge_forward.6} parent=11 // pred_check_branch
        %197 = sbr.rel (%p195) target = $region24
      $region23: #{squeeze_body_edge_forward.6} parent=11 // pred_region
        _
      $region24: #{squeeze_body_edge_forward.6} parent=11 // pred_fallthru
        _
      // Predicated region
      $region25: #{squeeze_body_edge_forward.6} parent=11 // pred_check
        %p198 = pneg %p148
      $region26: #{squeeze_body_edge_forward.6} parent=11 // pred_check_branch
        %200 = sbr.rel (%p198) target = $region28
      $region27: #{squeeze_body_edge_forward.6} parent=11 // pred_region
        _
      $region28: #{squeeze_body_edge_forward.6} parent=11 // pred_fallthru
        _
    $region12: #{squeeze_body_edge_forward.6} parent=5 // pred_fallthru
      _
    %p201 = scmp.lt.s32.totalorder %s12, 2
    // Predicated region
    $region29: #{squeeze_body_edge_forward.6} parent=5 // pred_check
      %p202 = pneg %p201
    $region30: #{squeeze_body_edge_forward.6} parent=5 // pred_check_branch
      %204 = sbr.rel (%p202) target = $region32
    $region31: #{squeeze_body_edge_forward.6} parent=5 // pred_region
      // Predicated region
      $region33: #{squeeze_body_edge_forward.6} parent=31 // pred_check
        %p205 = pneg %p32
      $region34: #{squeeze_body_edge_forward.6} parent=31 // pred_check_branch
        %207 = sbr.rel (%p205) target = $region36
      $region35: #{squeeze_body_edge_forward.6} parent=31 // pred_region
        %p208 = scmp.lt.s32.totalorder %s12, 1
        %s209 = scalar_select %p208, %s12, 1
        %s210 = smul.addr %s209, 54
        %s211 = smul.addr %s210, 8
        %s212 = scalar_lea.vmem %s0, %s211
      $region36: #{squeeze_body_edge_forward.6} parent=31 // pred_fallthru
        _
      // Predicated region
      $region37: #{squeeze_body_edge_forward.6} parent=31 // pred_check
        %p213 = pneg %p58
      $region38: #{squeeze_body_edge_forward.6} parent=31 // pred_check_branch
        %215 = sbr.rel (%p213) target = $region40
      $region39: #{squeeze_body_edge_forward.6} parent=31 // pred_region
        %p216 = scmp.lt.s32.totalorder %s12, 1
        %s217 = scalar_select %p216, %s12, 1
        %s218 = smul.addr %s217, 2
        %s219 = smul.addr %s218, 8
        %s220 = scalar_lea.vmem %s1, %s219
      $region40: #{squeeze_body_edge_forward.6} parent=31 // pred_fallthru
        _
    $region32: #{squeeze_body_edge_forward.6} parent=5 // pred_fallthru
      _
    %p221 = scmp.le.s32.totalorder 1, %s12
    %p222 = scmp.lt.s32.totalorder %s12, 3
    %p223 = pnand %p221, %p222
    %p224 = pneg %p223
    // Predicated region
    $region41: #{squeeze_body_edge_forward.6} parent=5 // pred_check
      _
    $region42: #{squeeze_body_edge_forward.6} parent=5 // pred_check_branch
      %226 = sbr.rel (%p223) target = $region44
    $region43: #{squeeze_body_edge_forward.6} parent=5 // pred_region
      %s227 = ssub.s32 %s12, 1
      %p228 = scmp.lt.s32.totalorder %s17, 1
      %s229 = scalar_select %p228, %s17, 1
      %s230 = smul.addr %s229, 54
      %s231 = smul.addr %s230, 8
      %s232 = scalar_lea.vmem %s0, %s231
      %p233 = pneg %p38
      %p234 = pneg %p35
      %p235 = scmp.lt.s32.totalorder %s17, 1
      %s236 = scalar_select %p235, %s17, 1
      %s237 = smul.addr %s236, 2
      %s238 = smul.addr %s237, 8
      %s239 = scalar_lea.vmem %s1, %s238
      %p240 = pneg %p64
      %p241 = pneg %p61
      %p242 = pneg %p85
      %p243 = pneg %p82
      %p244 = pneg %p106
      %p245 = pneg %p103
      %p246 = pneg %p127
      %p247 = pneg %p124
      %p248 = pneg %p148
      %p249 = pneg %p145
      %p250 = pneg %p174
      %p251 = pneg %p171
      %p252 = scmp.lt.s32.totalorder %s17, 1
      %s253 = scalar_select %p252, %s17, 1
      %s254 = smul.addr %s253, 32
      %s255 = smul.addr %s254, 8
      %s256 = scalar_lea.vmem %s6, %s255
      %p257 = scmp.lt.s32.totalorder %s17, 1
      %s258 = scalar_select %p257, %s17, 1
      %s259 = smul.addr %s258, 54
      %s260 = smul.addr %s259, 8
      %s261 = scalar_lea.vmem %s0, %s260
      %p262 = scmp.lt.s32.totalorder %s17, 1
      %s263 = scalar_select %p262, %s17, 1
      %s264 = smul.addr %s263, 2
      %s265 = smul.addr %s264, 8
      %s266 = scalar_lea.vmem %s1, %s265
      %p267 = scmp.lt.s32.totalorder %s17, 1
      %s268 = scalar_select %p267, %s17, 1
      %s269 = smul.addr %s268, 32
      %s270 = smul.addr %s269, 8
      %s271 = scalar_lea.vmem %s6, %s270
      %v272 = vld [vmem:[%s2] sm:$0xff]
      %v273 = vld [vmem:[%s2 + $0x8] sm:$0xff]
      %v274 = vld [vmem:[%s2 + $0x10] sm:$0xff]
      %v275 = vld [vmem:[%s2 + $0x18] sm:$0xff]
      %v276 = vld [vmem:[%s2 + $0x20] sm:$0xff]
      %v277 = vld [vmem:[%s2 + $0x28] sm:$0xff]
      %v278 = vld [vmem:[%s2 + $0x30] sm:$0xff]
      %v279 = vld [vmem:[%s2 + $0x38] sm:$0xff]
      %v280 = vld [vmem:[%s2 + $0x40] sm:$0xff]
      %v281 = vld [vmem:[%s2 + $0x48] sm:$0xff]
      %v282 = vld [vmem:[%s2 + $0x50] sm:$0xff]
      %v283 = vld [vmem:[%s2 + $0x58] sm:$0xff]
      %v284 = vld [vmem:[%s2 + $0x60] sm:$0xff]
      %v285 = vld [vmem:[%s2 + $0x68] sm:$0xff]
      %v286 = vld [vmem:[%s2 + $0x70] sm:$0xff]
      %v287 = vld [vmem:[%s2 + $0x78] sm:$0xff]
      %v288 = vld [vmem:[%s2 + $0x80] sm:$0xff]
      %v289 = vld [vmem:[%s2 + $0x88] sm:$0xff]
      %v290 = vld [vmem:[%s2 + $0x90] sm:$0xff]
      %v291 = vld [vmem:[%s2 + $0x98] sm:$0xff]
      %v292 = vld [vmem:[%s2 + $0xa0] sm:$0xff]
      %v293 = vld [vmem:[%s2 + $0xa8] sm:$0xff]
      %v294 = vld [vmem:[%s2 + $0xb0] sm:$0xff]
      %v295 = vld [vmem:[%s2 + $0xb8] sm:$0xff]
      %v296 = vld [vmem:[%s2 + $0xc0] sm:$0xff]
      %v297 = vld [vmem:[%s2 + $0xc8] sm:$0xff]
      %v298 = vld [vmem:[%s2 + $0xd0] sm:$0xff]
      %v299 = vld [vmem:[%s2 + $0xd8] sm:$0xff]
      %v300 = vld [vmem:[%s2 + $0xe0] sm:$0xff]
      %v301 = vld [vmem:[%s2 + $0xe8] sm:$0xff]
      %v302 = vld [vmem:[%s2 + $0xf0] sm:$0xff]
      %v303 = vld [vmem:[%s2 + $0xf8] sm:$0xff]
      %v304 = vld [vmem:[%s266] sm:$0xff]
      %v305 = vld [vmem:[%s266 + $0x8] sm:$0x1]
      %vm306 = vcmask 72704
      %v308 = vsel %vm306, %v272, 0
      %v311 = vsel %vm306, %v273, 0
      %v314 = vsel %vm306, %v274, 0
      %v317 = vsel %vm306, %v275, 0
      %v320 = vsel %vm306, %v276, 0
      %v323 = vsel %vm306, %v277, 0
      %v326 = vsel %vm306, %v278, 0
      %v329 = vsel %vm306, %v279, 0
      %v332 = vsel %vm306, %v280, 0
      %v335 = vsel %vm306, %v281, 0
      %v338 = vsel %vm306, %v282, 0
      %v341 = vsel %vm306, %v283, 0
      %v344 = vsel %vm306, %v284, 0
      %v347 = vsel %vm306, %v285, 0
      %v350 = vsel %vm306, %v286, 0
      %v353 = vsel %vm306, %v287, 0
      %v356 = vsel %vm306, %v288, 0
      %v359 = vsel %vm306, %v289, 0
      %v362 = vsel %vm306, %v290, 0
      %v365 = vsel %vm306, %v291, 0
      %v368 = vsel %vm306, %v292, 0
      %v371 = vsel %vm306, %v293, 0
      %v374 = vsel %vm306, %v294, 0
      %v377 = vsel %vm306, %v295, 0
      %v380 = vsel %vm306, %v296, 0
      %v383 = vsel %vm306, %v297, 0
      %v386 = vsel %vm306, %v298, 0
      %v389 = vsel %vm306, %v299, 0
      %v392 = vsel %vm306, %v300, 0
      %v395 = vsel %vm306, %v301, 0
      %v398 = vsel %vm306, %v302, 0
      %v401 = vsel %vm306, %v303, 0
      %vm403 = vcmask 1040384
      %v405 = vsel %vm403, %v305, 0
      %407 = vmatprep.subr.mxu0 0.0
      %408 = vmatpush1.msra.mxu0 0.0
      %409 = vmatprep.subr.mxu0 0.0
      %410 = vmatpush1.msra.mxu0 0.0
      %411 = vmatprep.subr.mxu0 0.0
      %412 = vmatpush1.msra.mxu0 0.0
      %413 = vmatprep.subr.mxu0 0.0
      %414 = vmatpush1.msra.mxu0 0.0
      %415 = vmatprep.subr.mxu0 0.0
      %416 = vmatpush1.msra.mxu0 0.0
      %417 = vmatprep.subr.mxu0 0.0
      %418 = vmatpush1.msra.mxu0 0.0
      %419 = vmatprep.subr.mxu0 0.0
      %420 = vmatpush1.msra.mxu0 0.0
      %421 = vmatprep.subr.mxu0 0.0
      %422 = vmatpush1.msra.mxu0 0.0
      %423 = vmatprep.subr.mxu0 0.0
      %424 = vmatpush1.msra.mxu0 0.0
      %425 = vmatprep.subr.mxu0 0.0
      %426 = vmatpush1.msra.mxu0 0.0
      %427 = vmatprep.subr.mxu0 0.0
      %428 = vmatpush1.msra.mxu0 0.0
      %429 = vmatprep.subr.mxu0 0.0
      %430 = vmatpush1.msra.mxu0 0.0
      %431 = vmatprep.subr.mxu0 0.0
      %432 = vmatpush1.msra.mxu0 0.0
      %433 = vmatprep.subr.mxu0 0.0
      %434 = vmatpush1.msra.mxu0 0.0
      %435 = vmatprep.subr.mxu0 0.0
      %436 = vmatpush1.msra.mxu0 %v405
      %437 = vmatprep.subr.mxu0 0.0
      %438 = vmatpush1.msra.mxu0 %v304
      %439 = vmatprep.subr.mxu0 0.0
      %440 = vmatpush2.msra.mxu0 0.0
      %441 = vmatprep.subr.mxu0 0.0
      %442 = vmatpush2.msra.mxu0 0.0
      %443 = vmatprep.subr.mxu0 0.0
      %444 = vmatpush2.msra.mxu0 0.0
      %445 = vmatprep.subr.mxu0 0.0
      %446 = vmatpush2.msra.mxu0 0.0
      %447 = vmatprep.subr.mxu0 0.0
      %448 = vmatpush2.msra.mxu0 0.0
      %449 = vmatprep.subr.mxu0 0.0
      %450 = vmatpush2.msra.mxu0 0.0
      %451 = vmatprep.subr.mxu0 0.0
      %452 = vmatpush2.msra.mxu0 0.0
      %453 = vmatprep.subr.mxu0 0.0
      %454 = vmatpush2.msra.mxu0 0.0
      %455 = vmatprep.subr.mxu0 0.0
      %456 = vmatpush2.msra.mxu0 0.0
      %457 = vmatprep.subr.mxu0 0.0
      %458 = vmatpush2.msra.mxu0 0.0
      %459 = vmatprep.subr.mxu0 0.0
      %460 = vmatpush2.msra.mxu0 0.0
      %461 = vmatprep.subr.mxu0 0.0
      %462 = vmatpush2.msra.mxu0 0.0
      %463 = vmatprep.subr.mxu0 0.0
      %464 = vmatpush2.msra.mxu0 0.0
      %465 = vmatprep.subr.mxu0 0.0
      %466 = vmatpush2.msra.mxu0 0.0
      %467 = vmatprep.subr.mxu0 0.0
      %468 = vmatpush2.msra.mxu0 0.0
      %469 = vmatprep.subr.mxu0 0.0
      %470 = vmatpush2.msra.mxu0 0.0
      %471 = vmatprep.mubr.f32.mxu0 0.0
      %472 = vmatmul.mubr.f32.gmra.mxu0 %v308
      %v473 = vpop.f32.mrf.mxu0
      %v474 = vadd.f32 0.0, %v473
      %v475 = vpop.f32.mrf.mxu0
      %476 = vmatprep.mubr.f32.mxu0 0.0
      %477 = vmatmul.mubr.f32.gmra.mxu0 %v311
      %v478 = vpop.f32.mrf.mxu0
      %v479 = vadd.f32 0.0, %v478
      %v480 = vpop.f32.mrf.mxu0
      %481 = vmatprep.mubr.f32.mxu0 0.0
      %482 = vmatmul.mubr.f32.gmra.mxu0 %v314
      %v483 = vpop.f32.mrf.mxu0
      %v484 = vadd.f32 0.0, %v483
      %v485 = vpop.f32.mrf.mxu0
      %486 = vmatprep.mubr.f32.mxu0 0.0
      %487 = vmatmul.mubr.f32.gmra.mxu0 %v317
      %v488 = vpop.f32.mrf.mxu0
      %v489 = vadd.f32 0.0, %v488
      %v490 = vpop.f32.mrf.mxu0
      %491 = vmatprep.mubr.f32.mxu0 0.0
      %492 = vmatmul.mubr.f32.gmra.mxu0 %v320
      %v493 = vpop.f32.mrf.mxu0
      %v494 = vadd.f32 0.0, %v493
      %v495 = vpop.f32.mrf.mxu0
      %496 = vmatprep.mubr.f32.mxu0 0.0
      %497 = vmatmul.mubr.f32.gmra.mxu0 %v323
      %v498 = vpop.f32.mrf.mxu0
      %v499 = vadd.f32 0.0, %v498
      %v500 = vpop.f32.mrf.mxu0
      %501 = vmatprep.mubr.f32.mxu0 0.0
      %502 = vmatmul.mubr.f32.gmra.mxu0 %v326
      %v503 = vpop.f32.mrf.mxu0
      %v504 = vadd.f32 0.0, %v503
      %v505 = vpop.f32.mrf.mxu0
      %506 = vmatprep.mubr.f32.mxu0 0.0
      %507 = vmatmul.mubr.f32.gmra.mxu0 %v329
      %v508 = vpop.f32.mrf.mxu0
      %v509 = vadd.f32 0.0, %v508
      %v510 = vpop.f32.mrf.mxu0
      %511 = vmatprep.mubr.f32.mxu0 0.0
      %512 = vmatmul.mubr.f32.gmra.mxu0 %v332
      %v513 = vpop.f32.mrf.mxu0
      %v514 = vadd.f32 0.0, %v513
      %v515 = vpop.f32.mrf.mxu0
      %516 = vmatprep.mubr.f32.mxu0 0.0
      %517 = vmatmul.mubr.f32.gmra.mxu0 %v335
      %v518 = vpop.f32.mrf.mxu0
      %v519 = vadd.f32 0.0, %v518
      %v520 = vpop.f32.mrf.mxu0
      %521 = vmatprep.mubr.f32.mxu0 0.0
      %522 = vmatmul.mubr.f32.gmra.mxu0 %v338
      %v523 = vpop.f32.mrf.mxu0
      %v524 = vadd.f32 0.0, %v523
      %v525 = vpop.f32.mrf.mxu0
      %526 = vmatprep.mubr.f32.mxu0 0.0
      %527 = vmatmul.mubr.f32.gmra.mxu0 %v341
      %v528 = vpop.f32.mrf.mxu0
      %v529 = vadd.f32 0.0, %v528
      %v530 = vpop.f32.mrf.mxu0
      %531 = vmatprep.mubr.f32.mxu0 0.0
      %532 = vmatmul.mubr.f32.gmra.mxu0 %v344
      %v533 = vpop.f32.mrf.mxu0
      %v534 = vadd.f32 0.0, %v533
      %v535 = vpop.f32.mrf.mxu0
      %536 = vmatprep.mubr.f32.mxu0 0.0
      %537 = vmatmul.mubr.f32.gmra.mxu0 %v347
      %v538 = vpop.f32.mrf.mxu0
      %v539 = vadd.f32 0.0, %v538
      %v540 = vpop.f32.mrf.mxu0
      %541 = vmatprep.mubr.f32.mxu0 0.0
      %542 = vmatmul.mubr.f32.gmra.mxu0 %v350
      %v543 = vpop.f32.mrf.mxu0
      %v544 = vadd.f32 0.0, %v543
      %v545 = vpop.f32.mrf.mxu0
      %546 = vmatprep.mubr.f32.mxu0 0.0
      %547 = vmatmul.mubr.f32.gmra.mxu0 %v353
      %v548 = vpop.f32.mrf.mxu0
      %v549 = vadd.f32 0.0, %v548
      %v550 = vpop.f32.mrf.mxu0
      %551 = vmatprep.mubr.f32.mxu0 0.0
      %552 = vmatmul.mubr.f32.gmra.mxu0 %v356
      %v553 = vpop.f32.mrf.mxu0
      %v554 = vadd.f32 0.0, %v553
      %v555 = vpop.f32.mrf.mxu0
      %556 = vmatprep.mubr.f32.mxu0 0.0
      %557 = vmatmul.mubr.f32.gmra.mxu0 %v359
      %v558 = vpop.f32.mrf.mxu0
      %v559 = vadd.f32 0.0, %v558
      %v560 = vpop.f32.mrf.mxu0
      %561 = vmatprep.mubr.f32.mxu0 0.0
      %562 = vmatmul.mubr.f32.gmra.mxu0 %v362
      %v563 = vpop.f32.mrf.mxu0
      %v564 = vadd.f32 0.0, %v563
      %v565 = vpop.f32.mrf.mxu0
      %566 = vmatprep.mubr.f32.mxu0 0.0
      %567 = vmatmul.mubr.f32.gmra.mxu0 %v365
      %v568 = vpop.f32.mrf.mxu0
      %v569 = vadd.f32 0.0, %v568
      %v570 = vpop.f32.mrf.mxu0
      %571 = vmatprep.mubr.f32.mxu0 0.0
      %572 = vmatmul.mubr.f32.gmra.mxu0 %v368
      %v573 = vpop.f32.mrf.mxu0
      %v574 = vadd.f32 0.0, %v573
      %v575 = vpop.f32.mrf.mxu0
      %576 = vmatprep.mubr.f32.mxu0 0.0
      %577 = vmatmul.mubr.f32.gmra.mxu0 %v371
      %v578 = vpop.f32.mrf.mxu0
      %v579 = vadd.f32 0.0, %v578
      %v580 = vpop.f32.mrf.mxu0
      %581 = vmatprep.mubr.f32.mxu0 0.0
      %582 = vmatmul.mubr.f32.gmra.mxu0 %v374
      %v583 = vpop.f32.mrf.mxu0
      %v584 = vadd.f32 0.0, %v583
      %v585 = vpop.f32.mrf.mxu0
      %586 = vmatprep.mubr.f32.mxu0 0.0
      %587 = vmatmul.mubr.f32.gmra.mxu0 %v377
      %v588 = vpop.f32.mrf.mxu0
      %v589 = vadd.f32 0.0, %v588
      %v590 = vpop.f32.mrf.mxu0
      %591 = vmatprep.mubr.f32.mxu0 0.0
      %592 = vmatmul.mubr.f32.gmra.mxu0 %v380
      %v593 = vpop.f32.mrf.mxu0
      %v594 = vadd.f32 0.0, %v593
      %v595 = vpop.f32.mrf.mxu0
      %596 = vmatprep.mubr.f32.mxu0 0.0
      %597 = vmatmul.mubr.f32.gmra.mxu0 %v383
      %v598 = vpop.f32.mrf.mxu0
      %v599 = vadd.f32 0.0, %v598
      %v600 = vpop.f32.mrf.mxu0
      %601 = vmatprep.mubr.f32.mxu0 0.0
      %602 = vmatmul.mubr.f32.gmra.mxu0 %v386
      %v603 = vpop.f32.mrf.mxu0
      %v604 = vadd.f32 0.0, %v603
      %v605 = vpop.f32.mrf.mxu0
      %606 = vmatprep.mubr.f32.mxu0 0.0
      %607 = vmatmul.mubr.f32.gmra.mxu0 %v389
      %v608 = vpop.f32.mrf.mxu0
      %v609 = vadd.f32 0.0, %v608
      %v610 = vpop.f32.mrf.mxu0
      %611 = vmatprep.mubr.f32.mxu0 0.0
      %612 = vmatmul.mubr.f32.gmra.mxu0 %v392
      %v613 = vpop.f32.mrf.mxu0
      %v614 = vadd.f32 0.0, %v613
      %v615 = vpop.f32.mrf.mxu0
      %616 = vmatprep.mubr.f32.mxu0 0.0
      %617 = vmatmul.mubr.f32.gmra.mxu0 %v395
      %v618 = vpop.f32.mrf.mxu0
      %v619 = vadd.f32 0.0, %v618
      %v620 = vpop.f32.mrf.mxu0
      %621 = vmatprep.mubr.f32.mxu0 0.0
      %622 = vmatmul.mubr.f32.gmra.mxu0 %v398
      %v623 = vpop.f32.mrf.mxu0
      %v624 = vadd.f32 0.0, %v623
      %v625 = vpop.f32.mrf.mxu0
      %626 = vmatprep.mubr.f32.mxu0 0.0
      %627 = vmatmul.mubr.f32.gmra.mxu0 %v401
      %v628 = vpop.f32.mrf.mxu0
      %v629 = vadd.f32 0.0, %v628
      %v630 = vpop.f32.mrf.mxu0
      %631 = vdwg.mxu0
      %vm632 = vcmask 31744
      %633 = vst.msk [vmem:[#allocation2] sm:$0xff] %vm632, 0.0
      %634 = vst.msk [vmem:[#allocation2 + $0x8] sm:$0xff] %vm632, 0.0
      %vm635 = vcmask 25600
      %636 = vst.msk [vmem:[#allocation2 + $0x10] sm:$0x3] %vm635, 0.0
      %637 = vst.msk [vmem:[#allocation2 + $0x18] sm:$0xff] %vm632, 0.0
      %638 = vst.msk [vmem:[#allocation2 + $0x20] sm:$0xff] %vm632, 0.0
      %639 = vst.msk [vmem:[#allocation2 + $0x28] sm:$0x3] %vm635, 0.0
      %640 = vst.msk [vmem:[#allocation2 + $0x30] sm:$0xff] %vm632, 0.0
      %641 = vst.msk [vmem:[#allocation2 + $0x38] sm:$0xff] %vm632, 0.0
      %642 = vst.msk [vmem:[#allocation2 + $0x40] sm:$0x3] %vm635, 0.0
      %643 = vst.msk [vmem:[#allocation2 + $0x48] sm:$0xff] %vm632, 0.0
      %644 = vst.msk [vmem:[#allocation2 + $0x50] sm:$0xff] %vm632, 0.0
      %645 = vst.msk [vmem:[#allocation2 + $0x58] sm:$0x3] %vm635, 0.0
      %646 = vst.msk [vmem:[#allocation2 + $0x60] sm:$0xff] %vm632, 0.0
      %647 = vst.msk [vmem:[#allocation2 + $0x68] sm:$0xff] %vm632, 0.0
      %648 = vst.msk [vmem:[#allocation2 + $0x70] sm:$0x3] %vm635, 0.0
      %649 = vst.msk [vmem:[#allocation2 + $0x78] sm:$0xff] %vm632, 0.0
      %650 = vst.msk [vmem:[#allocation2 + $0x80] sm:$0xff] %vm632, 0.0
      %651 = vst.msk [vmem:[#allocation2 + $0x88] sm:$0x3] %vm635, 0.0
      %652 = vst.msk [vmem:[#allocation2 + $0x90] sm:$0xff] %vm632, 0.0
      %653 = vst.msk [vmem:[#allocation2 + $0x98] sm:$0xff] %vm632, 0.0
      %654 = vst.msk [vmem:[#allocation2 + $0xa0] sm:$0x3] %vm635, 0.0
      %655 = vst.msk [vmem:[#allocation2 + $0xa8] sm:$0xff] %vm632, 0.0
      %656 = vst.msk [vmem:[#allocation2 + $0xb0] sm:$0xff] %vm632, 0.0
      %657 = vst.msk [vmem:[#allocation2 + $0xb8] sm:$0x3] %vm635, 0.0
      %658 = vst.msk [vmem:[#allocation2 + $0xc0] sm:$0xff] %vm632, 0.0
      %659 = vst.msk [vmem:[#allocation2 + $0xc8] sm:$0xff] %vm632, 0.0
      %660 = vst.msk [vmem:[#allocation2 + $0xd0] sm:$0x3] %vm635, 0.0
      %661 = vst.msk [vmem:[#allocation2 + $0xd8] sm:$0xff] %vm632, 0.0
      %662 = vst.msk [vmem:[#allocation2 + $0xe0] sm:$0xff] %vm632, 0.0
      %663 = vst.msk [vmem:[#allocation2 + $0xe8] sm:$0x3] %vm635, 0.0
      %664 = vst.msk [vmem:[#allocation2 + $0xf0] sm:$0xff] %vm632, 0.0
      %665 = vst.msk [vmem:[#allocation2 + $0xf8] sm:$0xff] %vm632, 0.0
      %666 = vst.msk [vmem:[#allocation2 + $0x100] sm:$0x3] %vm635, 0.0
      %667 = vst.msk [vmem:[#allocation2 + $0x108] sm:$0xff] %vm632, 0.0
      %668 = vst.msk [vmem:[#allocation2 + $0x110] sm:$0xff] %vm632, 0.0
      %669 = vst.msk [vmem:[#allocation2 + $0x118] sm:$0x3] %vm635, 0.0
      %670 = vst.msk [vmem:[#allocation2 + $0x120] sm:$0xff] %vm632, 0.0
      %671 = vst.msk [vmem:[#allocation2 + $0x128] sm:$0xff] %vm632, 0.0
      %672 = vst.msk [vmem:[#allocation2 + $0x130] sm:$0x3] %vm635, 0.0
      %673 = vst.msk [vmem:[#allocation2 + $0x138] sm:$0xff] %vm632, 0.0
      %674 = vst.msk [vmem:[#allocation2 + $0x140] sm:$0xff] %vm632, 0.0
      %675 = vst.msk [vmem:[#allocation2 + $0x148] sm:$0x3] %vm635, 0.0
      %676 = vst.msk [vmem:[#allocation2 + $0x150] sm:$0xff] %vm632, 0.0
      %677 = vst.msk [vmem:[#allocation2 + $0x158] sm:$0xff] %vm632, 0.0
      %678 = vst.msk [vmem:[#allocation2 + $0x160] sm:$0x3] %vm635, 0.0
      %679 = vst.msk [vmem:[#allocation2 + $0x168] sm:$0xff] %vm632, 0.0
      %680 = vst.msk [vmem:[#allocation2 + $0x170] sm:$0xff] %vm632, 0.0
      %681 = vst.msk [vmem:[#allocation2 + $0x178] sm:$0x3] %vm635, 0.0
      %682 = vst.msk [vmem:[#allocation2 + $0x180] sm:$0xff] %vm632, 0.0
      %683 = vst.msk [vmem:[#allocation2 + $0x188] sm:$0xff] %vm632, 0.0
      %684 = vst.msk [vmem:[#allocation2 + $0x190] sm:$0x3] %vm635, 0.0
      %685 = vst.msk [vmem:[#allocation2 + $0x198] sm:$0xff] %vm632, 0.0
      %686 = vst.msk [vmem:[#allocation2 + $0x1a0] sm:$0xff] %vm632, 0.0
      %687 = vst.msk [vmem:[#allocation2 + $0x1a8] sm:$0x3] %vm635, 0.0
      %s688 = scalar_lea.vmem [#allocation2], 24
      %689 = vst.msk [vmem:[%s688 + $0x1] sm:$0xff] %vm632, %v474
      %690 = vst.msk [vmem:[%s688 + $0x9] sm:$0xff] %vm632, %v479
      %691 = vst.msk [vmem:[%s688 + $0x19] sm:$0xff] %vm632, %v484
      %692 = vst.msk [vmem:[%s688 + $0x21] sm:$0xff] %vm632, %v489
      %693 = vst.msk [vmem:[%s688 + $0x31] sm:$0xff] %vm632, %v494
      %694 = vst.msk [vmem:[%s688 + $0x39] sm:$0xff] %vm632, %v499
      %695 = vst.msk [vmem:[%s688 + $0x49] sm:$0xff] %vm632, %v504
      %696 = vst.msk [vmem:[%s688 + $0x51] sm:$0xff] %vm632, %v509
      %697 = vst.msk [vmem:[%s688 + $0x61] sm:$0xff] %vm632, %v514
      %698 = vst.msk [vmem:[%s688 + $0x69] sm:$0xff] %vm632, %v519
      %699 = vst.msk [vmem:[%s688 + $0x79] sm:$0xff] %vm632, %v524
      %700 = vst.msk [vmem:[%s688 + $0x81] sm:$0xff] %vm632, %v529
      %701 = vst.msk [vmem:[%s688 + $0x91] sm:$0xff] %vm632, %v534
      %702 = vst.msk [vmem:[%s688 + $0x99] sm:$0xff] %vm632, %v539
      %703 = vst.msk [vmem:[%s688 + $0xa9] sm:$0xff] %vm632, %v544
      %704 = vst.msk [vmem:[%s688 + $0xb1] sm:$0xff] %vm632, %v549
      %705 = vst.msk [vmem:[%s688 + $0xc1] sm:$0xff] %vm632, %v554
      %706 = vst.msk [vmem:[%s688 + $0xc9] sm:$0xff] %vm632, %v559
      %707 = vst.msk [vmem:[%s688 + $0xd9] sm:$0xff] %vm632, %v564
      %708 = vst.msk [vmem:[%s688 + $0xe1] sm:$0xff] %vm632, %v569
      %709 = vst.msk [vmem:[%s688 + $0xf1] sm:$0xff] %vm632, %v574
      %710 = vst.msk [vmem:[%s688 + $0xf9] sm:$0xff] %vm632, %v579
      %711 = vst.msk [vmem:[%s688 + $0x109] sm:$0xff] %vm632, %v584
      %712 = vst.msk [vmem:[%s688 + $0x111] sm:$0xff] %vm632, %v589
      %713 = vst.msk [vmem:[%s688 + $0x121] sm:$0xff] %vm632, %v594
      %714 = vst.msk [vmem:[%s688 + $0x129] sm:$0xff] %vm632, %v599
      %715 = vst.msk [vmem:[%s688 + $0x139] sm:$0xff] %vm632, %v604
      %716 = vst.msk [vmem:[%s688 + $0x141] sm:$0xff] %vm632, %v609
      %717 = vst.msk [vmem:[%s688 + $0x151] sm:$0xff] %vm632, %v614
      %718 = vst.msk [vmem:[%s688 + $0x159] sm:$0xff] %vm632, %v619
      %719 = vst.msk [vmem:[%s688 + $0x169] sm:$0xff] %vm632, %v624
      %720 = vst.msk [vmem:[%s688 + $0x171] sm:$0xff] %vm632, %v629
      %v721 = vld [vmem:[%s261] sm:$0xff]
      %v722 = vld [vmem:[%s261 + $0x8] sm:$0xff]
      %v723 = vld [vmem:[%s261 + $0x18] sm:$0xff]
      %v724 = vld [vmem:[%s261 + $0x20] sm:$0xff]
      %v725 = vld [vmem:[%s261 + $0x30] sm:$0xff]
      %v726 = vld [vmem:[%s261 + $0x38] sm:$0xff]
      %v727 = vld [vmem:[%s261 + $0x48] sm:$0xff]
      %v728 = vld [vmem:[%s261 + $0x50] sm:$0xff]
      %v729 = vld [vmem:[%s261 + $0x60] sm:$0xff]
      %v730 = vld [vmem:[%s261 + $0x68] sm:$0xff]
      %v731 = vld [vmem:[%s261 + $0x78] sm:$0xff]
      %v732 = vld [vmem:[%s261 + $0x80] sm:$0xff]
      %v733 = vld [vmem:[%s261 + $0x90] sm:$0xff]
      %v734 = vld [vmem:[%s261 + $0x98] sm:$0xff]
      %v735 = vld [vmem:[%s261 + $0xa8] sm:$0xff]
      %v736 = vld [vmem:[%s261 + $0xb0] sm:$0xff]
      %v737 = vld [vmem:[%s261 + $0xc0] sm:$0xff]
      %v738 = vld [vmem:[%s261 + $0xc8] sm:$0xff]
      %v739 = vld [vmem:[%s261 + $0xd8] sm:$0xff]
      %v740 = vld [vmem:[%s261 + $0xe0] sm:$0xff]
      %v741 = vld [vmem:[%s261 + $0xf0] sm:$0xff]
      %v742 = vld [vmem:[%s261 + $0xf8] sm:$0xff]
      %v743 = vld [vmem:[%s261 + $0x108] sm:$0xff]
      %v744 = vld [vmem:[%s261 + $0x110] sm:$0xff]
      %v745 = vld [vmem:[%s261 + $0x120] sm:$0xff]
      %v746 = vld [vmem:[%s261 + $0x128] sm:$0xff]
      %v747 = vld [vmem:[%s261 + $0x138] sm:$0xff]
      %v748 = vld [vmem:[%s261 + $0x140] sm:$0xff]
      %v749 = vld [vmem:[%s261 + $0x150] sm:$0xff]
      %v750 = vld [vmem:[%s261 + $0x158] sm:$0xff]
      %v751 = vld [vmem:[%s261 + $0x168] sm:$0xff]
      %v752 = vld [vmem:[%s261 + $0x170] sm:$0xff]
      %v753 = vld [vmem:[#allocation2] sm:$0xff]
      %v754 = vld [vmem:[#allocation2 + $0x8] sm:$0xff]
      %v755 = vld [vmem:[#allocation2 + $0x18] sm:$0xff]
      %v756 = vld [vmem:[#allocation2 + $0x20] sm:$0xff]
      %v757 = vld [vmem:[#allocation2 + $0x30] sm:$0xff]
      %v758 = vld [vmem:[#allocation2 + $0x38] sm:$0xff]
      %v759 = vld [vmem:[#allocation2 + $0x48] sm:$0xff]
      %v760 = vld [vmem:[#allocation2 + $0x50] sm:$0xff]
      %v761 = vld [vmem:[#allocation2 + $0x60] sm:$0xff]
      %v762 = vld [vmem:[#allocation2 + $0x68] sm:$0xff]
      %v763 = vld [vmem:[#allocation2 + $0x78] sm:$0xff]
      %v764 = vld [vmem:[#allocation2 + $0x80] sm:$0xff]
      %v765 = vld [vmem:[#allocation2 + $0x90] sm:$0xff]
      %v766 = vld [vmem:[#allocation2 + $0x98] sm:$0xff]
      %v767 = vld [vmem:[#allocation2 + $0xa8] sm:$0xff]
      %v768 = vld [vmem:[#allocation2 + $0xb0] sm:$0xff]
      %v769 = vld [vmem:[#allocation2 + $0xc0] sm:$0xff]
      %v770 = vld [vmem:[#allocation2 + $0xc8] sm:$0xff]
      %v771 = vld [vmem:[#allocation2 + $0xd8] sm:$0xff]
      %v772 = vld [vmem:[#allocation2 + $0xe0] sm:$0xff]
      %v773 = vld [vmem:[#allocation2 + $0xf0] sm:$0xff]
      %v774 = vld [vmem:[#allocation2 + $0xf8] sm:$0xff]
      %v775 = vld [vmem:[#allocation2 + $0x108] sm:$0xff]
      %v776 = vld [vmem:[#allocation2 + $0x110] sm:$0xff]
      %v777 = vld [vmem:[#allocation2 + $0x120] sm:$0xff]
      %v778 = vld [vmem:[#allocation2 + $0x128] sm:$0xff]
      %v779 = vld [vmem:[#allocation2 + $0x138] sm:$0xff]
      %v780 = vld [vmem:[#allocation2 + $0x140] sm:$0xff]
      %v781 = vld [vmem:[#allocation2 + $0x150] sm:$0xff]
      %v782 = vld [vmem:[#allocation2 + $0x158] sm:$0xff]
      %v783 = vld [vmem:[#allocation2 + $0x168] sm:$0xff]
      %v784 = vld [vmem:[#allocation2 + $0x170] sm:$0xff]
      %v785 = vld [vmem:[%s3] sm:$0xf]
      %v786 = vld [vmem:[%s4] sm:$0xf]
      %v788 = vsel %vm632, %v753, 0
      %v791 = vsel %vm632, %v754, 0
      %v794 = vsel %vm632, %v755, 0
      %v797 = vsel %vm632, %v756, 0
      %v800 = vsel %vm632, %v757, 0
      %v803 = vsel %vm632, %v758, 0
      %v806 = vsel %vm632, %v759, 0
      %v809 = vsel %vm632, %v760, 0
      %v812 = vsel %vm632, %v761, 0
      %v815 = vsel %vm632, %v762, 0
      %v818 = vsel %vm632, %v763, 0
      %v821 = vsel %vm632, %v764, 0
      %v824 = vsel %vm632, %v765, 0
      %v827 = vsel %vm632, %v766, 0
      %v830 = vsel %vm632, %v767, 0
      %v833 = vsel %vm632, %v768, 0
      %v836 = vsel %vm632, %v769, 0
      %v839 = vsel %vm632, %v770, 0
      %v842 = vsel %vm632, %v771, 0
      %v845 = vsel %vm632, %v772, 0
      %v848 = vsel %vm632, %v773, 0
      %v851 = vsel %vm632, %v774, 0
      %v854 = vsel %vm632, %v775, 0
      %v857 = vsel %vm632, %v776, 0
      %v860 = vsel %vm632, %v777, 0
      %v863 = vsel %vm632, %v778, 0
      %v866 = vsel %vm632, %v779, 0
      %v869 = vsel %vm632, %v780, 0
      %v872 = vsel %vm632, %v781, 0
      %v875 = vsel %vm632, %v782, 0
      %v878 = vsel %vm632, %v783, 0
      %v881 = vsel %vm632, %v784, 0
      %vm883 = vcmask 1043456
      %v885 = vsel %vm883, %v786, 0
      %887 = vmatprep.subr.mxu0 0.0
      %888 = vmatpush1.msra.mxu0 0.0
      %889 = vmatprep.subr.mxu0 0.0
      %890 = vmatpush1.msra.mxu0 0.0
      %891 = vmatprep.subr.mxu0 0.0
      %892 = vmatpush1.msra.mxu0 0.0
      %893 = vmatprep.subr.mxu0 0.0
      %894 = vmatpush1.msra.mxu0 0.0
      %895 = vmatprep.subr.mxu0 0.0
      %896 = vmatpush1.msra.mxu0 0.0
      %897 = vmatprep.subr.mxu0 0.0
      %898 = vmatpush1.msra.mxu0 0.0
      %899 = vmatprep.subr.mxu0 0.0
      %900 = vmatpush1.msra.mxu0 0.0
      %901 = vmatprep.subr.mxu0 0.0
      %902 = vmatpush1.msra.mxu0 0.0
      %903 = vmatprep.subr.mxu0 0.0
      %904 = vmatpush1.msra.mxu0 0.0
      %905 = vmatprep.subr.mxu0 0.0
      %906 = vmatpush1.msra.mxu0 0.0
      %907 = vmatprep.subr.mxu0 0.0
      %908 = vmatpush1.msra.mxu0 0.0
      %909 = vmatprep.subr.mxu0 0.0
      %910 = vmatpush1.msra.mxu0 0.0
      %911 = vmatprep.subr.mxu0 0.0
      %912 = vmatpush1.msra.mxu0 0.0
      %913 = vmatprep.subr.mxu0 0.0
      %914 = vmatpush1.msra.mxu0 0.0
      %915 = vmatprep.subr.mxu0 0.0
      %916 = vmatpush1.msra.mxu0 0.0
      %917 = vmatprep.subr.mxu0 0.0
      %918 = vmatpush1.msra.mxu0 %v885
      %919 = vmatprep.subr.mxu0 0.0
      %920 = vmatpush2.msra.mxu0 0.0
      %921 = vmatprep.subr.mxu0 0.0
      %922 = vmatpush2.msra.mxu0 0.0
      %923 = vmatprep.subr.mxu0 0.0
      %924 = vmatpush2.msra.mxu0 0.0
      %925 = vmatprep.subr.mxu0 0.0
      %926 = vmatpush2.msra.mxu0 0.0
      %927 = vmatprep.subr.mxu0 0.0
      %928 = vmatpush2.msra.mxu0 0.0
      %929 = vmatprep.subr.mxu0 0.0
      %930 = vmatpush2.msra.mxu0 0.0
      %931 = vmatprep.subr.mxu0 0.0
      %932 = vmatpush2.msra.mxu0 0.0
      %933 = vmatprep.subr.mxu0 0.0
      %934 = vmatpush2.msra.mxu0 0.0
      %935 = vmatprep.subr.mxu0 0.0
      %936 = vmatpush2.msra.mxu0 0.0
      %937 = vmatprep.subr.mxu0 0.0
      %938 = vmatpush2.msra.mxu0 0.0
      %939 = vmatprep.subr.mxu0 0.0
      %940 = vmatpush2.msra.mxu0 0.0
      %941 = vmatprep.subr.mxu0 0.0
      %942 = vmatpush2.msra.mxu0 0.0
      %943 = vmatprep.subr.mxu0 0.0
      %944 = vmatpush2.msra.mxu0 0.0
      %945 = vmatprep.subr.mxu0 0.0
      %946 = vmatpush2.msra.mxu0 0.0
      %947 = vmatprep.subr.mxu0 0.0
      %948 = vmatpush2.msra.mxu0 0.0
      %949 = vmatprep.subr.mxu0 0.0
      %950 = vmatpush2.msra.mxu0 0.0
      %951 = vmatprep.mubr.f32.mxu0 0.0
      %952 = vmatmul.mubr.f32.gmra.mxu0 %v788
      %v953 = vpop.f32.mrf.mxu0
      %v954 = vadd.f32 0.0, %v953
      %v955 = vpop.f32.mrf.mxu0
      %956 = vmatprep.mubr.f32.mxu0 0.0
      %957 = vmatmul.mubr.f32.gmra.mxu0 %v791
      %v958 = vpop.f32.mrf.mxu0
      %v959 = vadd.f32 0.0, %v958
      %v960 = vpop.f32.mrf.mxu0
      %961 = vmatprep.mubr.f32.mxu0 0.0
      %962 = vmatmul.mubr.f32.gmra.mxu0 %v794
      %v963 = vpop.f32.mrf.mxu0
      %v964 = vadd.f32 0.0, %v963
      %v965 = vpop.f32.mrf.mxu0
      %966 = vmatprep.mubr.f32.mxu0 0.0
      %967 = vmatmul.mubr.f32.gmra.mxu0 %v797
      %v968 = vpop.f32.mrf.mxu0
      %v969 = vadd.f32 0.0, %v968
      %v970 = vpop.f32.mrf.mxu0
      %971 = vmatprep.mubr.f32.mxu0 0.0
      %972 = vmatmul.mubr.f32.gmra.mxu0 %v800
      %v973 = vpop.f32.mrf.mxu0
      %v974 = vadd.f32 0.0, %v973
      %v975 = vpop.f32.mrf.mxu0
      %976 = vmatprep.mubr.f32.mxu0 0.0
      %977 = vmatmul.mubr.f32.gmra.mxu0 %v803
      %v978 = vpop.f32.mrf.mxu0
      %v979 = vadd.f32 0.0, %v978
      %v980 = vpop.f32.mrf.mxu0
      %981 = vmatprep.mubr.f32.mxu0 0.0
      %982 = vmatmul.mubr.f32.gmra.mxu0 %v806
      %v983 = vpop.f32.mrf.mxu0
      %v984 = vadd.f32 0.0, %v983
      %v985 = vpop.f32.mrf.mxu0
      %986 = vmatprep.mubr.f32.mxu0 0.0
      %987 = vmatmul.mubr.f32.gmra.mxu0 %v809
      %v988 = vpop.f32.mrf.mxu0
      %v989 = vadd.f32 0.0, %v988
      %v990 = vpop.f32.mrf.mxu0
      %991 = vmatprep.mubr.f32.mxu0 0.0
      %992 = vmatmul.mubr.f32.gmra.mxu0 %v812
      %v993 = vpop.f32.mrf.mxu0
      %v994 = vadd.f32 0.0, %v993
      %v995 = vpop.f32.mrf.mxu0
      %996 = vmatprep.mubr.f32.mxu0 0.0
      %997 = vmatmul.mubr.f32.gmra.mxu0 %v815
      %v998 = vpop.f32.mrf.mxu0
      %v999 = vadd.f32 0.0, %v998
      %v1000 = vpop.f32.mrf.mxu0
      %1001 = vmatprep.mubr.f32.mxu0 0.0
      %1002 = vmatmul.mubr.f32.gmra.mxu0 %v818
      %v1003 = vpop.f32.mrf.mxu0
      %v1004 = vadd.f32 0.0, %v1003
      %v1005 = vpop.f32.mrf.mxu0
      %1006 = vmatprep.mubr.f32.mxu0 0.0
      %1007 = vmatmul.mubr.f32.gmra.mxu0 %v821
      %v1008 = vpop.f32.mrf.mxu0
      %v1009 = vadd.f32 0.0, %v1008
      %v1010 = vpop.f32.mrf.mxu0
      %1011 = vmatprep.mubr.f32.mxu0 0.0
      %1012 = vmatmul.mubr.f32.gmra.mxu0 %v824
      %v1013 = vpop.f32.mrf.mxu0
      %v1014 = vadd.f32 0.0, %v1013
      %v1015 = vpop.f32.mrf.mxu0
      %1016 = vmatprep.mubr.f32.mxu0 0.0
      %1017 = vmatmul.mubr.f32.gmra.mxu0 %v827
      %v1018 = vpop.f32.mrf.mxu0
      %v1019 = vadd.f32 0.0, %v1018
      %v1020 = vpop.f32.mrf.mxu0
      %1021 = vmatprep.mubr.f32.mxu0 0.0
      %1022 = vmatmul.mubr.f32.gmra.mxu0 %v830
      %v1023 = vpop.f32.mrf.mxu0
      %v1024 = vadd.f32 0.0, %v1023
      %v1025 = vpop.f32.mrf.mxu0
      %1026 = vmatprep.mubr.f32.mxu0 0.0
      %1027 = vmatmul.mubr.f32.gmra.mxu0 %v833
      %v1028 = vpop.f32.mrf.mxu0
      %v1029 = vadd.f32 0.0, %v1028
      %v1030 = vpop.f32.mrf.mxu0
      %1031 = vmatprep.mubr.f32.mxu0 0.0
      %1032 = vmatmul.mubr.f32.gmra.mxu0 %v836
      %v1033 = vpop.f32.mrf.mxu0
      %v1034 = vadd.f32 0.0, %v1033
      %v1035 = vpop.f32.mrf.mxu0
      %1036 = vmatprep.mubr.f32.mxu0 0.0
      %1037 = vmatmul.mubr.f32.gmra.mxu0 %v839
      %v1038 = vpop.f32.mrf.mxu0
      %v1039 = vadd.f32 0.0, %v1038
      %v1040 = vpop.f32.mrf.mxu0
      %1041 = vmatprep.mubr.f32.mxu0 0.0
      %1042 = vmatmul.mubr.f32.gmra.mxu0 %v842
      %v1043 = vpop.f32.mrf.mxu0
      %v1044 = vadd.f32 0.0, %v1043
      %v1045 = vpop.f32.mrf.mxu0
      %1046 = vmatprep.mubr.f32.mxu0 0.0
      %1047 = vmatmul.mubr.f32.gmra.mxu0 %v845
      %v1048 = vpop.f32.mrf.mxu0
      %v1049 = vadd.f32 0.0, %v1048
      %v1050 = vpop.f32.mrf.mxu0
      %1051 = vmatprep.mubr.f32.mxu0 0.0
      %1052 = vmatmul.mubr.f32.gmra.mxu0 %v848
      %v1053 = vpop.f32.mrf.mxu0
      %v1054 = vadd.f32 0.0, %v1053
      %v1055 = vpop.f32.mrf.mxu0
      %1056 = vmatprep.mubr.f32.mxu0 0.0
      %1057 = vmatmul.mubr.f32.gmra.mxu0 %v851
      %v1058 = vpop.f32.mrf.mxu0
      %v1059 = vadd.f32 0.0, %v1058
      %v1060 = vpop.f32.mrf.mxu0
      %1061 = vmatprep.mubr.f32.mxu0 0.0
      %1062 = vmatmul.mubr.f32.gmra.mxu0 %v854
      %v1063 = vpop.f32.mrf.mxu0
      %v1064 = vadd.f32 0.0, %v1063
      %v1065 = vpop.f32.mrf.mxu0
      %1066 = vmatprep.mubr.f32.mxu0 0.0
      %1067 = vmatmul.mubr.f32.gmra.mxu0 %v857
      %v1068 = vpop.f32.mrf.mxu0
      %v1069 = vadd.f32 0.0, %v1068
      %v1070 = vpop.f32.mrf.mxu0
      %1071 = vmatprep.mubr.f32.mxu0 0.0
      %1072 = vmatmul.mubr.f32.gmra.mxu0 %v860
      %v1073 = vpop.f32.mrf.mxu0
      %v1074 = vadd.f32 0.0, %v1073
      %v1075 = vpop.f32.mrf.mxu0
      %1076 = vmatprep.mubr.f32.mxu0 0.0
      %1077 = vmatmul.mubr.f32.gmra.mxu0 %v863
      %v1078 = vpop.f32.mrf.mxu0
      %v1079 = vadd.f32 0.0, %v1078
      %v1080 = vpop.f32.mrf.mxu0
      %1081 = vmatprep.mubr.f32.mxu0 0.0
      %1082 = vmatmul.mubr.f32.gmra.mxu0 %v866
      %v1083 = vpop.f32.mrf.mxu0
      %v1084 = vadd.f32 0.0, %v1083
      %v1085 = vpop.f32.mrf.mxu0
      %1086 = vmatprep.mubr.f32.mxu0 0.0
      %1087 = vmatmul.mubr.f32.gmra.mxu0 %v869
      %v1088 = vpop.f32.mrf.mxu0
      %v1089 = vadd.f32 0.0, %v1088
      %v1090 = vpop.f32.mrf.mxu0
      %1091 = vmatprep.mubr.f32.mxu0 0.0
      %1092 = vmatmul.mubr.f32.gmra.mxu0 %v872
      %v1093 = vpop.f32.mrf.mxu0
      %v1094 = vadd.f32 0.0, %v1093
      %v1095 = vpop.f32.mrf.mxu0
      %1096 = vmatprep.mubr.f32.mxu0 0.0
      %1097 = vmatmul.mubr.f32.gmra.mxu0 %v875
      %v1098 = vpop.f32.mrf.mxu0
      %v1099 = vadd.f32 0.0, %v1098
      %v1100 = vpop.f32.mrf.mxu0
      %1101 = vmatprep.mubr.f32.mxu0 0.0
      %1102 = vmatmul.mubr.f32.gmra.mxu0 %v878
      %v1103 = vpop.f32.mrf.mxu0
      %v1104 = vadd.f32 0.0, %v1103
      %v1105 = vpop.f32.mrf.mxu0
      %1106 = vmatprep.mubr.f32.mxu0 0.0
      %1107 = vmatmul.mubr.f32.gmra.mxu0 %v881
      %v1108 = vpop.f32.mrf.mxu0
      %v1109 = vadd.f32 0.0, %v1108
      %v1110 = vpop.f32.mrf.mxu0
      %1111 = vdwg.mxu0
      %v1113 = vsel %vm632, %v721, 0
      %v1116 = vsel %vm632, %v722, 0
      %v1119 = vsel %vm632, %v723, 0
      %v1122 = vsel %vm632, %v724, 0
      %v1125 = vsel %vm632, %v725, 0
      %v1128 = vsel %vm632, %v726, 0
      %v1131 = vsel %vm632, %v727, 0
      %v1134 = vsel %vm632, %v728, 0
      %v1137 = vsel %vm632, %v729, 0
      %v1140 = vsel %vm632, %v730, 0
      %v1143 = vsel %vm632, %v731, 0
      %v1146 = vsel %vm632, %v732, 0
      %v1149 = vsel %vm632, %v733, 0
      %v1152 = vsel %vm632, %v734, 0
      %v1155 = vsel %vm632, %v735, 0
      %v1158 = vsel %vm632, %v736, 0
      %v1161 = vsel %vm632, %v737, 0
      %v1164 = vsel %vm632, %v738, 0
      %v1167 = vsel %vm632, %v739, 0
      %v1170 = vsel %vm632, %v740, 0
      %v1173 = vsel %vm632, %v741, 0
      %v1176 = vsel %vm632, %v742, 0
      %v1179 = vsel %vm632, %v743, 0
      %v1182 = vsel %vm632, %v744, 0
      %v1185 = vsel %vm632, %v745, 0
      %v1188 = vsel %vm632, %v746, 0
      %v1191 = vsel %vm632, %v747, 0
      %v1194 = vsel %vm632, %v748, 0
      %v1197 = vsel %vm632, %v749, 0
      %v1200 = vsel %vm632, %v750, 0
      %v1203 = vsel %vm632, %v751, 0
      %v1206 = vsel %vm632, %v752, 0
      %v1209 = vsel %vm883, %v785, 0
      %1211 = vmatprep.subr.mxu0 0.0
      %1212 = vmatpush1.msra.mxu0 0.0
      %1213 = vmatprep.subr.mxu0 0.0
      %1214 = vmatpush1.msra.mxu0 0.0
      %1215 = vmatprep.subr.mxu0 0.0
      %1216 = vmatpush1.msra.mxu0 0.0
      %1217 = vmatprep.subr.mxu0 0.0
      %1218 = vmatpush1.msra.mxu0 0.0
      %1219 = vmatprep.subr.mxu0 0.0
      %1220 = vmatpush1.msra.mxu0 0.0
      %1221 = vmatprep.subr.mxu0 0.0
      %1222 = vmatpush1.msra.mxu0 0.0
      %1223 = vmatprep.subr.mxu0 0.0
      %1224 = vmatpush1.msra.mxu0 0.0
      %1225 = vmatprep.subr.mxu0 0.0
      %1226 = vmatpush1.msra.mxu0 0.0
      %1227 = vmatprep.subr.mxu0 0.0
      %1228 = vmatpush1.msra.mxu0 0.0
      %1229 = vmatprep.subr.mxu0 0.0
      %1230 = vmatpush1.msra.mxu0 0.0
      %1231 = vmatprep.subr.mxu0 0.0
      %1232 = vmatpush1.msra.mxu0 0.0
      %1233 = vmatprep.subr.mxu0 0.0
      %1234 = vmatpush1.msra.mxu0 0.0
      %1235 = vmatprep.subr.mxu0 0.0
      %1236 = vmatpush1.msra.mxu0 0.0
      %1237 = vmatprep.subr.mxu0 0.0
      %1238 = vmatpush1.msra.mxu0 0.0
      %1239 = vmatprep.subr.mxu0 0.0
      %1240 = vmatpush1.msra.mxu0 0.0
      %1241 = vmatprep.subr.mxu0 0.0
      %1242 = vmatpush1.msra.mxu0 %v1209
      %1243 = vmatprep.subr.mxu0 0.0
      %1244 = vmatpush2.msra.mxu0 0.0
      %1245 = vmatprep.subr.mxu0 0.0
      %1246 = vmatpush2.msra.mxu0 0.0
      %1247 = vmatprep.subr.mxu0 0.0
      %1248 = vmatpush2.msra.mxu0 0.0
      %1249 = vmatprep.subr.mxu0 0.0
      %1250 = vmatpush2.msra.mxu0 0.0
      %1251 = vmatprep.subr.mxu0 0.0
      %1252 = vmatpush2.msra.mxu0 0.0
      %1253 = vmatprep.subr.mxu0 0.0
      %1254 = vmatpush2.msra.mxu0 0.0
      %1255 = vmatprep.subr.mxu0 0.0
      %1256 = vmatpush2.msra.mxu0 0.0
      %1257 = vmatprep.subr.mxu0 0.0
      %1258 = vmatpush2.msra.mxu0 0.0
      %1259 = vmatprep.subr.mxu0 0.0
      %1260 = vmatpush2.msra.mxu0 0.0
      %1261 = vmatprep.subr.mxu0 0.0
      %1262 = vmatpush2.msra.mxu0 0.0
      %1263 = vmatprep.subr.mxu0 0.0
      %1264 = vmatpush2.msra.mxu0 0.0
      %1265 = vmatprep.subr.mxu0 0.0
      %1266 = vmatpush2.msra.mxu0 0.0
      %1267 = vmatprep.subr.mxu0 0.0
      %1268 = vmatpush2.msra.mxu0 0.0
      %1269 = vmatprep.subr.mxu0 0.0
      %1270 = vmatpush2.msra.mxu0 0.0
      %1271 = vmatprep.subr.mxu0 0.0
      %1272 = vmatpush2.msra.mxu0 0.0
      %1273 = vmatprep.subr.mxu0 0.0
      %1274 = vmatpush2.msra.mxu0 0.0
      %1275 = vmatprep.mubr.f32.mxu0 0.0
      %1276 = vmatmul.mubr.f32.gmra.mxu0 %v1113
      %v1277 = vpop.f32.mrf.mxu0
      %v1278 = vadd.f32 %v954, %v1277
      %v1279 = vpop.f32.mrf.mxu0
      %1280 = vmatprep.mubr.f32.mxu0 0.0
      %1281 = vmatmul.mubr.f32.gmra.mxu0 %v1116
      %v1282 = vpop.f32.mrf.mxu0
      %v1283 = vadd.f32 %v959, %v1282
      %v1284 = vpop.f32.mrf.mxu0
      %1285 = vmatprep.mubr.f32.mxu0 0.0
      %1286 = vmatmul.mubr.f32.gmra.mxu0 %v1119
      %v1287 = vpop.f32.mrf.mxu0
      %v1288 = vadd.f32 %v964, %v1287
      %v1289 = vpop.f32.mrf.mxu0
      %1290 = vmatprep.mubr.f32.mxu0 0.0
      %1291 = vmatmul.mubr.f32.gmra.mxu0 %v1122
      %v1292 = vpop.f32.mrf.mxu0
      %v1293 = vadd.f32 %v969, %v1292
      %v1294 = vpop.f32.mrf.mxu0
      %1295 = vmatprep.mubr.f32.mxu0 0.0
      %1296 = vmatmul.mubr.f32.gmra.mxu0 %v1125
      %v1297 = vpop.f32.mrf.mxu0
      %v1298 = vadd.f32 %v974, %v1297
      %v1299 = vpop.f32.mrf.mxu0
      %1300 = vmatprep.mubr.f32.mxu0 0.0
      %1301 = vmatmul.mubr.f32.gmra.mxu0 %v1128
      %v1302 = vpop.f32.mrf.mxu0
      %v1303 = vadd.f32 %v979, %v1302
      %v1304 = vpop.f32.mrf.mxu0
      %1305 = vmatprep.mubr.f32.mxu0 0.0
      %1306 = vmatmul.mubr.f32.gmra.mxu0 %v1131
      %v1307 = vpop.f32.mrf.mxu0
      %v1308 = vadd.f32 %v984, %v1307
      %v1309 = vpop.f32.mrf.mxu0
      %1310 = vmatprep.mubr.f32.mxu0 0.0
      %1311 = vmatmul.mubr.f32.gmra.mxu0 %v1134
      %v1312 = vpop.f32.mrf.mxu0
      %v1313 = vadd.f32 %v989, %v1312
      %v1314 = vpop.f32.mrf.mxu0
      %1315 = vmatprep.mubr.f32.mxu0 0.0
      %1316 = vmatmul.mubr.f32.gmra.mxu0 %v1137
      %v1317 = vpop.f32.mrf.mxu0
      %v1318 = vadd.f32 %v994, %v1317
      %v1319 = vpop.f32.mrf.mxu0
      %1320 = vmatprep.mubr.f32.mxu0 0.0
      %1321 = vmatmul.mubr.f32.gmra.mxu0 %v1140
      %v1322 = vpop.f32.mrf.mxu0
      %v1323 = vadd.f32 %v999, %v1322
      %v1324 = vpop.f32.mrf.mxu0
      %1325 = vmatprep.mubr.f32.mxu0 0.0
      %1326 = vmatmul.mubr.f32.gmra.mxu0 %v1143
      %v1327 = vpop.f32.mrf.mxu0
      %v1328 = vadd.f32 %v1004, %v1327
      %v1329 = vpop.f32.mrf.mxu0
      %1330 = vmatprep.mubr.f32.mxu0 0.0
      %1331 = vmatmul.mubr.f32.gmra.mxu0 %v1146
      %v1332 = vpop.f32.mrf.mxu0
      %v1333 = vadd.f32 %v1009, %v1332
      %v1334 = vpop.f32.mrf.mxu0
      %1335 = vmatprep.mubr.f32.mxu0 0.0
      %1336 = vmatmul.mubr.f32.gmra.mxu0 %v1149
      %v1337 = vpop.f32.mrf.mxu0
      %v1338 = vadd.f32 %v1014, %v1337
      %v1339 = vpop.f32.mrf.mxu0
      %1340 = vmatprep.mubr.f32.mxu0 0.0
      %1341 = vmatmul.mubr.f32.gmra.mxu0 %v1152
      %v1342 = vpop.f32.mrf.mxu0
      %v1343 = vadd.f32 %v1019, %v1342
      %v1344 = vpop.f32.mrf.mxu0
      %1345 = vmatprep.mubr.f32.mxu0 0.0
      %1346 = vmatmul.mubr.f32.gmra.mxu0 %v1155
      %v1347 = vpop.f32.mrf.mxu0
      %v1348 = vadd.f32 %v1024, %v1347
      %v1349 = vpop.f32.mrf.mxu0
      %1350 = vmatprep.mubr.f32.mxu0 0.0
      %1351 = vmatmul.mubr.f32.gmra.mxu0 %v1158
      %v1352 = vpop.f32.mrf.mxu0
      %v1353 = vadd.f32 %v1029, %v1352
      %v1354 = vpop.f32.mrf.mxu0
      %1355 = vmatprep.mubr.f32.mxu0 0.0
      %1356 = vmatmul.mubr.f32.gmra.mxu0 %v1161
      %v1357 = vpop.f32.mrf.mxu0
      %v1358 = vadd.f32 %v1034, %v1357
      %v1359 = vpop.f32.mrf.mxu0
      %1360 = vmatprep.mubr.f32.mxu0 0.0
      %1361 = vmatmul.mubr.f32.gmra.mxu0 %v1164
      %v1362 = vpop.f32.mrf.mxu0
      %v1363 = vadd.f32 %v1039, %v1362
      %v1364 = vpop.f32.mrf.mxu0
      %1365 = vmatprep.mubr.f32.mxu0 0.0
      %1366 = vmatmul.mubr.f32.gmra.mxu0 %v1167
      %v1367 = vpop.f32.mrf.mxu0
      %v1368 = vadd.f32 %v1044, %v1367
      %v1369 = vpop.f32.mrf.mxu0
      %1370 = vmatprep.mubr.f32.mxu0 0.0
      %1371 = vmatmul.mubr.f32.gmra.mxu0 %v1170
      %v1372 = vpop.f32.mrf.mxu0
      %v1373 = vadd.f32 %v1049, %v1372
      %v1374 = vpop.f32.mrf.mxu0
      %1375 = vmatprep.mubr.f32.mxu0 0.0
      %1376 = vmatmul.mubr.f32.gmra.mxu0 %v1173
      %v1377 = vpop.f32.mrf.mxu0
      %v1378 = vadd.f32 %v1054, %v1377
      %v1379 = vpop.f32.mrf.mxu0
      %1380 = vmatprep.mubr.f32.mxu0 0.0
      %1381 = vmatmul.mubr.f32.gmra.mxu0 %v1176
      %v1382 = vpop.f32.mrf.mxu0
      %v1383 = vadd.f32 %v1059, %v1382
      %v1384 = vpop.f32.mrf.mxu0
      %1385 = vmatprep.mubr.f32.mxu0 0.0
      %1386 = vmatmul.mubr.f32.gmra.mxu0 %v1179
      %v1387 = vpop.f32.mrf.mxu0
      %v1388 = vadd.f32 %v1064, %v1387
      %v1389 = vpop.f32.mrf.mxu0
      %1390 = vmatprep.mubr.f32.mxu0 0.0
      %1391 = vmatmul.mubr.f32.gmra.mxu0 %v1182
      %v1392 = vpop.f32.mrf.mxu0
      %v1393 = vadd.f32 %v1069, %v1392
      %v1394 = vpop.f32.mrf.mxu0
      %1395 = vmatprep.mubr.f32.mxu0 0.0
      %1396 = vmatmul.mubr.f32.gmra.mxu0 %v1185
      %v1397 = vpop.f32.mrf.mxu0
      %v1398 = vadd.f32 %v1074, %v1397
      %v1399 = vpop.f32.mrf.mxu0
      %1400 = vmatprep.mubr.f32.mxu0 0.0
      %1401 = vmatmul.mubr.f32.gmra.mxu0 %v1188
      %v1402 = vpop.f32.mrf.mxu0
      %v1403 = vadd.f32 %v1079, %v1402
      %v1404 = vpop.f32.mrf.mxu0
      %1405 = vmatprep.mubr.f32.mxu0 0.0
      %1406 = vmatmul.mubr.f32.gmra.mxu0 %v1191
      %v1407 = vpop.f32.mrf.mxu0
      %v1408 = vadd.f32 %v1084, %v1407
      %v1409 = vpop.f32.mrf.mxu0
      %1410 = vmatprep.mubr.f32.mxu0 0.0
      %1411 = vmatmul.mubr.f32.gmra.mxu0 %v1194
      %v1412 = vpop.f32.mrf.mxu0
      %v1413 = vadd.f32 %v1089, %v1412
      %v1414 = vpop.f32.mrf.mxu0
      %1415 = vmatprep.mubr.f32.mxu0 0.0
      %1416 = vmatmul.mubr.f32.gmra.mxu0 %v1197
      %v1417 = vpop.f32.mrf.mxu0
      %v1418 = vadd.f32 %v1094, %v1417
      %v1419 = vpop.f32.mrf.mxu0
      %1420 = vmatprep.mubr.f32.mxu0 0.0
      %1421 = vmatmul.mubr.f32.gmra.mxu0 %v1200
      %v1422 = vpop.f32.mrf.mxu0
      %v1423 = vadd.f32 %v1099, %v1422
      %v1424 = vpop.f32.mrf.mxu0
      %1425 = vmatprep.mubr.f32.mxu0 0.0
      %1426 = vmatmul.mubr.f32.gmra.mxu0 %v1203
      %v1427 = vpop.f32.mrf.mxu0
      %v1428 = vadd.f32 %v1104, %v1427
      %v1429 = vpop.f32.mrf.mxu0
      %1430 = vmatprep.mubr.f32.mxu0 0.0
      %1431 = vmatmul.mubr.f32.gmra.mxu0 %v1206
      %v1432 = vpop.f32.mrf.mxu0
      %v1433 = vadd.f32 %v1109, %v1432
      %v1434 = vpop.f32.mrf.mxu0
      %1435 = vdwg.mxu0
      %v1436 = vld [vmem:[%s261 + $0x1] sm:$0xff]
      %v1437 = vld [vmem:[%s261 + $0x9] sm:$0xff]
      %v1438 = vld [vmem:[%s261 + $0x19] sm:$0xff]
      %v1439 = vld [vmem:[%s261 + $0x21] sm:$0xff]
      %v1440 = vld [vmem:[%s261 + $0x31] sm:$0xff]
      %v1441 = vld [vmem:[%s261 + $0x39] sm:$0xff]
      %v1442 = vld [vmem:[%s261 + $0x49] sm:$0xff]
      %v1443 = vld [vmem:[%s261 + $0x51] sm:$0xff]
      %v1444 = vld [vmem:[%s261 + $0x61] sm:$0xff]
      %v1445 = vld [vmem:[%s261 + $0x69] sm:$0xff]
      %v1446 = vld [vmem:[%s261 + $0x79] sm:$0xff]
      %v1447 = vld [vmem:[%s261 + $0x81] sm:$0xff]
      %v1448 = vld [vmem:[%s261 + $0x91] sm:$0xff]
      %v1449 = vld [vmem:[%s261 + $0x99] sm:$0xff]
      %v1450 = vld [vmem:[%s261 + $0xa9] sm:$0xff]
      %v1451 = vld [vmem:[%s261 + $0xb1] sm:$0xff]
      %v1452 = vld [vmem:[%s261 + $0xc1] sm:$0xff]
      %v1453 = vld [vmem:[%s261 + $0xc9] sm:$0xff]
      %v1454 = vld [vmem:[%s261 + $0xd9] sm:$0xff]
      %v1455 = vld [vmem:[%s261 + $0xe1] sm:$0xff]
      %v1456 = vld [vmem:[%s261 + $0xf1] sm:$0xff]
      %v1457 = vld [vmem:[%s261 + $0xf9] sm:$0xff]
      %v1458 = vld [vmem:[%s261 + $0x109] sm:$0xff]
      %v1459 = vld [vmem:[%s261 + $0x111] sm:$0xff]
      %v1460 = vld [vmem:[%s261 + $0x121] sm:$0xff]
      %v1461 = vld [vmem:[%s261 + $0x129] sm:$0xff]
      %v1462 = vld [vmem:[%s261 + $0x139] sm:$0xff]
      %v1463 = vld [vmem:[%s261 + $0x141] sm:$0xff]
      %v1464 = vld [vmem:[%s261 + $0x151] sm:$0xff]
      %v1465 = vld [vmem:[%s261 + $0x159] sm:$0xff]
      %v1466 = vld [vmem:[%s261 + $0x169] sm:$0xff]
      %v1467 = vld [vmem:[%s261 + $0x171] sm:$0xff]
      %v1468 = vld [vmem:[#allocation2 + $0x1] sm:$0xff]
      %v1469 = vld [vmem:[#allocation2 + $0x9] sm:$0xff]
      %v1470 = vld [vmem:[#allocation2 + $0x19] sm:$0xff]
      %v1471 = vld [vmem:[#allocation2 + $0x21] sm:$0xff]
      %v1472 = vld [vmem:[#allocation2 + $0x31] sm:$0xff]
      %v1473 = vld [vmem:[#allocation2 + $0x39] sm:$0xff]
      %v1474 = vld [vmem:[#allocation2 + $0x49] sm:$0xff]
      %v1475 = vld [vmem:[#allocation2 + $0x51] sm:$0xff]
      %v1476 = vld [vmem:[#allocation2 + $0x61] sm:$0xff]
      %v1477 = vld [vmem:[#allocation2 + $0x69] sm:$0xff]
      %v1478 = vld [vmem:[#allocation2 + $0x79] sm:$0xff]
      %v1479 = vld [vmem:[#allocation2 + $0x81] sm:$0xff]
      %v1480 = vld [vmem:[#allocation2 + $0x91] sm:$0xff]
      %v1481 = vld [vmem:[#allocation2 + $0x99] sm:$0xff]
      %v1482 = vld [vmem:[#allocation2 + $0xa9] sm:$0xff]
      %v1483 = vld [vmem:[#allocation2 + $0xb1] sm:$0xff]
      %v1484 = vld [vmem:[#allocation2 + $0xc1] sm:$0xff]
      %v1485 = vld [vmem:[#allocation2 + $0xc9] sm:$0xff]
      %v1486 = vld [vmem:[#allocation2 + $0xd9] sm:$0xff]
      %v1487 = vld [vmem:[#allocation2 + $0xe1] sm:$0xff]
      %v1488 = vld [vmem:[#allocation2 + $0xf1] sm:$0xff]
      %v1489 = vld [vmem:[#allocation2 + $0xf9] sm:$0xff]
      %v1490 = vld [vmem:[#allocation2 + $0x109] sm:$0xff]
      %v1491 = vld [vmem:[#allocation2 + $0x111] sm:$0xff]
      %v1492 = vld [vmem:[#allocation2 + $0x121] sm:$0xff]
      %v1493 = vld [vmem:[#allocation2 + $0x129] sm:$0xff]
      %v1494 = vld [vmem:[#allocation2 + $0x139] sm:$0xff]
      %v1495 = vld [vmem:[#allocation2 + $0x141] sm:$0xff]
      %v1496 = vld [vmem:[#allocation2 + $0x151] sm:$0xff]
      %v1497 = vld [vmem:[#allocation2 + $0x159] sm:$0xff]
      %v1498 = vld [vmem:[#allocation2 + $0x169] sm:$0xff]
      %v1499 = vld [vmem:[#allocation2 + $0x171] sm:$0xff]
      %s1500 = scalar_lea.vmem %s3, 4
      %v1501 = vld [vmem:[%s1500] sm:$0xf]
      %v1503 = vsel %vm632, %v1436, 0
      %v1506 = vsel %vm632, %v1437, 0
      %v1509 = vsel %vm632, %v1438, 0
      %v1512 = vsel %vm632, %v1439, 0
      %v1515 = vsel %vm632, %v1440, 0
      %v1518 = vsel %vm632, %v1441, 0
      %v1521 = vsel %vm632, %v1442, 0
      %v1524 = vsel %vm632, %v1443, 0
      %v1527 = vsel %vm632, %v1444, 0
      %v1530 = vsel %vm632, %v1445, 0
      %v1533 = vsel %vm632, %v1446, 0
      %v1536 = vsel %vm632, %v1447, 0
      %v1539 = vsel %vm632, %v1448, 0
      %v1542 = vsel %vm632, %v1449, 0
      %v1545 = vsel %vm632, %v1450, 0
      %v1548 = vsel %vm632, %v1451, 0
      %v1551 = vsel %vm632, %v1452, 0
      %v1554 = vsel %vm632, %v1453, 0
      %v1557 = vsel %vm632, %v1454, 0
      %v1560 = vsel %vm632, %v1455, 0
      %v1563 = vsel %vm632, %v1456, 0
      %v1566 = vsel %vm632, %v1457, 0
      %v1569 = vsel %vm632, %v1458, 0
      %v1572 = vsel %vm632, %v1459, 0
      %v1575 = vsel %vm632, %v1460, 0
      %v1578 = vsel %vm632, %v1461, 0
      %v1581 = vsel %vm632, %v1462, 0
      %v1584 = vsel %vm632, %v1463, 0
      %v1587 = vsel %vm632, %v1464, 0
      %v1590 = vsel %vm632, %v1465, 0
      %v1593 = vsel %vm632, %v1466, 0
      %v1596 = vsel %vm632, %v1467, 0
      %v1599 = vsel %vm883, %v1501, 0
      %1601 = vmatprep.subr.mxu0 0.0
      %1602 = vmatpush1.msra.mxu0 0.0
      %1603 = vmatprep.subr.mxu0 0.0
      %1604 = vmatpush1.msra.mxu0 0.0
      %1605 = vmatprep.subr.mxu0 0.0
      %1606 = vmatpush1.msra.mxu0 0.0
      %1607 = vmatprep.subr.mxu0 0.0
      %1608 = vmatpush1.msra.mxu0 0.0
      %1609 = vmatprep.subr.mxu0 0.0
      %1610 = vmatpush1.msra.mxu0 0.0
      %1611 = vmatprep.subr.mxu0 0.0
      %1612 = vmatpush1.msra.mxu0 0.0
      %1613 = vmatprep.subr.mxu0 0.0
      %1614 = vmatpush1.msra.mxu0 0.0
      %1615 = vmatprep.subr.mxu0 0.0
      %1616 = vmatpush1.msra.mxu0 0.0
      %1617 = vmatprep.subr.mxu0 0.0
      %1618 = vmatpush1.msra.mxu0 0.0
      %1619 = vmatprep.subr.mxu0 0.0
      %1620 = vmatpush1.msra.mxu0 0.0
      %1621 = vmatprep.subr.mxu0 0.0
      %1622 = vmatpush1.msra.mxu0 0.0
      %1623 = vmatprep.subr.mxu0 0.0
      %1624 = vmatpush1.msra.mxu0 0.0
      %1625 = vmatprep.subr.mxu0 0.0
      %1626 = vmatpush1.msra.mxu0 0.0
      %1627 = vmatprep.subr.mxu0 0.0
      %1628 = vmatpush1.msra.mxu0 0.0
      %1629 = vmatprep.subr.mxu0 0.0
      %1630 = vmatpush1.msra.mxu0 0.0
      %1631 = vmatprep.subr.mxu0 0.0
      %1632 = vmatpush1.msra.mxu0 %v1599
      %1633 = vmatprep.subr.mxu0 0.0
      %1634 = vmatpush2.msra.mxu0 0.0
      %1635 = vmatprep.subr.mxu0 0.0
      %1636 = vmatpush2.msra.mxu0 0.0
      %1637 = vmatprep.subr.mxu0 0.0
      %1638 = vmatpush2.msra.mxu0 0.0
      %1639 = vmatprep.subr.mxu0 0.0
      %1640 = vmatpush2.msra.mxu0 0.0
      %1641 = vmatprep.subr.mxu0 0.0
      %1642 = vmatpush2.msra.mxu0 0.0
      %1643 = vmatprep.subr.mxu0 0.0
      %1644 = vmatpush2.msra.mxu0 0.0
      %1645 = vmatprep.subr.mxu0 0.0
      %1646 = vmatpush2.msra.mxu0 0.0
      %1647 = vmatprep.subr.mxu0 0.0
      %1648 = vmatpush2.msra.mxu0 0.0
      %1649 = vmatprep.subr.mxu0 0.0
      %1650 = vmatpush2.msra.mxu0 0.0
      %1651 = vmatprep.subr.mxu0 0.0
      %1652 = vmatpush2.msra.mxu0 0.0
      %1653 = vmatprep.subr.mxu0 0.0
      %1654 = vmatpush2.msra.mxu0 0.0
      %1655 = vmatprep.subr.mxu0 0.0
      %1656 = vmatpush2.msra.mxu0 0.0
      %1657 = vmatprep.subr.mxu0 0.0
      %1658 = vmatpush2.msra.mxu0 0.0
      %1659 = vmatprep.subr.mxu0 0.0
      %1660 = vmatpush2.msra.mxu0 0.0
      %1661 = vmatprep.subr.mxu0 0.0
      %1662 = vmatpush2.msra.mxu0 0.0
      %1663 = vmatprep.subr.mxu0 0.0
      %1664 = vmatpush2.msra.mxu0 0.0
      %1665 = vmatprep.mubr.f32.mxu0 0.0
      %1666 = vmatmul.mubr.f32.gmra.mxu0 %v1503
      %v1667 = vpop.f32.mrf.mxu0
      %v1668 = vadd.f32 0.0, %v1667
      %v1669 = vpop.f32.mrf.mxu0
      %1670 = vmatprep.mubr.f32.mxu0 0.0
      %1671 = vmatmul.mubr.f32.gmra.mxu0 %v1506
      %v1672 = vpop.f32.mrf.mxu0
      %v1673 = vadd.f32 0.0, %v1672
      %v1674 = vpop.f32.mrf.mxu0
      %1675 = vmatprep.mubr.f32.mxu0 0.0
      %1676 = vmatmul.mubr.f32.gmra.mxu0 %v1509
      %v1677 = vpop.f32.mrf.mxu0
      %v1678 = vadd.f32 0.0, %v1677
      %v1679 = vpop.f32.mrf.mxu0
      %1680 = vmatprep.mubr.f32.mxu0 0.0
      %1681 = vmatmul.mubr.f32.gmra.mxu0 %v1512
      %v1682 = vpop.f32.mrf.mxu0
      %v1683 = vadd.f32 0.0, %v1682
      %v1684 = vpop.f32.mrf.mxu0
      %1685 = vmatprep.mubr.f32.mxu0 0.0
      %1686 = vmatmul.mubr.f32.gmra.mxu0 %v1515
      %v1687 = vpop.f32.mrf.mxu0
      %v1688 = vadd.f32 0.0, %v1687
      %v1689 = vpop.f32.mrf.mxu0
      %1690 = vmatprep.mubr.f32.mxu0 0.0
      %1691 = vmatmul.mubr.f32.gmra.mxu0 %v1518
      %v1692 = vpop.f32.mrf.mxu0
      %v1693 = vadd.f32 0.0, %v1692
      %v1694 = vpop.f32.mrf.mxu0
      %1695 = vmatprep.mubr.f32.mxu0 0.0
      %1696 = vmatmul.mubr.f32.gmra.mxu0 %v1521
      %v1697 = vpop.f32.mrf.mxu0
      %v1698 = vadd.f32 0.0, %v1697
      %v1699 = vpop.f32.mrf.mxu0
      %1700 = vmatprep.mubr.f32.mxu0 0.0
      %1701 = vmatmul.mubr.f32.gmra.mxu0 %v1524
      %v1702 = vpop.f32.mrf.mxu0
      %v1703 = vadd.f32 0.0, %v1702
      %v1704 = vpop.f32.mrf.mxu0
      %1705 = vmatprep.mubr.f32.mxu0 0.0
      %1706 = vmatmul.mubr.f32.gmra.mxu0 %v1527
      %v1707 = vpop.f32.mrf.mxu0
      %v1708 = vadd.f32 0.0, %v1707
      %v1709 = vpop.f32.mrf.mxu0
      %1710 = vmatprep.mubr.f32.mxu0 0.0
      %1711 = vmatmul.mubr.f32.gmra.mxu0 %v1530
      %v1712 = vpop.f32.mrf.mxu0
      %v1713 = vadd.f32 0.0, %v1712
      %v1714 = vpop.f32.mrf.mxu0
      %1715 = vmatprep.mubr.f32.mxu0 0.0
      %1716 = vmatmul.mubr.f32.gmra.mxu0 %v1533
      %v1717 = vpop.f32.mrf.mxu0
      %v1718 = vadd.f32 0.0, %v1717
      %v1719 = vpop.f32.mrf.mxu0
      %1720 = vmatprep.mubr.f32.mxu0 0.0
      %1721 = vmatmul.mubr.f32.gmra.mxu0 %v1536
      %v1722 = vpop.f32.mrf.mxu0
      %v1723 = vadd.f32 0.0, %v1722
      %v1724 = vpop.f32.mrf.mxu0
      %1725 = vmatprep.mubr.f32.mxu0 0.0
      %1726 = vmatmul.mubr.f32.gmra.mxu0 %v1539
      %v1727 = vpop.f32.mrf.mxu0
      %v1728 = vadd.f32 0.0, %v1727
      %v1729 = vpop.f32.mrf.mxu0
      %1730 = vmatprep.mubr.f32.mxu0 0.0
      %1731 = vmatmul.mubr.f32.gmra.mxu0 %v1542
      %v1732 = vpop.f32.mrf.mxu0
      %v1733 = vadd.f32 0.0, %v1732
      %v1734 = vpop.f32.mrf.mxu0
      %1735 = vmatprep.mubr.f32.mxu0 0.0
      %1736 = vmatmul.mubr.f32.gmra.mxu0 %v1545
      %v1737 = vpop.f32.mrf.mxu0
      %v1738 = vadd.f32 0.0, %v1737
      %v1739 = vpop.f32.mrf.mxu0
      %1740 = vmatprep.mubr.f32.mxu0 0.0
      %1741 = vmatmul.mubr.f32.gmra.mxu0 %v1548
      %v1742 = vpop.f32.mrf.mxu0
      %v1743 = vadd.f32 0.0, %v1742
      %v1744 = vpop.f32.mrf.mxu0
      %1745 = vmatprep.mubr.f32.mxu0 0.0
      %1746 = vmatmul.mubr.f32.gmra.mxu0 %v1551
      %v1747 = vpop.f32.mrf.mxu0
      %v1748 = vadd.f32 0.0, %v1747
      %v1749 = vpop.f32.mrf.mxu0
      %1750 = vmatprep.mubr.f32.mxu0 0.0
      %1751 = vmatmul.mubr.f32.gmra.mxu0 %v1554
      %v1752 = vpop.f32.mrf.mxu0
      %v1753 = vadd.f32 0.0, %v1752
      %v1754 = vpop.f32.mrf.mxu0
      %1755 = vmatprep.mubr.f32.mxu0 0.0
      %1756 = vmatmul.mubr.f32.gmra.mxu0 %v1557
      %v1757 = vpop.f32.mrf.mxu0
      %v1758 = vadd.f32 0.0, %v1757
      %v1759 = vpop.f32.mrf.mxu0
      %1760 = vmatprep.mubr.f32.mxu0 0.0
      %1761 = vmatmul.mubr.f32.gmra.mxu0 %v1560
      %v1762 = vpop.f32.mrf.mxu0
      %v1763 = vadd.f32 0.0, %v1762
      %v1764 = vpop.f32.mrf.mxu0
      %1765 = vmatprep.mubr.f32.mxu0 0.0
      %1766 = vmatmul.mubr.f32.gmra.mxu0 %v1563
      %v1767 = vpop.f32.mrf.mxu0
      %v1768 = vadd.f32 0.0, %v1767
      %v1769 = vpop.f32.mrf.mxu0
      %1770 = vmatprep.mubr.f32.mxu0 0.0
      %1771 = vmatmul.mubr.f32.gmra.mxu0 %v1566
      %v1772 = vpop.f32.mrf.mxu0
      %v1773 = vadd.f32 0.0, %v1772
      %v1774 = vpop.f32.mrf.mxu0
      %1775 = vmatprep.mubr.f32.mxu0 0.0
      %1776 = vmatmul.mubr.f32.gmra.mxu0 %v1569
      %v1777 = vpop.f32.mrf.mxu0
      %v1778 = vadd.f32 0.0, %v1777
      %v1779 = vpop.f32.mrf.mxu0
      %1780 = vmatprep.mubr.f32.mxu0 0.0
      %1781 = vmatmul.mubr.f32.gmra.mxu0 %v1572
      %v1782 = vpop.f32.mrf.mxu0
      %v1783 = vadd.f32 0.0, %v1782
      %v1784 = vpop.f32.mrf.mxu0
      %1785 = vmatprep.mubr.f32.mxu0 0.0
      %1786 = vmatmul.mubr.f32.gmra.mxu0 %v1575
      %v1787 = vpop.f32.mrf.mxu0
      %v1788 = vadd.f32 0.0, %v1787
      %v1789 = vpop.f32.mrf.mxu0
      %1790 = vmatprep.mubr.f32.mxu0 0.0
      %1791 = vmatmul.mubr.f32.gmra.mxu0 %v1578
      %v1792 = vpop.f32.mrf.mxu0
      %v1793 = vadd.f32 0.0, %v1792
      %v1794 = vpop.f32.mrf.mxu0
      %1795 = vmatprep.mubr.f32.mxu0 0.0
      %1796 = vmatmul.mubr.f32.gmra.mxu0 %v1581
      %v1797 = vpop.f32.mrf.mxu0
      %v1798 = vadd.f32 0.0, %v1797
      %v1799 = vpop.f32.mrf.mxu0
      %1800 = vmatprep.mubr.f32.mxu0 0.0
      %1801 = vmatmul.mubr.f32.gmra.mxu0 %v1584
      %v1802 = vpop.f32.mrf.mxu0
      %v1803 = vadd.f32 0.0, %v1802
      %v1804 = vpop.f32.mrf.mxu0
      %1805 = vmatprep.mubr.f32.mxu0 0.0
      %1806 = vmatmul.mubr.f32.gmra.mxu0 %v1587
      %v1807 = vpop.f32.mrf.mxu0
      %v1808 = vadd.f32 0.0, %v1807
      %v1809 = vpop.f32.mrf.mxu0
      %1810 = vmatprep.mubr.f32.mxu0 0.0
      %1811 = vmatmul.mubr.f32.gmra.mxu0 %v1590
      %v1812 = vpop.f32.mrf.mxu0
      %v1813 = vadd.f32 0.0, %v1812
      %v1814 = vpop.f32.mrf.mxu0
      %1815 = vmatprep.mubr.f32.mxu0 0.0
      %1816 = vmatmul.mubr.f32.gmra.mxu0 %v1593
      %v1817 = vpop.f32.mrf.mxu0
      %v1818 = vadd.f32 0.0, %v1817
      %v1819 = vpop.f32.mrf.mxu0
      %1820 = vmatprep.mubr.f32.mxu0 0.0
      %1821 = vmatmul.mubr.f32.gmra.mxu0 %v1596
      %v1822 = vpop.f32.mrf.mxu0
      %v1823 = vadd.f32 0.0, %v1822
      %v1824 = vpop.f32.mrf.mxu0
      %1825 = vdwg.mxu0
      %v1826 = vadd.f32 %v1278, %v1668
      %v1827 = vadd.f32 %v1283, %v1673
      %v1828 = vadd.f32 %v1288, %v1678
      %v1829 = vadd.f32 %v1293, %v1683
      %v1830 = vadd.f32 %v1298, %v1688
      %v1831 = vadd.f32 %v1303, %v1693
      %v1832 = vadd.f32 %v1308, %v1698
      %v1833 = vadd.f32 %v1313, %v1703
      %v1834 = vadd.f32 %v1318, %v1708
      %v1835 = vadd.f32 %v1323, %v1713
      %v1836 = vadd.f32 %v1328, %v1718
      %v1837 = vadd.f32 %v1333, %v1723
      %v1838 = vadd.f32 %v1338, %v1728
      %v1839 = vadd.f32 %v1343, %v1733
      %v1840 = vadd.f32 %v1348, %v1738
      %v1841 = vadd.f32 %v1353, %v1743
      %v1842 = vadd.f32 %v1358, %v1748
      %v1843 = vadd.f32 %v1363, %v1753
      %v1844 = vadd.f32 %v1368, %v1758
      %v1845 = vadd.f32 %v1373, %v1763
      %v1846 = vadd.f32 %v1378, %v1768
      %v1847 = vadd.f32 %v1383, %v1773
      %v1848 = vadd.f32 %v1388, %v1778
      %v1849 = vadd.f32 %v1393, %v1783
      %v1850 = vadd.f32 %v1398, %v1788
      %v1851 = vadd.f32 %v1403, %v1793
      %v1852 = vadd.f32 %v1408, %v1798
      %v1853 = vadd.f32 %v1413, %v1803
      %v1854 = vadd.f32 %v1418, %v1808
      %v1855 = vadd.f32 %v1423, %v1813
      %v1856 = vadd.f32 %v1428, %v1818
      %v1857 = vadd.f32 %v1433, %v1823
      %s1858 = scalar_lea.vmem %s4, 4
      %v1859 = vld [vmem:[%s1858] sm:$0xf]
      %v1861 = vsel %vm632, %v1468, 0
      %v1864 = vsel %vm632, %v1469, 0
      %v1867 = vsel %vm632, %v1470, 0
      %v1870 = vsel %vm632, %v1471, 0
      %v1873 = vsel %vm632, %v1472, 0
      %v1876 = vsel %vm632, %v1473, 0
      %v1879 = vsel %vm632, %v1474, 0
      %v1882 = vsel %vm632, %v1475, 0
      %v1885 = vsel %vm632, %v1476, 0
      %v1888 = vsel %vm632, %v1477, 0
      %v1891 = vsel %vm632, %v1478, 0
      %v1894 = vsel %vm632, %v1479, 0
      %v1897 = vsel %vm632, %v1480, 0
      %v1900 = vsel %vm632, %v1481, 0
      %v1903 = vsel %vm632, %v1482, 0
      %v1906 = vsel %vm632, %v1483, 0
      %v1909 = vsel %vm632, %v1484, 0
      %v1912 = vsel %vm632, %v1485, 0
      %v1915 = vsel %vm632, %v1486, 0
      %v1918 = vsel %vm632, %v1487, 0
      %v1921 = vsel %vm632, %v1488, 0
      %v1924 = vsel %vm632, %v1489, 0
      %v1927 = vsel %vm632, %v1490, 0
      %v1930 = vsel %vm632, %v1491, 0
      %v1933 = vsel %vm632, %v1492, 0
      %v1936 = vsel %vm632, %v1493, 0
      %v1939 = vsel %vm632, %v1494, 0
      %v1942 = vsel %vm632, %v1495, 0
      %v1945 = vsel %vm632, %v1496, 0
      %v1948 = vsel %vm632, %v1497, 0
      %v1951 = vsel %vm632, %v1498, 0
      %v1954 = vsel %vm632, %v1499, 0
      %v1957 = vsel %vm883, %v1859, 0
      %1959 = vmatprep.subr.mxu0 0.0
      %1960 = vmatpush1.msra.mxu0 0.0
      %1961 = vmatprep.subr.mxu0 0.0
      %1962 = vmatpush1.msra.mxu0 0.0
      %1963 = vmatprep.subr.mxu0 0.0
      %1964 = vmatpush1.msra.mxu0 0.0
      %1965 = vmatprep.subr.mxu0 0.0
      %1966 = vmatpush1.msra.mxu0 0.0
      %1967 = vmatprep.subr.mxu0 0.0
      %1968 = vmatpush1.msra.mxu0 0.0
      %1969 = vmatprep.subr.mxu0 0.0
      %1970 = vmatpush1.msra.mxu0 0.0
      %1971 = vmatprep.subr.mxu0 0.0
      %1972 = vmatpush1.msra.mxu0 0.0
      %1973 = vmatprep.subr.mxu0 0.0
      %1974 = vmatpush1.msra.mxu0 0.0
      %1975 = vmatprep.subr.mxu0 0.0
      %1976 = vmatpush1.msra.mxu0 0.0
      %1977 = vmatprep.subr.mxu0 0.0
      %1978 = vmatpush1.msra.mxu0 0.0
      %1979 = vmatprep.subr.mxu0 0.0
      %1980 = vmatpush1.msra.mxu0 0.0
      %1981 = vmatprep.subr.mxu0 0.0
      %1982 = vmatpush1.msra.mxu0 0.0
      %1983 = vmatprep.subr.mxu0 0.0
      %1984 = vmatpush1.msra.mxu0 0.0
      %1985 = vmatprep.subr.mxu0 0.0
      %1986 = vmatpush1.msra.mxu0 0.0
      %1987 = vmatprep.subr.mxu0 0.0
      %1988 = vmatpush1.msra.mxu0 0.0
      %1989 = vmatprep.subr.mxu0 0.0
      %1990 = vmatpush1.msra.mxu0 %v1957
      %1991 = vmatprep.subr.mxu0 0.0
      %1992 = vmatpush2.msra.mxu0 0.0
      %1993 = vmatprep.subr.mxu0 0.0
      %1994 = vmatpush2.msra.mxu0 0.0
      %1995 = vmatprep.subr.mxu0 0.0
      %1996 = vmatpush2.msra.mxu0 0.0
      %1997 = vmatprep.subr.mxu0 0.0
      %1998 = vmatpush2.msra.mxu0 0.0
      %1999 = vmatprep.subr.mxu0 0.0
      %2000 = vmatpush2.msra.mxu0 0.0
      %2001 = vmatprep.subr.mxu0 0.0
      %2002 = vmatpush2.msra.mxu0 0.0
      %2003 = vmatprep.subr.mxu0 0.0
      %2004 = vmatpush2.msra.mxu0 0.0
      %2005 = vmatprep.subr.mxu0 0.0
      %2006 = vmatpush2.msra.mxu0 0.0
      %2007 = vmatprep.subr.mxu0 0.0
      %2008 = vmatpush2.msra.mxu0 0.0
      %2009 = vmatprep.subr.mxu0 0.0
      %2010 = vmatpush2.msra.mxu0 0.0
      %2011 = vmatprep.subr.mxu0 0.0
      %2012 = vmatpush2.msra.mxu0 0.0
      %2013 = vmatprep.subr.mxu0 0.0
      %2014 = vmatpush2.msra.mxu0 0.0
      %2015 = vmatprep.subr.mxu0 0.0
      %2016 = vmatpush2.msra.mxu0 0.0
      %2017 = vmatprep.subr.mxu0 0.0
      %2018 = vmatpush2.msra.mxu0 0.0
      %2019 = vmatprep.subr.mxu0 0.0
      %2020 = vmatpush2.msra.mxu0 0.0
      %2021 = vmatprep.subr.mxu0 0.0
      %2022 = vmatpush2.msra.mxu0 0.0
      %2023 = vmatprep.mubr.f32.mxu0 0.0
      %2024 = vmatmul.mubr.f32.gmra.mxu0 %v1861
      %v2025 = vpop.f32.mrf.mxu0
      %v2026 = vadd.f32 0.0, %v2025
      %v2027 = vpop.f32.mrf.mxu0
      %2028 = vmatprep.mubr.f32.mxu0 0.0
      %2029 = vmatmul.mubr.f32.gmra.mxu0 %v1864
      %v2030 = vpop.f32.mrf.mxu0
      %v2031 = vadd.f32 0.0, %v2030
      %v2032 = vpop.f32.mrf.mxu0
      %2033 = vmatprep.mubr.f32.mxu0 0.0
      %2034 = vmatmul.mubr.f32.gmra.mxu0 %v1867
      %v2035 = vpop.f32.mrf.mxu0
      %v2036 = vadd.f32 0.0, %v2035
      %v2037 = vpop.f32.mrf.mxu0
      %2038 = vmatprep.mubr.f32.mxu0 0.0
      %2039 = vmatmul.mubr.f32.gmra.mxu0 %v1870
      %v2040 = vpop.f32.mrf.mxu0
      %v2041 = vadd.f32 0.0, %v2040
      %v2042 = vpop.f32.mrf.mxu0
      %2043 = vmatprep.mubr.f32.mxu0 0.0
      %2044 = vmatmul.mubr.f32.gmra.mxu0 %v1873
      %v2045 = vpop.f32.mrf.mxu0
      %v2046 = vadd.f32 0.0, %v2045
      %v2047 = vpop.f32.mrf.mxu0
      %2048 = vmatprep.mubr.f32.mxu0 0.0
      %2049 = vmatmul.mubr.f32.gmra.mxu0 %v1876
      %v2050 = vpop.f32.mrf.mxu0
      %v2051 = vadd.f32 0.0, %v2050
      %v2052 = vpop.f32.mrf.mxu0
      %2053 = vmatprep.mubr.f32.mxu0 0.0
      %2054 = vmatmul.mubr.f32.gmra.mxu0 %v1879
      %v2055 = vpop.f32.mrf.mxu0
      %v2056 = vadd.f32 0.0, %v2055
      %v2057 = vpop.f32.mrf.mxu0
      %2058 = vmatprep.mubr.f32.mxu0 0.0
      %2059 = vmatmul.mubr.f32.gmra.mxu0 %v1882
      %v2060 = vpop.f32.mrf.mxu0
      %v2061 = vadd.f32 0.0, %v2060
      %v2062 = vpop.f32.mrf.mxu0
      %2063 = vmatprep.mubr.f32.mxu0 0.0
      %2064 = vmatmul.mubr.f32.gmra.mxu0 %v1885
      %v2065 = vpop.f32.mrf.mxu0
      %v2066 = vadd.f32 0.0, %v2065
      %v2067 = vpop.f32.mrf.mxu0
      %2068 = vmatprep.mubr.f32.mxu0 0.0
      %2069 = vmatmul.mubr.f32.gmra.mxu0 %v1888
      %v2070 = vpop.f32.mrf.mxu0
      %v2071 = vadd.f32 0.0, %v2070
      %v2072 = vpop.f32.mrf.mxu0
      %2073 = vmatprep.mubr.f32.mxu0 0.0
      %2074 = vmatmul.mubr.f32.gmra.mxu0 %v1891
      %v2075 = vpop.f32.mrf.mxu0
      %v2076 = vadd.f32 0.0, %v2075
      %v2077 = vpop.f32.mrf.mxu0
      %2078 = vmatprep.mubr.f32.mxu0 0.0
      %2079 = vmatmul.mubr.f32.gmra.mxu0 %v1894
      %v2080 = vpop.f32.mrf.mxu0
      %v2081 = vadd.f32 0.0, %v2080
      %v2082 = vpop.f32.mrf.mxu0
      %2083 = vmatprep.mubr.f32.mxu0 0.0
      %2084 = vmatmul.mubr.f32.gmra.mxu0 %v1897
      %v2085 = vpop.f32.mrf.mxu0
      %v2086 = vadd.f32 0.0, %v2085
      %v2087 = vpop.f32.mrf.mxu0
      %2088 = vmatprep.mubr.f32.mxu0 0.0
      %2089 = vmatmul.mubr.f32.gmra.mxu0 %v1900
      %v2090 = vpop.f32.mrf.mxu0
      %v2091 = vadd.f32 0.0, %v2090
      %v2092 = vpop.f32.mrf.mxu0
      %2093 = vmatprep.mubr.f32.mxu0 0.0
      %2094 = vmatmul.mubr.f32.gmra.mxu0 %v1903
      %v2095 = vpop.f32.mrf.mxu0
      %v2096 = vadd.f32 0.0, %v2095
      %v2097 = vpop.f32.mrf.mxu0
      %2098 = vmatprep.mubr.f32.mxu0 0.0
      %2099 = vmatmul.mubr.f32.gmra.mxu0 %v1906
      %v2100 = vpop.f32.mrf.mxu0
      %v2101 = vadd.f32 0.0, %v2100
      %v2102 = vpop.f32.mrf.mxu0
      %2103 = vmatprep.mubr.f32.mxu0 0.0
      %2104 = vmatmul.mubr.f32.gmra.mxu0 %v1909
      %v2105 = vpop.f32.mrf.mxu0
      %v2106 = vadd.f32 0.0, %v2105
      %v2107 = vpop.f32.mrf.mxu0
      %2108 = vmatprep.mubr.f32.mxu0 0.0
      %2109 = vmatmul.mubr.f32.gmra.mxu0 %v1912
      %v2110 = vpop.f32.mrf.mxu0
      %v2111 = vadd.f32 0.0, %v2110
      %v2112 = vpop.f32.mrf.mxu0
      %2113 = vmatprep.mubr.f32.mxu0 0.0
      %2114 = vmatmul.mubr.f32.gmra.mxu0 %v1915
      %v2115 = vpop.f32.mrf.mxu0
      %v2116 = vadd.f32 0.0, %v2115
      %v2117 = vpop.f32.mrf.mxu0
      %2118 = vmatprep.mubr.f32.mxu0 0.0
      %2119 = vmatmul.mubr.f32.gmra.mxu0 %v1918
      %v2120 = vpop.f32.mrf.mxu0
      %v2121 = vadd.f32 0.0, %v2120
      %v2122 = vpop.f32.mrf.mxu0
      %2123 = vmatprep.mubr.f32.mxu0 0.0
      %2124 = vmatmul.mubr.f32.gmra.mxu0 %v1921
      %v2125 = vpop.f32.mrf.mxu0
      %v2126 = vadd.f32 0.0, %v2125
      %v2127 = vpop.f32.mrf.mxu0
      %2128 = vmatprep.mubr.f32.mxu0 0.0
      %2129 = vmatmul.mubr.f32.gmra.mxu0 %v1924
      %v2130 = vpop.f32.mrf.mxu0
      %v2131 = vadd.f32 0.0, %v2130
      %v2132 = vpop.f32.mrf.mxu0
      %2133 = vmatprep.mubr.f32.mxu0 0.0
      %2134 = vmatmul.mubr.f32.gmra.mxu0 %v1927
      %v2135 = vpop.f32.mrf.mxu0
      %v2136 = vadd.f32 0.0, %v2135
      %v2137 = vpop.f32.mrf.mxu0
      %2138 = vmatprep.mubr.f32.mxu0 0.0
      %2139 = vmatmul.mubr.f32.gmra.mxu0 %v1930
      %v2140 = vpop.f32.mrf.mxu0
      %v2141 = vadd.f32 0.0, %v2140
      %v2142 = vpop.f32.mrf.mxu0
      %2143 = vmatprep.mubr.f32.mxu0 0.0
      %2144 = vmatmul.mubr.f32.gmra.mxu0 %v1933
      %v2145 = vpop.f32.mrf.mxu0
      %v2146 = vadd.f32 0.0, %v2145
      %v2147 = vpop.f32.mrf.mxu0
      %2148 = vmatprep.mubr.f32.mxu0 0.0
      %2149 = vmatmul.mubr.f32.gmra.mxu0 %v1936
      %v2150 = vpop.f32.mrf.mxu0
      %v2151 = vadd.f32 0.0, %v2150
      %v2152 = vpop.f32.mrf.mxu0
      %2153 = vmatprep.mubr.f32.mxu0 0.0
      %2154 = vmatmul.mubr.f32.gmra.mxu0 %v1939
      %v2155 = vpop.f32.mrf.mxu0
      %v2156 = vadd.f32 0.0, %v2155
      %v2157 = vpop.f32.mrf.mxu0
      %2158 = vmatprep.mubr.f32.mxu0 0.0
      %2159 = vmatmul.mubr.f32.gmra.mxu0 %v1942
      %v2160 = vpop.f32.mrf.mxu0
      %v2161 = vadd.f32 0.0, %v2160
      %v2162 = vpop.f32.mrf.mxu0
      %2163 = vmatprep.mubr.f32.mxu0 0.0
      %2164 = vmatmul.mubr.f32.gmra.mxu0 %v1945
      %v2165 = vpop.f32.mrf.mxu0
      %v2166 = vadd.f32 0.0, %v2165
      %v2167 = vpop.f32.mrf.mxu0
      %2168 = vmatprep.mubr.f32.mxu0 0.0
      %2169 = vmatmul.mubr.f32.gmra.mxu0 %v1948
      %v2170 = vpop.f32.mrf.mxu0
      %v2171 = vadd.f32 0.0, %v2170
      %v2172 = vpop.f32.mrf.mxu0
      %2173 = vmatprep.mubr.f32.mxu0 0.0
      %2174 = vmatmul.mubr.f32.gmra.mxu0 %v1951
      %v2175 = vpop.f32.mrf.mxu0
      %v2176 = vadd.f32 0.0, %v2175
      %v2177 = vpop.f32.mrf.mxu0
      %2178 = vmatprep.mubr.f32.mxu0 0.0
      %2179 = vmatmul.mubr.f32.gmra.mxu0 %v1954
      %v2180 = vpop.f32.mrf.mxu0
      %v2181 = vadd.f32 0.0, %v2180
      %v2182 = vpop.f32.mrf.mxu0
      %2183 = vdwg.mxu0
      %v2184 = vadd.f32 %v1826, %v2026
      %v2185 = vadd.f32 %v1827, %v2031
      %v2186 = vadd.f32 %v1828, %v2036
      %v2187 = vadd.f32 %v1829, %v2041
      %v2188 = vadd.f32 %v1830, %v2046
      %v2189 = vadd.f32 %v1831, %v2051
      %v2190 = vadd.f32 %v1832, %v2056
      %v2191 = vadd.f32 %v1833, %v2061
      %v2192 = vadd.f32 %v1834, %v2066
      %v2193 = vadd.f32 %v1835, %v2071
      %v2194 = vadd.f32 %v1836, %v2076
      %v2195 = vadd.f32 %v1837, %v2081
      %v2196 = vadd.f32 %v1838, %v2086
      %v2197 = vadd.f32 %v1839, %v2091
      %v2198 = vadd.f32 %v1840, %v2096
      %v2199 = vadd.f32 %v1841, %v2101
      %v2200 = vadd.f32 %v1842, %v2106
      %v2201 = vadd.f32 %v1843, %v2111
      %v2202 = vadd.f32 %v1844, %v2116
      %v2203 = vadd.f32 %v1845, %v2121
      %v2204 = vadd.f32 %v1846, %v2126
      %v2205 = vadd.f32 %v1847, %v2131
      %v2206 = vadd.f32 %v1848, %v2136
      %v2207 = vadd.f32 %v1849, %v2141
      %v2208 = vadd.f32 %v1850, %v2146
      %v2209 = vadd.f32 %v1851, %v2151
      %v2210 = vadd.f32 %v1852, %v2156
      %v2211 = vadd.f32 %v1853, %v2161
      %v2212 = vadd.f32 %v1854, %v2166
      %v2213 = vadd.f32 %v1855, %v2171
      %v2214 = vadd.f32 %v1856, %v2176
      %v2215 = vadd.f32 %v1857, %v2181
      %v2216 = vld [vmem:[%s261 + $0x2] sm:$0xff]
      %v2217 = vld [vmem:[%s261 + $0xa] sm:$0xff]
      %v2218 = vld [vmem:[%s261 + $0x1a] sm:$0xff]
      %v2219 = vld [vmem:[%s261 + $0x22] sm:$0xff]
      %v2220 = vld [vmem:[%s261 + $0x32] sm:$0xff]
      %v2221 = vld [vmem:[%s261 + $0x3a] sm:$0xff]
      %v2222 = vld [vmem:[%s261 + $0x4a] sm:$0xff]
      %v2223 = vld [vmem:[%s261 + $0x52] sm:$0xff]
      %v2224 = vld [vmem:[%s261 + $0x62] sm:$0xff]
      %v2225 = vld [vmem:[%s261 + $0x6a] sm:$0xff]
      %v2226 = vld [vmem:[%s261 + $0x7a] sm:$0xff]
      %v2227 = vld [vmem:[%s261 + $0x82] sm:$0xff]
      %v2228 = vld [vmem:[%s261 + $0x92] sm:$0xff]
      %v2229 = vld [vmem:[%s261 + $0x9a] sm:$0xff]
      %v2230 = vld [vmem:[%s261 + $0xaa] sm:$0xff]
      %v2231 = vld [vmem:[%s261 + $0xb2] sm:$0xff]
      %v2232 = vld [vmem:[%s261 + $0xc2] sm:$0xff]
      %v2233 = vld [vmem:[%s261 + $0xca] sm:$0xff]
      %v2234 = vld [vmem:[%s261 + $0xda] sm:$0xff]
      %v2235 = vld [vmem:[%s261 + $0xe2] sm:$0xff]
      %v2236 = vld [vmem:[%s261 + $0xf2] sm:$0xff]
      %v2237 = vld [vmem:[%s261 + $0xfa] sm:$0xff]
      %v2238 = vld [vmem:[%s261 + $0x10a] sm:$0xff]
      %v2239 = vld [vmem:[%s261 + $0x112] sm:$0xff]
      %v2240 = vld [vmem:[%s261 + $0x122] sm:$0xff]
      %v2241 = vld [vmem:[%s261 + $0x12a] sm:$0xff]
      %v2242 = vld [vmem:[%s261 + $0x13a] sm:$0xff]
      %v2243 = vld [vmem:[%s261 + $0x142] sm:$0xff]
      %v2244 = vld [vmem:[%s261 + $0x152] sm:$0xff]
      %v2245 = vld [vmem:[%s261 + $0x15a] sm:$0xff]
      %v2246 = vld [vmem:[%s261 + $0x16a] sm:$0xff]
      %v2247 = vld [vmem:[%s261 + $0x172] sm:$0xff]
      %v2248 = vld [vmem:[#allocation2 + $0x2] sm:$0xff]
      %v2249 = vld [vmem:[#allocation2 + $0xa] sm:$0xff]
      %v2250 = vld [vmem:[#allocation2 + $0x1a] sm:$0xff]
      %v2251 = vld [vmem:[#allocation2 + $0x22] sm:$0xff]
      %v2252 = vld [vmem:[#allocation2 + $0x32] sm:$0xff]
      %v2253 = vld [vmem:[#allocation2 + $0x3a] sm:$0xff]
      %v2254 = vld [vmem:[#allocation2 + $0x4a] sm:$0xff]
      %v2255 = vld [vmem:[#allocation2 + $0x52] sm:$0xff]
      %v2256 = vld [vmem:[#allocation2 + $0x62] sm:$0xff]
      %v2257 = vld [vmem:[#allocation2 + $0x6a] sm:$0xff]
      %v2258 = vld [vmem:[#allocation2 + $0x7a] sm:$0xff]
      %v2259 = vld [vmem:[#allocation2 + $0x82] sm:$0xff]
      %v2260 = vld [vmem:[#allocation2 + $0x92] sm:$0xff]
      %v2261 = vld [vmem:[#allocation2 + $0x9a] sm:$0xff]
      %v2262 = vld [vmem:[#allocation2 + $0xaa] sm:$0xff]
      %v2263 = vld [vmem:[#allocation2 + $0xb2] sm:$0xff]
      %v2264 = vld [vmem:[#allocation2 + $0xc2] sm:$0xff]
      %v2265 = vld [vmem:[#allocation2 + $0xca] sm:$0xff]
      %v2266 = vld [vmem:[#allocation2 + $0xda] sm:$0xff]
      %v2267 = vld [vmem:[#allocation2 + $0xe2] sm:$0xff]
      %v2268 = vld [vmem:[#allocation2 + $0xf2] sm:$0xff]
      %v2269 = vld [vmem:[#allocation2 + $0xfa] sm:$0xff]
      %v2270 = vld [vmem:[#allocation2 + $0x10a] sm:$0xff]
      %v2271 = vld [vmem:[#allocation2 + $0x112] sm:$0xff]
      %v2272 = vld [vmem:[#allocation2 + $0x122] sm:$0xff]
      %v2273 = vld [vmem:[#allocation2 + $0x12a] sm:$0xff]
      %v2274 = vld [vmem:[#allocation2 + $0x13a] sm:$0xff]
      %v2275 = vld [vmem:[#allocation2 + $0x142] sm:$0xff]
      %v2276 = vld [vmem:[#allocation2 + $0x152] sm:$0xff]
      %v2277 = vld [vmem:[#allocation2 + $0x15a] sm:$0xff]
      %v2278 = vld [vmem:[#allocation2 + $0x16a] sm:$0xff]
      %v2279 = vld [vmem:[#allocation2 + $0x172] sm:$0xff]
      %s2280 = scalar_lea.vmem %s3, 8
      %v2281 = vld [vmem:[%s2280] sm:$0xf]
      %v2283 = vsel %vm632, %v2216, 0
      %v2286 = vsel %vm632, %v2217, 0
      %v2289 = vsel %vm632, %v2218, 0
      %v2292 = vsel %vm632, %v2219, 0
      %v2295 = vsel %vm632, %v2220, 0
      %v2298 = vsel %vm632, %v2221, 0
      %v2301 = vsel %vm632, %v2222, 0
      %v2304 = vsel %vm632, %v2223, 0
      %v2307 = vsel %vm632, %v2224, 0
      %v2310 = vsel %vm632, %v2225, 0
      %v2313 = vsel %vm632, %v2226, 0
      %v2316 = vsel %vm632, %v2227, 0
      %v2319 = vsel %vm632, %v2228, 0
      %v2322 = vsel %vm632, %v2229, 0
      %v2325 = vsel %vm632, %v2230, 0
      %v2328 = vsel %vm632, %v2231, 0
      %v2331 = vsel %vm632, %v2232, 0
      %v2334 = vsel %vm632, %v2233, 0
      %v2337 = vsel %vm632, %v2234, 0
      %v2340 = vsel %vm632, %v2235, 0
      %v2343 = vsel %vm632, %v2236, 0
      %v2346 = vsel %vm632, %v2237, 0
      %v2349 = vsel %vm632, %v2238, 0
      %v2352 = vsel %vm632, %v2239, 0
      %v2355 = vsel %vm632, %v2240, 0
      %v2358 = vsel %vm632, %v2241, 0
      %v2361 = vsel %vm632, %v2242, 0
      %v2364 = vsel %vm632, %v2243, 0
      %v2367 = vsel %vm632, %v2244, 0
      %v2370 = vsel %vm632, %v2245, 0
      %v2373 = vsel %vm632, %v2246, 0
      %v2376 = vsel %vm632, %v2247, 0
      %v2379 = vsel %vm883, %v2281, 0
      %2381 = vmatprep.subr.mxu0 0.0
      %2382 = vmatpush1.msra.mxu0 0.0
      %2383 = vmatprep.subr.mxu0 0.0
      %2384 = vmatpush1.msra.mxu0 0.0
      %2385 = vmatprep.subr.mxu0 0.0
      %2386 = vmatpush1.msra.mxu0 0.0
      %2387 = vmatprep.subr.mxu0 0.0
      %2388 = vmatpush1.msra.mxu0 0.0
      %2389 = vmatprep.subr.mxu0 0.0
      %2390 = vmatpush1.msra.mxu0 0.0
      %2391 = vmatprep.subr.mxu0 0.0
      %2392 = vmatpush1.msra.mxu0 0.0
      %2393 = vmatprep.subr.mxu0 0.0
      %2394 = vmatpush1.msra.mxu0 0.0
      %2395 = vmatprep.subr.mxu0 0.0
      %2396 = vmatpush1.msra.mxu0 0.0
      %2397 = vmatprep.subr.mxu0 0.0
      %2398 = vmatpush1.msra.mxu0 0.0
      %2399 = vmatprep.subr.mxu0 0.0
      %2400 = vmatpush1.msra.mxu0 0.0
      %2401 = vmatprep.subr.mxu0 0.0
      %2402 = vmatpush1.msra.mxu0 0.0
      %2403 = vmatprep.subr.mxu0 0.0
      %2404 = vmatpush1.msra.mxu0 0.0
      %2405 = vmatprep.subr.mxu0 0.0
      %2406 = vmatpush1.msra.mxu0 0.0
      %2407 = vmatprep.subr.mxu0 0.0
      %2408 = vmatpush1.msra.mxu0 0.0
      %2409 = vmatprep.subr.mxu0 0.0
      %2410 = vmatpush1.msra.mxu0 0.0
      %2411 = vmatprep.subr.mxu0 0.0
      %2412 = vmatpush1.msra.mxu0 %v2379
      %2413 = vmatprep.subr.mxu0 0.0
      %2414 = vmatpush2.msra.mxu0 0.0
      %2415 = vmatprep.subr.mxu0 0.0
      %2416 = vmatpush2.msra.mxu0 0.0
      %2417 = vmatprep.subr.mxu0 0.0
      %2418 = vmatpush2.msra.mxu0 0.0
      %2419 = vmatprep.subr.mxu0 0.0
      %2420 = vmatpush2.msra.mxu0 0.0
      %2421 = vmatprep.subr.mxu0 0.0
      %2422 = vmatpush2.msra.mxu0 0.0
      %2423 = vmatprep.subr.mxu0 0.0
      %2424 = vmatpush2.msra.mxu0 0.0
      %2425 = vmatprep.subr.mxu0 0.0
      %2426 = vmatpush2.msra.mxu0 0.0
      %2427 = vmatprep.subr.mxu0 0.0
      %2428 = vmatpush2.msra.mxu0 0.0
      %2429 = vmatprep.subr.mxu0 0.0
      %2430 = vmatpush2.msra.mxu0 0.0
      %2431 = vmatprep.subr.mxu0 0.0
      %2432 = vmatpush2.msra.mxu0 0.0
      %2433 = vmatprep.subr.mxu0 0.0
      %2434 = vmatpush2.msra.mxu0 0.0
      %2435 = vmatprep.subr.mxu0 0.0
      %2436 = vmatpush2.msra.mxu0 0.0
      %2437 = vmatprep.subr.mxu0 0.0
      %2438 = vmatpush2.msra.mxu0 0.0
      %2439 = vmatprep.subr.mxu0 0.0
      %2440 = vmatpush2.msra.mxu0 0.0
      %2441 = vmatprep.subr.mxu0 0.0
      %2442 = vmatpush2.msra.mxu0 0.0
      %2443 = vmatprep.subr.mxu0 0.0
      %2444 = vmatpush2.msra.mxu0 0.0
      %2445 = vmatprep.mubr.f32.mxu0 0.0
      %2446 = vmatmul.mubr.f32.gmra.mxu0 %v2283
      %v2447 = vpop.f32.mrf.mxu0
      %v2448 = vadd.f32 0.0, %v2447
      %v2449 = vpop.f32.mrf.mxu0
      %2450 = vmatprep.mubr.f32.mxu0 0.0
      %2451 = vmatmul.mubr.f32.gmra.mxu0 %v2286
      %v2452 = vpop.f32.mrf.mxu0
      %v2453 = vadd.f32 0.0, %v2452
      %v2454 = vpop.f32.mrf.mxu0
      %2455 = vmatprep.mubr.f32.mxu0 0.0
      %2456 = vmatmul.mubr.f32.gmra.mxu0 %v2289
      %v2457 = vpop.f32.mrf.mxu0
      %v2458 = vadd.f32 0.0, %v2457
      %v2459 = vpop.f32.mrf.mxu0
      %2460 = vmatprep.mubr.f32.mxu0 0.0
      %2461 = vmatmul.mubr.f32.gmra.mxu0 %v2292
      %v2462 = vpop.f32.mrf.mxu0
      %v2463 = vadd.f32 0.0, %v2462
      %v2464 = vpop.f32.mrf.mxu0
      %2465 = vmatprep.mubr.f32.mxu0 0.0
      %2466 = vmatmul.mubr.f32.gmra.mxu0 %v2295
      %v2467 = vpop.f32.mrf.mxu0
      %v2468 = vadd.f32 0.0, %v2467
      %v2469 = vpop.f32.mrf.mxu0
      %2470 = vmatprep.mubr.f32.mxu0 0.0
      %2471 = vmatmul.mubr.f32.gmra.mxu0 %v2298
      %v2472 = vpop.f32.mrf.mxu0
      %v2473 = vadd.f32 0.0, %v2472
      %v2474 = vpop.f32.mrf.mxu0
      %2475 = vmatprep.mubr.f32.mxu0 0.0
      %2476 = vmatmul.mubr.f32.gmra.mxu0 %v2301
      %v2477 = vpop.f32.mrf.mxu0
      %v2478 = vadd.f32 0.0, %v2477
      %v2479 = vpop.f32.mrf.mxu0
      %2480 = vmatprep.mubr.f32.mxu0 0.0
      %2481 = vmatmul.mubr.f32.gmra.mxu0 %v2304
      %v2482 = vpop.f32.mrf.mxu0
      %v2483 = vadd.f32 0.0, %v2482
      %v2484 = vpop.f32.mrf.mxu0
      %2485 = vmatprep.mubr.f32.mxu0 0.0
      %2486 = vmatmul.mubr.f32.gmra.mxu0 %v2307
      %v2487 = vpop.f32.mrf.mxu0
      %v2488 = vadd.f32 0.0, %v2487
      %v2489 = vpop.f32.mrf.mxu0
      %2490 = vmatprep.mubr.f32.mxu0 0.0
      %2491 = vmatmul.mubr.f32.gmra.mxu0 %v2310
      %v2492 = vpop.f32.mrf.mxu0
      %v2493 = vadd.f32 0.0, %v2492
      %v2494 = vpop.f32.mrf.mxu0
      %2495 = vmatprep.mubr.f32.mxu0 0.0
      %2496 = vmatmul.mubr.f32.gmra.mxu0 %v2313
      %v2497 = vpop.f32.mrf.mxu0
      %v2498 = vadd.f32 0.0, %v2497
      %v2499 = vpop.f32.mrf.mxu0
      %2500 = vmatprep.mubr.f32.mxu0 0.0
      %2501 = vmatmul.mubr.f32.gmra.mxu0 %v2316
      %v2502 = vpop.f32.mrf.mxu0
      %v2503 = vadd.f32 0.0, %v2502
      %v2504 = vpop.f32.mrf.mxu0
      %2505 = vmatprep.mubr.f32.mxu0 0.0
      %2506 = vmatmul.mubr.f32.gmra.mxu0 %v2319
      %v2507 = vpop.f32.mrf.mxu0
      %v2508 = vadd.f32 0.0, %v2507
      %v2509 = vpop.f32.mrf.mxu0
      %2510 = vmatprep.mubr.f32.mxu0 0.0
      %2511 = vmatmul.mubr.f32.gmra.mxu0 %v2322
      %v2512 = vpop.f32.mrf.mxu0
      %v2513 = vadd.f32 0.0, %v2512
      %v2514 = vpop.f32.mrf.mxu0
      %2515 = vmatprep.mubr.f32.mxu0 0.0
      %2516 = vmatmul.mubr.f32.gmra.mxu0 %v2325
      %v2517 = vpop.f32.mrf.mxu0
      %v2518 = vadd.f32 0.0, %v2517
      %v2519 = vpop.f32.mrf.mxu0
      %2520 = vmatprep.mubr.f32.mxu0 0.0
      %2521 = vmatmul.mubr.f32.gmra.mxu0 %v2328
      %v2522 = vpop.f32.mrf.mxu0
      %v2523 = vadd.f32 0.0, %v2522
      %v2524 = vpop.f32.mrf.mxu0
      %2525 = vmatprep.mubr.f32.mxu0 0.0
      %2526 = vmatmul.mubr.f32.gmra.mxu0 %v2331
      %v2527 = vpop.f32.mrf.mxu0
      %v2528 = vadd.f32 0.0, %v2527
      %v2529 = vpop.f32.mrf.mxu0
      %2530 = vmatprep.mubr.f32.mxu0 0.0
      %2531 = vmatmul.mubr.f32.gmra.mxu0 %v2334
      %v2532 = vpop.f32.mrf.mxu0
      %v2533 = vadd.f32 0.0, %v2532
      %v2534 = vpop.f32.mrf.mxu0
      %2535 = vmatprep.mubr.f32.mxu0 0.0
      %2536 = vmatmul.mubr.f32.gmra.mxu0 %v2337
      %v2537 = vpop.f32.mrf.mxu0
      %v2538 = vadd.f32 0.0, %v2537
      %v2539 = vpop.f32.mrf.mxu0
      %2540 = vmatprep.mubr.f32.mxu0 0.0
      %2541 = vmatmul.mubr.f32.gmra.mxu0 %v2340
      %v2542 = vpop.f32.mrf.mxu0
      %v2543 = vadd.f32 0.0, %v2542
      %v2544 = vpop.f32.mrf.mxu0
      %2545 = vmatprep.mubr.f32.mxu0 0.0
      %2546 = vmatmul.mubr.f32.gmra.mxu0 %v2343
      %v2547 = vpop.f32.mrf.mxu0
      %v2548 = vadd.f32 0.0, %v2547
      %v2549 = vpop.f32.mrf.mxu0
      %2550 = vmatprep.mubr.f32.mxu0 0.0
      %2551 = vmatmul.mubr.f32.gmra.mxu0 %v2346
      %v2552 = vpop.f32.mrf.mxu0
      %v2553 = vadd.f32 0.0, %v2552
      %v2554 = vpop.f32.mrf.mxu0
      %2555 = vmatprep.mubr.f32.mxu0 0.0
      %2556 = vmatmul.mubr.f32.gmra.mxu0 %v2349
      %v2557 = vpop.f32.mrf.mxu0
      %v2558 = vadd.f32 0.0, %v2557
      %v2559 = vpop.f32.mrf.mxu0
      %2560 = vmatprep.mubr.f32.mxu0 0.0
      %2561 = vmatmul.mubr.f32.gmra.mxu0 %v2352
      %v2562 = vpop.f32.mrf.mxu0
      %v2563 = vadd.f32 0.0, %v2562
      %v2564 = vpop.f32.mrf.mxu0
      %2565 = vmatprep.mubr.f32.mxu0 0.0
      %2566 = vmatmul.mubr.f32.gmra.mxu0 %v2355
      %v2567 = vpop.f32.mrf.mxu0
      %v2568 = vadd.f32 0.0, %v2567
      %v2569 = vpop.f32.mrf.mxu0
      %2570 = vmatprep.mubr.f32.mxu0 0.0
      %2571 = vmatmul.mubr.f32.gmra.mxu0 %v2358
      %v2572 = vpop.f32.mrf.mxu0
      %v2573 = vadd.f32 0.0, %v2572
      %v2574 = vpop.f32.mrf.mxu0
      %2575 = vmatprep.mubr.f32.mxu0 0.0
      %2576 = vmatmul.mubr.f32.gmra.mxu0 %v2361
      %v2577 = vpop.f32.mrf.mxu0
      %v2578 = vadd.f32 0.0, %v2577
      %v2579 = vpop.f32.mrf.mxu0
      %2580 = vmatprep.mubr.f32.mxu0 0.0
      %2581 = vmatmul.mubr.f32.gmra.mxu0 %v2364
      %v2582 = vpop.f32.mrf.mxu0
      %v2583 = vadd.f32 0.0, %v2582
      %v2584 = vpop.f32.mrf.mxu0
      %2585 = vmatprep.mubr.f32.mxu0 0.0
      %2586 = vmatmul.mubr.f32.gmra.mxu0 %v2367
      %v2587 = vpop.f32.mrf.mxu0
      %v2588 = vadd.f32 0.0, %v2587
      %v2589 = vpop.f32.mrf.mxu0
      %2590 = vmatprep.mubr.f32.mxu0 0.0
      %2591 = vmatmul.mubr.f32.gmra.mxu0 %v2370
      %v2592 = vpop.f32.mrf.mxu0
      %v2593 = vadd.f32 0.0, %v2592
      %v2594 = vpop.f32.mrf.mxu0
      %2595 = vmatprep.mubr.f32.mxu0 0.0
      %2596 = vmatmul.mubr.f32.gmra.mxu0 %v2373
      %v2597 = vpop.f32.mrf.mxu0
      %v2598 = vadd.f32 0.0, %v2597
      %v2599 = vpop.f32.mrf.mxu0
      %2600 = vmatprep.mubr.f32.mxu0 0.0
      %2601 = vmatmul.mubr.f32.gmra.mxu0 %v2376
      %v2602 = vpop.f32.mrf.mxu0
      %v2603 = vadd.f32 0.0, %v2602
      %v2604 = vpop.f32.mrf.mxu0
      %2605 = vdwg.mxu0
      %v2606 = vadd.f32 %v2184, %v2448
      %v2607 = vadd.f32 %v2185, %v2453
      %v2608 = vadd.f32 %v2186, %v2458
      %v2609 = vadd.f32 %v2187, %v2463
      %v2610 = vadd.f32 %v2188, %v2468
      %v2611 = vadd.f32 %v2189, %v2473
      %v2612 = vadd.f32 %v2190, %v2478
      %v2613 = vadd.f32 %v2191, %v2483
      %v2614 = vadd.f32 %v2192, %v2488
      %v2615 = vadd.f32 %v2193, %v2493
      %v2616 = vadd.f32 %v2194, %v2498
      %v2617 = vadd.f32 %v2195, %v2503
      %v2618 = vadd.f32 %v2196, %v2508
      %v2619 = vadd.f32 %v2197, %v2513
      %v2620 = vadd.f32 %v2198, %v2518
      %v2621 = vadd.f32 %v2199, %v2523
      %v2622 = vadd.f32 %v2200, %v2528
      %v2623 = vadd.f32 %v2201, %v2533
      %v2624 = vadd.f32 %v2202, %v2538
      %v2625 = vadd.f32 %v2203, %v2543
      %v2626 = vadd.f32 %v2204, %v2548
      %v2627 = vadd.f32 %v2205, %v2553
      %v2628 = vadd.f32 %v2206, %v2558
      %v2629 = vadd.f32 %v2207, %v2563
      %v2630 = vadd.f32 %v2208, %v2568
      %v2631 = vadd.f32 %v2209, %v2573
      %v2632 = vadd.f32 %v2210, %v2578
      %v2633 = vadd.f32 %v2211, %v2583
      %v2634 = vadd.f32 %v2212, %v2588
      %v2635 = vadd.f32 %v2213, %v2593
      %v2636 = vadd.f32 %v2214, %v2598
      %v2637 = vadd.f32 %v2215, %v2603
      %s2638 = scalar_lea.vmem %s4, 8
      %v2639 = vld [vmem:[%s2638] sm:$0xf]
      %v2641 = vsel %vm632, %v2248, 0
      %v2644 = vsel %vm632, %v2249, 0
      %v2647 = vsel %vm632, %v2250, 0
      %v2650 = vsel %vm632, %v2251, 0
      %v2653 = vsel %vm632, %v2252, 0
      %v2656 = vsel %vm632, %v2253, 0
      %v2659 = vsel %vm632, %v2254, 0
      %v2662 = vsel %vm632, %v2255, 0
      %v2665 = vsel %vm632, %v2256, 0
      %v2668 = vsel %vm632, %v2257, 0
      %v2671 = vsel %vm632, %v2258, 0
      %v2674 = vsel %vm632, %v2259, 0
      %v2677 = vsel %vm632, %v2260, 0
      %v2680 = vsel %vm632, %v2261, 0
      %v2683 = vsel %vm632, %v2262, 0
      %v2686 = vsel %vm632, %v2263, 0
      %v2689 = vsel %vm632, %v2264, 0
      %v2692 = vsel %vm632, %v2265, 0
      %v2695 = vsel %vm632, %v2266, 0
      %v2698 = vsel %vm632, %v2267, 0
      %v2701 = vsel %vm632, %v2268, 0
      %v2704 = vsel %vm632, %v2269, 0
      %v2707 = vsel %vm632, %v2270, 0
      %v2710 = vsel %vm632, %v2271, 0
      %v2713 = vsel %vm632, %v2272, 0
      %v2716 = vsel %vm632, %v2273, 0
      %v2719 = vsel %vm632, %v2274, 0
      %v2722 = vsel %vm632, %v2275, 0
      %v2725 = vsel %vm632, %v2276, 0
      %v2728 = vsel %vm632, %v2277, 0
      %v2731 = vsel %vm632, %v2278, 0
      %v2734 = vsel %vm632, %v2279, 0
      %v2737 = vsel %vm883, %v2639, 0
      %2739 = vmatprep.subr.mxu0 0.0
      %2740 = vmatpush1.msra.mxu0 0.0
      %2741 = vmatprep.subr.mxu0 0.0
      %2742 = vmatpush1.msra.mxu0 0.0
      %2743 = vmatprep.subr.mxu0 0.0
      %2744 = vmatpush1.msra.mxu0 0.0
      %2745 = vmatprep.subr.mxu0 0.0
      %2746 = vmatpush1.msra.mxu0 0.0
      %2747 = vmatprep.subr.mxu0 0.0
      %2748 = vmatpush1.msra.mxu0 0.0
      %2749 = vmatprep.subr.mxu0 0.0
      %2750 = vmatpush1.msra.mxu0 0.0
      %2751 = vmatprep.subr.mxu0 0.0
      %2752 = vmatpush1.msra.mxu0 0.0
      %2753 = vmatprep.subr.mxu0 0.0
      %2754 = vmatpush1.msra.mxu0 0.0
      %2755 = vmatprep.subr.mxu0 0.0
      %2756 = vmatpush1.msra.mxu0 0.0
      %2757 = vmatprep.subr.mxu0 0.0
      %2758 = vmatpush1.msra.mxu0 0.0
      %2759 = vmatprep.subr.mxu0 0.0
      %2760 = vmatpush1.msra.mxu0 0.0
      %2761 = vmatprep.subr.mxu0 0.0
      %2762 = vmatpush1.msra.mxu0 0.0
      %2763 = vmatprep.subr.mxu0 0.0
      %2764 = vmatpush1.msra.mxu0 0.0
      %2765 = vmatprep.subr.mxu0 0.0
      %2766 = vmatpush1.msra.mxu0 0.0
      %2767 = vmatprep.subr.mxu0 0.0
      %2768 = vmatpush1.msra.mxu0 0.0
      %2769 = vmatprep.subr.mxu0 0.0
      %2770 = vmatpush1.msra.mxu0 %v2737
      %2771 = vmatprep.subr.mxu0 0.0
      %2772 = vmatpush2.msra.mxu0 0.0
      %2773 = vmatprep.subr.mxu0 0.0
      %2774 = vmatpush2.msra.mxu0 0.0
      %2775 = vmatprep.subr.mxu0 0.0
      %2776 = vmatpush2.msra.mxu0 0.0
      %2777 = vmatprep.subr.mxu0 0.0
      %2778 = vmatpush2.msra.mxu0 0.0
      %2779 = vmatprep.subr.mxu0 0.0
      %2780 = vmatpush2.msra.mxu0 0.0
      %2781 = vmatprep.subr.mxu0 0.0
      %2782 = vmatpush2.msra.mxu0 0.0
      %2783 = vmatprep.subr.mxu0 0.0
      %2784 = vmatpush2.msra.mxu0 0.0
      %2785 = vmatprep.subr.mxu0 0.0
      %2786 = vmatpush2.msra.mxu0 0.0
      %2787 = vmatprep.subr.mxu0 0.0
      %2788 = vmatpush2.msra.mxu0 0.0
      %2789 = vmatprep.subr.mxu0 0.0
      %2790 = vmatpush2.msra.mxu0 0.0
      %2791 = vmatprep.subr.mxu0 0.0
      %2792 = vmatpush2.msra.mxu0 0.0
      %2793 = vmatprep.subr.mxu0 0.0
      %2794 = vmatpush2.msra.mxu0 0.0
      %2795 = vmatprep.subr.mxu0 0.0
      %2796 = vmatpush2.msra.mxu0 0.0
      %2797 = vmatprep.subr.mxu0 0.0
      %2798 = vmatpush2.msra.mxu0 0.0
      %2799 = vmatprep.subr.mxu0 0.0
      %2800 = vmatpush2.msra.mxu0 0.0
      %2801 = vmatprep.subr.mxu0 0.0
      %2802 = vmatpush2.msra.mxu0 0.0
      %2803 = vmatprep.mubr.f32.mxu0 0.0
      %2804 = vmatmul.mubr.f32.gmra.mxu0 %v2641
      %v2805 = vpop.f32.mrf.mxu0
      %v2806 = vadd.f32 0.0, %v2805
      %v2807 = vpop.f32.mrf.mxu0
      %2808 = vmatprep.mubr.f32.mxu0 0.0
      %2809 = vmatmul.mubr.f32.gmra.mxu0 %v2644
      %v2810 = vpop.f32.mrf.mxu0
      %v2811 = vadd.f32 0.0, %v2810
      %v2812 = vpop.f32.mrf.mxu0
      %2813 = vmatprep.mubr.f32.mxu0 0.0
      %2814 = vmatmul.mubr.f32.gmra.mxu0 %v2647
      %v2815 = vpop.f32.mrf.mxu0
      %v2816 = vadd.f32 0.0, %v2815
      %v2817 = vpop.f32.mrf.mxu0
      %2818 = vmatprep.mubr.f32.mxu0 0.0
      %2819 = vmatmul.mubr.f32.gmra.mxu0 %v2650
      %v2820 = vpop.f32.mrf.mxu0
      %v2821 = vadd.f32 0.0, %v2820
      %v2822 = vpop.f32.mrf.mxu0
      %2823 = vmatprep.mubr.f32.mxu0 0.0
      %2824 = vmatmul.mubr.f32.gmra.mxu0 %v2653
      %v2825 = vpop.f32.mrf.mxu0
      %v2826 = vadd.f32 0.0, %v2825
      %v2827 = vpop.f32.mrf.mxu0
      %2828 = vmatprep.mubr.f32.mxu0 0.0
      %2829 = vmatmul.mubr.f32.gmra.mxu0 %v2656
      %v2830 = vpop.f32.mrf.mxu0
      %v2831 = vadd.f32 0.0, %v2830
      %v2832 = vpop.f32.mrf.mxu0
      %2833 = vmatprep.mubr.f32.mxu0 0.0
      %2834 = vmatmul.mubr.f32.gmra.mxu0 %v2659
      %v2835 = vpop.f32.mrf.mxu0
      %v2836 = vadd.f32 0.0, %v2835
      %v2837 = vpop.f32.mrf.mxu0
      %2838 = vmatprep.mubr.f32.mxu0 0.0
      %2839 = vmatmul.mubr.f32.gmra.mxu0 %v2662
      %v2840 = vpop.f32.mrf.mxu0
      %v2841 = vadd.f32 0.0, %v2840
      %v2842 = vpop.f32.mrf.mxu0
      %2843 = vmatprep.mubr.f32.mxu0 0.0
      %2844 = vmatmul.mubr.f32.gmra.mxu0 %v2665
      %v2845 = vpop.f32.mrf.mxu0
      %v2846 = vadd.f32 0.0, %v2845
      %v2847 = vpop.f32.mrf.mxu0
      %2848 = vmatprep.mubr.f32.mxu0 0.0
      %2849 = vmatmul.mubr.f32.gmra.mxu0 %v2668
      %v2850 = vpop.f32.mrf.mxu0
      %v2851 = vadd.f32 0.0, %v2850
      %v2852 = vpop.f32.mrf.mxu0
      %2853 = vmatprep.mubr.f32.mxu0 0.0
      %2854 = vmatmul.mubr.f32.gmra.mxu0 %v2671
      %v2855 = vpop.f32.mrf.mxu0
      %v2856 = vadd.f32 0.0, %v2855
      %v2857 = vpop.f32.mrf.mxu0
      %2858 = vmatprep.mubr.f32.mxu0 0.0
      %2859 = vmatmul.mubr.f32.gmra.mxu0 %v2674
      %v2860 = vpop.f32.mrf.mxu0
      %v2861 = vadd.f32 0.0, %v2860
      %v2862 = vpop.f32.mrf.mxu0
      %2863 = vmatprep.mubr.f32.mxu0 0.0
      %2864 = vmatmul.mubr.f32.gmra.mxu0 %v2677
      %v2865 = vpop.f32.mrf.mxu0
      %v2866 = vadd.f32 0.0, %v2865
      %v2867 = vpop.f32.mrf.mxu0
      %2868 = vmatprep.mubr.f32.mxu0 0.0
      %2869 = vmatmul.mubr.f32.gmra.mxu0 %v2680
      %v2870 = vpop.f32.mrf.mxu0
      %v2871 = vadd.f32 0.0, %v2870
      %v2872 = vpop.f32.mrf.mxu0
      %2873 = vmatprep.mubr.f32.mxu0 0.0
      %2874 = vmatmul.mubr.f32.gmra.mxu0 %v2683
      %v2875 = vpop.f32.mrf.mxu0
      %v2876 = vadd.f32 0.0, %v2875
      %v2877 = vpop.f32.mrf.mxu0
      %2878 = vmatprep.mubr.f32.mxu0 0.0
      %2879 = vmatmul.mubr.f32.gmra.mxu0 %v2686
      %v2880 = vpop.f32.mrf.mxu0
      %v2881 = vadd.f32 0.0, %v2880
      %v2882 = vpop.f32.mrf.mxu0
      %2883 = vmatprep.mubr.f32.mxu0 0.0
      %2884 = vmatmul.mubr.f32.gmra.mxu0 %v2689
      %v2885 = vpop.f32.mrf.mxu0
      %v2886 = vadd.f32 0.0, %v2885
      %v2887 = vpop.f32.mrf.mxu0
      %2888 = vmatprep.mubr.f32.mxu0 0.0
      %2889 = vmatmul.mubr.f32.gmra.mxu0 %v2692
      %v2890 = vpop.f32.mrf.mxu0
      %v2891 = vadd.f32 0.0, %v2890
      %v2892 = vpop.f32.mrf.mxu0
      %2893 = vmatprep.mubr.f32.mxu0 0.0
      %2894 = vmatmul.mubr.f32.gmra.mxu0 %v2695
      %v2895 = vpop.f32.mrf.mxu0
      %v2896 = vadd.f32 0.0, %v2895
      %v2897 = vpop.f32.mrf.mxu0
      %2898 = vmatprep.mubr.f32.mxu0 0.0
      %2899 = vmatmul.mubr.f32.gmra.mxu0 %v2698
      %v2900 = vpop.f32.mrf.mxu0
      %v2901 = vadd.f32 0.0, %v2900
      %v2902 = vpop.f32.mrf.mxu0
      %2903 = vmatprep.mubr.f32.mxu0 0.0
      %2904 = vmatmul.mubr.f32.gmra.mxu0 %v2701
      %v2905 = vpop.f32.mrf.mxu0
      %v2906 = vadd.f32 0.0, %v2905
      %v2907 = vpop.f32.mrf.mxu0
      %2908 = vmatprep.mubr.f32.mxu0 0.0
      %2909 = vmatmul.mubr.f32.gmra.mxu0 %v2704
      %v2910 = vpop.f32.mrf.mxu0
      %v2911 = vadd.f32 0.0, %v2910
      %v2912 = vpop.f32.mrf.mxu0
      %2913 = vmatprep.mubr.f32.mxu0 0.0
      %2914 = vmatmul.mubr.f32.gmra.mxu0 %v2707
      %v2915 = vpop.f32.mrf.mxu0
      %v2916 = vadd.f32 0.0, %v2915
      %v2917 = vpop.f32.mrf.mxu0
      %2918 = vmatprep.mubr.f32.mxu0 0.0
      %2919 = vmatmul.mubr.f32.gmra.mxu0 %v2710
      %v2920 = vpop.f32.mrf.mxu0
      %v2921 = vadd.f32 0.0, %v2920
      %v2922 = vpop.f32.mrf.mxu0
      %2923 = vmatprep.mubr.f32.mxu0 0.0
      %2924 = vmatmul.mubr.f32.gmra.mxu0 %v2713
      %v2925 = vpop.f32.mrf.mxu0
      %v2926 = vadd.f32 0.0, %v2925
      %v2927 = vpop.f32.mrf.mxu0
      %2928 = vmatprep.mubr.f32.mxu0 0.0
      %2929 = vmatmul.mubr.f32.gmra.mxu0 %v2716
      %v2930 = vpop.f32.mrf.mxu0
      %v2931 = vadd.f32 0.0, %v2930
      %v2932 = vpop.f32.mrf.mxu0
      %2933 = vmatprep.mubr.f32.mxu0 0.0
      %2934 = vmatmul.mubr.f32.gmra.mxu0 %v2719
      %v2935 = vpop.f32.mrf.mxu0
      %v2936 = vadd.f32 0.0, %v2935
      %v2937 = vpop.f32.mrf.mxu0
      %2938 = vmatprep.mubr.f32.mxu0 0.0
      %2939 = vmatmul.mubr.f32.gmra.mxu0 %v2722
      %v2940 = vpop.f32.mrf.mxu0
      %v2941 = vadd.f32 0.0, %v2940
      %v2942 = vpop.f32.mrf.mxu0
      %2943 = vmatprep.mubr.f32.mxu0 0.0
      %2944 = vmatmul.mubr.f32.gmra.mxu0 %v2725
      %v2945 = vpop.f32.mrf.mxu0
      %v2946 = vadd.f32 0.0, %v2945
      %v2947 = vpop.f32.mrf.mxu0
      %2948 = vmatprep.mubr.f32.mxu0 0.0
      %2949 = vmatmul.mubr.f32.gmra.mxu0 %v2728
      %v2950 = vpop.f32.mrf.mxu0
      %v2951 = vadd.f32 0.0, %v2950
      %v2952 = vpop.f32.mrf.mxu0
      %2953 = vmatprep.mubr.f32.mxu0 0.0
      %2954 = vmatmul.mubr.f32.gmra.mxu0 %v2731
      %v2955 = vpop.f32.mrf.mxu0
      %v2956 = vadd.f32 0.0, %v2955
      %v2957 = vpop.f32.mrf.mxu0
      %2958 = vmatprep.mubr.f32.mxu0 0.0
      %2959 = vmatmul.mubr.f32.gmra.mxu0 %v2734
      %v2960 = vpop.f32.mrf.mxu0
      %v2961 = vadd.f32 0.0, %v2960
      %v2962 = vpop.f32.mrf.mxu0
      %2963 = vdwg.mxu0
      %v2964 = vadd.f32 %v2606, %v2806
      %v2965 = vadd.f32 %v2607, %v2811
      %v2966 = vadd.f32 %v2608, %v2816
      %v2967 = vadd.f32 %v2609, %v2821
      %v2968 = vadd.f32 %v2610, %v2826
      %v2969 = vadd.f32 %v2611, %v2831
      %v2970 = vadd.f32 %v2612, %v2836
      %v2971 = vadd.f32 %v2613, %v2841
      %v2972 = vadd.f32 %v2614, %v2846
      %v2973 = vadd.f32 %v2615, %v2851
      %v2974 = vadd.f32 %v2616, %v2856
      %v2975 = vadd.f32 %v2617, %v2861
      %v2976 = vadd.f32 %v2618, %v2866
      %v2977 = vadd.f32 %v2619, %v2871
      %v2978 = vadd.f32 %v2620, %v2876
      %v2979 = vadd.f32 %v2621, %v2881
      %v2980 = vadd.f32 %v2622, %v2886
      %v2981 = vadd.f32 %v2623, %v2891
      %v2982 = vadd.f32 %v2624, %v2896
      %v2983 = vadd.f32 %v2625, %v2901
      %v2984 = vadd.f32 %v2626, %v2906
      %v2985 = vadd.f32 %v2627, %v2911
      %v2986 = vadd.f32 %v2628, %v2916
      %v2987 = vadd.f32 %v2629, %v2921
      %v2988 = vadd.f32 %v2630, %v2926
      %v2989 = vadd.f32 %v2631, %v2931
      %v2990 = vadd.f32 %v2632, %v2936
      %v2991 = vadd.f32 %v2633, %v2941
      %v2992 = vadd.f32 %v2634, %v2946
      %v2993 = vadd.f32 %v2635, %v2951
      %v2994 = vadd.f32 %v2636, %v2956
      %v2995 = vadd.f32 %v2637, %v2961
      %s2996 = scalar_lea.vmem %s261, 24
      %v2997 = vld [vmem:[%s2996] sm:$0xff]
      %v2998 = vld [vmem:[%s2996 + $0x8] sm:$0xff]
      %v2999 = vld [vmem:[%s2996 + $0x18] sm:$0xff]
      %v3000 = vld [vmem:[%s2996 + $0x20] sm:$0xff]
      %v3001 = vld [vmem:[%s2996 + $0x30] sm:$0xff]
      %v3002 = vld [vmem:[%s2996 + $0x38] sm:$0xff]
      %v3003 = vld [vmem:[%s2996 + $0x48] sm:$0xff]
      %v3004 = vld [vmem:[%s2996 + $0x50] sm:$0xff]
      %v3005 = vld [vmem:[%s2996 + $0x60] sm:$0xff]
      %v3006 = vld [vmem:[%s2996 + $0x68] sm:$0xff]
      %v3007 = vld [vmem:[%s2996 + $0x78] sm:$0xff]
      %v3008 = vld [vmem:[%s2996 + $0x80] sm:$0xff]
      %v3009 = vld [vmem:[%s2996 + $0x90] sm:$0xff]
      %v3010 = vld [vmem:[%s2996 + $0x98] sm:$0xff]
      %v3011 = vld [vmem:[%s2996 + $0xa8] sm:$0xff]
      %v3012 = vld [vmem:[%s2996 + $0xb0] sm:$0xff]
      %v3013 = vld [vmem:[%s2996 + $0xc0] sm:$0xff]
      %v3014 = vld [vmem:[%s2996 + $0xc8] sm:$0xff]
      %v3015 = vld [vmem:[%s2996 + $0xd8] sm:$0xff]
      %v3016 = vld [vmem:[%s2996 + $0xe0] sm:$0xff]
      %v3017 = vld [vmem:[%s2996 + $0xf0] sm:$0xff]
      %v3018 = vld [vmem:[%s2996 + $0xf8] sm:$0xff]
      %v3019 = vld [vmem:[%s2996 + $0x108] sm:$0xff]
      %v3020 = vld [vmem:[%s2996 + $0x110] sm:$0xff]
      %v3021 = vld [vmem:[%s2996 + $0x120] sm:$0xff]
      %v3022 = vld [vmem:[%s2996 + $0x128] sm:$0xff]
      %v3023 = vld [vmem:[%s2996 + $0x138] sm:$0xff]
      %v3024 = vld [vmem:[%s2996 + $0x140] sm:$0xff]
      %v3025 = vld [vmem:[%s2996 + $0x150] sm:$0xff]
      %v3026 = vld [vmem:[%s2996 + $0x158] sm:$0xff]
      %v3027 = vld [vmem:[%s2996 + $0x168] sm:$0xff]
      %v3028 = vld [vmem:[%s2996 + $0x170] sm:$0xff]
      %v3029 = vld [vmem:[%s688] sm:$0xff]
      %v3030 = vld [vmem:[%s688 + $0x8] sm:$0xff]
      %v3031 = vld [vmem:[%s688 + $0x18] sm:$0xff]
      %v3032 = vld [vmem:[%s688 + $0x20] sm:$0xff]
      %v3033 = vld [vmem:[%s688 + $0x30] sm:$0xff]
      %v3034 = vld [vmem:[%s688 + $0x38] sm:$0xff]
      %v3035 = vld [vmem:[%s688 + $0x48] sm:$0xff]
      %v3036 = vld [vmem:[%s688 + $0x50] sm:$0xff]
      %v3037 = vld [vmem:[%s688 + $0x60] sm:$0xff]
      %v3038 = vld [vmem:[%s688 + $0x68] sm:$0xff]
      %v3039 = vld [vmem:[%s688 + $0x78] sm:$0xff]
      %v3040 = vld [vmem:[%s688 + $0x80] sm:$0xff]
      %v3041 = vld [vmem:[%s688 + $0x90] sm:$0xff]
      %v3042 = vld [vmem:[%s688 + $0x98] sm:$0xff]
      %v3043 = vld [vmem:[%s688 + $0xa8] sm:$0xff]
      %v3044 = vld [vmem:[%s688 + $0xb0] sm:$0xff]
      %v3045 = vld [vmem:[%s688 + $0xc0] sm:$0xff]
      %v3046 = vld [vmem:[%s688 + $0xc8] sm:$0xff]
      %v3047 = vld [vmem:[%s688 + $0xd8] sm:$0xff]
      %v3048 = vld [vmem:[%s688 + $0xe0] sm:$0xff]
      %v3049 = vld [vmem:[%s688 + $0xf0] sm:$0xff]
      %v3050 = vld [vmem:[%s688 + $0xf8] sm:$0xff]
      %v3051 = vld [vmem:[%s688 + $0x108] sm:$0xff]
      %v3052 = vld [vmem:[%s688 + $0x110] sm:$0xff]
      %v3053 = vld [vmem:[%s688 + $0x120] sm:$0xff]
      %v3054 = vld [vmem:[%s688 + $0x128] sm:$0xff]
      %v3055 = vld [vmem:[%s688 + $0x138] sm:$0xff]
      %v3056 = vld [vmem:[%s688 + $0x140] sm:$0xff]
      %v3057 = vld [vmem:[%s688 + $0x150] sm:$0xff]
      %v3058 = vld [vmem:[%s688 + $0x158] sm:$0xff]
      %v3059 = vld [vmem:[%s688 + $0x168] sm:$0xff]
      %v3060 = vld [vmem:[%s688 + $0x170] sm:$0xff]
      %s3061 = scalar_lea.vmem %s3, 12
      %v3062 = vld [vmem:[%s3061] sm:$0xf]
      %v3064 = vsel %vm632, %v2997, 0
      %v3067 = vsel %vm632, %v2998, 0
      %v3070 = vsel %vm632, %v2999, 0
      %v3073 = vsel %vm632, %v3000, 0
      %v3076 = vsel %vm632, %v3001, 0
      %v3079 = vsel %vm632, %v3002, 0
      %v3082 = vsel %vm632, %v3003, 0
      %v3085 = vsel %vm632, %v3004, 0
      %v3088 = vsel %vm632, %v3005, 0
      %v3091 = vsel %vm632, %v3006, 0
      %v3094 = vsel %vm632, %v3007, 0
      %v3097 = vsel %vm632, %v3008, 0
      %v3100 = vsel %vm632, %v3009, 0
      %v3103 = vsel %vm632, %v3010, 0
      %v3106 = vsel %vm632, %v3011, 0
      %v3109 = vsel %vm632, %v3012, 0
      %v3112 = vsel %vm632, %v3013, 0
      %v3115 = vsel %vm632, %v3014, 0
      %v3118 = vsel %vm632, %v3015, 0
      %v3121 = vsel %vm632, %v3016, 0
      %v3124 = vsel %vm632, %v3017, 0
      %v3127 = vsel %vm632, %v3018, 0
      %v3130 = vsel %vm632, %v3019, 0
      %v3133 = vsel %vm632, %v3020, 0
      %v3136 = vsel %vm632, %v3021, 0
      %v3139 = vsel %vm632, %v3022, 0
      %v3142 = vsel %vm632, %v3023, 0
      %v3145 = vsel %vm632, %v3024, 0
      %v3148 = vsel %vm632, %v3025, 0
      %v3151 = vsel %vm632, %v3026, 0
      %v3154 = vsel %vm632, %v3027, 0
      %v3157 = vsel %vm632, %v3028, 0
      %v3160 = vsel %vm883, %v3062, 0
      %3162 = vmatprep.subr.mxu0 0.0
      %3163 = vmatpush1.msra.mxu0 0.0
      %3164 = vmatprep.subr.mxu0 0.0
      %3165 = vmatpush1.msra.mxu0 0.0
      %3166 = vmatprep.subr.mxu0 0.0
      %3167 = vmatpush1.msra.mxu0 0.0
      %3168 = vmatprep.subr.mxu0 0.0
      %3169 = vmatpush1.msra.mxu0 0.0
      %3170 = vmatprep.subr.mxu0 0.0
      %3171 = vmatpush1.msra.mxu0 0.0
      %3172 = vmatprep.subr.mxu0 0.0
      %3173 = vmatpush1.msra.mxu0 0.0
      %3174 = vmatprep.subr.mxu0 0.0
      %3175 = vmatpush1.msra.mxu0 0.0
      %3176 = vmatprep.subr.mxu0 0.0
      %3177 = vmatpush1.msra.mxu0 0.0
      %3178 = vmatprep.subr.mxu0 0.0
      %3179 = vmatpush1.msra.mxu0 0.0
      %3180 = vmatprep.subr.mxu0 0.0
      %3181 = vmatpush1.msra.mxu0 0.0
      %3182 = vmatprep.subr.mxu0 0.0
      %3183 = vmatpush1.msra.mxu0 0.0
      %3184 = vmatprep.subr.mxu0 0.0
      %3185 = vmatpush1.msra.mxu0 0.0
      %3186 = vmatprep.subr.mxu0 0.0
      %3187 = vmatpush1.msra.mxu0 0.0
      %3188 = vmatprep.subr.mxu0 0.0
      %3189 = vmatpush1.msra.mxu0 0.0
      %3190 = vmatprep.subr.mxu0 0.0
      %3191 = vmatpush1.msra.mxu0 0.0
      %3192 = vmatprep.subr.mxu0 0.0
      %3193 = vmatpush1.msra.mxu0 %v3160
      %3194 = vmatprep.subr.mxu0 0.0
      %3195 = vmatpush2.msra.mxu0 0.0
      %3196 = vmatprep.subr.mxu0 0.0
      %3197 = vmatpush2.msra.mxu0 0.0
      %3198 = vmatprep.subr.mxu0 0.0
      %3199 = vmatpush2.msra.mxu0 0.0
      %3200 = vmatprep.subr.mxu0 0.0
      %3201 = vmatpush2.msra.mxu0 0.0
      %3202 = vmatprep.subr.mxu0 0.0
      %3203 = vmatpush2.msra.mxu0 0.0
      %3204 = vmatprep.subr.mxu0 0.0
      %3205 = vmatpush2.msra.mxu0 0.0
      %3206 = vmatprep.subr.mxu0 0.0
      %3207 = vmatpush2.msra.mxu0 0.0
      %3208 = vmatprep.subr.mxu0 0.0
      %3209 = vmatpush2.msra.mxu0 0.0
      %3210 = vmatprep.subr.mxu0 0.0
      %3211 = vmatpush2.msra.mxu0 0.0
      %3212 = vmatprep.subr.mxu0 0.0
      %3213 = vmatpush2.msra.mxu0 0.0
      %3214 = vmatprep.subr.mxu0 0.0
      %3215 = vmatpush2.msra.mxu0 0.0
      %3216 = vmatprep.subr.mxu0 0.0
      %3217 = vmatpush2.msra.mxu0 0.0
      %3218 = vmatprep.subr.mxu0 0.0
      %3219 = vmatpush2.msra.mxu0 0.0
      %3220 = vmatprep.subr.mxu0 0.0
      %3221 = vmatpush2.msra.mxu0 0.0
      %3222 = vmatprep.subr.mxu0 0.0
      %3223 = vmatpush2.msra.mxu0 0.0
      %3224 = vmatprep.subr.mxu0 0.0
      %3225 = vmatpush2.msra.mxu0 0.0
      %3226 = vmatprep.mubr.f32.mxu0 0.0
      %3227 = vmatmul.mubr.f32.gmra.mxu0 %v3064
      %v3228 = vpop.f32.mrf.mxu0
      %v3229 = vadd.f32 0.0, %v3228
      %v3230 = vpop.f32.mrf.mxu0
      %3231 = vmatprep.mubr.f32.mxu0 0.0
      %3232 = vmatmul.mubr.f32.gmra.mxu0 %v3067
      %v3233 = vpop.f32.mrf.mxu0
      %v3234 = vadd.f32 0.0, %v3233
      %v3235 = vpop.f32.mrf.mxu0
      %3236 = vmatprep.mubr.f32.mxu0 0.0
      %3237 = vmatmul.mubr.f32.gmra.mxu0 %v3070
      %v3238 = vpop.f32.mrf.mxu0
      %v3239 = vadd.f32 0.0, %v3238
      %v3240 = vpop.f32.mrf.mxu0
      %3241 = vmatprep.mubr.f32.mxu0 0.0
      %3242 = vmatmul.mubr.f32.gmra.mxu0 %v3073
      %v3243 = vpop.f32.mrf.mxu0
      %v3244 = vadd.f32 0.0, %v3243
      %v3245 = vpop.f32.mrf.mxu0
      %3246 = vmatprep.mubr.f32.mxu0 0.0
      %3247 = vmatmul.mubr.f32.gmra.mxu0 %v3076
      %v3248 = vpop.f32.mrf.mxu0
      %v3249 = vadd.f32 0.0, %v3248
      %v3250 = vpop.f32.mrf.mxu0
      %3251 = vmatprep.mubr.f32.mxu0 0.0
      %3252 = vmatmul.mubr.f32.gmra.mxu0 %v3079
      %v3253 = vpop.f32.mrf.mxu0
      %v3254 = vadd.f32 0.0, %v3253
      %v3255 = vpop.f32.mrf.mxu0
      %3256 = vmatprep.mubr.f32.mxu0 0.0
      %3257 = vmatmul.mubr.f32.gmra.mxu0 %v3082
      %v3258 = vpop.f32.mrf.mxu0
      %v3259 = vadd.f32 0.0, %v3258
      %v3260 = vpop.f32.mrf.mxu0
      %3261 = vmatprep.mubr.f32.mxu0 0.0
      %3262 = vmatmul.mubr.f32.gmra.mxu0 %v3085
      %v3263 = vpop.f32.mrf.mxu0
      %v3264 = vadd.f32 0.0, %v3263
      %v3265 = vpop.f32.mrf.mxu0
      %3266 = vmatprep.mubr.f32.mxu0 0.0
      %3267 = vmatmul.mubr.f32.gmra.mxu0 %v3088
      %v3268 = vpop.f32.mrf.mxu0
      %v3269 = vadd.f32 0.0, %v3268
      %v3270 = vpop.f32.mrf.mxu0
      %3271 = vmatprep.mubr.f32.mxu0 0.0
      %3272 = vmatmul.mubr.f32.gmra.mxu0 %v3091
      %v3273 = vpop.f32.mrf.mxu0
      %v3274 = vadd.f32 0.0, %v3273
      %v3275 = vpop.f32.mrf.mxu0
      %3276 = vmatprep.mubr.f32.mxu0 0.0
      %3277 = vmatmul.mubr.f32.gmra.mxu0 %v3094
      %v3278 = vpop.f32.mrf.mxu0
      %v3279 = vadd.f32 0.0, %v3278
      %v3280 = vpop.f32.mrf.mxu0
      %3281 = vmatprep.mubr.f32.mxu0 0.0
      %3282 = vmatmul.mubr.f32.gmra.mxu0 %v3097
      %v3283 = vpop.f32.mrf.mxu0
      %v3284 = vadd.f32 0.0, %v3283
      %v3285 = vpop.f32.mrf.mxu0
      %3286 = vmatprep.mubr.f32.mxu0 0.0
      %3287 = vmatmul.mubr.f32.gmra.mxu0 %v3100
      %v3288 = vpop.f32.mrf.mxu0
      %v3289 = vadd.f32 0.0, %v3288
      %v3290 = vpop.f32.mrf.mxu0
      %3291 = vmatprep.mubr.f32.mxu0 0.0
      %3292 = vmatmul.mubr.f32.gmra.mxu0 %v3103
      %v3293 = vpop.f32.mrf.mxu0
      %v3294 = vadd.f32 0.0, %v3293
      %v3295 = vpop.f32.mrf.mxu0
      %3296 = vmatprep.mubr.f32.mxu0 0.0
      %3297 = vmatmul.mubr.f32.gmra.mxu0 %v3106
      %v3298 = vpop.f32.mrf.mxu0
      %v3299 = vadd.f32 0.0, %v3298
      %v3300 = vpop.f32.mrf.mxu0
      %3301 = vmatprep.mubr.f32.mxu0 0.0
      %3302 = vmatmul.mubr.f32.gmra.mxu0 %v3109
      %v3303 = vpop.f32.mrf.mxu0
      %v3304 = vadd.f32 0.0, %v3303
      %v3305 = vpop.f32.mrf.mxu0
      %3306 = vmatprep.mubr.f32.mxu0 0.0
      %3307 = vmatmul.mubr.f32.gmra.mxu0 %v3112
      %v3308 = vpop.f32.mrf.mxu0
      %v3309 = vadd.f32 0.0, %v3308
      %v3310 = vpop.f32.mrf.mxu0
      %3311 = vmatprep.mubr.f32.mxu0 0.0
      %3312 = vmatmul.mubr.f32.gmra.mxu0 %v3115
      %v3313 = vpop.f32.mrf.mxu0
      %v3314 = vadd.f32 0.0, %v3313
      %v3315 = vpop.f32.mrf.mxu0
      %3316 = vmatprep.mubr.f32.mxu0 0.0
      %3317 = vmatmul.mubr.f32.gmra.mxu0 %v3118
      %v3318 = vpop.f32.mrf.mxu0
      %v3319 = vadd.f32 0.0, %v3318
      %v3320 = vpop.f32.mrf.mxu0
      %3321 = vmatprep.mubr.f32.mxu0 0.0
      %3322 = vmatmul.mubr.f32.gmra.mxu0 %v3121
      %v3323 = vpop.f32.mrf.mxu0
      %v3324 = vadd.f32 0.0, %v3323
      %v3325 = vpop.f32.mrf.mxu0
      %3326 = vmatprep.mubr.f32.mxu0 0.0
      %3327 = vmatmul.mubr.f32.gmra.mxu0 %v3124
      %v3328 = vpop.f32.mrf.mxu0
      %v3329 = vadd.f32 0.0, %v3328
      %v3330 = vpop.f32.mrf.mxu0
      %3331 = vmatprep.mubr.f32.mxu0 0.0
      %3332 = vmatmul.mubr.f32.gmra.mxu0 %v3127
      %v3333 = vpop.f32.mrf.mxu0
      %v3334 = vadd.f32 0.0, %v3333
      %v3335 = vpop.f32.mrf.mxu0
      %3336 = vmatprep.mubr.f32.mxu0 0.0
      %3337 = vmatmul.mubr.f32.gmra.mxu0 %v3130
      %v3338 = vpop.f32.mrf.mxu0
      %v3339 = vadd.f32 0.0, %v3338
      %v3340 = vpop.f32.mrf.mxu0
      %3341 = vmatprep.mubr.f32.mxu0 0.0
      %3342 = vmatmul.mubr.f32.gmra.mxu0 %v3133
      %v3343 = vpop.f32.mrf.mxu0
      %v3344 = vadd.f32 0.0, %v3343
      %v3345 = vpop.f32.mrf.mxu0
      %3346 = vmatprep.mubr.f32.mxu0 0.0
      %3347 = vmatmul.mubr.f32.gmra.mxu0 %v3136
      %v3348 = vpop.f32.mrf.mxu0
      %v3349 = vadd.f32 0.0, %v3348
      %v3350 = vpop.f32.mrf.mxu0
      %3351 = vmatprep.mubr.f32.mxu0 0.0
      %3352 = vmatmul.mubr.f32.gmra.mxu0 %v3139
      %v3353 = vpop.f32.mrf.mxu0
      %v3354 = vadd.f32 0.0, %v3353
      %v3355 = vpop.f32.mrf.mxu0
      %3356 = vmatprep.mubr.f32.mxu0 0.0
      %3357 = vmatmul.mubr.f32.gmra.mxu0 %v3142
      %v3358 = vpop.f32.mrf.mxu0
      %v3359 = vadd.f32 0.0, %v3358
      %v3360 = vpop.f32.mrf.mxu0
      %3361 = vmatprep.mubr.f32.mxu0 0.0
      %3362 = vmatmul.mubr.f32.gmra.mxu0 %v3145
      %v3363 = vpop.f32.mrf.mxu0
      %v3364 = vadd.f32 0.0, %v3363
      %v3365 = vpop.f32.mrf.mxu0
      %3366 = vmatprep.mubr.f32.mxu0 0.0
      %3367 = vmatmul.mubr.f32.gmra.mxu0 %v3148
      %v3368 = vpop.f32.mrf.mxu0
      %v3369 = vadd.f32 0.0, %v3368
      %v3370 = vpop.f32.mrf.mxu0
      %3371 = vmatprep.mubr.f32.mxu0 0.0
      %3372 = vmatmul.mubr.f32.gmra.mxu0 %v3151
      %v3373 = vpop.f32.mrf.mxu0
      %v3374 = vadd.f32 0.0, %v3373
      %v3375 = vpop.f32.mrf.mxu0
      %3376 = vmatprep.mubr.f32.mxu0 0.0
      %3377 = vmatmul.mubr.f32.gmra.mxu0 %v3154
      %v3378 = vpop.f32.mrf.mxu0
      %v3379 = vadd.f32 0.0, %v3378
      %v3380 = vpop.f32.mrf.mxu0
      %3381 = vmatprep.mubr.f32.mxu0 0.0
      %3382 = vmatmul.mubr.f32.gmra.mxu0 %v3157
      %v3383 = vpop.f32.mrf.mxu0
      %v3384 = vadd.f32 0.0, %v3383
      %v3385 = vpop.f32.mrf.mxu0
      %3386 = vdwg.mxu0
      %v3387 = vadd.f32 %v2964, %v3229
      %v3388 = vadd.f32 %v2965, %v3234
      %v3389 = vadd.f32 %v2966, %v3239
      %v3390 = vadd.f32 %v2967, %v3244
      %v3391 = vadd.f32 %v2968, %v3249
      %v3392 = vadd.f32 %v2969, %v3254
      %v3393 = vadd.f32 %v2970, %v3259
      %v3394 = vadd.f32 %v2971, %v3264
      %v3395 = vadd.f32 %v2972, %v3269
      %v3396 = vadd.f32 %v2973, %v3274
      %v3397 = vadd.f32 %v2974, %v3279
      %v3398 = vadd.f32 %v2975, %v3284
      %v3399 = vadd.f32 %v2976, %v3289
      %v3400 = vadd.f32 %v2977, %v3294
      %v3401 = vadd.f32 %v2978, %v3299
      %v3402 = vadd.f32 %v2979, %v3304
      %v3403 = vadd.f32 %v2980, %v3309
      %v3404 = vadd.f32 %v2981, %v3314
      %v3405 = vadd.f32 %v2982, %v3319
      %v3406 = vadd.f32 %v2983, %v3324
      %v3407 = vadd.f32 %v2984, %v3329
      %v3408 = vadd.f32 %v2985, %v3334
      %v3409 = vadd.f32 %v2986, %v3339
      %v3410 = vadd.f32 %v2987, %v3344
      %v3411 = vadd.f32 %v2988, %v3349
      %v3412 = vadd.f32 %v2989, %v3354
      %v3413 = vadd.f32 %v2990, %v3359
      %v3414 = vadd.f32 %v2991, %v3364
      %v3415 = vadd.f32 %v2992, %v3369
      %v3416 = vadd.f32 %v2993, %v3374
      %v3417 = vadd.f32 %v2994, %v3379
      %v3418 = vadd.f32 %v2995, %v3384
      %s3419 = scalar_lea.vmem %s4, 12
      %v3420 = vld [vmem:[%s3419] sm:$0xf]
      %v3422 = vsel %vm632, %v3029, 0
      %v3425 = vsel %vm632, %v3030, 0
      %v3428 = vsel %vm632, %v3031, 0
      %v3431 = vsel %vm632, %v3032, 0
      %v3434 = vsel %vm632, %v3033, 0
      %v3437 = vsel %vm632, %v3034, 0
      %v3440 = vsel %vm632, %v3035, 0
      %v3443 = vsel %vm632, %v3036, 0
      %v3446 = vsel %vm632, %v3037, 0
      %v3449 = vsel %vm632, %v3038, 0
      %v3452 = vsel %vm632, %v3039, 0
      %v3455 = vsel %vm632, %v3040, 0
      %v3458 = vsel %vm632, %v3041, 0
      %v3461 = vsel %vm632, %v3042, 0
      %v3464 = vsel %vm632, %v3043, 0
      %v3467 = vsel %vm632, %v3044, 0
      %v3470 = vsel %vm632, %v3045, 0
      %v3473 = vsel %vm632, %v3046, 0
      %v3476 = vsel %vm632, %v3047, 0
      %v3479 = vsel %vm632, %v3048, 0
      %v3482 = vsel %vm632, %v3049, 0
      %v3485 = vsel %vm632, %v3050, 0
      %v3488 = vsel %vm632, %v3051, 0
      %v3491 = vsel %vm632, %v3052, 0
      %v3494 = vsel %vm632, %v3053, 0
      %v3497 = vsel %vm632, %v3054, 0
      %v3500 = vsel %vm632, %v3055, 0
      %v3503 = vsel %vm632, %v3056, 0
      %v3506 = vsel %vm632, %v3057, 0
      %v3509 = vsel %vm632, %v3058, 0
      %v3512 = vsel %vm632, %v3059, 0
      %v3515 = vsel %vm632, %v3060, 0
      %v3518 = vsel %vm883, %v3420, 0
      %3520 = vmatprep.subr.mxu0 0.0
      %3521 = vmatpush1.msra.mxu0 0.0
      %3522 = vmatprep.subr.mxu0 0.0
      %3523 = vmatpush1.msra.mxu0 0.0
      %3524 = vmatprep.subr.mxu0 0.0
      %3525 = vmatpush1.msra.mxu0 0.0
      %3526 = vmatprep.subr.mxu0 0.0
      %3527 = vmatpush1.msra.mxu0 0.0
      %3528 = vmatprep.subr.mxu0 0.0
      %3529 = vmatpush1.msra.mxu0 0.0
      %3530 = vmatprep.subr.mxu0 0.0
      %3531 = vmatpush1.msra.mxu0 0.0
      %3532 = vmatprep.subr.mxu0 0.0
      %3533 = vmatpush1.msra.mxu0 0.0
      %3534 = vmatprep.subr.mxu0 0.0
      %3535 = vmatpush1.msra.mxu0 0.0
      %3536 = vmatprep.subr.mxu0 0.0
      %3537 = vmatpush1.msra.mxu0 0.0
      %3538 = vmatprep.subr.mxu0 0.0
      %3539 = vmatpush1.msra.mxu0 0.0
      %3540 = vmatprep.subr.mxu0 0.0
      %3541 = vmatpush1.msra.mxu0 0.0
      %3542 = vmatprep.subr.mxu0 0.0
      %3543 = vmatpush1.msra.mxu0 0.0
      %3544 = vmatprep.subr.mxu0 0.0
      %3545 = vmatpush1.msra.mxu0 0.0
      %3546 = vmatprep.subr.mxu0 0.0
      %3547 = vmatpush1.msra.mxu0 0.0
      %3548 = vmatprep.subr.mxu0 0.0
      %3549 = vmatpush1.msra.mxu0 0.0
      %3550 = vmatprep.subr.mxu0 0.0
      %3551 = vmatpush1.msra.mxu0 %v3518
      %3552 = vmatprep.subr.mxu0 0.0
      %3553 = vmatpush2.msra.mxu0 0.0
      %3554 = vmatprep.subr.mxu0 0.0
      %3555 = vmatpush2.msra.mxu0 0.0
      %3556 = vmatprep.subr.mxu0 0.0
      %3557 = vmatpush2.msra.mxu0 0.0
      %3558 = vmatprep.subr.mxu0 0.0
      %3559 = vmatpush2.msra.mxu0 0.0
      %3560 = vmatprep.subr.mxu0 0.0
      %3561 = vmatpush2.msra.mxu0 0.0
      %3562 = vmatprep.subr.mxu0 0.0
      %3563 = vmatpush2.msra.mxu0 0.0
      %3564 = vmatprep.subr.mxu0 0.0
      %3565 = vmatpush2.msra.mxu0 0.0
      %3566 = vmatprep.subr.mxu0 0.0
      %3567 = vmatpush2.msra.mxu0 0.0
      %3568 = vmatprep.subr.mxu0 0.0
      %3569 = vmatpush2.msra.mxu0 0.0
      %3570 = vmatprep.subr.mxu0 0.0
      %3571 = vmatpush2.msra.mxu0 0.0
      %3572 = vmatprep.subr.mxu0 0.0
      %3573 = vmatpush2.msra.mxu0 0.0
      %3574 = vmatprep.subr.mxu0 0.0
      %3575 = vmatpush2.msra.mxu0 0.0
      %3576 = vmatprep.subr.mxu0 0.0
      %3577 = vmatpush2.msra.mxu0 0.0
      %3578 = vmatprep.subr.mxu0 0.0
      %3579 = vmatpush2.msra.mxu0 0.0
      %3580 = vmatprep.subr.mxu0 0.0
      %3581 = vmatpush2.msra.mxu0 0.0
      %3582 = vmatprep.subr.mxu0 0.0
      %3583 = vmatpush2.msra.mxu0 0.0
      %3584 = vmatprep.mubr.f32.mxu0 0.0
      %3585 = vmatmul.mubr.f32.gmra.mxu0 %v3422
      %v3586 = vpop.f32.mrf.mxu0
      %v3587 = vadd.f32 0.0, %v3586
      %v3588 = vpop.f32.mrf.mxu0
      %3589 = vmatprep.mubr.f32.mxu0 0.0
      %3590 = vmatmul.mubr.f32.gmra.mxu0 %v3425
      %v3591 = vpop.f32.mrf.mxu0
      %v3592 = vadd.f32 0.0, %v3591
      %v3593 = vpop.f32.mrf.mxu0
      %3594 = vmatprep.mubr.f32.mxu0 0.0
      %3595 = vmatmul.mubr.f32.gmra.mxu0 %v3428
      %v3596 = vpop.f32.mrf.mxu0
      %v3597 = vadd.f32 0.0, %v3596
      %v3598 = vpop.f32.mrf.mxu0
      %3599 = vmatprep.mubr.f32.mxu0 0.0
      %3600 = vmatmul.mubr.f32.gmra.mxu0 %v3431
      %v3601 = vpop.f32.mrf.mxu0
      %v3602 = vadd.f32 0.0, %v3601
      %v3603 = vpop.f32.mrf.mxu0
      %3604 = vmatprep.mubr.f32.mxu0 0.0
      %3605 = vmatmul.mubr.f32.gmra.mxu0 %v3434
      %v3606 = vpop.f32.mrf.mxu0
      %v3607 = vadd.f32 0.0, %v3606
      %v3608 = vpop.f32.mrf.mxu0
      %3609 = vmatprep.mubr.f32.mxu0 0.0
      %3610 = vmatmul.mubr.f32.gmra.mxu0 %v3437
      %v3611 = vpop.f32.mrf.mxu0
      %v3612 = vadd.f32 0.0, %v3611
      %v3613 = vpop.f32.mrf.mxu0
      %3614 = vmatprep.mubr.f32.mxu0 0.0
      %3615 = vmatmul.mubr.f32.gmra.mxu0 %v3440
      %v3616 = vpop.f32.mrf.mxu0
      %v3617 = vadd.f32 0.0, %v3616
      %v3618 = vpop.f32.mrf.mxu0
      %3619 = vmatprep.mubr.f32.mxu0 0.0
      %3620 = vmatmul.mubr.f32.gmra.mxu0 %v3443
      %v3621 = vpop.f32.mrf.mxu0
      %v3622 = vadd.f32 0.0, %v3621
      %v3623 = vpop.f32.mrf.mxu0
      %3624 = vmatprep.mubr.f32.mxu0 0.0
      %3625 = vmatmul.mubr.f32.gmra.mxu0 %v3446
      %v3626 = vpop.f32.mrf.mxu0
      %v3627 = vadd.f32 0.0, %v3626
      %v3628 = vpop.f32.mrf.mxu0
      %3629 = vmatprep.mubr.f32.mxu0 0.0
      %3630 = vmatmul.mubr.f32.gmra.mxu0 %v3449
      %v3631 = vpop.f32.mrf.mxu0
      %v3632 = vadd.f32 0.0, %v3631
      %v3633 = vpop.f32.mrf.mxu0
      %3634 = vmatprep.mubr.f32.mxu0 0.0
      %3635 = vmatmul.mubr.f32.gmra.mxu0 %v3452
      %v3636 = vpop.f32.mrf.mxu0
      %v3637 = vadd.f32 0.0, %v3636
      %v3638 = vpop.f32.mrf.mxu0
      %3639 = vmatprep.mubr.f32.mxu0 0.0
      %3640 = vmatmul.mubr.f32.gmra.mxu0 %v3455
      %v3641 = vpop.f32.mrf.mxu0
      %v3642 = vadd.f32 0.0, %v3641
      %v3643 = vpop.f32.mrf.mxu0
      %3644 = vmatprep.mubr.f32.mxu0 0.0
      %3645 = vmatmul.mubr.f32.gmra.mxu0 %v3458
      %v3646 = vpop.f32.mrf.mxu0
      %v3647 = vadd.f32 0.0, %v3646
      %v3648 = vpop.f32.mrf.mxu0
      %3649 = vmatprep.mubr.f32.mxu0 0.0
      %3650 = vmatmul.mubr.f32.gmra.mxu0 %v3461
      %v3651 = vpop.f32.mrf.mxu0
      %v3652 = vadd.f32 0.0, %v3651
      %v3653 = vpop.f32.mrf.mxu0
      %3654 = vmatprep.mubr.f32.mxu0 0.0
      %3655 = vmatmul.mubr.f32.gmra.mxu0 %v3464
      %v3656 = vpop.f32.mrf.mxu0
      %v3657 = vadd.f32 0.0, %v3656
      %v3658 = vpop.f32.mrf.mxu0
      %3659 = vmatprep.mubr.f32.mxu0 0.0
      %3660 = vmatmul.mubr.f32.gmra.mxu0 %v3467
      %v3661 = vpop.f32.mrf.mxu0
      %v3662 = vadd.f32 0.0, %v3661
      %v3663 = vpop.f32.mrf.mxu0
      %3664 = vmatprep.mubr.f32.mxu0 0.0
      %3665 = vmatmul.mubr.f32.gmra.mxu0 %v3470
      %v3666 = vpop.f32.mrf.mxu0
      %v3667 = vadd.f32 0.0, %v3666
      %v3668 = vpop.f32.mrf.mxu0
      %3669 = vmatprep.mubr.f32.mxu0 0.0
      %3670 = vmatmul.mubr.f32.gmra.mxu0 %v3473
      %v3671 = vpop.f32.mrf.mxu0
      %v3672 = vadd.f32 0.0, %v3671
      %v3673 = vpop.f32.mrf.mxu0
      %3674 = vmatprep.mubr.f32.mxu0 0.0
      %3675 = vmatmul.mubr.f32.gmra.mxu0 %v3476
      %v3676 = vpop.f32.mrf.mxu0
      %v3677 = vadd.f32 0.0, %v3676
      %v3678 = vpop.f32.mrf.mxu0
      %3679 = vmatprep.mubr.f32.mxu0 0.0
      %3680 = vmatmul.mubr.f32.gmra.mxu0 %v3479
      %v3681 = vpop.f32.mrf.mxu0
      %v3682 = vadd.f32 0.0, %v3681
      %v3683 = vpop.f32.mrf.mxu0
      %3684 = vmatprep.mubr.f32.mxu0 0.0
      %3685 = vmatmul.mubr.f32.gmra.mxu0 %v3482
      %v3686 = vpop.f32.mrf.mxu0
      %v3687 = vadd.f32 0.0, %v3686
      %v3688 = vpop.f32.mrf.mxu0
      %3689 = vmatprep.mubr.f32.mxu0 0.0
      %3690 = vmatmul.mubr.f32.gmra.mxu0 %v3485
      %v3691 = vpop.f32.mrf.mxu0
      %v3692 = vadd.f32 0.0, %v3691
      %v3693 = vpop.f32.mrf.mxu0
      %3694 = vmatprep.mubr.f32.mxu0 0.0
      %3695 = vmatmul.mubr.f32.gmra.mxu0 %v3488
      %v3696 = vpop.f32.mrf.mxu0
      %v3697 = vadd.f32 0.0, %v3696
      %v3698 = vpop.f32.mrf.mxu0
      %3699 = vmatprep.mubr.f32.mxu0 0.0
      %3700 = vmatmul.mubr.f32.gmra.mxu0 %v3491
      %v3701 = vpop.f32.mrf.mxu0
      %v3702 = vadd.f32 0.0, %v3701
      %v3703 = vpop.f32.mrf.mxu0
      %3704 = vmatprep.mubr.f32.mxu0 0.0
      %3705 = vmatmul.mubr.f32.gmra.mxu0 %v3494
      %v3706 = vpop.f32.mrf.mxu0
      %v3707 = vadd.f32 0.0, %v3706
      %v3708 = vpop.f32.mrf.mxu0
      %3709 = vmatprep.mubr.f32.mxu0 0.0
      %3710 = vmatmul.mubr.f32.gmra.mxu0 %v3497
      %v3711 = vpop.f32.mrf.mxu0
      %v3712 = vadd.f32 0.0, %v3711
      %v3713 = vpop.f32.mrf.mxu0
      %3714 = vmatprep.mubr.f32.mxu0 0.0
      %3715 = vmatmul.mubr.f32.gmra.mxu0 %v3500
      %v3716 = vpop.f32.mrf.mxu0
      %v3717 = vadd.f32 0.0, %v3716
      %v3718 = vpop.f32.mrf.mxu0
      %3719 = vmatprep.mubr.f32.mxu0 0.0
      %3720 = vmatmul.mubr.f32.gmra.mxu0 %v3503
      %v3721 = vpop.f32.mrf.mxu0
      %v3722 = vadd.f32 0.0, %v3721
      %v3723 = vpop.f32.mrf.mxu0
      %3724 = vmatprep.mubr.f32.mxu0 0.0
      %3725 = vmatmul.mubr.f32.gmra.mxu0 %v3506
      %v3726 = vpop.f32.mrf.mxu0
      %v3727 = vadd.f32 0.0, %v3726
      %v3728 = vpop.f32.mrf.mxu0
      %3729 = vmatprep.mubr.f32.mxu0 0.0
      %3730 = vmatmul.mubr.f32.gmra.mxu0 %v3509
      %v3731 = vpop.f32.mrf.mxu0
      %v3732 = vadd.f32 0.0, %v3731
      %v3733 = vpop.f32.mrf.mxu0
      %3734 = vmatprep.mubr.f32.mxu0 0.0
      %3735 = vmatmul.mubr.f32.gmra.mxu0 %v3512
      %v3736 = vpop.f32.mrf.mxu0
      %v3737 = vadd.f32 0.0, %v3736
      %v3738 = vpop.f32.mrf.mxu0
      %3739 = vmatprep.mubr.f32.mxu0 0.0
      %3740 = vmatmul.mubr.f32.gmra.mxu0 %v3515
      %v3741 = vpop.f32.mrf.mxu0
      %v3742 = vadd.f32 0.0, %v3741
      %v3743 = vpop.f32.mrf.mxu0
      %3744 = vdwg.mxu0
      %v3745 = vadd.f32 %v3387, %v3587
      %v3746 = vadd.f32 %v3388, %v3592
      %v3747 = vadd.f32 %v3389, %v3597
      %v3748 = vadd.f32 %v3390, %v3602
      %v3749 = vadd.f32 %v3391, %v3607
      %v3750 = vadd.f32 %v3392, %v3612
      %v3751 = vadd.f32 %v3393, %v3617
      %v3752 = vadd.f32 %v3394, %v3622
      %v3753 = vadd.f32 %v3395, %v3627
      %v3754 = vadd.f32 %v3396, %v3632
      %v3755 = vadd.f32 %v3397, %v3637
      %v3756 = vadd.f32 %v3398, %v3642
      %v3757 = vadd.f32 %v3399, %v3647
      %v3758 = vadd.f32 %v3400, %v3652
      %v3759 = vadd.f32 %v3401, %v3657
      %v3760 = vadd.f32 %v3402, %v3662
      %v3761 = vadd.f32 %v3403, %v3667
      %v3762 = vadd.f32 %v3404, %v3672
      %v3763 = vadd.f32 %v3405, %v3677
      %v3764 = vadd.f32 %v3406, %v3682
      %v3765 = vadd.f32 %v3407, %v3687
      %v3766 = vadd.f32 %v3408, %v3692
      %v3767 = vadd.f32 %v3409, %v3697
      %v3768 = vadd.f32 %v3410, %v3702
      %v3769 = vadd.f32 %v3411, %v3707
      %v3770 = vadd.f32 %v3412, %v3712
      %v3771 = vadd.f32 %v3413, %v3717
      %v3772 = vadd.f32 %v3414, %v3722
      %v3773 = vadd.f32 %v3415, %v3727
      %v3774 = vadd.f32 %v3416, %v3732
      %v3775 = vadd.f32 %v3417, %v3737
      %v3776 = vadd.f32 %v3418, %v3742
      %v3777 = vld [vmem:[%s2996 + $0x1] sm:$0xff]
      %v3778 = vld [vmem:[%s2996 + $0x9] sm:$0xff]
      %v3779 = vld [vmem:[%s2996 + $0x19] sm:$0xff]
      %v3780 = vld [vmem:[%s2996 + $0x21] sm:$0xff]
      %v3781 = vld [vmem:[%s2996 + $0x31] sm:$0xff]
      %v3782 = vld [vmem:[%s2996 + $0x39] sm:$0xff]
      %v3783 = vld [vmem:[%s2996 + $0x49] sm:$0xff]
      %v3784 = vld [vmem:[%s2996 + $0x51] sm:$0xff]
      %v3785 = vld [vmem:[%s2996 + $0x61] sm:$0xff]
      %v3786 = vld [vmem:[%s2996 + $0x69] sm:$0xff]
      %v3787 = vld [vmem:[%s2996 + $0x79] sm:$0xff]
      %v3788 = vld [vmem:[%s2996 + $0x81] sm:$0xff]
      %v3789 = vld [vmem:[%s2996 + $0x91] sm:$0xff]
      %v3790 = vld [vmem:[%s2996 + $0x99] sm:$0xff]
      %v3791 = vld [vmem:[%s2996 + $0xa9] sm:$0xff]
      %v3792 = vld [vmem:[%s2996 + $0xb1] sm:$0xff]
      %v3793 = vld [vmem:[%s2996 + $0xc1] sm:$0xff]
      %v3794 = vld [vmem:[%s2996 + $0xc9] sm:$0xff]
      %v3795 = vld [vmem:[%s2996 + $0xd9] sm:$0xff]
      %v3796 = vld [vmem:[%s2996 + $0xe1] sm:$0xff]
      %v3797 = vld [vmem:[%s2996 + $0xf1] sm:$0xff]
      %v3798 = vld [vmem:[%s2996 + $0xf9] sm:$0xff]
      %v3799 = vld [vmem:[%s2996 + $0x109] sm:$0xff]
      %v3800 = vld [vmem:[%s2996 + $0x111] sm:$0xff]
      %v3801 = vld [vmem:[%s2996 + $0x121] sm:$0xff]
      %v3802 = vld [vmem:[%s2996 + $0x129] sm:$0xff]
      %v3803 = vld [vmem:[%s2996 + $0x139] sm:$0xff]
      %v3804 = vld [vmem:[%s2996 + $0x141] sm:$0xff]
      %v3805 = vld [vmem:[%s2996 + $0x151] sm:$0xff]
      %v3806 = vld [vmem:[%s2996 + $0x159] sm:$0xff]
      %v3807 = vld [vmem:[%s2996 + $0x169] sm:$0xff]
      %v3808 = vld [vmem:[%s2996 + $0x171] sm:$0xff]
      %v3809 = vld [vmem:[%s688 + $0x1] sm:$0xff]
      %v3810 = vld [vmem:[%s688 + $0x9] sm:$0xff]
      %v3811 = vld [vmem:[%s688 + $0x19] sm:$0xff]
      %v3812 = vld [vmem:[%s688 + $0x21] sm:$0xff]
      %v3813 = vld [vmem:[%s688 + $0x31] sm:$0xff]
      %v3814 = vld [vmem:[%s688 + $0x39] sm:$0xff]
      %v3815 = vld [vmem:[%s688 + $0x49] sm:$0xff]
      %v3816 = vld [vmem:[%s688 + $0x51] sm:$0xff]
      %v3817 = vld [vmem:[%s688 + $0x61] sm:$0xff]
      %v3818 = vld [vmem:[%s688 + $0x69] sm:$0xff]
      %v3819 = vld [vmem:[%s688 + $0x79] sm:$0xff]
      %v3820 = vld [vmem:[%s688 + $0x81] sm:$0xff]
      %v3821 = vld [vmem:[%s688 + $0x91] sm:$0xff]
      %v3822 = vld [vmem:[%s688 + $0x99] sm:$0xff]
      %v3823 = vld [vmem:[%s688 + $0xa9] sm:$0xff]
      %v3824 = vld [vmem:[%s688 + $0xb1] sm:$0xff]
      %v3825 = vld [vmem:[%s688 + $0xc1] sm:$0xff]
      %v3826 = vld [vmem:[%s688 + $0xc9] sm:$0xff]
      %v3827 = vld [vmem:[%s688 + $0xd9] sm:$0xff]
      %v3828 = vld [vmem:[%s688 + $0xe1] sm:$0xff]
      %v3829 = vld [vmem:[%s688 + $0xf1] sm:$0xff]
      %v3830 = vld [vmem:[%s688 + $0xf9] sm:$0xff]
      %v3831 = vld [vmem:[%s688 + $0x109] sm:$0xff]
      %v3832 = vld [vmem:[%s688 + $0x111] sm:$0xff]
      %v3833 = vld [vmem:[%s688 + $0x121] sm:$0xff]
      %v3834 = vld [vmem:[%s688 + $0x129] sm:$0xff]
      %v3835 = vld [vmem:[%s688 + $0x139] sm:$0xff]
      %v3836 = vld [vmem:[%s688 + $0x141] sm:$0xff]
      %v3837 = vld [vmem:[%s688 + $0x151] sm:$0xff]
      %v3838 = vld [vmem:[%s688 + $0x159] sm:$0xff]
      %v3839 = vld [vmem:[%s688 + $0x169] sm:$0xff]
      %v3840 = vld [vmem:[%s688 + $0x171] sm:$0xff]
      %s3841 = scalar_lea.vmem %s3, 16
      %v3842 = vld [vmem:[%s3841] sm:$0xf]
      %v3844 = vsel %vm632, %v3777, 0
      %v3847 = vsel %vm632, %v3778, 0
      %v3850 = vsel %vm632, %v3779, 0
      %v3853 = vsel %vm632, %v3780, 0
      %v3856 = vsel %vm632, %v3781, 0
      %v3859 = vsel %vm632, %v3782, 0
      %v3862 = vsel %vm632, %v3783, 0
      %v3865 = vsel %vm632, %v3784, 0
      %v3868 = vsel %vm632, %v3785, 0
      %v3871 = vsel %vm632, %v3786, 0
      %v3874 = vsel %vm632, %v3787, 0
      %v3877 = vsel %vm632, %v3788, 0
      %v3880 = vsel %vm632, %v3789, 0
      %v3883 = vsel %vm632, %v3790, 0
      %v3886 = vsel %vm632, %v3791, 0
      %v3889 = vsel %vm632, %v3792, 0
      %v3892 = vsel %vm632, %v3793, 0
      %v3895 = vsel %vm632, %v3794, 0
      %v3898 = vsel %vm632, %v3795, 0
      %v3901 = vsel %vm632, %v3796, 0
      %v3904 = vsel %vm632, %v3797, 0
      %v3907 = vsel %vm632, %v3798, 0
      %v3910 = vsel %vm632, %v3799, 0
      %v3913 = vsel %vm632, %v3800, 0
      %v3916 = vsel %vm632, %v3801, 0
      %v3919 = vsel %vm632, %v3802, 0
      %v3922 = vsel %vm632, %v3803, 0
      %v3925 = vsel %vm632, %v3804, 0
      %v3928 = vsel %vm632, %v3805, 0
      %v3931 = vsel %vm632, %v3806, 0
      %v3934 = vsel %vm632, %v3807, 0
      %v3937 = vsel %vm632, %v3808, 0
      %v3940 = vsel %vm883, %v3842, 0
      %3942 = vmatprep.subr.mxu0 0.0
      %3943 = vmatpush1.msra.mxu0 0.0
      %3944 = vmatprep.subr.mxu0 0.0
      %3945 = vmatpush1.msra.mxu0 0.0
      %3946 = vmatprep.subr.mxu0 0.0
      %3947 = vmatpush1.msra.mxu0 0.0
      %3948 = vmatprep.subr.mxu0 0.0
      %3949 = vmatpush1.msra.mxu0 0.0
      %3950 = vmatprep.subr.mxu0 0.0
      %3951 = vmatpush1.msra.mxu0 0.0
      %3952 = vmatprep.subr.mxu0 0.0
      %3953 = vmatpush1.msra.mxu0 0.0
      %3954 = vmatprep.subr.mxu0 0.0
      %3955 = vmatpush1.msra.mxu0 0.0
      %3956 = vmatprep.subr.mxu0 0.0
      %3957 = vmatpush1.msra.mxu0 0.0
      %3958 = vmatprep.subr.mxu0 0.0
      %3959 = vmatpush1.msra.mxu0 0.0
      %3960 = vmatprep.subr.mxu0 0.0
      %3961 = vmatpush1.msra.mxu0 0.0
      %3962 = vmatprep.subr.mxu0 0.0
      %3963 = vmatpush1.msra.mxu0 0.0
      %3964 = vmatprep.subr.mxu0 0.0
      %3965 = vmatpush1.msra.mxu0 0.0
      %3966 = vmatprep.subr.mxu0 0.0
      %3967 = vmatpush1.msra.mxu0 0.0
      %3968 = vmatprep.subr.mxu0 0.0
      %3969 = vmatpush1.msra.mxu0 0.0
      %3970 = vmatprep.subr.mxu0 0.0
      %3971 = vmatpush1.msra.mxu0 0.0
      %3972 = vmatprep.subr.mxu0 0.0
      %3973 = vmatpush1.msra.mxu0 %v3940
      %3974 = vmatprep.subr.mxu0 0.0
      %3975 = vmatpush2.msra.mxu0 0.0
      %3976 = vmatprep.subr.mxu0 0.0
      %3977 = vmatpush2.msra.mxu0 0.0
      %3978 = vmatprep.subr.mxu0 0.0
      %3979 = vmatpush2.msra.mxu0 0.0
      %3980 = vmatprep.subr.mxu0 0.0
      %3981 = vmatpush2.msra.mxu0 0.0
      %3982 = vmatprep.subr.mxu0 0.0
      %3983 = vmatpush2.msra.mxu0 0.0
      %3984 = vmatprep.subr.mxu0 0.0
      %3985 = vmatpush2.msra.mxu0 0.0
      %3986 = vmatprep.subr.mxu0 0.0
      %3987 = vmatpush2.msra.mxu0 0.0
      %3988 = vmatprep.subr.mxu0 0.0
      %3989 = vmatpush2.msra.mxu0 0.0
      %3990 = vmatprep.subr.mxu0 0.0
      %3991 = vmatpush2.msra.mxu0 0.0
      %3992 = vmatprep.subr.mxu0 0.0
      %3993 = vmatpush2.msra.mxu0 0.0
      %3994 = vmatprep.subr.mxu0 0.0
      %3995 = vmatpush2.msra.mxu0 0.0
      %3996 = vmatprep.subr.mxu0 0.0
      %3997 = vmatpush2.msra.mxu0 0.0
      %3998 = vmatprep.subr.mxu0 0.0
      %3999 = vmatpush2.msra.mxu0 0.0
      %4000 = vmatprep.subr.mxu0 0.0
      %4001 = vmatpush2.msra.mxu0 0.0
      %4002 = vmatprep.subr.mxu0 0.0
      %4003 = vmatpush2.msra.mxu0 0.0
      %4004 = vmatprep.subr.mxu0 0.0
      %4005 = vmatpush2.msra.mxu0 0.0
      %4006 = vmatprep.mubr.f32.mxu0 0.0
      %4007 = vmatmul.mubr.f32.gmra.mxu0 %v3844
      %v4008 = vpop.f32.mrf.mxu0
      %v4009 = vadd.f32 0.0, %v4008
      %v4010 = vpop.f32.mrf.mxu0
      %4011 = vmatprep.mubr.f32.mxu0 0.0
      %4012 = vmatmul.mubr.f32.gmra.mxu0 %v3847
      %v4013 = vpop.f32.mrf.mxu0
      %v4014 = vadd.f32 0.0, %v4013
      %v4015 = vpop.f32.mrf.mxu0
      %4016 = vmatprep.mubr.f32.mxu0 0.0
      %4017 = vmatmul.mubr.f32.gmra.mxu0 %v3850
      %v4018 = vpop.f32.mrf.mxu0
      %v4019 = vadd.f32 0.0, %v4018
      %v4020 = vpop.f32.mrf.mxu0
      %4021 = vmatprep.mubr.f32.mxu0 0.0
      %4022 = vmatmul.mubr.f32.gmra.mxu0 %v3853
      %v4023 = vpop.f32.mrf.mxu0
      %v4024 = vadd.f32 0.0, %v4023
      %v4025 = vpop.f32.mrf.mxu0
      %4026 = vmatprep.mubr.f32.mxu0 0.0
      %4027 = vmatmul.mubr.f32.gmra.mxu0 %v3856
      %v4028 = vpop.f32.mrf.mxu0
      %v4029 = vadd.f32 0.0, %v4028
      %v4030 = vpop.f32.mrf.mxu0
      %4031 = vmatprep.mubr.f32.mxu0 0.0
      %4032 = vmatmul.mubr.f32.gmra.mxu0 %v3859
      %v4033 = vpop.f32.mrf.mxu0
      %v4034 = vadd.f32 0.0, %v4033
      %v4035 = vpop.f32.mrf.mxu0
      %4036 = vmatprep.mubr.f32.mxu0 0.0
      %4037 = vmatmul.mubr.f32.gmra.mxu0 %v3862
      %v4038 = vpop.f32.mrf.mxu0
      %v4039 = vadd.f32 0.0, %v4038
      %v4040 = vpop.f32.mrf.mxu0
      %4041 = vmatprep.mubr.f32.mxu0 0.0
      %4042 = vmatmul.mubr.f32.gmra.mxu0 %v3865
      %v4043 = vpop.f32.mrf.mxu0
      %v4044 = vadd.f32 0.0, %v4043
      %v4045 = vpop.f32.mrf.mxu0
      %4046 = vmatprep.mubr.f32.mxu0 0.0
      %4047 = vmatmul.mubr.f32.gmra.mxu0 %v3868
      %v4048 = vpop.f32.mrf.mxu0
      %v4049 = vadd.f32 0.0, %v4048
      %v4050 = vpop.f32.mrf.mxu0
      %4051 = vmatprep.mubr.f32.mxu0 0.0
      %4052 = vmatmul.mubr.f32.gmra.mxu0 %v3871
      %v4053 = vpop.f32.mrf.mxu0
      %v4054 = vadd.f32 0.0, %v4053
      %v4055 = vpop.f32.mrf.mxu0
      %4056 = vmatprep.mubr.f32.mxu0 0.0
      %4057 = vmatmul.mubr.f32.gmra.mxu0 %v3874
      %v4058 = vpop.f32.mrf.mxu0
      %v4059 = vadd.f32 0.0, %v4058
      %v4060 = vpop.f32.mrf.mxu0
      %4061 = vmatprep.mubr.f32.mxu0 0.0
      %4062 = vmatmul.mubr.f32.gmra.mxu0 %v3877
      %v4063 = vpop.f32.mrf.mxu0
      %v4064 = vadd.f32 0.0, %v4063
      %v4065 = vpop.f32.mrf.mxu0
      %4066 = vmatprep.mubr.f32.mxu0 0.0
      %4067 = vmatmul.mubr.f32.gmra.mxu0 %v3880
      %v4068 = vpop.f32.mrf.mxu0
      %v4069 = vadd.f32 0.0, %v4068
      %v4070 = vpop.f32.mrf.mxu0
      %4071 = vmatprep.mubr.f32.mxu0 0.0
      %4072 = vmatmul.mubr.f32.gmra.mxu0 %v3883
      %v4073 = vpop.f32.mrf.mxu0
      %v4074 = vadd.f32 0.0, %v4073
      %v4075 = vpop.f32.mrf.mxu0
      %4076 = vmatprep.mubr.f32.mxu0 0.0
      %4077 = vmatmul.mubr.f32.gmra.mxu0 %v3886
      %v4078 = vpop.f32.mrf.mxu0
      %v4079 = vadd.f32 0.0, %v4078
      %v4080 = vpop.f32.mrf.mxu0
      %4081 = vmatprep.mubr.f32.mxu0 0.0
      %4082 = vmatmul.mubr.f32.gmra.mxu0 %v3889
      %v4083 = vpop.f32.mrf.mxu0
      %v4084 = vadd.f32 0.0, %v4083
      %v4085 = vpop.f32.mrf.mxu0
      %4086 = vmatprep.mubr.f32.mxu0 0.0
      %4087 = vmatmul.mubr.f32.gmra.mxu0 %v3892
      %v4088 = vpop.f32.mrf.mxu0
      %v4089 = vadd.f32 0.0, %v4088
      %v4090 = vpop.f32.mrf.mxu0
      %4091 = vmatprep.mubr.f32.mxu0 0.0
      %4092 = vmatmul.mubr.f32.gmra.mxu0 %v3895
      %v4093 = vpop.f32.mrf.mxu0
      %v4094 = vadd.f32 0.0, %v4093
      %v4095 = vpop.f32.mrf.mxu0
      %4096 = vmatprep.mubr.f32.mxu0 0.0
      %4097 = vmatmul.mubr.f32.gmra.mxu0 %v3898
      %v4098 = vpop.f32.mrf.mxu0
      %v4099 = vadd.f32 0.0, %v4098
      %v4100 = vpop.f32.mrf.mxu0
      %4101 = vmatprep.mubr.f32.mxu0 0.0
      %4102 = vmatmul.mubr.f32.gmra.mxu0 %v3901
      %v4103 = vpop.f32.mrf.mxu0
      %v4104 = vadd.f32 0.0, %v4103
      %v4105 = vpop.f32.mrf.mxu0
      %4106 = vmatprep.mubr.f32.mxu0 0.0
      %4107 = vmatmul.mubr.f32.gmra.mxu0 %v3904
      %v4108 = vpop.f32.mrf.mxu0
      %v4109 = vadd.f32 0.0, %v4108
      %v4110 = vpop.f32.mrf.mxu0
      %4111 = vmatprep.mubr.f32.mxu0 0.0
      %4112 = vmatmul.mubr.f32.gmra.mxu0 %v3907
      %v4113 = vpop.f32.mrf.mxu0
      %v4114 = vadd.f32 0.0, %v4113
      %v4115 = vpop.f32.mrf.mxu0
      %4116 = vmatprep.mubr.f32.mxu0 0.0
      %4117 = vmatmul.mubr.f32.gmra.mxu0 %v3910
      %v4118 = vpop.f32.mrf.mxu0
      %v4119 = vadd.f32 0.0, %v4118
      %v4120 = vpop.f32.mrf.mxu0
      %4121 = vmatprep.mubr.f32.mxu0 0.0
      %4122 = vmatmul.mubr.f32.gmra.mxu0 %v3913
      %v4123 = vpop.f32.mrf.mxu0
      %v4124 = vadd.f32 0.0, %v4123
      %v4125 = vpop.f32.mrf.mxu0
      %4126 = vmatprep.mubr.f32.mxu0 0.0
      %4127 = vmatmul.mubr.f32.gmra.mxu0 %v3916
      %v4128 = vpop.f32.mrf.mxu0
      %v4129 = vadd.f32 0.0, %v4128
      %v4130 = vpop.f32.mrf.mxu0
      %4131 = vmatprep.mubr.f32.mxu0 0.0
      %4132 = vmatmul.mubr.f32.gmra.mxu0 %v3919
      %v4133 = vpop.f32.mrf.mxu0
      %v4134 = vadd.f32 0.0, %v4133
      %v4135 = vpop.f32.mrf.mxu0
      %4136 = vmatprep.mubr.f32.mxu0 0.0
      %4137 = vmatmul.mubr.f32.gmra.mxu0 %v3922
      %v4138 = vpop.f32.mrf.mxu0
      %v4139 = vadd.f32 0.0, %v4138
      %v4140 = vpop.f32.mrf.mxu0
      %4141 = vmatprep.mubr.f32.mxu0 0.0
      %4142 = vmatmul.mubr.f32.gmra.mxu0 %v3925
      %v4143 = vpop.f32.mrf.mxu0
      %v4144 = vadd.f32 0.0, %v4143
      %v4145 = vpop.f32.mrf.mxu0
      %4146 = vmatprep.mubr.f32.mxu0 0.0
      %4147 = vmatmul.mubr.f32.gmra.mxu0 %v3928
      %v4148 = vpop.f32.mrf.mxu0
      %v4149 = vadd.f32 0.0, %v4148
      %v4150 = vpop.f32.mrf.mxu0
      %4151 = vmatprep.mubr.f32.mxu0 0.0
      %4152 = vmatmul.mubr.f32.gmra.mxu0 %v3931
      %v4153 = vpop.f32.mrf.mxu0
      %v4154 = vadd.f32 0.0, %v4153
      %v4155 = vpop.f32.mrf.mxu0
      %4156 = vmatprep.mubr.f32.mxu0 0.0
      %4157 = vmatmul.mubr.f32.gmra.mxu0 %v3934
      %v4158 = vpop.f32.mrf.mxu0
      %v4159 = vadd.f32 0.0, %v4158
      %v4160 = vpop.f32.mrf.mxu0
      %4161 = vmatprep.mubr.f32.mxu0 0.0
      %4162 = vmatmul.mubr.f32.gmra.mxu0 %v3937
      %v4163 = vpop.f32.mrf.mxu0
      %v4164 = vadd.f32 0.0, %v4163
      %v4165 = vpop.f32.mrf.mxu0
      %4166 = vdwg.mxu0
      %v4167 = vadd.f32 %v3745, %v4009
      %v4168 = vadd.f32 %v3746, %v4014
      %v4169 = vadd.f32 %v3747, %v4019
      %v4170 = vadd.f32 %v3748, %v4024
      %v4171 = vadd.f32 %v3749, %v4029
      %v4172 = vadd.f32 %v3750, %v4034
      %v4173 = vadd.f32 %v3751, %v4039
      %v4174 = vadd.f32 %v3752, %v4044
      %v4175 = vadd.f32 %v3753, %v4049
      %v4176 = vadd.f32 %v3754, %v4054
      %v4177 = vadd.f32 %v3755, %v4059
      %v4178 = vadd.f32 %v3756, %v4064
      %v4179 = vadd.f32 %v3757, %v4069
      %v4180 = vadd.f32 %v3758, %v4074
      %v4181 = vadd.f32 %v3759, %v4079
      %v4182 = vadd.f32 %v3760, %v4084
      %v4183 = vadd.f32 %v3761, %v4089
      %v4184 = vadd.f32 %v3762, %v4094
      %v4185 = vadd.f32 %v3763, %v4099
      %v4186 = vadd.f32 %v3764, %v4104
      %v4187 = vadd.f32 %v3765, %v4109
      %v4188 = vadd.f32 %v3766, %v4114
      %v4189 = vadd.f32 %v3767, %v4119
      %v4190 = vadd.f32 %v3768, %v4124
      %v4191 = vadd.f32 %v3769, %v4129
      %v4192 = vadd.f32 %v3770, %v4134
      %v4193 = vadd.f32 %v3771, %v4139
      %v4194 = vadd.f32 %v3772, %v4144
      %v4195 = vadd.f32 %v3773, %v4149
      %v4196 = vadd.f32 %v3774, %v4154
      %v4197 = vadd.f32 %v3775, %v4159
      %v4198 = vadd.f32 %v3776, %v4164
      %s4199 = scalar_lea.vmem %s4, 16
      %v4200 = vld [vmem:[%s4199] sm:$0xf]
      %v4202 = vsel %vm632, %v3809, 0
      %v4205 = vsel %vm632, %v3810, 0
      %v4208 = vsel %vm632, %v3811, 0
      %v4211 = vsel %vm632, %v3812, 0
      %v4214 = vsel %vm632, %v3813, 0
      %v4217 = vsel %vm632, %v3814, 0
      %v4220 = vsel %vm632, %v3815, 0
      %v4223 = vsel %vm632, %v3816, 0
      %v4226 = vsel %vm632, %v3817, 0
      %v4229 = vsel %vm632, %v3818, 0
      %v4232 = vsel %vm632, %v3819, 0
      %v4235 = vsel %vm632, %v3820, 0
      %v4238 = vsel %vm632, %v3821, 0
      %v4241 = vsel %vm632, %v3822, 0
      %v4244 = vsel %vm632, %v3823, 0
      %v4247 = vsel %vm632, %v3824, 0
      %v4250 = vsel %vm632, %v3825, 0
      %v4253 = vsel %vm632, %v3826, 0
      %v4256 = vsel %vm632, %v3827, 0
      %v4259 = vsel %vm632, %v3828, 0
      %v4262 = vsel %vm632, %v3829, 0
      %v4265 = vsel %vm632, %v3830, 0
      %v4268 = vsel %vm632, %v3831, 0
      %v4271 = vsel %vm632, %v3832, 0
      %v4274 = vsel %vm632, %v3833, 0
      %v4277 = vsel %vm632, %v3834, 0
      %v4280 = vsel %vm632, %v3835, 0
      %v4283 = vsel %vm632, %v3836, 0
      %v4286 = vsel %vm632, %v3837, 0
      %v4289 = vsel %vm632, %v3838, 0
      %v4292 = vsel %vm632, %v3839, 0
      %v4295 = vsel %vm632, %v3840, 0
      %v4298 = vsel %vm883, %v4200, 0
      %4300 = vmatprep.subr.mxu0 0.0
      %4301 = vmatpush1.msra.mxu0 0.0
      %4302 = vmatprep.subr.mxu0 0.0
      %4303 = vmatpush1.msra.mxu0 0.0
      %4304 = vmatprep.subr.mxu0 0.0
      %4305 = vmatpush1.msra.mxu0 0.0
      %4306 = vmatprep.subr.mxu0 0.0
      %4307 = vmatpush1.msra.mxu0 0.0
      %4308 = vmatprep.subr.mxu0 0.0
      %4309 = vmatpush1.msra.mxu0 0.0
      %4310 = vmatprep.subr.mxu0 0.0
      %4311 = vmatpush1.msra.mxu0 0.0
      %4312 = vmatprep.subr.mxu0 0.0
      %4313 = vmatpush1.msra.mxu0 0.0
      %4314 = vmatprep.subr.mxu0 0.0
      %4315 = vmatpush1.msra.mxu0 0.0
      %4316 = vmatprep.subr.mxu0 0.0
      %4317 = vmatpush1.msra.mxu0 0.0
      %4318 = vmatprep.subr.mxu0 0.0
      %4319 = vmatpush1.msra.mxu0 0.0
      %4320 = vmatprep.subr.mxu0 0.0
      %4321 = vmatpush1.msra.mxu0 0.0
      %4322 = vmatprep.subr.mxu0 0.0
      %4323 = vmatpush1.msra.mxu0 0.0
      %4324 = vmatprep.subr.mxu0 0.0
      %4325 = vmatpush1.msra.mxu0 0.0
      %4326 = vmatprep.subr.mxu0 0.0
      %4327 = vmatpush1.msra.mxu0 0.0
      %4328 = vmatprep.subr.mxu0 0.0
      %4329 = vmatpush1.msra.mxu0 0.0
      %4330 = vmatprep.subr.mxu0 0.0
      %4331 = vmatpush1.msra.mxu0 %v4298
      %4332 = vmatprep.subr.mxu0 0.0
      %4333 = vmatpush2.msra.mxu0 0.0
      %4334 = vmatprep.subr.mxu0 0.0
      %4335 = vmatpush2.msra.mxu0 0.0
      %4336 = vmatprep.subr.mxu0 0.0
      %4337 = vmatpush2.msra.mxu0 0.0
      %4338 = vmatprep.subr.mxu0 0.0
      %4339 = vmatpush2.msra.mxu0 0.0
      %4340 = vmatprep.subr.mxu0 0.0
      %4341 = vmatpush2.msra.mxu0 0.0
      %4342 = vmatprep.subr.mxu0 0.0
      %4343 = vmatpush2.msra.mxu0 0.0
      %4344 = vmatprep.subr.mxu0 0.0
      %4345 = vmatpush2.msra.mxu0 0.0
      %4346 = vmatprep.subr.mxu0 0.0
      %4347 = vmatpush2.msra.mxu0 0.0
      %4348 = vmatprep.subr.mxu0 0.0
      %4349 = vmatpush2.msra.mxu0 0.0
      %4350 = vmatprep.subr.mxu0 0.0
      %4351 = vmatpush2.msra.mxu0 0.0
      %4352 = vmatprep.subr.mxu0 0.0
      %4353 = vmatpush2.msra.mxu0 0.0
      %4354 = vmatprep.subr.mxu0 0.0
      %4355 = vmatpush2.msra.mxu0 0.0
      %4356 = vmatprep.subr.mxu0 0.0
      %4357 = vmatpush2.msra.mxu0 0.0
      %4358 = vmatprep.subr.mxu0 0.0
      %4359 = vmatpush2.msra.mxu0 0.0
      %4360 = vmatprep.subr.mxu0 0.0
      %4361 = vmatpush2.msra.mxu0 0.0
      %4362 = vmatprep.subr.mxu0 0.0
      %4363 = vmatpush2.msra.mxu0 0.0
      %4364 = vmatprep.mubr.f32.mxu0 0.0
      %4365 = vmatmul.mubr.f32.gmra.mxu0 %v4202
      %v4366 = vpop.f32.mrf.mxu0
      %v4367 = vadd.f32 0.0, %v4366
      %v4368 = vpop.f32.mrf.mxu0
      %4369 = vmatprep.mubr.f32.mxu0 0.0
      %4370 = vmatmul.mubr.f32.gmra.mxu0 %v4205
      %v4371 = vpop.f32.mrf.mxu0
      %v4372 = vadd.f32 0.0, %v4371
      %v4373 = vpop.f32.mrf.mxu0
      %4374 = vmatprep.mubr.f32.mxu0 0.0
      %4375 = vmatmul.mubr.f32.gmra.mxu0 %v4208
      %v4376 = vpop.f32.mrf.mxu0
      %v4377 = vadd.f32 0.0, %v4376
      %v4378 = vpop.f32.mrf.mxu0
      %4379 = vmatprep.mubr.f32.mxu0 0.0
      %4380 = vmatmul.mubr.f32.gmra.mxu0 %v4211
      %v4381 = vpop.f32.mrf.mxu0
      %v4382 = vadd.f32 0.0, %v4381
      %v4383 = vpop.f32.mrf.mxu0
      %4384 = vmatprep.mubr.f32.mxu0 0.0
      %4385 = vmatmul.mubr.f32.gmra.mxu0 %v4214
      %v4386 = vpop.f32.mrf.mxu0
      %v4387 = vadd.f32 0.0, %v4386
      %v4388 = vpop.f32.mrf.mxu0
      %4389 = vmatprep.mubr.f32.mxu0 0.0
      %4390 = vmatmul.mubr.f32.gmra.mxu0 %v4217
      %v4391 = vpop.f32.mrf.mxu0
      %v4392 = vadd.f32 0.0, %v4391
      %v4393 = vpop.f32.mrf.mxu0
      %4394 = vmatprep.mubr.f32.mxu0 0.0
      %4395 = vmatmul.mubr.f32.gmra.mxu0 %v4220
      %v4396 = vpop.f32.mrf.mxu0
      %v4397 = vadd.f32 0.0, %v4396
      %v4398 = vpop.f32.mrf.mxu0
      %4399 = vmatprep.mubr.f32.mxu0 0.0
      %4400 = vmatmul.mubr.f32.gmra.mxu0 %v4223
      %v4401 = vpop.f32.mrf.mxu0
      %v4402 = vadd.f32 0.0, %v4401
      %v4403 = vpop.f32.mrf.mxu0
      %4404 = vmatprep.mubr.f32.mxu0 0.0
      %4405 = vmatmul.mubr.f32.gmra.mxu0 %v4226
      %v4406 = vpop.f32.mrf.mxu0
      %v4407 = vadd.f32 0.0, %v4406
      %v4408 = vpop.f32.mrf.mxu0
      %4409 = vmatprep.mubr.f32.mxu0 0.0
      %4410 = vmatmul.mubr.f32.gmra.mxu0 %v4229
      %v4411 = vpop.f32.mrf.mxu0
      %v4412 = vadd.f32 0.0, %v4411
      %v4413 = vpop.f32.mrf.mxu0
      %4414 = vmatprep.mubr.f32.mxu0 0.0
      %4415 = vmatmul.mubr.f32.gmra.mxu0 %v4232
      %v4416 = vpop.f32.mrf.mxu0
      %v4417 = vadd.f32 0.0, %v4416
      %v4418 = vpop.f32.mrf.mxu0
      %4419 = vmatprep.mubr.f32.mxu0 0.0
      %4420 = vmatmul.mubr.f32.gmra.mxu0 %v4235
      %v4421 = vpop.f32.mrf.mxu0
      %v4422 = vadd.f32 0.0, %v4421
      %v4423 = vpop.f32.mrf.mxu0
      %4424 = vmatprep.mubr.f32.mxu0 0.0
      %4425 = vmatmul.mubr.f32.gmra.mxu0 %v4238
      %v4426 = vpop.f32.mrf.mxu0
      %v4427 = vadd.f32 0.0, %v4426
      %v4428 = vpop.f32.mrf.mxu0
      %4429 = vmatprep.mubr.f32.mxu0 0.0
      %4430 = vmatmul.mubr.f32.gmra.mxu0 %v4241
      %v4431 = vpop.f32.mrf.mxu0
      %v4432 = vadd.f32 0.0, %v4431
      %v4433 = vpop.f32.mrf.mxu0
      %4434 = vmatprep.mubr.f32.mxu0 0.0
      %4435 = vmatmul.mubr.f32.gmra.mxu0 %v4244
      %v4436 = vpop.f32.mrf.mxu0
      %v4437 = vadd.f32 0.0, %v4436
      %v4438 = vpop.f32.mrf.mxu0
      %4439 = vmatprep.mubr.f32.mxu0 0.0
      %4440 = vmatmul.mubr.f32.gmra.mxu0 %v4247
      %v4441 = vpop.f32.mrf.mxu0
      %v4442 = vadd.f32 0.0, %v4441
      %v4443 = vpop.f32.mrf.mxu0
      %4444 = vmatprep.mubr.f32.mxu0 0.0
      %4445 = vmatmul.mubr.f32.gmra.mxu0 %v4250
      %v4446 = vpop.f32.mrf.mxu0
      %v4447 = vadd.f32 0.0, %v4446
      %v4448 = vpop.f32.mrf.mxu0
      %4449 = vmatprep.mubr.f32.mxu0 0.0
      %4450 = vmatmul.mubr.f32.gmra.mxu0 %v4253
      %v4451 = vpop.f32.mrf.mxu0
      %v4452 = vadd.f32 0.0, %v4451
      %v4453 = vpop.f32.mrf.mxu0
      %4454 = vmatprep.mubr.f32.mxu0 0.0
      %4455 = vmatmul.mubr.f32.gmra.mxu0 %v4256
      %v4456 = vpop.f32.mrf.mxu0
      %v4457 = vadd.f32 0.0, %v4456
      %v4458 = vpop.f32.mrf.mxu0
      %4459 = vmatprep.mubr.f32.mxu0 0.0
      %4460 = vmatmul.mubr.f32.gmra.mxu0 %v4259
      %v4461 = vpop.f32.mrf.mxu0
      %v4462 = vadd.f32 0.0, %v4461
      %v4463 = vpop.f32.mrf.mxu0
      %4464 = vmatprep.mubr.f32.mxu0 0.0
      %4465 = vmatmul.mubr.f32.gmra.mxu0 %v4262
      %v4466 = vpop.f32.mrf.mxu0
      %v4467 = vadd.f32 0.0, %v4466
      %v4468 = vpop.f32.mrf.mxu0
      %4469 = vmatprep.mubr.f32.mxu0 0.0
      %4470 = vmatmul.mubr.f32.gmra.mxu0 %v4265
      %v4471 = vpop.f32.mrf.mxu0
      %v4472 = vadd.f32 0.0, %v4471
      %v4473 = vpop.f32.mrf.mxu0
      %4474 = vmatprep.mubr.f32.mxu0 0.0
      %4475 = vmatmul.mubr.f32.gmra.mxu0 %v4268
      %v4476 = vpop.f32.mrf.mxu0
      %v4477 = vadd.f32 0.0, %v4476
      %v4478 = vpop.f32.mrf.mxu0
      %4479 = vmatprep.mubr.f32.mxu0 0.0
      %4480 = vmatmul.mubr.f32.gmra.mxu0 %v4271
      %v4481 = vpop.f32.mrf.mxu0
      %v4482 = vadd.f32 0.0, %v4481
      %v4483 = vpop.f32.mrf.mxu0
      %4484 = vmatprep.mubr.f32.mxu0 0.0
      %4485 = vmatmul.mubr.f32.gmra.mxu0 %v4274
      %v4486 = vpop.f32.mrf.mxu0
      %v4487 = vadd.f32 0.0, %v4486
      %v4488 = vpop.f32.mrf.mxu0
      %4489 = vmatprep.mubr.f32.mxu0 0.0
      %4490 = vmatmul.mubr.f32.gmra.mxu0 %v4277
      %v4491 = vpop.f32.mrf.mxu0
      %v4492 = vadd.f32 0.0, %v4491
      %v4493 = vpop.f32.mrf.mxu0
      %4494 = vmatprep.mubr.f32.mxu0 0.0
      %4495 = vmatmul.mubr.f32.gmra.mxu0 %v4280
      %v4496 = vpop.f32.mrf.mxu0
      %v4497 = vadd.f32 0.0, %v4496
      %v4498 = vpop.f32.mrf.mxu0
      %4499 = vmatprep.mubr.f32.mxu0 0.0
      %4500 = vmatmul.mubr.f32.gmra.mxu0 %v4283
      %v4501 = vpop.f32.mrf.mxu0
      %v4502 = vadd.f32 0.0, %v4501
      %v4503 = vpop.f32.mrf.mxu0
      %4504 = vmatprep.mubr.f32.mxu0 0.0
      %4505 = vmatmul.mubr.f32.gmra.mxu0 %v4286
      %v4506 = vpop.f32.mrf.mxu0
      %v4507 = vadd.f32 0.0, %v4506
      %v4508 = vpop.f32.mrf.mxu0
      %4509 = vmatprep.mubr.f32.mxu0 0.0
      %4510 = vmatmul.mubr.f32.gmra.mxu0 %v4289
      %v4511 = vpop.f32.mrf.mxu0
      %v4512 = vadd.f32 0.0, %v4511
      %v4513 = vpop.f32.mrf.mxu0
      %4514 = vmatprep.mubr.f32.mxu0 0.0
      %4515 = vmatmul.mubr.f32.gmra.mxu0 %v4292
      %v4516 = vpop.f32.mrf.mxu0
      %v4517 = vadd.f32 0.0, %v4516
      %v4518 = vpop.f32.mrf.mxu0
      %4519 = vmatprep.mubr.f32.mxu0 0.0
      %4520 = vmatmul.mubr.f32.gmra.mxu0 %v4295
      %v4521 = vpop.f32.mrf.mxu0
      %v4522 = vadd.f32 0.0, %v4521
      %v4523 = vpop.f32.mrf.mxu0
      %4524 = vdwg.mxu0
      %v4525 = vadd.f32 %v4167, %v4367
      %v4526 = vadd.f32 %v4168, %v4372
      %v4527 = vadd.f32 %v4169, %v4377
      %v4528 = vadd.f32 %v4170, %v4382
      %v4529 = vadd.f32 %v4171, %v4387
      %v4530 = vadd.f32 %v4172, %v4392
      %v4531 = vadd.f32 %v4173, %v4397
      %v4532 = vadd.f32 %v4174, %v4402
      %v4533 = vadd.f32 %v4175, %v4407
      %v4534 = vadd.f32 %v4176, %v4412
      %v4535 = vadd.f32 %v4177, %v4417
      %v4536 = vadd.f32 %v4178, %v4422
      %v4537 = vadd.f32 %v4179, %v4427
      %v4538 = vadd.f32 %v4180, %v4432
      %v4539 = vadd.f32 %v4181, %v4437
      %v4540 = vadd.f32 %v4182, %v4442
      %v4541 = vadd.f32 %v4183, %v4447
      %v4542 = vadd.f32 %v4184, %v4452
      %v4543 = vadd.f32 %v4185, %v4457
      %v4544 = vadd.f32 %v4186, %v4462
      %v4545 = vadd.f32 %v4187, %v4467
      %v4546 = vadd.f32 %v4188, %v4472
      %v4547 = vadd.f32 %v4189, %v4477
      %v4548 = vadd.f32 %v4190, %v4482
      %v4549 = vadd.f32 %v4191, %v4487
      %v4550 = vadd.f32 %v4192, %v4492
      %v4551 = vadd.f32 %v4193, %v4497
      %v4552 = vadd.f32 %v4194, %v4502
      %v4553 = vadd.f32 %v4195, %v4507
      %v4554 = vadd.f32 %v4196, %v4512
      %v4555 = vadd.f32 %v4197, %v4517
      %v4556 = vadd.f32 %v4198, %v4522
      %v4557 = vld [vmem:[%s2996 + $0x2] sm:$0xff]
      %v4558 = vld [vmem:[%s2996 + $0xa] sm:$0xff]
      %v4559 = vld [vmem:[%s2996 + $0x1a] sm:$0xff]
      %v4560 = vld [vmem:[%s2996 + $0x22] sm:$0xff]
      %v4561 = vld [vmem:[%s2996 + $0x32] sm:$0xff]
      %v4562 = vld [vmem:[%s2996 + $0x3a] sm:$0xff]
      %v4563 = vld [vmem:[%s2996 + $0x4a] sm:$0xff]
      %v4564 = vld [vmem:[%s2996 + $0x52] sm:$0xff]
      %v4565 = vld [vmem:[%s2996 + $0x62] sm:$0xff]
      %v4566 = vld [vmem:[%s2996 + $0x6a] sm:$0xff]
      %v4567 = vld [vmem:[%s2996 + $0x7a] sm:$0xff]
      %v4568 = vld [vmem:[%s2996 + $0x82] sm:$0xff]
      %v4569 = vld [vmem:[%s2996 + $0x92] sm:$0xff]
      %v4570 = vld [vmem:[%s2996 + $0x9a] sm:$0xff]
      %v4571 = vld [vmem:[%s2996 + $0xaa] sm:$0xff]
      %v4572 = vld [vmem:[%s2996 + $0xb2] sm:$0xff]
      %v4573 = vld [vmem:[%s2996 + $0xc2] sm:$0xff]
      %v4574 = vld [vmem:[%s2996 + $0xca] sm:$0xff]
      %v4575 = vld [vmem:[%s2996 + $0xda] sm:$0xff]
      %v4576 = vld [vmem:[%s2996 + $0xe2] sm:$0xff]
      %v4577 = vld [vmem:[%s2996 + $0xf2] sm:$0xff]
      %v4578 = vld [vmem:[%s2996 + $0xfa] sm:$0xff]
      %v4579 = vld [vmem:[%s2996 + $0x10a] sm:$0xff]
      %v4580 = vld [vmem:[%s2996 + $0x112] sm:$0xff]
      %v4581 = vld [vmem:[%s2996 + $0x122] sm:$0xff]
      %v4582 = vld [vmem:[%s2996 + $0x12a] sm:$0xff]
      %v4583 = vld [vmem:[%s2996 + $0x13a] sm:$0xff]
      %v4584 = vld [vmem:[%s2996 + $0x142] sm:$0xff]
      %v4585 = vld [vmem:[%s2996 + $0x152] sm:$0xff]
      %v4586 = vld [vmem:[%s2996 + $0x15a] sm:$0xff]
      %v4587 = vld [vmem:[%s2996 + $0x16a] sm:$0xff]
      %v4588 = vld [vmem:[%s2996 + $0x172] sm:$0xff]
      %v4589 = vld [vmem:[%s688 + $0x2] sm:$0xff]
      %v4590 = vld [vmem:[%s688 + $0xa] sm:$0xff]
      %v4591 = vld [vmem:[%s688 + $0x1a] sm:$0xff]
      %v4592 = vld [vmem:[%s688 + $0x22] sm:$0xff]
      %v4593 = vld [vmem:[%s688 + $0x32] sm:$0xff]
      %v4594 = vld [vmem:[%s688 + $0x3a] sm:$0xff]
      %v4595 = vld [vmem:[%s688 + $0x4a] sm:$0xff]
      %v4596 = vld [vmem:[%s688 + $0x52] sm:$0xff]
      %v4597 = vld [vmem:[%s688 + $0x62] sm:$0xff]
      %v4598 = vld [vmem:[%s688 + $0x6a] sm:$0xff]
      %v4599 = vld [vmem:[%s688 + $0x7a] sm:$0xff]
      %v4600 = vld [vmem:[%s688 + $0x82] sm:$0xff]
      %v4601 = vld [vmem:[%s688 + $0x92] sm:$0xff]
      %v4602 = vld [vmem:[%s688 + $0x9a] sm:$0xff]
      %v4603 = vld [vmem:[%s688 + $0xaa] sm:$0xff]
      %v4604 = vld [vmem:[%s688 + $0xb2] sm:$0xff]
      %v4605 = vld [vmem:[%s688 + $0xc2] sm:$0xff]
      %v4606 = vld [vmem:[%s688 + $0xca] sm:$0xff]
      %v4607 = vld [vmem:[%s688 + $0xda] sm:$0xff]
      %v4608 = vld [vmem:[%s688 + $0xe2] sm:$0xff]
      %v4609 = vld [vmem:[%s688 + $0xf2] sm:$0xff]
      %v4610 = vld [vmem:[%s688 + $0xfa] sm:$0xff]
      %v4611 = vld [vmem:[%s688 + $0x10a] sm:$0xff]
      %v4612 = vld [vmem:[%s688 + $0x112] sm:$0xff]
      %v4613 = vld [vmem:[%s688 + $0x122] sm:$0xff]
      %v4614 = vld [vmem:[%s688 + $0x12a] sm:$0xff]
      %v4615 = vld [vmem:[%s688 + $0x13a] sm:$0xff]
      %v4616 = vld [vmem:[%s688 + $0x142] sm:$0xff]
      %v4617 = vld [vmem:[%s688 + $0x152] sm:$0xff]
      %v4618 = vld [vmem:[%s688 + $0x15a] sm:$0xff]
      %v4619 = vld [vmem:[%s688 + $0x16a] sm:$0xff]
      %v4620 = vld [vmem:[%s688 + $0x172] sm:$0xff]
      %s4621 = scalar_lea.vmem %s3, 20
      %v4622 = vld [vmem:[%s4621] sm:$0xf]
      %v4624 = vsel %vm632, %v4557, 0
      %v4627 = vsel %vm632, %v4558, 0
      %v4630 = vsel %vm632, %v4559, 0
      %v4633 = vsel %vm632, %v4560, 0
      %v4636 = vsel %vm632, %v4561, 0
      %v4639 = vsel %vm632, %v4562, 0
      %v4642 = vsel %vm632, %v4563, 0
      %v4645 = vsel %vm632, %v4564, 0
      %v4648 = vsel %vm632, %v4565, 0
      %v4651 = vsel %vm632, %v4566, 0
      %v4654 = vsel %vm632, %v4567, 0
      %v4657 = vsel %vm632, %v4568, 0
      %v4660 = vsel %vm632, %v4569, 0
      %v4663 = vsel %vm632, %v4570, 0
      %v4666 = vsel %vm632, %v4571, 0
      %v4669 = vsel %vm632, %v4572, 0
      %v4672 = vsel %vm632, %v4573, 0
      %v4675 = vsel %vm632, %v4574, 0
      %v4678 = vsel %vm632, %v4575, 0
      %v4681 = vsel %vm632, %v4576, 0
      %v4684 = vsel %vm632, %v4577, 0
      %v4687 = vsel %vm632, %v4578, 0
      %v4690 = vsel %vm632, %v4579, 0
      %v4693 = vsel %vm632, %v4580, 0
      %v4696 = vsel %vm632, %v4581, 0
      %v4699 = vsel %vm632, %v4582, 0
      %v4702 = vsel %vm632, %v4583, 0
      %v4705 = vsel %vm632, %v4584, 0
      %v4708 = vsel %vm632, %v4585, 0
      %v4711 = vsel %vm632, %v4586, 0
      %v4714 = vsel %vm632, %v4587, 0
      %v4717 = vsel %vm632, %v4588, 0
      %v4720 = vsel %vm883, %v4622, 0
      %4722 = vmatprep.subr.mxu0 0.0
      %4723 = vmatpush1.msra.mxu0 0.0
      %4724 = vmatprep.subr.mxu0 0.0
      %4725 = vmatpush1.msra.mxu0 0.0
      %4726 = vmatprep.subr.mxu0 0.0
      %4727 = vmatpush1.msra.mxu0 0.0
      %4728 = vmatprep.subr.mxu0 0.0
      %4729 = vmatpush1.msra.mxu0 0.0
      %4730 = vmatprep.subr.mxu0 0.0
      %4731 = vmatpush1.msra.mxu0 0.0
      %4732 = vmatprep.subr.mxu0 0.0
      %4733 = vmatpush1.msra.mxu0 0.0
      %4734 = vmatprep.subr.mxu0 0.0
      %4735 = vmatpush1.msra.mxu0 0.0
      %4736 = vmatprep.subr.mxu0 0.0
      %4737 = vmatpush1.msra.mxu0 0.0
      %4738 = vmatprep.subr.mxu0 0.0
      %4739 = vmatpush1.msra.mxu0 0.0
      %4740 = vmatprep.subr.mxu0 0.0
      %4741 = vmatpush1.msra.mxu0 0.0
      %4742 = vmatprep.subr.mxu0 0.0
      %4743 = vmatpush1.msra.mxu0 0.0
      %4744 = vmatprep.subr.mxu0 0.0
      %4745 = vmatpush1.msra.mxu0 0.0
      %4746 = vmatprep.subr.mxu0 0.0
      %4747 = vmatpush1.msra.mxu0 0.0
      %4748 = vmatprep.subr.mxu0 0.0
      %4749 = vmatpush1.msra.mxu0 0.0
      %4750 = vmatprep.subr.mxu0 0.0
      %4751 = vmatpush1.msra.mxu0 0.0
      %4752 = vmatprep.subr.mxu0 0.0
      %4753 = vmatpush1.msra.mxu0 %v4720
      %4754 = vmatprep.subr.mxu0 0.0
      %4755 = vmatpush2.msra.mxu0 0.0
      %4756 = vmatprep.subr.mxu0 0.0
      %4757 = vmatpush2.msra.mxu0 0.0
      %4758 = vmatprep.subr.mxu0 0.0
      %4759 = vmatpush2.msra.mxu0 0.0
      %4760 = vmatprep.subr.mxu0 0.0
      %4761 = vmatpush2.msra.mxu0 0.0
      %4762 = vmatprep.subr.mxu0 0.0
      %4763 = vmatpush2.msra.mxu0 0.0
      %4764 = vmatprep.subr.mxu0 0.0
      %4765 = vmatpush2.msra.mxu0 0.0
      %4766 = vmatprep.subr.mxu0 0.0
      %4767 = vmatpush2.msra.mxu0 0.0
      %4768 = vmatprep.subr.mxu0 0.0
      %4769 = vmatpush2.msra.mxu0 0.0
      %4770 = vmatprep.subr.mxu0 0.0
      %4771 = vmatpush2.msra.mxu0 0.0
      %4772 = vmatprep.subr.mxu0 0.0
      %4773 = vmatpush2.msra.mxu0 0.0
      %4774 = vmatprep.subr.mxu0 0.0
      %4775 = vmatpush2.msra.mxu0 0.0
      %4776 = vmatprep.subr.mxu0 0.0
      %4777 = vmatpush2.msra.mxu0 0.0
      %4778 = vmatprep.subr.mxu0 0.0
      %4779 = vmatpush2.msra.mxu0 0.0
      %4780 = vmatprep.subr.mxu0 0.0
      %4781 = vmatpush2.msra.mxu0 0.0
      %4782 = vmatprep.subr.mxu0 0.0
      %4783 = vmatpush2.msra.mxu0 0.0
      %4784 = vmatprep.subr.mxu0 0.0
      %4785 = vmatpush2.msra.mxu0 0.0
      %4786 = vmatprep.mubr.f32.mxu0 0.0
      %4787 = vmatmul.mubr.f32.gmra.mxu0 %v4624
      %v4788 = vpop.f32.mrf.mxu0
      %v4789 = vadd.f32 0.0, %v4788
      %v4790 = vpop.f32.mrf.mxu0
      %4791 = vmatprep.mubr.f32.mxu0 0.0
      %4792 = vmatmul.mubr.f32.gmra.mxu0 %v4627
      %v4793 = vpop.f32.mrf.mxu0
      %v4794 = vadd.f32 0.0, %v4793
      %v4795 = vpop.f32.mrf.mxu0
      %4796 = vmatprep.mubr.f32.mxu0 0.0
      %4797 = vmatmul.mubr.f32.gmra.mxu0 %v4630
      %v4798 = vpop.f32.mrf.mxu0
      %v4799 = vadd.f32 0.0, %v4798
      %v4800 = vpop.f32.mrf.mxu0
      %4801 = vmatprep.mubr.f32.mxu0 0.0
      %4802 = vmatmul.mubr.f32.gmra.mxu0 %v4633
      %v4803 = vpop.f32.mrf.mxu0
      %v4804 = vadd.f32 0.0, %v4803
      %v4805 = vpop.f32.mrf.mxu0
      %4806 = vmatprep.mubr.f32.mxu0 0.0
      %4807 = vmatmul.mubr.f32.gmra.mxu0 %v4636
      %v4808 = vpop.f32.mrf.mxu0
      %v4809 = vadd.f32 0.0, %v4808
      %v4810 = vpop.f32.mrf.mxu0
      %4811 = vmatprep.mubr.f32.mxu0 0.0
      %4812 = vmatmul.mubr.f32.gmra.mxu0 %v4639
      %v4813 = vpop.f32.mrf.mxu0
      %v4814 = vadd.f32 0.0, %v4813
      %v4815 = vpop.f32.mrf.mxu0
      %4816 = vmatprep.mubr.f32.mxu0 0.0
      %4817 = vmatmul.mubr.f32.gmra.mxu0 %v4642
      %v4818 = vpop.f32.mrf.mxu0
      %v4819 = vadd.f32 0.0, %v4818
      %v4820 = vpop.f32.mrf.mxu0
      %4821 = vmatprep.mubr.f32.mxu0 0.0
      %4822 = vmatmul.mubr.f32.gmra.mxu0 %v4645
      %v4823 = vpop.f32.mrf.mxu0
      %v4824 = vadd.f32 0.0, %v4823
      %v4825 = vpop.f32.mrf.mxu0
      %4826 = vmatprep.mubr.f32.mxu0 0.0
      %4827 = vmatmul.mubr.f32.gmra.mxu0 %v4648
      %v4828 = vpop.f32.mrf.mxu0
      %v4829 = vadd.f32 0.0, %v4828
      %v4830 = vpop.f32.mrf.mxu0
      %4831 = vmatprep.mubr.f32.mxu0 0.0
      %4832 = vmatmul.mubr.f32.gmra.mxu0 %v4651
      %v4833 = vpop.f32.mrf.mxu0
      %v4834 = vadd.f32 0.0, %v4833
      %v4835 = vpop.f32.mrf.mxu0
      %4836 = vmatprep.mubr.f32.mxu0 0.0
      %4837 = vmatmul.mubr.f32.gmra.mxu0 %v4654
      %v4838 = vpop.f32.mrf.mxu0
      %v4839 = vadd.f32 0.0, %v4838
      %v4840 = vpop.f32.mrf.mxu0
      %4841 = vmatprep.mubr.f32.mxu0 0.0
      %4842 = vmatmul.mubr.f32.gmra.mxu0 %v4657
      %v4843 = vpop.f32.mrf.mxu0
      %v4844 = vadd.f32 0.0, %v4843
      %v4845 = vpop.f32.mrf.mxu0
      %4846 = vmatprep.mubr.f32.mxu0 0.0
      %4847 = vmatmul.mubr.f32.gmra.mxu0 %v4660
      %v4848 = vpop.f32.mrf.mxu0
      %v4849 = vadd.f32 0.0, %v4848
      %v4850 = vpop.f32.mrf.mxu0
      %4851 = vmatprep.mubr.f32.mxu0 0.0
      %4852 = vmatmul.mubr.f32.gmra.mxu0 %v4663
      %v4853 = vpop.f32.mrf.mxu0
      %v4854 = vadd.f32 0.0, %v4853
      %v4855 = vpop.f32.mrf.mxu0
      %4856 = vmatprep.mubr.f32.mxu0 0.0
      %4857 = vmatmul.mubr.f32.gmra.mxu0 %v4666
      %v4858 = vpop.f32.mrf.mxu0
      %v4859 = vadd.f32 0.0, %v4858
      %v4860 = vpop.f32.mrf.mxu0
      %4861 = vmatprep.mubr.f32.mxu0 0.0
      %4862 = vmatmul.mubr.f32.gmra.mxu0 %v4669
      %v4863 = vpop.f32.mrf.mxu0
      %v4864 = vadd.f32 0.0, %v4863
      %v4865 = vpop.f32.mrf.mxu0
      %4866 = vmatprep.mubr.f32.mxu0 0.0
      %4867 = vmatmul.mubr.f32.gmra.mxu0 %v4672
      %v4868 = vpop.f32.mrf.mxu0
      %v4869 = vadd.f32 0.0, %v4868
      %v4870 = vpop.f32.mrf.mxu0
      %4871 = vmatprep.mubr.f32.mxu0 0.0
      %4872 = vmatmul.mubr.f32.gmra.mxu0 %v4675
      %v4873 = vpop.f32.mrf.mxu0
      %v4874 = vadd.f32 0.0, %v4873
      %v4875 = vpop.f32.mrf.mxu0
      %4876 = vmatprep.mubr.f32.mxu0 0.0
      %4877 = vmatmul.mubr.f32.gmra.mxu0 %v4678
      %v4878 = vpop.f32.mrf.mxu0
      %v4879 = vadd.f32 0.0, %v4878
      %v4880 = vpop.f32.mrf.mxu0
      %4881 = vmatprep.mubr.f32.mxu0 0.0
      %4882 = vmatmul.mubr.f32.gmra.mxu0 %v4681
      %v4883 = vpop.f32.mrf.mxu0
      %v4884 = vadd.f32 0.0, %v4883
      %v4885 = vpop.f32.mrf.mxu0
      %4886 = vmatprep.mubr.f32.mxu0 0.0
      %4887 = vmatmul.mubr.f32.gmra.mxu0 %v4684
      %v4888 = vpop.f32.mrf.mxu0
      %v4889 = vadd.f32 0.0, %v4888
      %v4890 = vpop.f32.mrf.mxu0
      %4891 = vmatprep.mubr.f32.mxu0 0.0
      %4892 = vmatmul.mubr.f32.gmra.mxu0 %v4687
      %v4893 = vpop.f32.mrf.mxu0
      %v4894 = vadd.f32 0.0, %v4893
      %v4895 = vpop.f32.mrf.mxu0
      %4896 = vmatprep.mubr.f32.mxu0 0.0
      %4897 = vmatmul.mubr.f32.gmra.mxu0 %v4690
      %v4898 = vpop.f32.mrf.mxu0
      %v4899 = vadd.f32 0.0, %v4898
      %v4900 = vpop.f32.mrf.mxu0
      %4901 = vmatprep.mubr.f32.mxu0 0.0
      %4902 = vmatmul.mubr.f32.gmra.mxu0 %v4693
      %v4903 = vpop.f32.mrf.mxu0
      %v4904 = vadd.f32 0.0, %v4903
      %v4905 = vpop.f32.mrf.mxu0
      %4906 = vmatprep.mubr.f32.mxu0 0.0
      %4907 = vmatmul.mubr.f32.gmra.mxu0 %v4696
      %v4908 = vpop.f32.mrf.mxu0
      %v4909 = vadd.f32 0.0, %v4908
      %v4910 = vpop.f32.mrf.mxu0
      %4911 = vmatprep.mubr.f32.mxu0 0.0
      %4912 = vmatmul.mubr.f32.gmra.mxu0 %v4699
      %v4913 = vpop.f32.mrf.mxu0
      %v4914 = vadd.f32 0.0, %v4913
      %v4915 = vpop.f32.mrf.mxu0
      %4916 = vmatprep.mubr.f32.mxu0 0.0
      %4917 = vmatmul.mubr.f32.gmra.mxu0 %v4702
      %v4918 = vpop.f32.mrf.mxu0
      %v4919 = vadd.f32 0.0, %v4918
      %v4920 = vpop.f32.mrf.mxu0
      %4921 = vmatprep.mubr.f32.mxu0 0.0
      %4922 = vmatmul.mubr.f32.gmra.mxu0 %v4705
      %v4923 = vpop.f32.mrf.mxu0
      %v4924 = vadd.f32 0.0, %v4923
      %v4925 = vpop.f32.mrf.mxu0
      %4926 = vmatprep.mubr.f32.mxu0 0.0
      %4927 = vmatmul.mubr.f32.gmra.mxu0 %v4708
      %v4928 = vpop.f32.mrf.mxu0
      %v4929 = vadd.f32 0.0, %v4928
      %v4930 = vpop.f32.mrf.mxu0
      %4931 = vmatprep.mubr.f32.mxu0 0.0
      %4932 = vmatmul.mubr.f32.gmra.mxu0 %v4711
      %v4933 = vpop.f32.mrf.mxu0
      %v4934 = vadd.f32 0.0, %v4933
      %v4935 = vpop.f32.mrf.mxu0
      %4936 = vmatprep.mubr.f32.mxu0 0.0
      %4937 = vmatmul.mubr.f32.gmra.mxu0 %v4714
      %v4938 = vpop.f32.mrf.mxu0
      %v4939 = vadd.f32 0.0, %v4938
      %v4940 = vpop.f32.mrf.mxu0
      %4941 = vmatprep.mubr.f32.mxu0 0.0
      %4942 = vmatmul.mubr.f32.gmra.mxu0 %v4717
      %v4943 = vpop.f32.mrf.mxu0
      %v4944 = vadd.f32 0.0, %v4943
      %v4945 = vpop.f32.mrf.mxu0
      %4946 = vdwg.mxu0
      %v4947 = vadd.f32 %v4525, %v4789
      %v4948 = vadd.f32 %v4526, %v4794
      %v4949 = vadd.f32 %v4527, %v4799
      %v4950 = vadd.f32 %v4528, %v4804
      %v4951 = vadd.f32 %v4529, %v4809
      %v4952 = vadd.f32 %v4530, %v4814
      %v4953 = vadd.f32 %v4531, %v4819
      %v4954 = vadd.f32 %v4532, %v4824
      %v4955 = vadd.f32 %v4533, %v4829
      %v4956 = vadd.f32 %v4534, %v4834
      %v4957 = vadd.f32 %v4535, %v4839
      %v4958 = vadd.f32 %v4536, %v4844
      %v4959 = vadd.f32 %v4537, %v4849
      %v4960 = vadd.f32 %v4538, %v4854
      %v4961 = vadd.f32 %v4539, %v4859
      %v4962 = vadd.f32 %v4540, %v4864
      %v4963 = vadd.f32 %v4541, %v4869
      %v4964 = vadd.f32 %v4542, %v4874
      %v4965 = vadd.f32 %v4543, %v4879
      %v4966 = vadd.f32 %v4544, %v4884
      %v4967 = vadd.f32 %v4545, %v4889
      %v4968 = vadd.f32 %v4546, %v4894
      %v4969 = vadd.f32 %v4547, %v4899
      %v4970 = vadd.f32 %v4548, %v4904
      %v4971 = vadd.f32 %v4549, %v4909
      %v4972 = vadd.f32 %v4550, %v4914
      %v4973 = vadd.f32 %v4551, %v4919
      %v4974 = vadd.f32 %v4552, %v4924
      %v4975 = vadd.f32 %v4553, %v4929
      %v4976 = vadd.f32 %v4554, %v4934
      %v4977 = vadd.f32 %v4555, %v4939
      %v4978 = vadd.f32 %v4556, %v4944
      %s4979 = scalar_lea.vmem %s4, 20
      %v4980 = vld [vmem:[%s4979] sm:$0xf]
      %v4982 = vsel %vm632, %v4589, 0
      %v4985 = vsel %vm632, %v4590, 0
      %v4988 = vsel %vm632, %v4591, 0
      %v4991 = vsel %vm632, %v4592, 0
      %v4994 = vsel %vm632, %v4593, 0
      %v4997 = vsel %vm632, %v4594, 0
      %v5000 = vsel %vm632, %v4595, 0
      %v5003 = vsel %vm632, %v4596, 0
      %v5006 = vsel %vm632, %v4597, 0
      %v5009 = vsel %vm632, %v4598, 0
      %v5012 = vsel %vm632, %v4599, 0
      %v5015 = vsel %vm632, %v4600, 0
      %v5018 = vsel %vm632, %v4601, 0
      %v5021 = vsel %vm632, %v4602, 0
      %v5024 = vsel %vm632, %v4603, 0
      %v5027 = vsel %vm632, %v4604, 0
      %v5030 = vsel %vm632, %v4605, 0
      %v5033 = vsel %vm632, %v4606, 0
      %v5036 = vsel %vm632, %v4607, 0
      %v5039 = vsel %vm632, %v4608, 0
      %v5042 = vsel %vm632, %v4609, 0
      %v5045 = vsel %vm632, %v4610, 0
      %v5048 = vsel %vm632, %v4611, 0
      %v5051 = vsel %vm632, %v4612, 0
      %v5054 = vsel %vm632, %v4613, 0
      %v5057 = vsel %vm632, %v4614, 0
      %v5060 = vsel %vm632, %v4615, 0
      %v5063 = vsel %vm632, %v4616, 0
      %v5066 = vsel %vm632, %v4617, 0
      %v5069 = vsel %vm632, %v4618, 0
      %v5072 = vsel %vm632, %v4619, 0
      %v5075 = vsel %vm632, %v4620, 0
      %v5078 = vsel %vm883, %v4980, 0
      %5080 = vmatprep.subr.mxu0 0.0
      %5081 = vmatpush1.msra.mxu0 0.0
      %5082 = vmatprep.subr.mxu0 0.0
      %5083 = vmatpush1.msra.mxu0 0.0
      %5084 = vmatprep.subr.mxu0 0.0
      %5085 = vmatpush1.msra.mxu0 0.0
      %5086 = vmatprep.subr.mxu0 0.0
      %5087 = vmatpush1.msra.mxu0 0.0
      %5088 = vmatprep.subr.mxu0 0.0
      %5089 = vmatpush1.msra.mxu0 0.0
      %5090 = vmatprep.subr.mxu0 0.0
      %5091 = vmatpush1.msra.mxu0 0.0
      %5092 = vmatprep.subr.mxu0 0.0
      %5093 = vmatpush1.msra.mxu0 0.0
      %5094 = vmatprep.subr.mxu0 0.0
      %5095 = vmatpush1.msra.mxu0 0.0
      %5096 = vmatprep.subr.mxu0 0.0
      %5097 = vmatpush1.msra.mxu0 0.0
      %5098 = vmatprep.subr.mxu0 0.0
      %5099 = vmatpush1.msra.mxu0 0.0
      %5100 = vmatprep.subr.mxu0 0.0
      %5101 = vmatpush1.msra.mxu0 0.0
      %5102 = vmatprep.subr.mxu0 0.0
      %5103 = vmatpush1.msra.mxu0 0.0
      %5104 = vmatprep.subr.mxu0 0.0
      %5105 = vmatpush1.msra.mxu0 0.0
      %5106 = vmatprep.subr.mxu0 0.0
      %5107 = vmatpush1.msra.mxu0 0.0
      %5108 = vmatprep.subr.mxu0 0.0
      %5109 = vmatpush1.msra.mxu0 0.0
      %5110 = vmatprep.subr.mxu0 0.0
      %5111 = vmatpush1.msra.mxu0 %v5078
      %5112 = vmatprep.subr.mxu0 0.0
      %5113 = vmatpush2.msra.mxu0 0.0
      %5114 = vmatprep.subr.mxu0 0.0
      %5115 = vmatpush2.msra.mxu0 0.0
      %5116 = vmatprep.subr.mxu0 0.0
      %5117 = vmatpush2.msra.mxu0 0.0
      %5118 = vmatprep.subr.mxu0 0.0
      %5119 = vmatpush2.msra.mxu0 0.0
      %5120 = vmatprep.subr.mxu0 0.0
      %5121 = vmatpush2.msra.mxu0 0.0
      %5122 = vmatprep.subr.mxu0 0.0
      %5123 = vmatpush2.msra.mxu0 0.0
      %5124 = vmatprep.subr.mxu0 0.0
      %5125 = vmatpush2.msra.mxu0 0.0
      %5126 = vmatprep.subr.mxu0 0.0
      %5127 = vmatpush2.msra.mxu0 0.0
      %5128 = vmatprep.subr.mxu0 0.0
      %5129 = vmatpush2.msra.mxu0 0.0
      %5130 = vmatprep.subr.mxu0 0.0
      %5131 = vmatpush2.msra.mxu0 0.0
      %5132 = vmatprep.subr.mxu0 0.0
      %5133 = vmatpush2.msra.mxu0 0.0
      %5134 = vmatprep.subr.mxu0 0.0
      %5135 = vmatpush2.msra.mxu0 0.0
      %5136 = vmatprep.subr.mxu0 0.0
      %5137 = vmatpush2.msra.mxu0 0.0
      %5138 = vmatprep.subr.mxu0 0.0
      %5139 = vmatpush2.msra.mxu0 0.0
      %5140 = vmatprep.subr.mxu0 0.0
      %5141 = vmatpush2.msra.mxu0 0.0
      %5142 = vmatprep.subr.mxu0 0.0
      %5143 = vmatpush2.msra.mxu0 0.0
      %5144 = vmatprep.mubr.f32.mxu0 0.0
      %5145 = vmatmul.mubr.f32.gmra.mxu0 %v4982
      %v5146 = vpop.f32.mrf.mxu0
      %v5147 = vadd.f32 0.0, %v5146
      %v5148 = vpop.f32.mrf.mxu0
      %5149 = vmatprep.mubr.f32.mxu0 0.0
      %5150 = vmatmul.mubr.f32.gmra.mxu0 %v4985
      %v5151 = vpop.f32.mrf.mxu0
      %v5152 = vadd.f32 0.0, %v5151
      %v5153 = vpop.f32.mrf.mxu0
      %5154 = vmatprep.mubr.f32.mxu0 0.0
      %5155 = vmatmul.mubr.f32.gmra.mxu0 %v4988
      %v5156 = vpop.f32.mrf.mxu0
      %v5157 = vadd.f32 0.0, %v5156
      %v5158 = vpop.f32.mrf.mxu0
      %5159 = vmatprep.mubr.f32.mxu0 0.0
      %5160 = vmatmul.mubr.f32.gmra.mxu0 %v4991
      %v5161 = vpop.f32.mrf.mxu0
      %v5162 = vadd.f32 0.0, %v5161
      %v5163 = vpop.f32.mrf.mxu0
      %5164 = vmatprep.mubr.f32.mxu0 0.0
      %5165 = vmatmul.mubr.f32.gmra.mxu0 %v4994
      %v5166 = vpop.f32.mrf.mxu0
      %v5167 = vadd.f32 0.0, %v5166
      %v5168 = vpop.f32.mrf.mxu0
      %5169 = vmatprep.mubr.f32.mxu0 0.0
      %5170 = vmatmul.mubr.f32.gmra.mxu0 %v4997
      %v5171 = vpop.f32.mrf.mxu0
      %v5172 = vadd.f32 0.0, %v5171
      %v5173 = vpop.f32.mrf.mxu0
      %5174 = vmatprep.mubr.f32.mxu0 0.0
      %5175 = vmatmul.mubr.f32.gmra.mxu0 %v5000
      %v5176 = vpop.f32.mrf.mxu0
      %v5177 = vadd.f32 0.0, %v5176
      %v5178 = vpop.f32.mrf.mxu0
      %5179 = vmatprep.mubr.f32.mxu0 0.0
      %5180 = vmatmul.mubr.f32.gmra.mxu0 %v5003
      %v5181 = vpop.f32.mrf.mxu0
      %v5182 = vadd.f32 0.0, %v5181
      %v5183 = vpop.f32.mrf.mxu0
      %5184 = vmatprep.mubr.f32.mxu0 0.0
      %5185 = vmatmul.mubr.f32.gmra.mxu0 %v5006
      %v5186 = vpop.f32.mrf.mxu0
      %v5187 = vadd.f32 0.0, %v5186
      %v5188 = vpop.f32.mrf.mxu0
      %5189 = vmatprep.mubr.f32.mxu0 0.0
      %5190 = vmatmul.mubr.f32.gmra.mxu0 %v5009
      %v5191 = vpop.f32.mrf.mxu0
      %v5192 = vadd.f32 0.0, %v5191
      %v5193 = vpop.f32.mrf.mxu0
      %5194 = vmatprep.mubr.f32.mxu0 0.0
      %5195 = vmatmul.mubr.f32.gmra.mxu0 %v5012
      %v5196 = vpop.f32.mrf.mxu0
      %v5197 = vadd.f32 0.0, %v5196
      %v5198 = vpop.f32.mrf.mxu0
      %5199 = vmatprep.mubr.f32.mxu0 0.0
      %5200 = vmatmul.mubr.f32.gmra.mxu0 %v5015
      %v5201 = vpop.f32.mrf.mxu0
      %v5202 = vadd.f32 0.0, %v5201
      %v5203 = vpop.f32.mrf.mxu0
      %5204 = vmatprep.mubr.f32.mxu0 0.0
      %5205 = vmatmul.mubr.f32.gmra.mxu0 %v5018
      %v5206 = vpop.f32.mrf.mxu0
      %v5207 = vadd.f32 0.0, %v5206
      %v5208 = vpop.f32.mrf.mxu0
      %5209 = vmatprep.mubr.f32.mxu0 0.0
      %5210 = vmatmul.mubr.f32.gmra.mxu0 %v5021
      %v5211 = vpop.f32.mrf.mxu0
      %v5212 = vadd.f32 0.0, %v5211
      %v5213 = vpop.f32.mrf.mxu0
      %5214 = vmatprep.mubr.f32.mxu0 0.0
      %5215 = vmatmul.mubr.f32.gmra.mxu0 %v5024
      %v5216 = vpop.f32.mrf.mxu0
      %v5217 = vadd.f32 0.0, %v5216
      %v5218 = vpop.f32.mrf.mxu0
      %5219 = vmatprep.mubr.f32.mxu0 0.0
      %5220 = vmatmul.mubr.f32.gmra.mxu0 %v5027
      %v5221 = vpop.f32.mrf.mxu0
      %v5222 = vadd.f32 0.0, %v5221
      %v5223 = vpop.f32.mrf.mxu0
      %5224 = vmatprep.mubr.f32.mxu0 0.0
      %5225 = vmatmul.mubr.f32.gmra.mxu0 %v5030
      %v5226 = vpop.f32.mrf.mxu0
      %v5227 = vadd.f32 0.0, %v5226
      %v5228 = vpop.f32.mrf.mxu0
      %5229 = vmatprep.mubr.f32.mxu0 0.0
      %5230 = vmatmul.mubr.f32.gmra.mxu0 %v5033
      %v5231 = vpop.f32.mrf.mxu0
      %v5232 = vadd.f32 0.0, %v5231
      %v5233 = vpop.f32.mrf.mxu0
      %5234 = vmatprep.mubr.f32.mxu0 0.0
      %5235 = vmatmul.mubr.f32.gmra.mxu0 %v5036
      %v5236 = vpop.f32.mrf.mxu0
      %v5237 = vadd.f32 0.0, %v5236
      %v5238 = vpop.f32.mrf.mxu0
      %5239 = vmatprep.mubr.f32.mxu0 0.0
      %5240 = vmatmul.mubr.f32.gmra.mxu0 %v5039
      %v5241 = vpop.f32.mrf.mxu0
      %v5242 = vadd.f32 0.0, %v5241
      %v5243 = vpop.f32.mrf.mxu0
      %5244 = vmatprep.mubr.f32.mxu0 0.0
      %5245 = vmatmul.mubr.f32.gmra.mxu0 %v5042
      %v5246 = vpop.f32.mrf.mxu0
      %v5247 = vadd.f32 0.0, %v5246
      %v5248 = vpop.f32.mrf.mxu0
      %5249 = vmatprep.mubr.f32.mxu0 0.0
      %5250 = vmatmul.mubr.f32.gmra.mxu0 %v5045
      %v5251 = vpop.f32.mrf.mxu0
      %v5252 = vadd.f32 0.0, %v5251
      %v5253 = vpop.f32.mrf.mxu0
      %5254 = vmatprep.mubr.f32.mxu0 0.0
      %5255 = vmatmul.mubr.f32.gmra.mxu0 %v5048
      %v5256 = vpop.f32.mrf.mxu0
      %v5257 = vadd.f32 0.0, %v5256
      %v5258 = vpop.f32.mrf.mxu0
      %5259 = vmatprep.mubr.f32.mxu0 0.0
      %5260 = vmatmul.mubr.f32.gmra.mxu0 %v5051
      %v5261 = vpop.f32.mrf.mxu0
      %v5262 = vadd.f32 0.0, %v5261
      %v5263 = vpop.f32.mrf.mxu0
      %5264 = vmatprep.mubr.f32.mxu0 0.0
      %5265 = vmatmul.mubr.f32.gmra.mxu0 %v5054
      %v5266 = vpop.f32.mrf.mxu0
      %v5267 = vadd.f32 0.0, %v5266
      %v5268 = vpop.f32.mrf.mxu0
      %5269 = vmatprep.mubr.f32.mxu0 0.0
      %5270 = vmatmul.mubr.f32.gmra.mxu0 %v5057
      %v5271 = vpop.f32.mrf.mxu0
      %v5272 = vadd.f32 0.0, %v5271
      %v5273 = vpop.f32.mrf.mxu0
      %5274 = vmatprep.mubr.f32.mxu0 0.0
      %5275 = vmatmul.mubr.f32.gmra.mxu0 %v5060
      %v5276 = vpop.f32.mrf.mxu0
      %v5277 = vadd.f32 0.0, %v5276
      %v5278 = vpop.f32.mrf.mxu0
      %5279 = vmatprep.mubr.f32.mxu0 0.0
      %5280 = vmatmul.mubr.f32.gmra.mxu0 %v5063
      %v5281 = vpop.f32.mrf.mxu0
      %v5282 = vadd.f32 0.0, %v5281
      %v5283 = vpop.f32.mrf.mxu0
      %5284 = vmatprep.mubr.f32.mxu0 0.0
      %5285 = vmatmul.mubr.f32.gmra.mxu0 %v5066
      %v5286 = vpop.f32.mrf.mxu0
      %v5287 = vadd.f32 0.0, %v5286
      %v5288 = vpop.f32.mrf.mxu0
      %5289 = vmatprep.mubr.f32.mxu0 0.0
      %5290 = vmatmul.mubr.f32.gmra.mxu0 %v5069
      %v5291 = vpop.f32.mrf.mxu0
      %v5292 = vadd.f32 0.0, %v5291
      %v5293 = vpop.f32.mrf.mxu0
      %5294 = vmatprep.mubr.f32.mxu0 0.0
      %5295 = vmatmul.mubr.f32.gmra.mxu0 %v5072
      %v5296 = vpop.f32.mrf.mxu0
      %v5297 = vadd.f32 0.0, %v5296
      %v5298 = vpop.f32.mrf.mxu0
      %5299 = vmatprep.mubr.f32.mxu0 0.0
      %5300 = vmatmul.mubr.f32.gmra.mxu0 %v5075
      %v5301 = vpop.f32.mrf.mxu0
      %v5302 = vadd.f32 0.0, %v5301
      %v5303 = vpop.f32.mrf.mxu0
      %5304 = vdwg.mxu0
      %v5305 = vadd.f32 %v4947, %v5147
      %v5306 = vadd.f32 %v4948, %v5152
      %v5307 = vadd.f32 %v4949, %v5157
      %v5308 = vadd.f32 %v4950, %v5162
      %v5309 = vadd.f32 %v4951, %v5167
      %v5310 = vadd.f32 %v4952, %v5172
      %v5311 = vadd.f32 %v4953, %v5177
      %v5312 = vadd.f32 %v4954, %v5182
      %v5313 = vadd.f32 %v4955, %v5187
      %v5314 = vadd.f32 %v4956, %v5192
      %v5315 = vadd.f32 %v4957, %v5197
      %v5316 = vadd.f32 %v4958, %v5202
      %v5317 = vadd.f32 %v4959, %v5207
      %v5318 = vadd.f32 %v4960, %v5212
      %v5319 = vadd.f32 %v4961, %v5217
      %v5320 = vadd.f32 %v4962, %v5222
      %v5321 = vadd.f32 %v4963, %v5227
      %v5322 = vadd.f32 %v4964, %v5232
      %v5323 = vadd.f32 %v4965, %v5237
      %v5324 = vadd.f32 %v4966, %v5242
      %v5325 = vadd.f32 %v4967, %v5247
      %v5326 = vadd.f32 %v4968, %v5252
      %v5327 = vadd.f32 %v4969, %v5257
      %v5328 = vadd.f32 %v4970, %v5262
      %v5329 = vadd.f32 %v4971, %v5267
      %v5330 = vadd.f32 %v4972, %v5272
      %v5331 = vadd.f32 %v4973, %v5277
      %v5332 = vadd.f32 %v4974, %v5282
      %v5333 = vadd.f32 %v4975, %v5287
      %v5334 = vadd.f32 %v4976, %v5292
      %v5335 = vadd.f32 %v4977, %v5297
      %v5336 = vadd.f32 %v4978, %v5302
      %s5337 = scalar_lea.vmem %s261, 48
      %v5338 = vld [vmem:[%s5337] sm:$0xff]
      %v5339 = vld [vmem:[%s5337 + $0x8] sm:$0xff]
      %v5340 = vld [vmem:[%s5337 + $0x18] sm:$0xff]
      %v5341 = vld [vmem:[%s5337 + $0x20] sm:$0xff]
      %v5342 = vld [vmem:[%s5337 + $0x30] sm:$0xff]
      %v5343 = vld [vmem:[%s5337 + $0x38] sm:$0xff]
      %v5344 = vld [vmem:[%s5337 + $0x48] sm:$0xff]
      %v5345 = vld [vmem:[%s5337 + $0x50] sm:$0xff]
      %v5346 = vld [vmem:[%s5337 + $0x60] sm:$0xff]
      %v5347 = vld [vmem:[%s5337 + $0x68] sm:$0xff]
      %v5348 = vld [vmem:[%s5337 + $0x78] sm:$0xff]
      %v5349 = vld [vmem:[%s5337 + $0x80] sm:$0xff]
      %v5350 = vld [vmem:[%s5337 + $0x90] sm:$0xff]
      %v5351 = vld [vmem:[%s5337 + $0x98] sm:$0xff]
      %v5352 = vld [vmem:[%s5337 + $0xa8] sm:$0xff]
      %v5353 = vld [vmem:[%s5337 + $0xb0] sm:$0xff]
      %v5354 = vld [vmem:[%s5337 + $0xc0] sm:$0xff]
      %v5355 = vld [vmem:[%s5337 + $0xc8] sm:$0xff]
      %v5356 = vld [vmem:[%s5337 + $0xd8] sm:$0xff]
      %v5357 = vld [vmem:[%s5337 + $0xe0] sm:$0xff]
      %v5358 = vld [vmem:[%s5337 + $0xf0] sm:$0xff]
      %v5359 = vld [vmem:[%s5337 + $0xf8] sm:$0xff]
      %v5360 = vld [vmem:[%s5337 + $0x108] sm:$0xff]
      %v5361 = vld [vmem:[%s5337 + $0x110] sm:$0xff]
      %v5362 = vld [vmem:[%s5337 + $0x120] sm:$0xff]
      %v5363 = vld [vmem:[%s5337 + $0x128] sm:$0xff]
      %v5364 = vld [vmem:[%s5337 + $0x138] sm:$0xff]
      %v5365 = vld [vmem:[%s5337 + $0x140] sm:$0xff]
      %v5366 = vld [vmem:[%s5337 + $0x150] sm:$0xff]
      %v5367 = vld [vmem:[%s5337 + $0x158] sm:$0xff]
      %v5368 = vld [vmem:[%s5337 + $0x168] sm:$0xff]
      %v5369 = vld [vmem:[%s5337 + $0x170] sm:$0xff]
      %s5370 = scalar_lea.vmem [#allocation2], 48
      %v5371 = vld [vmem:[%s5370] sm:$0xff]
      %v5372 = vld [vmem:[%s5370 + $0x8] sm:$0xff]
      %v5373 = vld [vmem:[%s5370 + $0x18] sm:$0xff]
      %v5374 = vld [vmem:[%s5370 + $0x20] sm:$0xff]
      %v5375 = vld [vmem:[%s5370 + $0x30] sm:$0xff]
      %v5376 = vld [vmem:[%s5370 + $0x38] sm:$0xff]
      %v5377 = vld [vmem:[%s5370 + $0x48] sm:$0xff]
      %v5378 = vld [vmem:[%s5370 + $0x50] sm:$0xff]
      %v5379 = vld [vmem:[%s5370 + $0x60] sm:$0xff]
      %v5380 = vld [vmem:[%s5370 + $0x68] sm:$0xff]
      %v5381 = vld [vmem:[%s5370 + $0x78] sm:$0xff]
      %v5382 = vld [vmem:[%s5370 + $0x80] sm:$0xff]
      %v5383 = vld [vmem:[%s5370 + $0x90] sm:$0xff]
      %v5384 = vld [vmem:[%s5370 + $0x98] sm:$0xff]
      %v5385 = vld [vmem:[%s5370 + $0xa8] sm:$0xff]
      %v5386 = vld [vmem:[%s5370 + $0xb0] sm:$0xff]
      %v5387 = vld [vmem:[%s5370 + $0xc0] sm:$0xff]
      %v5388 = vld [vmem:[%s5370 + $0xc8] sm:$0xff]
      %v5389 = vld [vmem:[%s5370 + $0xd8] sm:$0xff]
      %v5390 = vld [vmem:[%s5370 + $0xe0] sm:$0xff]
      %v5391 = vld [vmem:[%s5370 + $0xf0] sm:$0xff]
      %v5392 = vld [vmem:[%s5370 + $0xf8] sm:$0xff]
      %v5393 = vld [vmem:[%s5370 + $0x108] sm:$0xff]
      %v5394 = vld [vmem:[%s5370 + $0x110] sm:$0xff]
      %v5395 = vld [vmem:[%s5370 + $0x120] sm:$0xff]
      %v5396 = vld [vmem:[%s5370 + $0x128] sm:$0xff]
      %v5397 = vld [vmem:[%s5370 + $0x138] sm:$0xff]
      %v5398 = vld [vmem:[%s5370 + $0x140] sm:$0xff]
      %v5399 = vld [vmem:[%s5370 + $0x150] sm:$0xff]
      %v5400 = vld [vmem:[%s5370 + $0x158] sm:$0xff]
      %v5401 = vld [vmem:[%s5370 + $0x168] sm:$0xff]
      %v5402 = vld [vmem:[%s5370 + $0x170] sm:$0xff]
      %s5403 = scalar_lea.vmem %s3, 24
      %v5404 = vld [vmem:[%s5403] sm:$0xf]
      %v5406 = vsel %vm632, %v5338, 0
      %v5409 = vsel %vm632, %v5339, 0
      %v5412 = vsel %vm632, %v5340, 0
      %v5415 = vsel %vm632, %v5341, 0
      %v5418 = vsel %vm632, %v5342, 0
      %v5421 = vsel %vm632, %v5343, 0
      %v5424 = vsel %vm632, %v5344, 0
      %v5427 = vsel %vm632, %v5345, 0
      %v5430 = vsel %vm632, %v5346, 0
      %v5433 = vsel %vm632, %v5347, 0
      %v5436 = vsel %vm632, %v5348, 0
      %v5439 = vsel %vm632, %v5349, 0
      %v5442 = vsel %vm632, %v5350, 0
      %v5445 = vsel %vm632, %v5351, 0
      %v5448 = vsel %vm632, %v5352, 0
      %v5451 = vsel %vm632, %v5353, 0
      %v5454 = vsel %vm632, %v5354, 0
      %v5457 = vsel %vm632, %v5355, 0
      %v5460 = vsel %vm632, %v5356, 0
      %v5463 = vsel %vm632, %v5357, 0
      %v5466 = vsel %vm632, %v5358, 0
      %v5469 = vsel %vm632, %v5359, 0
      %v5472 = vsel %vm632, %v5360, 0
      %v5475 = vsel %vm632, %v5361, 0
      %v5478 = vsel %vm632, %v5362, 0
      %v5481 = vsel %vm632, %v5363, 0
      %v5484 = vsel %vm632, %v5364, 0
      %v5487 = vsel %vm632, %v5365, 0
      %v5490 = vsel %vm632, %v5366, 0
      %v5493 = vsel %vm632, %v5367, 0
      %v5496 = vsel %vm632, %v5368, 0
      %v5499 = vsel %vm632, %v5369, 0
      %v5502 = vsel %vm883, %v5404, 0
      %5504 = vmatprep.subr.mxu0 0.0
      %5505 = vmatpush1.msra.mxu0 0.0
      %5506 = vmatprep.subr.mxu0 0.0
      %5507 = vmatpush1.msra.mxu0 0.0
      %5508 = vmatprep.subr.mxu0 0.0
      %5509 = vmatpush1.msra.mxu0 0.0
      %5510 = vmatprep.subr.mxu0 0.0
      %5511 = vmatpush1.msra.mxu0 0.0
      %5512 = vmatprep.subr.mxu0 0.0
      %5513 = vmatpush1.msra.mxu0 0.0
      %5514 = vmatprep.subr.mxu0 0.0
      %5515 = vmatpush1.msra.mxu0 0.0
      %5516 = vmatprep.subr.mxu0 0.0
      %5517 = vmatpush1.msra.mxu0 0.0
      %5518 = vmatprep.subr.mxu0 0.0
      %5519 = vmatpush1.msra.mxu0 0.0
      %5520 = vmatprep.subr.mxu0 0.0
      %5521 = vmatpush1.msra.mxu0 0.0
      %5522 = vmatprep.subr.mxu0 0.0
      %5523 = vmatpush1.msra.mxu0 0.0
      %5524 = vmatprep.subr.mxu0 0.0
      %5525 = vmatpush1.msra.mxu0 0.0
      %5526 = vmatprep.subr.mxu0 0.0
      %5527 = vmatpush1.msra.mxu0 0.0
      %5528 = vmatprep.subr.mxu0 0.0
      %5529 = vmatpush1.msra.mxu0 0.0
      %5530 = vmatprep.subr.mxu0 0.0
      %5531 = vmatpush1.msra.mxu0 0.0
      %5532 = vmatprep.subr.mxu0 0.0
      %5533 = vmatpush1.msra.mxu0 0.0
      %5534 = vmatprep.subr.mxu0 0.0
      %5535 = vmatpush1.msra.mxu0 %v5502
      %5536 = vmatprep.subr.mxu0 0.0
      %5537 = vmatpush2.msra.mxu0 0.0
      %5538 = vmatprep.subr.mxu0 0.0
      %5539 = vmatpush2.msra.mxu0 0.0
      %5540 = vmatprep.subr.mxu0 0.0
      %5541 = vmatpush2.msra.mxu0 0.0
      %5542 = vmatprep.subr.mxu0 0.0
      %5543 = vmatpush2.msra.mxu0 0.0
      %5544 = vmatprep.subr.mxu0 0.0
      %5545 = vmatpush2.msra.mxu0 0.0
      %5546 = vmatprep.subr.mxu0 0.0
      %5547 = vmatpush2.msra.mxu0 0.0
      %5548 = vmatprep.subr.mxu0 0.0
      %5549 = vmatpush2.msra.mxu0 0.0
      %5550 = vmatprep.subr.mxu0 0.0
      %5551 = vmatpush2.msra.mxu0 0.0
      %5552 = vmatprep.subr.mxu0 0.0
      %5553 = vmatpush2.msra.mxu0 0.0
      %5554 = vmatprep.subr.mxu0 0.0
      %5555 = vmatpush2.msra.mxu0 0.0
      %5556 = vmatprep.subr.mxu0 0.0
      %5557 = vmatpush2.msra.mxu0 0.0
      %5558 = vmatprep.subr.mxu0 0.0
      %5559 = vmatpush2.msra.mxu0 0.0
      %5560 = vmatprep.subr.mxu0 0.0
      %5561 = vmatpush2.msra.mxu0 0.0
      %5562 = vmatprep.subr.mxu0 0.0
      %5563 = vmatpush2.msra.mxu0 0.0
      %5564 = vmatprep.subr.mxu0 0.0
      %5565 = vmatpush2.msra.mxu0 0.0
      %5566 = vmatprep.subr.mxu0 0.0
      %5567 = vmatpush2.msra.mxu0 0.0
      %5568 = vmatprep.mubr.f32.mxu0 0.0
      %5569 = vmatmul.mubr.f32.gmra.mxu0 %v5406
      %v5570 = vpop.f32.mrf.mxu0
      %v5571 = vadd.f32 0.0, %v5570
      %v5572 = vpop.f32.mrf.mxu0
      %5573 = vmatprep.mubr.f32.mxu0 0.0
      %5574 = vmatmul.mubr.f32.gmra.mxu0 %v5409
      %v5575 = vpop.f32.mrf.mxu0
      %v5576 = vadd.f32 0.0, %v5575
      %v5577 = vpop.f32.mrf.mxu0
      %5578 = vmatprep.mubr.f32.mxu0 0.0
      %5579 = vmatmul.mubr.f32.gmra.mxu0 %v5412
      %v5580 = vpop.f32.mrf.mxu0
      %v5581 = vadd.f32 0.0, %v5580
      %v5582 = vpop.f32.mrf.mxu0
      %5583 = vmatprep.mubr.f32.mxu0 0.0
      %5584 = vmatmul.mubr.f32.gmra.mxu0 %v5415
      %v5585 = vpop.f32.mrf.mxu0
      %v5586 = vadd.f32 0.0, %v5585
      %v5587 = vpop.f32.mrf.mxu0
      %5588 = vmatprep.mubr.f32.mxu0 0.0
      %5589 = vmatmul.mubr.f32.gmra.mxu0 %v5418
      %v5590 = vpop.f32.mrf.mxu0
      %v5591 = vadd.f32 0.0, %v5590
      %v5592 = vpop.f32.mrf.mxu0
      %5593 = vmatprep.mubr.f32.mxu0 0.0
      %5594 = vmatmul.mubr.f32.gmra.mxu0 %v5421
      %v5595 = vpop.f32.mrf.mxu0
      %v5596 = vadd.f32 0.0, %v5595
      %v5597 = vpop.f32.mrf.mxu0
      %5598 = vmatprep.mubr.f32.mxu0 0.0
      %5599 = vmatmul.mubr.f32.gmra.mxu0 %v5424
      %v5600 = vpop.f32.mrf.mxu0
      %v5601 = vadd.f32 0.0, %v5600
      %v5602 = vpop.f32.mrf.mxu0
      %5603 = vmatprep.mubr.f32.mxu0 0.0
      %5604 = vmatmul.mubr.f32.gmra.mxu0 %v5427
      %v5605 = vpop.f32.mrf.mxu0
      %v5606 = vadd.f32 0.0, %v5605
      %v5607 = vpop.f32.mrf.mxu0
      %5608 = vmatprep.mubr.f32.mxu0 0.0
      %5609 = vmatmul.mubr.f32.gmra.mxu0 %v5430
      %v5610 = vpop.f32.mrf.mxu0
      %v5611 = vadd.f32 0.0, %v5610
      %v5612 = vpop.f32.mrf.mxu0
      %5613 = vmatprep.mubr.f32.mxu0 0.0
      %5614 = vmatmul.mubr.f32.gmra.mxu0 %v5433
      %v5615 = vpop.f32.mrf.mxu0
      %v5616 = vadd.f32 0.0, %v5615
      %v5617 = vpop.f32.mrf.mxu0
      %5618 = vmatprep.mubr.f32.mxu0 0.0
      %5619 = vmatmul.mubr.f32.gmra.mxu0 %v5436
      %v5620 = vpop.f32.mrf.mxu0
      %v5621 = vadd.f32 0.0, %v5620
      %v5622 = vpop.f32.mrf.mxu0
      %5623 = vmatprep.mubr.f32.mxu0 0.0
      %5624 = vmatmul.mubr.f32.gmra.mxu0 %v5439
      %v5625 = vpop.f32.mrf.mxu0
      %v5626 = vadd.f32 0.0, %v5625
      %v5627 = vpop.f32.mrf.mxu0
      %5628 = vmatprep.mubr.f32.mxu0 0.0
      %5629 = vmatmul.mubr.f32.gmra.mxu0 %v5442
      %v5630 = vpop.f32.mrf.mxu0
      %v5631 = vadd.f32 0.0, %v5630
      %v5632 = vpop.f32.mrf.mxu0
      %5633 = vmatprep.mubr.f32.mxu0 0.0
      %5634 = vmatmul.mubr.f32.gmra.mxu0 %v5445
      %v5635 = vpop.f32.mrf.mxu0
      %v5636 = vadd.f32 0.0, %v5635
      %v5637 = vpop.f32.mrf.mxu0
      %5638 = vmatprep.mubr.f32.mxu0 0.0
      %5639 = vmatmul.mubr.f32.gmra.mxu0 %v5448
      %v5640 = vpop.f32.mrf.mxu0
      %v5641 = vadd.f32 0.0, %v5640
      %v5642 = vpop.f32.mrf.mxu0
      %5643 = vmatprep.mubr.f32.mxu0 0.0
      %5644 = vmatmul.mubr.f32.gmra.mxu0 %v5451
      %v5645 = vpop.f32.mrf.mxu0
      %v5646 = vadd.f32 0.0, %v5645
      %v5647 = vpop.f32.mrf.mxu0
      %5648 = vmatprep.mubr.f32.mxu0 0.0
      %5649 = vmatmul.mubr.f32.gmra.mxu0 %v5454
      %v5650 = vpop.f32.mrf.mxu0
      %v5651 = vadd.f32 0.0, %v5650
      %v5652 = vpop.f32.mrf.mxu0
      %5653 = vmatprep.mubr.f32.mxu0 0.0
      %5654 = vmatmul.mubr.f32.gmra.mxu0 %v5457
      %v5655 = vpop.f32.mrf.mxu0
      %v5656 = vadd.f32 0.0, %v5655
      %v5657 = vpop.f32.mrf.mxu0
      %5658 = vmatprep.mubr.f32.mxu0 0.0
      %5659 = vmatmul.mubr.f32.gmra.mxu0 %v5460
      %v5660 = vpop.f32.mrf.mxu0
      %v5661 = vadd.f32 0.0, %v5660
      %v5662 = vpop.f32.mrf.mxu0
      %5663 = vmatprep.mubr.f32.mxu0 0.0
      %5664 = vmatmul.mubr.f32.gmra.mxu0 %v5463
      %v5665 = vpop.f32.mrf.mxu0
      %v5666 = vadd.f32 0.0, %v5665
      %v5667 = vpop.f32.mrf.mxu0
      %5668 = vmatprep.mubr.f32.mxu0 0.0
      %5669 = vmatmul.mubr.f32.gmra.mxu0 %v5466
      %v5670 = vpop.f32.mrf.mxu0
      %v5671 = vadd.f32 0.0, %v5670
      %v5672 = vpop.f32.mrf.mxu0
      %5673 = vmatprep.mubr.f32.mxu0 0.0
      %5674 = vmatmul.mubr.f32.gmra.mxu0 %v5469
      %v5675 = vpop.f32.mrf.mxu0
      %v5676 = vadd.f32 0.0, %v5675
      %v5677 = vpop.f32.mrf.mxu0
      %5678 = vmatprep.mubr.f32.mxu0 0.0
      %5679 = vmatmul.mubr.f32.gmra.mxu0 %v5472
      %v5680 = vpop.f32.mrf.mxu0
      %v5681 = vadd.f32 0.0, %v5680
      %v5682 = vpop.f32.mrf.mxu0
      %5683 = vmatprep.mubr.f32.mxu0 0.0
      %5684 = vmatmul.mubr.f32.gmra.mxu0 %v5475
      %v5685 = vpop.f32.mrf.mxu0
      %v5686 = vadd.f32 0.0, %v5685
      %v5687 = vpop.f32.mrf.mxu0
      %5688 = vmatprep.mubr.f32.mxu0 0.0
      %5689 = vmatmul.mubr.f32.gmra.mxu0 %v5478
      %v5690 = vpop.f32.mrf.mxu0
      %v5691 = vadd.f32 0.0, %v5690
      %v5692 = vpop.f32.mrf.mxu0
      %5693 = vmatprep.mubr.f32.mxu0 0.0
      %5694 = vmatmul.mubr.f32.gmra.mxu0 %v5481
      %v5695 = vpop.f32.mrf.mxu0
      %v5696 = vadd.f32 0.0, %v5695
      %v5697 = vpop.f32.mrf.mxu0
      %5698 = vmatprep.mubr.f32.mxu0 0.0
      %5699 = vmatmul.mubr.f32.gmra.mxu0 %v5484
      %v5700 = vpop.f32.mrf.mxu0
      %v5701 = vadd.f32 0.0, %v5700
      %v5702 = vpop.f32.mrf.mxu0
      %5703 = vmatprep.mubr.f32.mxu0 0.0
      %5704 = vmatmul.mubr.f32.gmra.mxu0 %v5487
      %v5705 = vpop.f32.mrf.mxu0
      %v5706 = vadd.f32 0.0, %v5705
      %v5707 = vpop.f32.mrf.mxu0
      %5708 = vmatprep.mubr.f32.mxu0 0.0
      %5709 = vmatmul.mubr.f32.gmra.mxu0 %v5490
      %v5710 = vpop.f32.mrf.mxu0
      %v5711 = vadd.f32 0.0, %v5710
      %v5712 = vpop.f32.mrf.mxu0
      %5713 = vmatprep.mubr.f32.mxu0 0.0
      %5714 = vmatmul.mubr.f32.gmra.mxu0 %v5493
      %v5715 = vpop.f32.mrf.mxu0
      %v5716 = vadd.f32 0.0, %v5715
      %v5717 = vpop.f32.mrf.mxu0
      %5718 = vmatprep.mubr.f32.mxu0 0.0
      %5719 = vmatmul.mubr.f32.gmra.mxu0 %v5496
      %v5720 = vpop.f32.mrf.mxu0
      %v5721 = vadd.f32 0.0, %v5720
      %v5722 = vpop.f32.mrf.mxu0
      %5723 = vmatprep.mubr.f32.mxu0 0.0
      %5724 = vmatmul.mubr.f32.gmra.mxu0 %v5499
      %v5725 = vpop.f32.mrf.mxu0
      %v5726 = vadd.f32 0.0, %v5725
      %v5727 = vpop.f32.mrf.mxu0
      %5728 = vdwg.mxu0
      %v5729 = vadd.f32 %v5305, %v5571
      %v5730 = vadd.f32 %v5306, %v5576
      %v5731 = vadd.f32 %v5307, %v5581
      %v5732 = vadd.f32 %v5308, %v5586
      %v5733 = vadd.f32 %v5309, %v5591
      %v5734 = vadd.f32 %v5310, %v5596
      %v5735 = vadd.f32 %v5311, %v5601
      %v5736 = vadd.f32 %v5312, %v5606
      %v5737 = vadd.f32 %v5313, %v5611
      %v5738 = vadd.f32 %v5314, %v5616
      %v5739 = vadd.f32 %v5315, %v5621
      %v5740 = vadd.f32 %v5316, %v5626
      %v5741 = vadd.f32 %v5317, %v5631
      %v5742 = vadd.f32 %v5318, %v5636
      %v5743 = vadd.f32 %v5319, %v5641
      %v5744 = vadd.f32 %v5320, %v5646
      %v5745 = vadd.f32 %v5321, %v5651
      %v5746 = vadd.f32 %v5322, %v5656
      %v5747 = vadd.f32 %v5323, %v5661
      %v5748 = vadd.f32 %v5324, %v5666
      %v5749 = vadd.f32 %v5325, %v5671
      %v5750 = vadd.f32 %v5326, %v5676
      %v5751 = vadd.f32 %v5327, %v5681
      %v5752 = vadd.f32 %v5328, %v5686
      %v5753 = vadd.f32 %v5329, %v5691
      %v5754 = vadd.f32 %v5330, %v5696
      %v5755 = vadd.f32 %v5331, %v5701
      %v5756 = vadd.f32 %v5332, %v5706
      %v5757 = vadd.f32 %v5333, %v5711
      %v5758 = vadd.f32 %v5334, %v5716
      %v5759 = vadd.f32 %v5335, %v5721
      %v5760 = vadd.f32 %v5336, %v5726
      %s5761 = scalar_lea.vmem %s4, 24
      %v5762 = vld [vmem:[%s5761] sm:$0xf]
      %v5764 = vsel %vm632, %v5371, 0
      %v5767 = vsel %vm632, %v5372, 0
      %v5770 = vsel %vm632, %v5373, 0
      %v5773 = vsel %vm632, %v5374, 0
      %v5776 = vsel %vm632, %v5375, 0
      %v5779 = vsel %vm632, %v5376, 0
      %v5782 = vsel %vm632, %v5377, 0
      %v5785 = vsel %vm632, %v5378, 0
      %v5788 = vsel %vm632, %v5379, 0
      %v5791 = vsel %vm632, %v5380, 0
      %v5794 = vsel %vm632, %v5381, 0
      %v5797 = vsel %vm632, %v5382, 0
      %v5800 = vsel %vm632, %v5383, 0
      %v5803 = vsel %vm632, %v5384, 0
      %v5806 = vsel %vm632, %v5385, 0
      %v5809 = vsel %vm632, %v5386, 0
      %v5812 = vsel %vm632, %v5387, 0
      %v5815 = vsel %vm632, %v5388, 0
      %v5818 = vsel %vm632, %v5389, 0
      %v5821 = vsel %vm632, %v5390, 0
      %v5824 = vsel %vm632, %v5391, 0
      %v5827 = vsel %vm632, %v5392, 0
      %v5830 = vsel %vm632, %v5393, 0
      %v5833 = vsel %vm632, %v5394, 0
      %v5836 = vsel %vm632, %v5395, 0
      %v5839 = vsel %vm632, %v5396, 0
      %v5842 = vsel %vm632, %v5397, 0
      %v5845 = vsel %vm632, %v5398, 0
      %v5848 = vsel %vm632, %v5399, 0
      %v5851 = vsel %vm632, %v5400, 0
      %v5854 = vsel %vm632, %v5401, 0
      %v5857 = vsel %vm632, %v5402, 0
      %v5860 = vsel %vm883, %v5762, 0
      %5862 = vmatprep.subr.mxu0 0.0
      %5863 = vmatpush1.msra.mxu0 0.0
      %5864 = vmatprep.subr.mxu0 0.0
      %5865 = vmatpush1.msra.mxu0 0.0
      %5866 = vmatprep.subr.mxu0 0.0
      %5867 = vmatpush1.msra.mxu0 0.0
      %5868 = vmatprep.subr.mxu0 0.0
      %5869 = vmatpush1.msra.mxu0 0.0
      %5870 = vmatprep.subr.mxu0 0.0
      %5871 = vmatpush1.msra.mxu0 0.0
      %5872 = vmatprep.subr.mxu0 0.0
      %5873 = vmatpush1.msra.mxu0 0.0
      %5874 = vmatprep.subr.mxu0 0.0
      %5875 = vmatpush1.msra.mxu0 0.0
      %5876 = vmatprep.subr.mxu0 0.0
      %5877 = vmatpush1.msra.mxu0 0.0
      %5878 = vmatprep.subr.mxu0 0.0
      %5879 = vmatpush1.msra.mxu0 0.0
      %5880 = vmatprep.subr.mxu0 0.0
      %5881 = vmatpush1.msra.mxu0 0.0
      %5882 = vmatprep.subr.mxu0 0.0
      %5883 = vmatpush1.msra.mxu0 0.0
      %5884 = vmatprep.subr.mxu0 0.0
      %5885 = vmatpush1.msra.mxu0 0.0
      %5886 = vmatprep.subr.mxu0 0.0
      %5887 = vmatpush1.msra.mxu0 0.0
      %5888 = vmatprep.subr.mxu0 0.0
      %5889 = vmatpush1.msra.mxu0 0.0
      %5890 = vmatprep.subr.mxu0 0.0
      %5891 = vmatpush1.msra.mxu0 0.0
      %5892 = vmatprep.subr.mxu0 0.0
      %5893 = vmatpush1.msra.mxu0 %v5860
      %5894 = vmatprep.subr.mxu0 0.0
      %5895 = vmatpush2.msra.mxu0 0.0
      %5896 = vmatprep.subr.mxu0 0.0
      %5897 = vmatpush2.msra.mxu0 0.0
      %5898 = vmatprep.subr.mxu0 0.0
      %5899 = vmatpush2.msra.mxu0 0.0
      %5900 = vmatprep.subr.mxu0 0.0
      %5901 = vmatpush2.msra.mxu0 0.0
      %5902 = vmatprep.subr.mxu0 0.0
      %5903 = vmatpush2.msra.mxu0 0.0
      %5904 = vmatprep.subr.mxu0 0.0
      %5905 = vmatpush2.msra.mxu0 0.0
      %5906 = vmatprep.subr.mxu0 0.0
      %5907 = vmatpush2.msra.mxu0 0.0
      %5908 = vmatprep.subr.mxu0 0.0
      %5909 = vmatpush2.msra.mxu0 0.0
      %5910 = vmatprep.subr.mxu0 0.0
      %5911 = vmatpush2.msra.mxu0 0.0
      %5912 = vmatprep.subr.mxu0 0.0
      %5913 = vmatpush2.msra.mxu0 0.0
      %5914 = vmatprep.subr.mxu0 0.0
      %5915 = vmatpush2.msra.mxu0 0.0
      %5916 = vmatprep.subr.mxu0 0.0
      %5917 = vmatpush2.msra.mxu0 0.0
      %5918 = vmatprep.subr.mxu0 0.0
      %5919 = vmatpush2.msra.mxu0 0.0
      %5920 = vmatprep.subr.mxu0 0.0
      %5921 = vmatpush2.msra.mxu0 0.0
      %5922 = vmatprep.subr.mxu0 0.0
      %5923 = vmatpush2.msra.mxu0 0.0
      %5924 = vmatprep.subr.mxu0 0.0
      %5925 = vmatpush2.msra.mxu0 0.0
      %5926 = vmatprep.mubr.f32.mxu0 0.0
      %5927 = vmatmul.mubr.f32.gmra.mxu0 %v5764
      %v5928 = vpop.f32.mrf.mxu0
      %v5929 = vadd.f32 0.0, %v5928
      %v5930 = vpop.f32.mrf.mxu0
      %5931 = vmatprep.mubr.f32.mxu0 0.0
      %5932 = vmatmul.mubr.f32.gmra.mxu0 %v5767
      %v5933 = vpop.f32.mrf.mxu0
      %v5934 = vadd.f32 0.0, %v5933
      %v5935 = vpop.f32.mrf.mxu0
      %5936 = vmatprep.mubr.f32.mxu0 0.0
      %5937 = vmatmul.mubr.f32.gmra.mxu0 %v5770
      %v5938 = vpop.f32.mrf.mxu0
      %v5939 = vadd.f32 0.0, %v5938
      %v5940 = vpop.f32.mrf.mxu0
      %5941 = vmatprep.mubr.f32.mxu0 0.0
      %5942 = vmatmul.mubr.f32.gmra.mxu0 %v5773
      %v5943 = vpop.f32.mrf.mxu0
      %v5944 = vadd.f32 0.0, %v5943
      %v5945 = vpop.f32.mrf.mxu0
      %5946 = vmatprep.mubr.f32.mxu0 0.0
      %5947 = vmatmul.mubr.f32.gmra.mxu0 %v5776
      %v5948 = vpop.f32.mrf.mxu0
      %v5949 = vadd.f32 0.0, %v5948
      %v5950 = vpop.f32.mrf.mxu0
      %5951 = vmatprep.mubr.f32.mxu0 0.0
      %5952 = vmatmul.mubr.f32.gmra.mxu0 %v5779
      %v5953 = vpop.f32.mrf.mxu0
      %v5954 = vadd.f32 0.0, %v5953
      %v5955 = vpop.f32.mrf.mxu0
      %5956 = vmatprep.mubr.f32.mxu0 0.0
      %5957 = vmatmul.mubr.f32.gmra.mxu0 %v5782
      %v5958 = vpop.f32.mrf.mxu0
      %v5959 = vadd.f32 0.0, %v5958
      %v5960 = vpop.f32.mrf.mxu0
      %5961 = vmatprep.mubr.f32.mxu0 0.0
      %5962 = vmatmul.mubr.f32.gmra.mxu0 %v5785
      %v5963 = vpop.f32.mrf.mxu0
      %v5964 = vadd.f32 0.0, %v5963
      %v5965 = vpop.f32.mrf.mxu0
      %5966 = vmatprep.mubr.f32.mxu0 0.0
      %5967 = vmatmul.mubr.f32.gmra.mxu0 %v5788
      %v5968 = vpop.f32.mrf.mxu0
      %v5969 = vadd.f32 0.0, %v5968
      %v5970 = vpop.f32.mrf.mxu0
      %5971 = vmatprep.mubr.f32.mxu0 0.0
      %5972 = vmatmul.mubr.f32.gmra.mxu0 %v5791
      %v5973 = vpop.f32.mrf.mxu0
      %v5974 = vadd.f32 0.0, %v5973
      %v5975 = vpop.f32.mrf.mxu0
      %5976 = vmatprep.mubr.f32.mxu0 0.0
      %5977 = vmatmul.mubr.f32.gmra.mxu0 %v5794
      %v5978 = vpop.f32.mrf.mxu0
      %v5979 = vadd.f32 0.0, %v5978
      %v5980 = vpop.f32.mrf.mxu0
      %5981 = vmatprep.mubr.f32.mxu0 0.0
      %5982 = vmatmul.mubr.f32.gmra.mxu0 %v5797
      %v5983 = vpop.f32.mrf.mxu0
      %v5984 = vadd.f32 0.0, %v5983
      %v5985 = vpop.f32.mrf.mxu0
      %5986 = vmatprep.mubr.f32.mxu0 0.0
      %5987 = vmatmul.mubr.f32.gmra.mxu0 %v5800
      %v5988 = vpop.f32.mrf.mxu0
      %v5989 = vadd.f32 0.0, %v5988
      %v5990 = vpop.f32.mrf.mxu0
      %5991 = vmatprep.mubr.f32.mxu0 0.0
      %5992 = vmatmul.mubr.f32.gmra.mxu0 %v5803
      %v5993 = vpop.f32.mrf.mxu0
      %v5994 = vadd.f32 0.0, %v5993
      %v5995 = vpop.f32.mrf.mxu0
      %5996 = vmatprep.mubr.f32.mxu0 0.0
      %5997 = vmatmul.mubr.f32.gmra.mxu0 %v5806
      %v5998 = vpop.f32.mrf.mxu0
      %v5999 = vadd.f32 0.0, %v5998
      %v6000 = vpop.f32.mrf.mxu0
      %6001 = vmatprep.mubr.f32.mxu0 0.0
      %6002 = vmatmul.mubr.f32.gmra.mxu0 %v5809
      %v6003 = vpop.f32.mrf.mxu0
      %v6004 = vadd.f32 0.0, %v6003
      %v6005 = vpop.f32.mrf.mxu0
      %6006 = vmatprep.mubr.f32.mxu0 0.0
      %6007 = vmatmul.mubr.f32.gmra.mxu0 %v5812
      %v6008 = vpop.f32.mrf.mxu0
      %v6009 = vadd.f32 0.0, %v6008
      %v6010 = vpop.f32.mrf.mxu0
      %6011 = vmatprep.mubr.f32.mxu0 0.0
      %6012 = vmatmul.mubr.f32.gmra.mxu0 %v5815
      %v6013 = vpop.f32.mrf.mxu0
      %v6014 = vadd.f32 0.0, %v6013
      %v6015 = vpop.f32.mrf.mxu0
      %6016 = vmatprep.mubr.f32.mxu0 0.0
      %6017 = vmatmul.mubr.f32.gmra.mxu0 %v5818
      %v6018 = vpop.f32.mrf.mxu0
      %v6019 = vadd.f32 0.0, %v6018
      %v6020 = vpop.f32.mrf.mxu0
      %6021 = vmatprep.mubr.f32.mxu0 0.0
      %6022 = vmatmul.mubr.f32.gmra.mxu0 %v5821
      %v6023 = vpop.f32.mrf.mxu0
      %v6024 = vadd.f32 0.0, %v6023
      %v6025 = vpop.f32.mrf.mxu0
      %6026 = vmatprep.mubr.f32.mxu0 0.0
      %6027 = vmatmul.mubr.f32.gmra.mxu0 %v5824
      %v6028 = vpop.f32.mrf.mxu0
      %v6029 = vadd.f32 0.0, %v6028
      %v6030 = vpop.f32.mrf.mxu0
      %6031 = vmatprep.mubr.f32.mxu0 0.0
      %6032 = vmatmul.mubr.f32.gmra.mxu0 %v5827
      %v6033 = vpop.f32.mrf.mxu0
      %v6034 = vadd.f32 0.0, %v6033
      %v6035 = vpop.f32.mrf.mxu0
      %6036 = vmatprep.mubr.f32.mxu0 0.0
      %6037 = vmatmul.mubr.f32.gmra.mxu0 %v5830
      %v6038 = vpop.f32.mrf.mxu0
      %v6039 = vadd.f32 0.0, %v6038
      %v6040 = vpop.f32.mrf.mxu0
      %6041 = vmatprep.mubr.f32.mxu0 0.0
      %6042 = vmatmul.mubr.f32.gmra.mxu0 %v5833
      %v6043 = vpop.f32.mrf.mxu0
      %v6044 = vadd.f32 0.0, %v6043
      %v6045 = vpop.f32.mrf.mxu0
      %6046 = vmatprep.mubr.f32.mxu0 0.0
      %6047 = vmatmul.mubr.f32.gmra.mxu0 %v5836
      %v6048 = vpop.f32.mrf.mxu0
      %v6049 = vadd.f32 0.0, %v6048
      %v6050 = vpop.f32.mrf.mxu0
      %6051 = vmatprep.mubr.f32.mxu0 0.0
      %6052 = vmatmul.mubr.f32.gmra.mxu0 %v5839
      %v6053 = vpop.f32.mrf.mxu0
      %v6054 = vadd.f32 0.0, %v6053
      %v6055 = vpop.f32.mrf.mxu0
      %6056 = vmatprep.mubr.f32.mxu0 0.0
      %6057 = vmatmul.mubr.f32.gmra.mxu0 %v5842
      %v6058 = vpop.f32.mrf.mxu0
      %v6059 = vadd.f32 0.0, %v6058
      %v6060 = vpop.f32.mrf.mxu0
      %6061 = vmatprep.mubr.f32.mxu0 0.0
      %6062 = vmatmul.mubr.f32.gmra.mxu0 %v5845
      %v6063 = vpop.f32.mrf.mxu0
      %v6064 = vadd.f32 0.0, %v6063
      %v6065 = vpop.f32.mrf.mxu0
      %6066 = vmatprep.mubr.f32.mxu0 0.0
      %6067 = vmatmul.mubr.f32.gmra.mxu0 %v5848
      %v6068 = vpop.f32.mrf.mxu0
      %v6069 = vadd.f32 0.0, %v6068
      %v6070 = vpop.f32.mrf.mxu0
      %6071 = vmatprep.mubr.f32.mxu0 0.0
      %6072 = vmatmul.mubr.f32.gmra.mxu0 %v5851
      %v6073 = vpop.f32.mrf.mxu0
      %v6074 = vadd.f32 0.0, %v6073
      %v6075 = vpop.f32.mrf.mxu0
      %6076 = vmatprep.mubr.f32.mxu0 0.0
      %6077 = vmatmul.mubr.f32.gmra.mxu0 %v5854
      %v6078 = vpop.f32.mrf.mxu0
      %v6079 = vadd.f32 0.0, %v6078
      %v6080 = vpop.f32.mrf.mxu0
      %6081 = vmatprep.mubr.f32.mxu0 0.0
      %6082 = vmatmul.mubr.f32.gmra.mxu0 %v5857
      %v6083 = vpop.f32.mrf.mxu0
      %v6084 = vadd.f32 0.0, %v6083
      %v6085 = vpop.f32.mrf.mxu0
      %6086 = vdwg.mxu0
      %v6087 = vadd.f32 %v5729, %v5929
      %v6088 = vadd.f32 %v5730, %v5934
      %v6089 = vadd.f32 %v5731, %v5939
      %v6090 = vadd.f32 %v5732, %v5944
      %v6091 = vadd.f32 %v5733, %v5949
      %v6092 = vadd.f32 %v5734, %v5954
      %v6093 = vadd.f32 %v5735, %v5959
      %v6094 = vadd.f32 %v5736, %v5964
      %v6095 = vadd.f32 %v5737, %v5969
      %v6096 = vadd.f32 %v5738, %v5974
      %v6097 = vadd.f32 %v5739, %v5979
      %v6098 = vadd.f32 %v5740, %v5984
      %v6099 = vadd.f32 %v5741, %v5989
      %v6100 = vadd.f32 %v5742, %v5994
      %v6101 = vadd.f32 %v5743, %v5999
      %v6102 = vadd.f32 %v5744, %v6004
      %v6103 = vadd.f32 %v5745, %v6009
      %v6104 = vadd.f32 %v5746, %v6014
      %v6105 = vadd.f32 %v5747, %v6019
      %v6106 = vadd.f32 %v5748, %v6024
      %v6107 = vadd.f32 %v5749, %v6029
      %v6108 = vadd.f32 %v5750, %v6034
      %v6109 = vadd.f32 %v5751, %v6039
      %v6110 = vadd.f32 %v5752, %v6044
      %v6111 = vadd.f32 %v5753, %v6049
      %v6112 = vadd.f32 %v5754, %v6054
      %v6113 = vadd.f32 %v5755, %v6059
      %v6114 = vadd.f32 %v5756, %v6064
      %v6115 = vadd.f32 %v5757, %v6069
      %v6116 = vadd.f32 %v5758, %v6074
      %v6117 = vadd.f32 %v5759, %v6079
      %v6118 = vadd.f32 %v5760, %v6084
      %v6119 = vld [vmem:[%s5337 + $0x1] sm:$0xff]
      %v6120 = vld [vmem:[%s5337 + $0x9] sm:$0xff]
      %v6121 = vld [vmem:[%s5337 + $0x19] sm:$0xff]
      %v6122 = vld [vmem:[%s5337 + $0x21] sm:$0xff]
      %v6123 = vld [vmem:[%s5337 + $0x31] sm:$0xff]
      %v6124 = vld [vmem:[%s5337 + $0x39] sm:$0xff]
      %v6125 = vld [vmem:[%s5337 + $0x49] sm:$0xff]
      %v6126 = vld [vmem:[%s5337 + $0x51] sm:$0xff]
      %v6127 = vld [vmem:[%s5337 + $0x61] sm:$0xff]
      %v6128 = vld [vmem:[%s5337 + $0x69] sm:$0xff]
      %v6129 = vld [vmem:[%s5337 + $0x79] sm:$0xff]
      %v6130 = vld [vmem:[%s5337 + $0x81] sm:$0xff]
      %v6131 = vld [vmem:[%s5337 + $0x91] sm:$0xff]
      %v6132 = vld [vmem:[%s5337 + $0x99] sm:$0xff]
      %v6133 = vld [vmem:[%s5337 + $0xa9] sm:$0xff]
      %v6134 = vld [vmem:[%s5337 + $0xb1] sm:$0xff]
      %v6135 = vld [vmem:[%s5337 + $0xc1] sm:$0xff]
      %v6136 = vld [vmem:[%s5337 + $0xc9] sm:$0xff]
      %v6137 = vld [vmem:[%s5337 + $0xd9] sm:$0xff]
      %v6138 = vld [vmem:[%s5337 + $0xe1] sm:$0xff]
      %v6139 = vld [vmem:[%s5337 + $0xf1] sm:$0xff]
      %v6140 = vld [vmem:[%s5337 + $0xf9] sm:$0xff]
      %v6141 = vld [vmem:[%s5337 + $0x109] sm:$0xff]
      %v6142 = vld [vmem:[%s5337 + $0x111] sm:$0xff]
      %v6143 = vld [vmem:[%s5337 + $0x121] sm:$0xff]
      %v6144 = vld [vmem:[%s5337 + $0x129] sm:$0xff]
      %v6145 = vld [vmem:[%s5337 + $0x139] sm:$0xff]
      %v6146 = vld [vmem:[%s5337 + $0x141] sm:$0xff]
      %v6147 = vld [vmem:[%s5337 + $0x151] sm:$0xff]
      %v6148 = vld [vmem:[%s5337 + $0x159] sm:$0xff]
      %v6149 = vld [vmem:[%s5337 + $0x169] sm:$0xff]
      %v6150 = vld [vmem:[%s5337 + $0x171] sm:$0xff]
      %v6151 = vld [vmem:[%s5370 + $0x1] sm:$0xff]
      %v6152 = vld [vmem:[%s5370 + $0x9] sm:$0xff]
      %v6153 = vld [vmem:[%s5370 + $0x19] sm:$0xff]
      %v6154 = vld [vmem:[%s5370 + $0x21] sm:$0xff]
      %v6155 = vld [vmem:[%s5370 + $0x31] sm:$0xff]
      %v6156 = vld [vmem:[%s5370 + $0x39] sm:$0xff]
      %v6157 = vld [vmem:[%s5370 + $0x49] sm:$0xff]
      %v6158 = vld [vmem:[%s5370 + $0x51] sm:$0xff]
      %v6159 = vld [vmem:[%s5370 + $0x61] sm:$0xff]
      %v6160 = vld [vmem:[%s5370 + $0x69] sm:$0xff]
      %v6161 = vld [vmem:[%s5370 + $0x79] sm:$0xff]
      %v6162 = vld [vmem:[%s5370 + $0x81] sm:$0xff]
      %v6163 = vld [vmem:[%s5370 + $0x91] sm:$0xff]
      %v6164 = vld [vmem:[%s5370 + $0x99] sm:$0xff]
      %v6165 = vld [vmem:[%s5370 + $0xa9] sm:$0xff]
      %v6166 = vld [vmem:[%s5370 + $0xb1] sm:$0xff]
      %v6167 = vld [vmem:[%s5370 + $0xc1] sm:$0xff]
      %v6168 = vld [vmem:[%s5370 + $0xc9] sm:$0xff]
      %v6169 = vld [vmem:[%s5370 + $0xd9] sm:$0xff]
      %v6170 = vld [vmem:[%s5370 + $0xe1] sm:$0xff]
      %v6171 = vld [vmem:[%s5370 + $0xf1] sm:$0xff]
      %v6172 = vld [vmem:[%s5370 + $0xf9] sm:$0xff]
      %v6173 = vld [vmem:[%s5370 + $0x109] sm:$0xff]
      %v6174 = vld [vmem:[%s5370 + $0x111] sm:$0xff]
      %v6175 = vld [vmem:[%s5370 + $0x121] sm:$0xff]
      %v6176 = vld [vmem:[%s5370 + $0x129] sm:$0xff]
      %v6177 = vld [vmem:[%s5370 + $0x139] sm:$0xff]
      %v6178 = vld [vmem:[%s5370 + $0x141] sm:$0xff]
      %v6179 = vld [vmem:[%s5370 + $0x151] sm:$0xff]
      %v6180 = vld [vmem:[%s5370 + $0x159] sm:$0xff]
      %v6181 = vld [vmem:[%s5370 + $0x169] sm:$0xff]
      %v6182 = vld [vmem:[%s5370 + $0x171] sm:$0xff]
      %s6183 = scalar_lea.vmem %s3, 28
      %v6184 = vld [vmem:[%s6183] sm:$0xf]
      %v6186 = vsel %vm632, %v6119, 0
      %v6189 = vsel %vm632, %v6120, 0
      %v6192 = vsel %vm632, %v6121, 0
      %v6195 = vsel %vm632, %v6122, 0
      %v6198 = vsel %vm632, %v6123, 0
      %v6201 = vsel %vm632, %v6124, 0
      %v6204 = vsel %vm632, %v6125, 0
      %v6207 = vsel %vm632, %v6126, 0
      %v6210 = vsel %vm632, %v6127, 0
      %v6213 = vsel %vm632, %v6128, 0
      %v6216 = vsel %vm632, %v6129, 0
      %v6219 = vsel %vm632, %v6130, 0
      %v6222 = vsel %vm632, %v6131, 0
      %v6225 = vsel %vm632, %v6132, 0
      %v6228 = vsel %vm632, %v6133, 0
      %v6231 = vsel %vm632, %v6134, 0
      %v6234 = vsel %vm632, %v6135, 0
      %v6237 = vsel %vm632, %v6136, 0
      %v6240 = vsel %vm632, %v6137, 0
      %v6243 = vsel %vm632, %v6138, 0
      %v6246 = vsel %vm632, %v6139, 0
      %v6249 = vsel %vm632, %v6140, 0
      %v6252 = vsel %vm632, %v6141, 0
      %v6255 = vsel %vm632, %v6142, 0
      %v6258 = vsel %vm632, %v6143, 0
      %v6261 = vsel %vm632, %v6144, 0
      %v6264 = vsel %vm632, %v6145, 0
      %v6267 = vsel %vm632, %v6146, 0
      %v6270 = vsel %vm632, %v6147, 0
      %v6273 = vsel %vm632, %v6148, 0
      %v6276 = vsel %vm632, %v6149, 0
      %v6279 = vsel %vm632, %v6150, 0
      %v6282 = vsel %vm883, %v6184, 0
      %6284 = vmatprep.subr.mxu0 0.0
      %6285 = vmatpush1.msra.mxu0 0.0
      %6286 = vmatprep.subr.mxu0 0.0
      %6287 = vmatpush1.msra.mxu0 0.0
      %6288 = vmatprep.subr.mxu0 0.0
      %6289 = vmatpush1.msra.mxu0 0.0
      %6290 = vmatprep.subr.mxu0 0.0
      %6291 = vmatpush1.msra.mxu0 0.0
      %6292 = vmatprep.subr.mxu0 0.0
      %6293 = vmatpush1.msra.mxu0 0.0
      %6294 = vmatprep.subr.mxu0 0.0
      %6295 = vmatpush1.msra.mxu0 0.0
      %6296 = vmatprep.subr.mxu0 0.0
      %6297 = vmatpush1.msra.mxu0 0.0
      %6298 = vmatprep.subr.mxu0 0.0
      %6299 = vmatpush1.msra.mxu0 0.0
      %6300 = vmatprep.subr.mxu0 0.0
      %6301 = vmatpush1.msra.mxu0 0.0
      %6302 = vmatprep.subr.mxu0 0.0
      %6303 = vmatpush1.msra.mxu0 0.0
      %6304 = vmatprep.subr.mxu0 0.0
      %6305 = vmatpush1.msra.mxu0 0.0
      %6306 = vmatprep.subr.mxu0 0.0
      %6307 = vmatpush1.msra.mxu0 0.0
      %6308 = vmatprep.subr.mxu0 0.0
      %6309 = vmatpush1.msra.mxu0 0.0
      %6310 = vmatprep.subr.mxu0 0.0
      %6311 = vmatpush1.msra.mxu0 0.0
      %6312 = vmatprep.subr.mxu0 0.0
      %6313 = vmatpush1.msra.mxu0 0.0
      %6314 = vmatprep.subr.mxu0 0.0
      %6315 = vmatpush1.msra.mxu0 %v6282
      %6316 = vmatprep.subr.mxu0 0.0
      %6317 = vmatpush2.msra.mxu0 0.0
      %6318 = vmatprep.subr.mxu0 0.0
      %6319 = vmatpush2.msra.mxu0 0.0
      %6320 = vmatprep.subr.mxu0 0.0
      %6321 = vmatpush2.msra.mxu0 0.0
      %6322 = vmatprep.subr.mxu0 0.0
      %6323 = vmatpush2.msra.mxu0 0.0
      %6324 = vmatprep.subr.mxu0 0.0
      %6325 = vmatpush2.msra.mxu0 0.0
      %6326 = vmatprep.subr.mxu0 0.0
      %6327 = vmatpush2.msra.mxu0 0.0
      %6328 = vmatprep.subr.mxu0 0.0
      %6329 = vmatpush2.msra.mxu0 0.0
      %6330 = vmatprep.subr.mxu0 0.0
      %6331 = vmatpush2.msra.mxu0 0.0
      %6332 = vmatprep.subr.mxu0 0.0
      %6333 = vmatpush2.msra.mxu0 0.0
      %6334 = vmatprep.subr.mxu0 0.0
      %6335 = vmatpush2.msra.mxu0 0.0
      %6336 = vmatprep.subr.mxu0 0.0
      %6337 = vmatpush2.msra.mxu0 0.0
      %6338 = vmatprep.subr.mxu0 0.0
      %6339 = vmatpush2.msra.mxu0 0.0
      %6340 = vmatprep.subr.mxu0 0.0
      %6341 = vmatpush2.msra.mxu0 0.0
      %6342 = vmatprep.subr.mxu0 0.0
      %6343 = vmatpush2.msra.mxu0 0.0
      %6344 = vmatprep.subr.mxu0 0.0
      %6345 = vmatpush2.msra.mxu0 0.0
      %6346 = vmatprep.subr.mxu0 0.0
      %6347 = vmatpush2.msra.mxu0 0.0
      %6348 = vmatprep.mubr.f32.mxu0 0.0
      %6349 = vmatmul.mubr.f32.gmra.mxu0 %v6186
      %v6350 = vpop.f32.mrf.mxu0
      %v6351 = vadd.f32 0.0, %v6350
      %v6352 = vpop.f32.mrf.mxu0
      %6353 = vmatprep.mubr.f32.mxu0 0.0
      %6354 = vmatmul.mubr.f32.gmra.mxu0 %v6189
      %v6355 = vpop.f32.mrf.mxu0
      %v6356 = vadd.f32 0.0, %v6355
      %v6357 = vpop.f32.mrf.mxu0
      %6358 = vmatprep.mubr.f32.mxu0 0.0
      %6359 = vmatmul.mubr.f32.gmra.mxu0 %v6192
      %v6360 = vpop.f32.mrf.mxu0
      %v6361 = vadd.f32 0.0, %v6360
      %v6362 = vpop.f32.mrf.mxu0
      %6363 = vmatprep.mubr.f32.mxu0 0.0
      %6364 = vmatmul.mubr.f32.gmra.mxu0 %v6195
      %v6365 = vpop.f32.mrf.mxu0
      %v6366 = vadd.f32 0.0, %v6365
      %v6367 = vpop.f32.mrf.mxu0
      %6368 = vmatprep.mubr.f32.mxu0 0.0
      %6369 = vmatmul.mubr.f32.gmra.mxu0 %v6198
      %v6370 = vpop.f32.mrf.mxu0
      %v6371 = vadd.f32 0.0, %v6370
      %v6372 = vpop.f32.mrf.mxu0
      %6373 = vmatprep.mubr.f32.mxu0 0.0
      %6374 = vmatmul.mubr.f32.gmra.mxu0 %v6201
      %v6375 = vpop.f32.mrf.mxu0
      %v6376 = vadd.f32 0.0, %v6375
      %v6377 = vpop.f32.mrf.mxu0
      %6378 = vmatprep.mubr.f32.mxu0 0.0
      %6379 = vmatmul.mubr.f32.gmra.mxu0 %v6204
      %v6380 = vpop.f32.mrf.mxu0
      %v6381 = vadd.f32 0.0, %v6380
      %v6382 = vpop.f32.mrf.mxu0
      %6383 = vmatprep.mubr.f32.mxu0 0.0
      %6384 = vmatmul.mubr.f32.gmra.mxu0 %v6207
      %v6385 = vpop.f32.mrf.mxu0
      %v6386 = vadd.f32 0.0, %v6385
      %v6387 = vpop.f32.mrf.mxu0
      %6388 = vmatprep.mubr.f32.mxu0 0.0
      %6389 = vmatmul.mubr.f32.gmra.mxu0 %v6210
      %v6390 = vpop.f32.mrf.mxu0
      %v6391 = vadd.f32 0.0, %v6390
      %v6392 = vpop.f32.mrf.mxu0
      %6393 = vmatprep.mubr.f32.mxu0 0.0
      %6394 = vmatmul.mubr.f32.gmra.mxu0 %v6213
      %v6395 = vpop.f32.mrf.mxu0
      %v6396 = vadd.f32 0.0, %v6395
      %v6397 = vpop.f32.mrf.mxu0
      %6398 = vmatprep.mubr.f32.mxu0 0.0
      %6399 = vmatmul.mubr.f32.gmra.mxu0 %v6216
      %v6400 = vpop.f32.mrf.mxu0
      %v6401 = vadd.f32 0.0, %v6400
      %v6402 = vpop.f32.mrf.mxu0
      %6403 = vmatprep.mubr.f32.mxu0 0.0
      %6404 = vmatmul.mubr.f32.gmra.mxu0 %v6219
      %v6405 = vpop.f32.mrf.mxu0
      %v6406 = vadd.f32 0.0, %v6405
      %v6407 = vpop.f32.mrf.mxu0
      %6408 = vmatprep.mubr.f32.mxu0 0.0
      %6409 = vmatmul.mubr.f32.gmra.mxu0 %v6222
      %v6410 = vpop.f32.mrf.mxu0
      %v6411 = vadd.f32 0.0, %v6410
      %v6412 = vpop.f32.mrf.mxu0
      %6413 = vmatprep.mubr.f32.mxu0 0.0
      %6414 = vmatmul.mubr.f32.gmra.mxu0 %v6225
      %v6415 = vpop.f32.mrf.mxu0
      %v6416 = vadd.f32 0.0, %v6415
      %v6417 = vpop.f32.mrf.mxu0
      %6418 = vmatprep.mubr.f32.mxu0 0.0
      %6419 = vmatmul.mubr.f32.gmra.mxu0 %v6228
      %v6420 = vpop.f32.mrf.mxu0
      %v6421 = vadd.f32 0.0, %v6420
      %v6422 = vpop.f32.mrf.mxu0
      %6423 = vmatprep.mubr.f32.mxu0 0.0
      %6424 = vmatmul.mubr.f32.gmra.mxu0 %v6231
      %v6425 = vpop.f32.mrf.mxu0
      %v6426 = vadd.f32 0.0, %v6425
      %v6427 = vpop.f32.mrf.mxu0
      %6428 = vmatprep.mubr.f32.mxu0 0.0
      %6429 = vmatmul.mubr.f32.gmra.mxu0 %v6234
      %v6430 = vpop.f32.mrf.mxu0
      %v6431 = vadd.f32 0.0, %v6430
      %v6432 = vpop.f32.mrf.mxu0
      %6433 = vmatprep.mubr.f32.mxu0 0.0
      %6434 = vmatmul.mubr.f32.gmra.mxu0 %v6237
      %v6435 = vpop.f32.mrf.mxu0
      %v6436 = vadd.f32 0.0, %v6435
      %v6437 = vpop.f32.mrf.mxu0
      %6438 = vmatprep.mubr.f32.mxu0 0.0
      %6439 = vmatmul.mubr.f32.gmra.mxu0 %v6240
      %v6440 = vpop.f32.mrf.mxu0
      %v6441 = vadd.f32 0.0, %v6440
      %v6442 = vpop.f32.mrf.mxu0
      %6443 = vmatprep.mubr.f32.mxu0 0.0
      %6444 = vmatmul.mubr.f32.gmra.mxu0 %v6243
      %v6445 = vpop.f32.mrf.mxu0
      %v6446 = vadd.f32 0.0, %v6445
      %v6447 = vpop.f32.mrf.mxu0
      %6448 = vmatprep.mubr.f32.mxu0 0.0
      %6449 = vmatmul.mubr.f32.gmra.mxu0 %v6246
      %v6450 = vpop.f32.mrf.mxu0
      %v6451 = vadd.f32 0.0, %v6450
      %v6452 = vpop.f32.mrf.mxu0
      %6453 = vmatprep.mubr.f32.mxu0 0.0
      %6454 = vmatmul.mubr.f32.gmra.mxu0 %v6249
      %v6455 = vpop.f32.mrf.mxu0
      %v6456 = vadd.f32 0.0, %v6455
      %v6457 = vpop.f32.mrf.mxu0
      %6458 = vmatprep.mubr.f32.mxu0 0.0
      %6459 = vmatmul.mubr.f32.gmra.mxu0 %v6252
      %v6460 = vpop.f32.mrf.mxu0
      %v6461 = vadd.f32 0.0, %v6460
      %v6462 = vpop.f32.mrf.mxu0
      %6463 = vmatprep.mubr.f32.mxu0 0.0
      %6464 = vmatmul.mubr.f32.gmra.mxu0 %v6255
      %v6465 = vpop.f32.mrf.mxu0
      %v6466 = vadd.f32 0.0, %v6465
      %v6467 = vpop.f32.mrf.mxu0
      %6468 = vmatprep.mubr.f32.mxu0 0.0
      %6469 = vmatmul.mubr.f32.gmra.mxu0 %v6258
      %v6470 = vpop.f32.mrf.mxu0
      %v6471 = vadd.f32 0.0, %v6470
      %v6472 = vpop.f32.mrf.mxu0
      %6473 = vmatprep.mubr.f32.mxu0 0.0
      %6474 = vmatmul.mubr.f32.gmra.mxu0 %v6261
      %v6475 = vpop.f32.mrf.mxu0
      %v6476 = vadd.f32 0.0, %v6475
      %v6477 = vpop.f32.mrf.mxu0
      %6478 = vmatprep.mubr.f32.mxu0 0.0
      %6479 = vmatmul.mubr.f32.gmra.mxu0 %v6264
      %v6480 = vpop.f32.mrf.mxu0
      %v6481 = vadd.f32 0.0, %v6480
      %v6482 = vpop.f32.mrf.mxu0
      %6483 = vmatprep.mubr.f32.mxu0 0.0
      %6484 = vmatmul.mubr.f32.gmra.mxu0 %v6267
      %v6485 = vpop.f32.mrf.mxu0
      %v6486 = vadd.f32 0.0, %v6485
      %v6487 = vpop.f32.mrf.mxu0
      %6488 = vmatprep.mubr.f32.mxu0 0.0
      %6489 = vmatmul.mubr.f32.gmra.mxu0 %v6270
      %v6490 = vpop.f32.mrf.mxu0
      %v6491 = vadd.f32 0.0, %v6490
      %v6492 = vpop.f32.mrf.mxu0
      %6493 = vmatprep.mubr.f32.mxu0 0.0
      %6494 = vmatmul.mubr.f32.gmra.mxu0 %v6273
      %v6495 = vpop.f32.mrf.mxu0
      %v6496 = vadd.f32 0.0, %v6495
      %v6497 = vpop.f32.mrf.mxu0
      %6498 = vmatprep.mubr.f32.mxu0 0.0
      %6499 = vmatmul.mubr.f32.gmra.mxu0 %v6276
      %v6500 = vpop.f32.mrf.mxu0
      %v6501 = vadd.f32 0.0, %v6500
      %v6502 = vpop.f32.mrf.mxu0
      %6503 = vmatprep.mubr.f32.mxu0 0.0
      %6504 = vmatmul.mubr.f32.gmra.mxu0 %v6279
      %v6505 = vpop.f32.mrf.mxu0
      %v6506 = vadd.f32 0.0, %v6505
      %v6507 = vpop.f32.mrf.mxu0
      %6508 = vdwg.mxu0
      %v6509 = vadd.f32 %v6087, %v6351
      %v6510 = vadd.f32 %v6088, %v6356
      %v6511 = vadd.f32 %v6089, %v6361
      %v6512 = vadd.f32 %v6090, %v6366
      %v6513 = vadd.f32 %v6091, %v6371
      %v6514 = vadd.f32 %v6092, %v6376
      %v6515 = vadd.f32 %v6093, %v6381
      %v6516 = vadd.f32 %v6094, %v6386
      %v6517 = vadd.f32 %v6095, %v6391
      %v6518 = vadd.f32 %v6096, %v6396
      %v6519 = vadd.f32 %v6097, %v6401
      %v6520 = vadd.f32 %v6098, %v6406
      %v6521 = vadd.f32 %v6099, %v6411
      %v6522 = vadd.f32 %v6100, %v6416
      %v6523 = vadd.f32 %v6101, %v6421
      %v6524 = vadd.f32 %v6102, %v6426
      %v6525 = vadd.f32 %v6103, %v6431
      %v6526 = vadd.f32 %v6104, %v6436
      %v6527 = vadd.f32 %v6105, %v6441
      %v6528 = vadd.f32 %v6106, %v6446
      %v6529 = vadd.f32 %v6107, %v6451
      %v6530 = vadd.f32 %v6108, %v6456
      %v6531 = vadd.f32 %v6109, %v6461
      %v6532 = vadd.f32 %v6110, %v6466
      %v6533 = vadd.f32 %v6111, %v6471
      %v6534 = vadd.f32 %v6112, %v6476
      %v6535 = vadd.f32 %v6113, %v6481
      %v6536 = vadd.f32 %v6114, %v6486
      %v6537 = vadd.f32 %v6115, %v6491
      %v6538 = vadd.f32 %v6116, %v6496
      %v6539 = vadd.f32 %v6117, %v6501
      %v6540 = vadd.f32 %v6118, %v6506
      %s6541 = scalar_lea.vmem %s4, 28
      %v6542 = vld [vmem:[%s6541] sm:$0xf]
      %v6544 = vsel %vm632, %v6151, 0
      %v6547 = vsel %vm632, %v6152, 0
      %v6550 = vsel %vm632, %v6153, 0
      %v6553 = vsel %vm632, %v6154, 0
      %v6556 = vsel %vm632, %v6155, 0
      %v6559 = vsel %vm632, %v6156, 0
      %v6562 = vsel %vm632, %v6157, 0
      %v6565 = vsel %vm632, %v6158, 0
      %v6568 = vsel %vm632, %v6159, 0
      %v6571 = vsel %vm632, %v6160, 0
      %v6574 = vsel %vm632, %v6161, 0
      %v6577 = vsel %vm632, %v6162, 0
      %v6580 = vsel %vm632, %v6163, 0
      %v6583 = vsel %vm632, %v6164, 0
      %v6586 = vsel %vm632, %v6165, 0
      %v6589 = vsel %vm632, %v6166, 0
      %v6592 = vsel %vm632, %v6167, 0
      %v6595 = vsel %vm632, %v6168, 0
      %v6598 = vsel %vm632, %v6169, 0
      %v6601 = vsel %vm632, %v6170, 0
      %v6604 = vsel %vm632, %v6171, 0
      %v6607 = vsel %vm632, %v6172, 0
      %v6610 = vsel %vm632, %v6173, 0
      %v6613 = vsel %vm632, %v6174, 0
      %v6616 = vsel %vm632, %v6175, 0
      %v6619 = vsel %vm632, %v6176, 0
      %v6622 = vsel %vm632, %v6177, 0
      %v6625 = vsel %vm632, %v6178, 0
      %v6628 = vsel %vm632, %v6179, 0
      %v6631 = vsel %vm632, %v6180, 0
      %v6634 = vsel %vm632, %v6181, 0
      %v6637 = vsel %vm632, %v6182, 0
      %v6640 = vsel %vm883, %v6542, 0
      %6642 = vmatprep.subr.mxu0 0.0
      %6643 = vmatpush1.msra.mxu0 0.0
      %6644 = vmatprep.subr.mxu0 0.0
      %6645 = vmatpush1.msra.mxu0 0.0
      %6646 = vmatprep.subr.mxu0 0.0
      %6647 = vmatpush1.msra.mxu0 0.0
      %6648 = vmatprep.subr.mxu0 0.0
      %6649 = vmatpush1.msra.mxu0 0.0
      %6650 = vmatprep.subr.mxu0 0.0
      %6651 = vmatpush1.msra.mxu0 0.0
      %6652 = vmatprep.subr.mxu0 0.0
      %6653 = vmatpush1.msra.mxu0 0.0
      %6654 = vmatprep.subr.mxu0 0.0
      %6655 = vmatpush1.msra.mxu0 0.0
      %6656 = vmatprep.subr.mxu0 0.0
      %6657 = vmatpush1.msra.mxu0 0.0
      %6658 = vmatprep.subr.mxu0 0.0
      %6659 = vmatpush1.msra.mxu0 0.0
      %6660 = vmatprep.subr.mxu0 0.0
      %6661 = vmatpush1.msra.mxu0 0.0
      %6662 = vmatprep.subr.mxu0 0.0
      %6663 = vmatpush1.msra.mxu0 0.0
      %6664 = vmatprep.subr.mxu0 0.0
      %6665 = vmatpush1.msra.mxu0 0.0
      %6666 = vmatprep.subr.mxu0 0.0
      %6667 = vmatpush1.msra.mxu0 0.0
      %6668 = vmatprep.subr.mxu0 0.0
      %6669 = vmatpush1.msra.mxu0 0.0
      %6670 = vmatprep.subr.mxu0 0.0
      %6671 = vmatpush1.msra.mxu0 0.0
      %6672 = vmatprep.subr.mxu0 0.0
      %6673 = vmatpush1.msra.mxu0 %v6640
      %6674 = vmatprep.subr.mxu0 0.0
      %6675 = vmatpush2.msra.mxu0 0.0
      %6676 = vmatprep.subr.mxu0 0.0
      %6677 = vmatpush2.msra.mxu0 0.0
      %6678 = vmatprep.subr.mxu0 0.0
      %6679 = vmatpush2.msra.mxu0 0.0
      %6680 = vmatprep.subr.mxu0 0.0
      %6681 = vmatpush2.msra.mxu0 0.0
      %6682 = vmatprep.subr.mxu0 0.0
      %6683 = vmatpush2.msra.mxu0 0.0
      %6684 = vmatprep.subr.mxu0 0.0
      %6685 = vmatpush2.msra.mxu0 0.0
      %6686 = vmatprep.subr.mxu0 0.0
      %6687 = vmatpush2.msra.mxu0 0.0
      %6688 = vmatprep.subr.mxu0 0.0
      %6689 = vmatpush2.msra.mxu0 0.0
      %6690 = vmatprep.subr.mxu0 0.0
      %6691 = vmatpush2.msra.mxu0 0.0
      %6692 = vmatprep.subr.mxu0 0.0
      %6693 = vmatpush2.msra.mxu0 0.0
      %6694 = vmatprep.subr.mxu0 0.0
      %6695 = vmatpush2.msra.mxu0 0.0
      %6696 = vmatprep.subr.mxu0 0.0
      %6697 = vmatpush2.msra.mxu0 0.0
      %6698 = vmatprep.subr.mxu0 0.0
      %6699 = vmatpush2.msra.mxu0 0.0
      %6700 = vmatprep.subr.mxu0 0.0
      %6701 = vmatpush2.msra.mxu0 0.0
      %6702 = vmatprep.subr.mxu0 0.0
      %6703 = vmatpush2.msra.mxu0 0.0
      %6704 = vmatprep.subr.mxu0 0.0
      %6705 = vmatpush2.msra.mxu0 0.0
      %6706 = vmatprep.mubr.f32.mxu0 0.0
      %6707 = vmatmul.mubr.f32.gmra.mxu0 %v6544
      %v6708 = vpop.f32.mrf.mxu0
      %v6709 = vadd.f32 0.0, %v6708
      %v6710 = vpop.f32.mrf.mxu0
      %6711 = vmatprep.mubr.f32.mxu0 0.0
      %6712 = vmatmul.mubr.f32.gmra.mxu0 %v6547
      %v6713 = vpop.f32.mrf.mxu0
      %v6714 = vadd.f32 0.0, %v6713
      %v6715 = vpop.f32.mrf.mxu0
      %6716 = vmatprep.mubr.f32.mxu0 0.0
      %6717 = vmatmul.mubr.f32.gmra.mxu0 %v6550
      %v6718 = vpop.f32.mrf.mxu0
      %v6719 = vadd.f32 0.0, %v6718
      %v6720 = vpop.f32.mrf.mxu0
      %6721 = vmatprep.mubr.f32.mxu0 0.0
      %6722 = vmatmul.mubr.f32.gmra.mxu0 %v6553
      %v6723 = vpop.f32.mrf.mxu0
      %v6724 = vadd.f32 0.0, %v6723
      %v6725 = vpop.f32.mrf.mxu0
      %6726 = vmatprep.mubr.f32.mxu0 0.0
      %6727 = vmatmul.mubr.f32.gmra.mxu0 %v6556
      %v6728 = vpop.f32.mrf.mxu0
      %v6729 = vadd.f32 0.0, %v6728
      %v6730 = vpop.f32.mrf.mxu0
      %6731 = vmatprep.mubr.f32.mxu0 0.0
      %6732 = vmatmul.mubr.f32.gmra.mxu0 %v6559
      %v6733 = vpop.f32.mrf.mxu0
      %v6734 = vadd.f32 0.0, %v6733
      %v6735 = vpop.f32.mrf.mxu0
      %6736 = vmatprep.mubr.f32.mxu0 0.0
      %6737 = vmatmul.mubr.f32.gmra.mxu0 %v6562
      %v6738 = vpop.f32.mrf.mxu0
      %v6739 = vadd.f32 0.0, %v6738
      %v6740 = vpop.f32.mrf.mxu0
      %6741 = vmatprep.mubr.f32.mxu0 0.0
      %6742 = vmatmul.mubr.f32.gmra.mxu0 %v6565
      %v6743 = vpop.f32.mrf.mxu0
      %v6744 = vadd.f32 0.0, %v6743
      %v6745 = vpop.f32.mrf.mxu0
      %6746 = vmatprep.mubr.f32.mxu0 0.0
      %6747 = vmatmul.mubr.f32.gmra.mxu0 %v6568
      %v6748 = vpop.f32.mrf.mxu0
      %v6749 = vadd.f32 0.0, %v6748
      %v6750 = vpop.f32.mrf.mxu0
      %6751 = vmatprep.mubr.f32.mxu0 0.0
      %6752 = vmatmul.mubr.f32.gmra.mxu0 %v6571
      %v6753 = vpop.f32.mrf.mxu0
      %v6754 = vadd.f32 0.0, %v6753
      %v6755 = vpop.f32.mrf.mxu0
      %6756 = vmatprep.mubr.f32.mxu0 0.0
      %6757 = vmatmul.mubr.f32.gmra.mxu0 %v6574
      %v6758 = vpop.f32.mrf.mxu0
      %v6759 = vadd.f32 0.0, %v6758
      %v6760 = vpop.f32.mrf.mxu0
      %6761 = vmatprep.mubr.f32.mxu0 0.0
      %6762 = vmatmul.mubr.f32.gmra.mxu0 %v6577
      %v6763 = vpop.f32.mrf.mxu0
      %v6764 = vadd.f32 0.0, %v6763
      %v6765 = vpop.f32.mrf.mxu0
      %6766 = vmatprep.mubr.f32.mxu0 0.0
      %6767 = vmatmul.mubr.f32.gmra.mxu0 %v6580
      %v6768 = vpop.f32.mrf.mxu0
      %v6769 = vadd.f32 0.0, %v6768
      %v6770 = vpop.f32.mrf.mxu0
      %6771 = vmatprep.mubr.f32.mxu0 0.0
      %6772 = vmatmul.mubr.f32.gmra.mxu0 %v6583
      %v6773 = vpop.f32.mrf.mxu0
      %v6774 = vadd.f32 0.0, %v6773
      %v6775 = vpop.f32.mrf.mxu0
      %6776 = vmatprep.mubr.f32.mxu0 0.0
      %6777 = vmatmul.mubr.f32.gmra.mxu0 %v6586
      %v6778 = vpop.f32.mrf.mxu0
      %v6779 = vadd.f32 0.0, %v6778
      %v6780 = vpop.f32.mrf.mxu0
      %6781 = vmatprep.mubr.f32.mxu0 0.0
      %6782 = vmatmul.mubr.f32.gmra.mxu0 %v6589
      %v6783 = vpop.f32.mrf.mxu0
      %v6784 = vadd.f32 0.0, %v6783
      %v6785 = vpop.f32.mrf.mxu0
      %6786 = vmatprep.mubr.f32.mxu0 0.0
      %6787 = vmatmul.mubr.f32.gmra.mxu0 %v6592
      %v6788 = vpop.f32.mrf.mxu0
      %v6789 = vadd.f32 0.0, %v6788
      %v6790 = vpop.f32.mrf.mxu0
      %6791 = vmatprep.mubr.f32.mxu0 0.0
      %6792 = vmatmul.mubr.f32.gmra.mxu0 %v6595
      %v6793 = vpop.f32.mrf.mxu0
      %v6794 = vadd.f32 0.0, %v6793
      %v6795 = vpop.f32.mrf.mxu0
      %6796 = vmatprep.mubr.f32.mxu0 0.0
      %6797 = vmatmul.mubr.f32.gmra.mxu0 %v6598
      %v6798 = vpop.f32.mrf.mxu0
      %v6799 = vadd.f32 0.0, %v6798
      %v6800 = vpop.f32.mrf.mxu0
      %6801 = vmatprep.mubr.f32.mxu0 0.0
      %6802 = vmatmul.mubr.f32.gmra.mxu0 %v6601
      %v6803 = vpop.f32.mrf.mxu0
      %v6804 = vadd.f32 0.0, %v6803
      %v6805 = vpop.f32.mrf.mxu0
      %6806 = vmatprep.mubr.f32.mxu0 0.0
      %6807 = vmatmul.mubr.f32.gmra.mxu0 %v6604
      %v6808 = vpop.f32.mrf.mxu0
      %v6809 = vadd.f32 0.0, %v6808
      %v6810 = vpop.f32.mrf.mxu0
      %6811 = vmatprep.mubr.f32.mxu0 0.0
      %6812 = vmatmul.mubr.f32.gmra.mxu0 %v6607
      %v6813 = vpop.f32.mrf.mxu0
      %v6814 = vadd.f32 0.0, %v6813
      %v6815 = vpop.f32.mrf.mxu0
      %6816 = vmatprep.mubr.f32.mxu0 0.0
      %6817 = vmatmul.mubr.f32.gmra.mxu0 %v6610
      %v6818 = vpop.f32.mrf.mxu0
      %v6819 = vadd.f32 0.0, %v6818
      %v6820 = vpop.f32.mrf.mxu0
      %6821 = vmatprep.mubr.f32.mxu0 0.0
      %6822 = vmatmul.mubr.f32.gmra.mxu0 %v6613
      %v6823 = vpop.f32.mrf.mxu0
      %v6824 = vadd.f32 0.0, %v6823
      %v6825 = vpop.f32.mrf.mxu0
      %6826 = vmatprep.mubr.f32.mxu0 0.0
      %6827 = vmatmul.mubr.f32.gmra.mxu0 %v6616
      %v6828 = vpop.f32.mrf.mxu0
      %v6829 = vadd.f32 0.0, %v6828
      %v6830 = vpop.f32.mrf.mxu0
      %6831 = vmatprep.mubr.f32.mxu0 0.0
      %6832 = vmatmul.mubr.f32.gmra.mxu0 %v6619
      %v6833 = vpop.f32.mrf.mxu0
      %v6834 = vadd.f32 0.0, %v6833
      %v6835 = vpop.f32.mrf.mxu0
      %6836 = vmatprep.mubr.f32.mxu0 0.0
      %6837 = vmatmul.mubr.f32.gmra.mxu0 %v6622
      %v6838 = vpop.f32.mrf.mxu0
      %v6839 = vadd.f32 0.0, %v6838
      %v6840 = vpop.f32.mrf.mxu0
      %6841 = vmatprep.mubr.f32.mxu0 0.0
      %6842 = vmatmul.mubr.f32.gmra.mxu0 %v6625
      %v6843 = vpop.f32.mrf.mxu0
      %v6844 = vadd.f32 0.0, %v6843
      %v6845 = vpop.f32.mrf.mxu0
      %6846 = vmatprep.mubr.f32.mxu0 0.0
      %6847 = vmatmul.mubr.f32.gmra.mxu0 %v6628
      %v6848 = vpop.f32.mrf.mxu0
      %v6849 = vadd.f32 0.0, %v6848
      %v6850 = vpop.f32.mrf.mxu0
      %6851 = vmatprep.mubr.f32.mxu0 0.0
      %6852 = vmatmul.mubr.f32.gmra.mxu0 %v6631
      %v6853 = vpop.f32.mrf.mxu0
      %v6854 = vadd.f32 0.0, %v6853
      %v6855 = vpop.f32.mrf.mxu0
      %6856 = vmatprep.mubr.f32.mxu0 0.0
      %6857 = vmatmul.mubr.f32.gmra.mxu0 %v6634
      %v6858 = vpop.f32.mrf.mxu0
      %v6859 = vadd.f32 0.0, %v6858
      %v6860 = vpop.f32.mrf.mxu0
      %6861 = vmatprep.mubr.f32.mxu0 0.0
      %6862 = vmatmul.mubr.f32.gmra.mxu0 %v6637
      %v6863 = vpop.f32.mrf.mxu0
      %v6864 = vadd.f32 0.0, %v6863
      %v6865 = vpop.f32.mrf.mxu0
      %6866 = vdwg.mxu0
      %v6867 = vadd.f32 %v6509, %v6709
      %v6868 = vadd.f32 %v6510, %v6714
      %v6869 = vadd.f32 %v6511, %v6719
      %v6870 = vadd.f32 %v6512, %v6724
      %v6871 = vadd.f32 %v6513, %v6729
      %v6872 = vadd.f32 %v6514, %v6734
      %v6873 = vadd.f32 %v6515, %v6739
      %v6874 = vadd.f32 %v6516, %v6744
      %v6875 = vadd.f32 %v6517, %v6749
      %v6876 = vadd.f32 %v6518, %v6754
      %v6877 = vadd.f32 %v6519, %v6759
      %v6878 = vadd.f32 %v6520, %v6764
      %v6879 = vadd.f32 %v6521, %v6769
      %v6880 = vadd.f32 %v6522, %v6774
      %v6881 = vadd.f32 %v6523, %v6779
      %v6882 = vadd.f32 %v6524, %v6784
      %v6883 = vadd.f32 %v6525, %v6789
      %v6884 = vadd.f32 %v6526, %v6794
      %v6885 = vadd.f32 %v6527, %v6799
      %v6886 = vadd.f32 %v6528, %v6804
      %v6887 = vadd.f32 %v6529, %v6809
      %v6888 = vadd.f32 %v6530, %v6814
      %v6889 = vadd.f32 %v6531, %v6819
      %v6890 = vadd.f32 %v6532, %v6824
      %v6891 = vadd.f32 %v6533, %v6829
      %v6892 = vadd.f32 %v6534, %v6834
      %v6893 = vadd.f32 %v6535, %v6839
      %v6894 = vadd.f32 %v6536, %v6844
      %v6895 = vadd.f32 %v6537, %v6849
      %v6896 = vadd.f32 %v6538, %v6854
      %v6897 = vadd.f32 %v6539, %v6859
      %v6898 = vadd.f32 %v6540, %v6864
      %v6899 = vld [vmem:[%s5337 + $0x2] sm:$0xff]
      %v6900 = vld [vmem:[%s5337 + $0xa] sm:$0xff]
      %v6901 = vld [vmem:[%s5337 + $0x1a] sm:$0xff]
      %v6902 = vld [vmem:[%s5337 + $0x22] sm:$0xff]
      %v6903 = vld [vmem:[%s5337 + $0x32] sm:$0xff]
      %v6904 = vld [vmem:[%s5337 + $0x3a] sm:$0xff]
      %v6905 = vld [vmem:[%s5337 + $0x4a] sm:$0xff]
      %v6906 = vld [vmem:[%s5337 + $0x52] sm:$0xff]
      %v6907 = vld [vmem:[%s5337 + $0x62] sm:$0xff]
      %v6908 = vld [vmem:[%s5337 + $0x6a] sm:$0xff]
      %v6909 = vld [vmem:[%s5337 + $0x7a] sm:$0xff]
      %v6910 = vld [vmem:[%s5337 + $0x82] sm:$0xff]
      %v6911 = vld [vmem:[%s5337 + $0x92] sm:$0xff]
      %v6912 = vld [vmem:[%s5337 + $0x9a] sm:$0xff]
      %v6913 = vld [vmem:[%s5337 + $0xaa] sm:$0xff]
      %v6914 = vld [vmem:[%s5337 + $0xb2] sm:$0xff]
      %v6915 = vld [vmem:[%s5337 + $0xc2] sm:$0xff]
      %v6916 = vld [vmem:[%s5337 + $0xca] sm:$0xff]
      %v6917 = vld [vmem:[%s5337 + $0xda] sm:$0xff]
      %v6918 = vld [vmem:[%s5337 + $0xe2] sm:$0xff]
      %v6919 = vld [vmem:[%s5337 + $0xf2] sm:$0xff]
      %v6920 = vld [vmem:[%s5337 + $0xfa] sm:$0xff]
      %v6921 = vld [vmem:[%s5337 + $0x10a] sm:$0xff]
      %v6922 = vld [vmem:[%s5337 + $0x112] sm:$0xff]
      %v6923 = vld [vmem:[%s5337 + $0x122] sm:$0xff]
      %v6924 = vld [vmem:[%s5337 + $0x12a] sm:$0xff]
      %v6925 = vld [vmem:[%s5337 + $0x13a] sm:$0xff]
      %v6926 = vld [vmem:[%s5337 + $0x142] sm:$0xff]
      %v6927 = vld [vmem:[%s5337 + $0x152] sm:$0xff]
      %v6928 = vld [vmem:[%s5337 + $0x15a] sm:$0xff]
      %v6929 = vld [vmem:[%s5337 + $0x16a] sm:$0xff]
      %v6930 = vld [vmem:[%s5337 + $0x172] sm:$0xff]
      %v6931 = vld [vmem:[%s5370 + $0x2] sm:$0xff]
      %v6932 = vld [vmem:[%s5370 + $0xa] sm:$0xff]
      %v6933 = vld [vmem:[%s5370 + $0x1a] sm:$0xff]
      %v6934 = vld [vmem:[%s5370 + $0x22] sm:$0xff]
      %v6935 = vld [vmem:[%s5370 + $0x32] sm:$0xff]
      %v6936 = vld [vmem:[%s5370 + $0x3a] sm:$0xff]
      %v6937 = vld [vmem:[%s5370 + $0x4a] sm:$0xff]
      %v6938 = vld [vmem:[%s5370 + $0x52] sm:$0xff]
      %v6939 = vld [vmem:[%s5370 + $0x62] sm:$0xff]
      %v6940 = vld [vmem:[%s5370 + $0x6a] sm:$0xff]
      %v6941 = vld [vmem:[%s5370 + $0x7a] sm:$0xff]
      %v6942 = vld [vmem:[%s5370 + $0x82] sm:$0xff]
      %v6943 = vld [vmem:[%s5370 + $0x92] sm:$0xff]
      %v6944 = vld [vmem:[%s5370 + $0x9a] sm:$0xff]
      %v6945 = vld [vmem:[%s5370 + $0xaa] sm:$0xff]
      %v6946 = vld [vmem:[%s5370 + $0xb2] sm:$0xff]
      %v6947 = vld [vmem:[%s5370 + $0xc2] sm:$0xff]
      %v6948 = vld [vmem:[%s5370 + $0xca] sm:$0xff]
      %v6949 = vld [vmem:[%s5370 + $0xda] sm:$0xff]
      %v6950 = vld [vmem:[%s5370 + $0xe2] sm:$0xff]
      %v6951 = vld [vmem:[%s5370 + $0xf2] sm:$0xff]
      %v6952 = vld [vmem:[%s5370 + $0xfa] sm:$0xff]
      %v6953 = vld [vmem:[%s5370 + $0x10a] sm:$0xff]
      %v6954 = vld [vmem:[%s5370 + $0x112] sm:$0xff]
      %v6955 = vld [vmem:[%s5370 + $0x122] sm:$0xff]
      %v6956 = vld [vmem:[%s5370 + $0x12a] sm:$0xff]
      %v6957 = vld [vmem:[%s5370 + $0x13a] sm:$0xff]
      %v6958 = vld [vmem:[%s5370 + $0x142] sm:$0xff]
      %v6959 = vld [vmem:[%s5370 + $0x152] sm:$0xff]
      %v6960 = vld [vmem:[%s5370 + $0x15a] sm:$0xff]
      %v6961 = vld [vmem:[%s5370 + $0x16a] sm:$0xff]
      %v6962 = vld [vmem:[%s5370 + $0x172] sm:$0xff]
      %s6963 = scalar_lea.vmem %s3, 32
      %v6964 = vld [vmem:[%s6963] sm:$0xf]
      %v6966 = vsel %vm632, %v6899, 0
      %v6969 = vsel %vm632, %v6900, 0
      %v6972 = vsel %vm632, %v6901, 0
      %v6975 = vsel %vm632, %v6902, 0
      %v6978 = vsel %vm632, %v6903, 0
      %v6981 = vsel %vm632, %v6904, 0
      %v6984 = vsel %vm632, %v6905, 0
      %v6987 = vsel %vm632, %v6906, 0
      %v6990 = vsel %vm632, %v6907, 0
      %v6993 = vsel %vm632, %v6908, 0
      %v6996 = vsel %vm632, %v6909, 0
      %v6999 = vsel %vm632, %v6910, 0
      %v7002 = vsel %vm632, %v6911, 0
      %v7005 = vsel %vm632, %v6912, 0
      %v7008 = vsel %vm632, %v6913, 0
      %v7011 = vsel %vm632, %v6914, 0
      %v7014 = vsel %vm632, %v6915, 0
      %v7017 = vsel %vm632, %v6916, 0
      %v7020 = vsel %vm632, %v6917, 0
      %v7023 = vsel %vm632, %v6918, 0
      %v7026 = vsel %vm632, %v6919, 0
      %v7029 = vsel %vm632, %v6920, 0
      %v7032 = vsel %vm632, %v6921, 0
      %v7035 = vsel %vm632, %v6922, 0
      %v7038 = vsel %vm632, %v6923, 0
      %v7041 = vsel %vm632, %v6924, 0
      %v7044 = vsel %vm632, %v6925, 0
      %v7047 = vsel %vm632, %v6926, 0
      %v7050 = vsel %vm632, %v6927, 0
      %v7053 = vsel %vm632, %v6928, 0
      %v7056 = vsel %vm632, %v6929, 0
      %v7059 = vsel %vm632, %v6930, 0
      %v7062 = vsel %vm883, %v6964, 0
      %7064 = vmatprep.subr.mxu0 0.0
      %7065 = vmatpush1.msra.mxu0 0.0
      %7066 = vmatprep.subr.mxu0 0.0
      %7067 = vmatpush1.msra.mxu0 0.0
      %7068 = vmatprep.subr.mxu0 0.0
      %7069 = vmatpush1.msra.mxu0 0.0
      %7070 = vmatprep.subr.mxu0 0.0
      %7071 = vmatpush1.msra.mxu0 0.0
      %7072 = vmatprep.subr.mxu0 0.0
      %7073 = vmatpush1.msra.mxu0 0.0
      %7074 = vmatprep.subr.mxu0 0.0
      %7075 = vmatpush1.msra.mxu0 0.0
      %7076 = vmatprep.subr.mxu0 0.0
      %7077 = vmatpush1.msra.mxu0 0.0
      %7078 = vmatprep.subr.mxu0 0.0
      %7079 = vmatpush1.msra.mxu0 0.0
      %7080 = vmatprep.subr.mxu0 0.0
      %7081 = vmatpush1.msra.mxu0 0.0
      %7082 = vmatprep.subr.mxu0 0.0
      %7083 = vmatpush1.msra.mxu0 0.0
      %7084 = vmatprep.subr.mxu0 0.0
      %7085 = vmatpush1.msra.mxu0 0.0
      %7086 = vmatprep.subr.mxu0 0.0
      %7087 = vmatpush1.msra.mxu0 0.0
      %7088 = vmatprep.subr.mxu0 0.0
      %7089 = vmatpush1.msra.mxu0 0.0
      %7090 = vmatprep.subr.mxu0 0.0
      %7091 = vmatpush1.msra.mxu0 0.0
      %7092 = vmatprep.subr.mxu0 0.0
      %7093 = vmatpush1.msra.mxu0 0.0
      %7094 = vmatprep.subr.mxu0 0.0
      %7095 = vmatpush1.msra.mxu0 %v7062
      %7096 = vmatprep.subr.mxu0 0.0
      %7097 = vmatpush2.msra.mxu0 0.0
      %7098 = vmatprep.subr.mxu0 0.0
      %7099 = vmatpush2.msra.mxu0 0.0
      %7100 = vmatprep.subr.mxu0 0.0
      %7101 = vmatpush2.msra.mxu0 0.0
      %7102 = vmatprep.subr.mxu0 0.0
      %7103 = vmatpush2.msra.mxu0 0.0
      %7104 = vmatprep.subr.mxu0 0.0
      %7105 = vmatpush2.msra.mxu0 0.0
      %7106 = vmatprep.subr.mxu0 0.0
      %7107 = vmatpush2.msra.mxu0 0.0
      %7108 = vmatprep.subr.mxu0 0.0
      %7109 = vmatpush2.msra.mxu0 0.0
      %7110 = vmatprep.subr.mxu0 0.0
      %7111 = vmatpush2.msra.mxu0 0.0
      %7112 = vmatprep.subr.mxu0 0.0
      %7113 = vmatpush2.msra.mxu0 0.0
      %7114 = vmatprep.subr.mxu0 0.0
      %7115 = vmatpush2.msra.mxu0 0.0
      %7116 = vmatprep.subr.mxu0 0.0
      %7117 = vmatpush2.msra.mxu0 0.0
      %7118 = vmatprep.subr.mxu0 0.0
      %7119 = vmatpush2.msra.mxu0 0.0
      %7120 = vmatprep.subr.mxu0 0.0
      %7121 = vmatpush2.msra.mxu0 0.0
      %7122 = vmatprep.subr.mxu0 0.0
      %7123 = vmatpush2.msra.mxu0 0.0
      %7124 = vmatprep.subr.mxu0 0.0
      %7125 = vmatpush2.msra.mxu0 0.0
      %7126 = vmatprep.subr.mxu0 0.0
      %7127 = vmatpush2.msra.mxu0 0.0
      %7128 = vmatprep.mubr.f32.mxu0 0.0
      %7129 = vmatmul.mubr.f32.gmra.mxu0 %v6966
      %v7130 = vpop.f32.mrf.mxu0
      %v7131 = vadd.f32 0.0, %v7130
      %v7132 = vpop.f32.mrf.mxu0
      %7133 = vmatprep.mubr.f32.mxu0 0.0
      %7134 = vmatmul.mubr.f32.gmra.mxu0 %v6969
      %v7135 = vpop.f32.mrf.mxu0
      %v7136 = vadd.f32 0.0, %v7135
      %v7137 = vpop.f32.mrf.mxu0
      %7138 = vmatprep.mubr.f32.mxu0 0.0
      %7139 = vmatmul.mubr.f32.gmra.mxu0 %v6972
      %v7140 = vpop.f32.mrf.mxu0
      %v7141 = vadd.f32 0.0, %v7140
      %v7142 = vpop.f32.mrf.mxu0
      %7143 = vmatprep.mubr.f32.mxu0 0.0
      %7144 = vmatmul.mubr.f32.gmra.mxu0 %v6975
      %v7145 = vpop.f32.mrf.mxu0
      %v7146 = vadd.f32 0.0, %v7145
      %v7147 = vpop.f32.mrf.mxu0
      %7148 = vmatprep.mubr.f32.mxu0 0.0
      %7149 = vmatmul.mubr.f32.gmra.mxu0 %v6978
      %v7150 = vpop.f32.mrf.mxu0
      %v7151 = vadd.f32 0.0, %v7150
      %v7152 = vpop.f32.mrf.mxu0
      %7153 = vmatprep.mubr.f32.mxu0 0.0
      %7154 = vmatmul.mubr.f32.gmra.mxu0 %v6981
      %v7155 = vpop.f32.mrf.mxu0
      %v7156 = vadd.f32 0.0, %v7155
      %v7157 = vpop.f32.mrf.mxu0
      %7158 = vmatprep.mubr.f32.mxu0 0.0
      %7159 = vmatmul.mubr.f32.gmra.mxu0 %v6984
      %v7160 = vpop.f32.mrf.mxu0
      %v7161 = vadd.f32 0.0, %v7160
      %v7162 = vpop.f32.mrf.mxu0
      %7163 = vmatprep.mubr.f32.mxu0 0.0
      %7164 = vmatmul.mubr.f32.gmra.mxu0 %v6987
      %v7165 = vpop.f32.mrf.mxu0
      %v7166 = vadd.f32 0.0, %v7165
      %v7167 = vpop.f32.mrf.mxu0
      %7168 = vmatprep.mubr.f32.mxu0 0.0
      %7169 = vmatmul.mubr.f32.gmra.mxu0 %v6990
      %v7170 = vpop.f32.mrf.mxu0
      %v7171 = vadd.f32 0.0, %v7170
      %v7172 = vpop.f32.mrf.mxu0
      %7173 = vmatprep.mubr.f32.mxu0 0.0
      %7174 = vmatmul.mubr.f32.gmra.mxu0 %v6993
      %v7175 = vpop.f32.mrf.mxu0
      %v7176 = vadd.f32 0.0, %v7175
      %v7177 = vpop.f32.mrf.mxu0
      %7178 = vmatprep.mubr.f32.mxu0 0.0
      %7179 = vmatmul.mubr.f32.gmra.mxu0 %v6996
      %v7180 = vpop.f32.mrf.mxu0
      %v7181 = vadd.f32 0.0, %v7180
      %v7182 = vpop.f32.mrf.mxu0
      %7183 = vmatprep.mubr.f32.mxu0 0.0
      %7184 = vmatmul.mubr.f32.gmra.mxu0 %v6999
      %v7185 = vpop.f32.mrf.mxu0
      %v7186 = vadd.f32 0.0, %v7185
      %v7187 = vpop.f32.mrf.mxu0
      %7188 = vmatprep.mubr.f32.mxu0 0.0
      %7189 = vmatmul.mubr.f32.gmra.mxu0 %v7002
      %v7190 = vpop.f32.mrf.mxu0
      %v7191 = vadd.f32 0.0, %v7190
      %v7192 = vpop.f32.mrf.mxu0
      %7193 = vmatprep.mubr.f32.mxu0 0.0
      %7194 = vmatmul.mubr.f32.gmra.mxu0 %v7005
      %v7195 = vpop.f32.mrf.mxu0
      %v7196 = vadd.f32 0.0, %v7195
      %v7197 = vpop.f32.mrf.mxu0
      %7198 = vmatprep.mubr.f32.mxu0 0.0
      %7199 = vmatmul.mubr.f32.gmra.mxu0 %v7008
      %v7200 = vpop.f32.mrf.mxu0
      %v7201 = vadd.f32 0.0, %v7200
      %v7202 = vpop.f32.mrf.mxu0
      %7203 = vmatprep.mubr.f32.mxu0 0.0
      %7204 = vmatmul.mubr.f32.gmra.mxu0 %v7011
      %v7205 = vpop.f32.mrf.mxu0
      %v7206 = vadd.f32 0.0, %v7205
      %v7207 = vpop.f32.mrf.mxu0
      %7208 = vmatprep.mubr.f32.mxu0 0.0
      %7209 = vmatmul.mubr.f32.gmra.mxu0 %v7014
      %v7210 = vpop.f32.mrf.mxu0
      %v7211 = vadd.f32 0.0, %v7210
      %v7212 = vpop.f32.mrf.mxu0
      %7213 = vmatprep.mubr.f32.mxu0 0.0
      %7214 = vmatmul.mubr.f32.gmra.mxu0 %v7017
      %v7215 = vpop.f32.mrf.mxu0
      %v7216 = vadd.f32 0.0, %v7215
      %v7217 = vpop.f32.mrf.mxu0
      %7218 = vmatprep.mubr.f32.mxu0 0.0
      %7219 = vmatmul.mubr.f32.gmra.mxu0 %v7020
      %v7220 = vpop.f32.mrf.mxu0
      %v7221 = vadd.f32 0.0, %v7220
      %v7222 = vpop.f32.mrf.mxu0
      %7223 = vmatprep.mubr.f32.mxu0 0.0
      %7224 = vmatmul.mubr.f32.gmra.mxu0 %v7023
      %v7225 = vpop.f32.mrf.mxu0
      %v7226 = vadd.f32 0.0, %v7225
      %v7227 = vpop.f32.mrf.mxu0
      %7228 = vmatprep.mubr.f32.mxu0 0.0
      %7229 = vmatmul.mubr.f32.gmra.mxu0 %v7026
      %v7230 = vpop.f32.mrf.mxu0
      %v7231 = vadd.f32 0.0, %v7230
      %v7232 = vpop.f32.mrf.mxu0
      %7233 = vmatprep.mubr.f32.mxu0 0.0
      %7234 = vmatmul.mubr.f32.gmra.mxu0 %v7029
      %v7235 = vpop.f32.mrf.mxu0
      %v7236 = vadd.f32 0.0, %v7235
      %v7237 = vpop.f32.mrf.mxu0
      %7238 = vmatprep.mubr.f32.mxu0 0.0
      %7239 = vmatmul.mubr.f32.gmra.mxu0 %v7032
      %v7240 = vpop.f32.mrf.mxu0
      %v7241 = vadd.f32 0.0, %v7240
      %v7242 = vpop.f32.mrf.mxu0
      %7243 = vmatprep.mubr.f32.mxu0 0.0
      %7244 = vmatmul.mubr.f32.gmra.mxu0 %v7035
      %v7245 = vpop.f32.mrf.mxu0
      %v7246 = vadd.f32 0.0, %v7245
      %v7247 = vpop.f32.mrf.mxu0
      %7248 = vmatprep.mubr.f32.mxu0 0.0
      %7249 = vmatmul.mubr.f32.gmra.mxu0 %v7038
      %v7250 = vpop.f32.mrf.mxu0
      %v7251 = vadd.f32 0.0, %v7250
      %v7252 = vpop.f32.mrf.mxu0
      %7253 = vmatprep.mubr.f32.mxu0 0.0
      %7254 = vmatmul.mubr.f32.gmra.mxu0 %v7041
      %v7255 = vpop.f32.mrf.mxu0
      %v7256 = vadd.f32 0.0, %v7255
      %v7257 = vpop.f32.mrf.mxu0
      %7258 = vmatprep.mubr.f32.mxu0 0.0
      %7259 = vmatmul.mubr.f32.gmra.mxu0 %v7044
      %v7260 = vpop.f32.mrf.mxu0
      %v7261 = vadd.f32 0.0, %v7260
      %v7262 = vpop.f32.mrf.mxu0
      %7263 = vmatprep.mubr.f32.mxu0 0.0
      %7264 = vmatmul.mubr.f32.gmra.mxu0 %v7047
      %v7265 = vpop.f32.mrf.mxu0
      %v7266 = vadd.f32 0.0, %v7265
      %v7267 = vpop.f32.mrf.mxu0
      %7268 = vmatprep.mubr.f32.mxu0 0.0
      %7269 = vmatmul.mubr.f32.gmra.mxu0 %v7050
      %v7270 = vpop.f32.mrf.mxu0
      %v7271 = vadd.f32 0.0, %v7270
      %v7272 = vpop.f32.mrf.mxu0
      %7273 = vmatprep.mubr.f32.mxu0 0.0
      %7274 = vmatmul.mubr.f32.gmra.mxu0 %v7053
      %v7275 = vpop.f32.mrf.mxu0
      %v7276 = vadd.f32 0.0, %v7275
      %v7277 = vpop.f32.mrf.mxu0
      %7278 = vmatprep.mubr.f32.mxu0 0.0
      %7279 = vmatmul.mubr.f32.gmra.mxu0 %v7056
      %v7280 = vpop.f32.mrf.mxu0
      %v7281 = vadd.f32 0.0, %v7280
      %v7282 = vpop.f32.mrf.mxu0
      %7283 = vmatprep.mubr.f32.mxu0 0.0
      %7284 = vmatmul.mubr.f32.gmra.mxu0 %v7059
      %v7285 = vpop.f32.mrf.mxu0
      %v7286 = vadd.f32 0.0, %v7285
      %v7287 = vpop.f32.mrf.mxu0
      %7288 = vdwg.mxu0
      %v7289 = vadd.f32 %v6867, %v7131
      %v7290 = vadd.f32 %v6868, %v7136
      %v7291 = vadd.f32 %v6869, %v7141
      %v7292 = vadd.f32 %v6870, %v7146
      %v7293 = vadd.f32 %v6871, %v7151
      %v7294 = vadd.f32 %v6872, %v7156
      %v7295 = vadd.f32 %v6873, %v7161
      %v7296 = vadd.f32 %v6874, %v7166
      %v7297 = vadd.f32 %v6875, %v7171
      %v7298 = vadd.f32 %v6876, %v7176
      %v7299 = vadd.f32 %v6877, %v7181
      %v7300 = vadd.f32 %v6878, %v7186
      %v7301 = vadd.f32 %v6879, %v7191
      %v7302 = vadd.f32 %v6880, %v7196
      %v7303 = vadd.f32 %v6881, %v7201
      %v7304 = vadd.f32 %v6882, %v7206
      %v7305 = vadd.f32 %v6883, %v7211
      %v7306 = vadd.f32 %v6884, %v7216
      %v7307 = vadd.f32 %v6885, %v7221
      %v7308 = vadd.f32 %v6886, %v7226
      %v7309 = vadd.f32 %v6887, %v7231
      %v7310 = vadd.f32 %v6888, %v7236
      %v7311 = vadd.f32 %v6889, %v7241
      %v7312 = vadd.f32 %v6890, %v7246
      %v7313 = vadd.f32 %v6891, %v7251
      %v7314 = vadd.f32 %v6892, %v7256
      %v7315 = vadd.f32 %v6893, %v7261
      %v7316 = vadd.f32 %v6894, %v7266
      %v7317 = vadd.f32 %v6895, %v7271
      %v7318 = vadd.f32 %v6896, %v7276
      %v7319 = vadd.f32 %v6897, %v7281
      %v7320 = vadd.f32 %v6898, %v7286
      %s7321 = scalar_lea.vmem %s4, 32
      %v7322 = vld [vmem:[%s7321] sm:$0xf]
      %v7324 = vsel %vm632, %v6931, 0
      %v7327 = vsel %vm632, %v6932, 0
      %v7330 = vsel %vm632, %v6933, 0
      %v7333 = vsel %vm632, %v6934, 0
      %v7336 = vsel %vm632, %v6935, 0
      %v7339 = vsel %vm632, %v6936, 0
      %v7342 = vsel %vm632, %v6937, 0
      %v7345 = vsel %vm632, %v6938, 0
      %v7348 = vsel %vm632, %v6939, 0
      %v7351 = vsel %vm632, %v6940, 0
      %v7354 = vsel %vm632, %v6941, 0
      %v7357 = vsel %vm632, %v6942, 0
      %v7360 = vsel %vm632, %v6943, 0
      %v7363 = vsel %vm632, %v6944, 0
      %v7366 = vsel %vm632, %v6945, 0
      %v7369 = vsel %vm632, %v6946, 0
      %v7372 = vsel %vm632, %v6947, 0
      %v7375 = vsel %vm632, %v6948, 0
      %v7378 = vsel %vm632, %v6949, 0
      %v7381 = vsel %vm632, %v6950, 0
      %v7384 = vsel %vm632, %v6951, 0
      %v7387 = vsel %vm632, %v6952, 0
      %v7390 = vsel %vm632, %v6953, 0
      %v7393 = vsel %vm632, %v6954, 0
      %v7396 = vsel %vm632, %v6955, 0
      %v7399 = vsel %vm632, %v6956, 0
      %v7402 = vsel %vm632, %v6957, 0
      %v7405 = vsel %vm632, %v6958, 0
      %v7408 = vsel %vm632, %v6959, 0
      %v7411 = vsel %vm632, %v6960, 0
      %v7414 = vsel %vm632, %v6961, 0
      %v7417 = vsel %vm632, %v6962, 0
      %v7420 = vsel %vm883, %v7322, 0
      %7422 = vmatprep.subr.mxu0 0.0
      %7423 = vmatpush1.msra.mxu0 0.0
      %7424 = vmatprep.subr.mxu0 0.0
      %7425 = vmatpush1.msra.mxu0 0.0
      %7426 = vmatprep.subr.mxu0 0.0
      %7427 = vmatpush1.msra.mxu0 0.0
      %7428 = vmatprep.subr.mxu0 0.0
      %7429 = vmatpush1.msra.mxu0 0.0
      %7430 = vmatprep.subr.mxu0 0.0
      %7431 = vmatpush1.msra.mxu0 0.0
      %7432 = vmatprep.subr.mxu0 0.0
      %7433 = vmatpush1.msra.mxu0 0.0
      %7434 = vmatprep.subr.mxu0 0.0
      %7435 = vmatpush1.msra.mxu0 0.0
      %7436 = vmatprep.subr.mxu0 0.0
      %7437 = vmatpush1.msra.mxu0 0.0
      %7438 = vmatprep.subr.mxu0 0.0
      %7439 = vmatpush1.msra.mxu0 0.0
      %7440 = vmatprep.subr.mxu0 0.0
      %7441 = vmatpush1.msra.mxu0 0.0
      %7442 = vmatprep.subr.mxu0 0.0
      %7443 = vmatpush1.msra.mxu0 0.0
      %7444 = vmatprep.subr.mxu0 0.0
      %7445 = vmatpush1.msra.mxu0 0.0
      %7446 = vmatprep.subr.mxu0 0.0
      %7447 = vmatpush1.msra.mxu0 0.0
      %7448 = vmatprep.subr.mxu0 0.0
      %7449 = vmatpush1.msra.mxu0 0.0
      %7450 = vmatprep.subr.mxu0 0.0
      %7451 = vmatpush1.msra.mxu0 0.0
      %7452 = vmatprep.subr.mxu0 0.0
      %7453 = vmatpush1.msra.mxu0 %v7420
      %7454 = vmatprep.subr.mxu0 0.0
      %7455 = vmatpush2.msra.mxu0 0.0
      %7456 = vmatprep.subr.mxu0 0.0
      %7457 = vmatpush2.msra.mxu0 0.0
      %7458 = vmatprep.subr.mxu0 0.0
      %7459 = vmatpush2.msra.mxu0 0.0
      %7460 = vmatprep.subr.mxu0 0.0
      %7461 = vmatpush2.msra.mxu0 0.0
      %7462 = vmatprep.subr.mxu0 0.0
      %7463 = vmatpush2.msra.mxu0 0.0
      %7464 = vmatprep.subr.mxu0 0.0
      %7465 = vmatpush2.msra.mxu0 0.0
      %7466 = vmatprep.subr.mxu0 0.0
      %7467 = vmatpush2.msra.mxu0 0.0
      %7468 = vmatprep.subr.mxu0 0.0
      %7469 = vmatpush2.msra.mxu0 0.0
      %7470 = vmatprep.subr.mxu0 0.0
      %7471 = vmatpush2.msra.mxu0 0.0
      %7472 = vmatprep.subr.mxu0 0.0
      %7473 = vmatpush2.msra.mxu0 0.0
      %7474 = vmatprep.subr.mxu0 0.0
      %7475 = vmatpush2.msra.mxu0 0.0
      %7476 = vmatprep.subr.mxu0 0.0
      %7477 = vmatpush2.msra.mxu0 0.0
      %7478 = vmatprep.subr.mxu0 0.0
      %7479 = vmatpush2.msra.mxu0 0.0
      %7480 = vmatprep.subr.mxu0 0.0
      %7481 = vmatpush2.msra.mxu0 0.0
      %7482 = vmatprep.subr.mxu0 0.0
      %7483 = vmatpush2.msra.mxu0 0.0
      %7484 = vmatprep.subr.mxu0 0.0
      %7485 = vmatpush2.msra.mxu0 0.0
      %7486 = vmatprep.mubr.f32.mxu0 0.0
      %7487 = vmatmul.mubr.f32.gmra.mxu0 %v7324
      %v7488 = vpop.f32.mrf.mxu0
      %v7489 = vadd.f32 0.0, %v7488
      %v7490 = vpop.f32.mrf.mxu0
      %7491 = vmatprep.mubr.f32.mxu0 0.0
      %7492 = vmatmul.mubr.f32.gmra.mxu0 %v7327
      %v7493 = vpop.f32.mrf.mxu0
      %v7494 = vadd.f32 0.0, %v7493
      %v7495 = vpop.f32.mrf.mxu0
      %7496 = vmatprep.mubr.f32.mxu0 0.0
      %7497 = vmatmul.mubr.f32.gmra.mxu0 %v7330
      %v7498 = vpop.f32.mrf.mxu0
      %v7499 = vadd.f32 0.0, %v7498
      %v7500 = vpop.f32.mrf.mxu0
      %7501 = vmatprep.mubr.f32.mxu0 0.0
      %7502 = vmatmul.mubr.f32.gmra.mxu0 %v7333
      %v7503 = vpop.f32.mrf.mxu0
      %v7504 = vadd.f32 0.0, %v7503
      %v7505 = vpop.f32.mrf.mxu0
      %7506 = vmatprep.mubr.f32.mxu0 0.0
      %7507 = vmatmul.mubr.f32.gmra.mxu0 %v7336
      %v7508 = vpop.f32.mrf.mxu0
      %v7509 = vadd.f32 0.0, %v7508
      %v7510 = vpop.f32.mrf.mxu0
      %7511 = vmatprep.mubr.f32.mxu0 0.0
      %7512 = vmatmul.mubr.f32.gmra.mxu0 %v7339
      %v7513 = vpop.f32.mrf.mxu0
      %v7514 = vadd.f32 0.0, %v7513
      %v7515 = vpop.f32.mrf.mxu0
      %7516 = vmatprep.mubr.f32.mxu0 0.0
      %7517 = vmatmul.mubr.f32.gmra.mxu0 %v7342
      %v7518 = vpop.f32.mrf.mxu0
      %v7519 = vadd.f32 0.0, %v7518
      %v7520 = vpop.f32.mrf.mxu0
      %7521 = vmatprep.mubr.f32.mxu0 0.0
      %7522 = vmatmul.mubr.f32.gmra.mxu0 %v7345
      %v7523 = vpop.f32.mrf.mxu0
      %v7524 = vadd.f32 0.0, %v7523
      %v7525 = vpop.f32.mrf.mxu0
      %7526 = vmatprep.mubr.f32.mxu0 0.0
      %7527 = vmatmul.mubr.f32.gmra.mxu0 %v7348
      %v7528 = vpop.f32.mrf.mxu0
      %v7529 = vadd.f32 0.0, %v7528
      %v7530 = vpop.f32.mrf.mxu0
      %7531 = vmatprep.mubr.f32.mxu0 0.0
      %7532 = vmatmul.mubr.f32.gmra.mxu0 %v7351
      %v7533 = vpop.f32.mrf.mxu0
      %v7534 = vadd.f32 0.0, %v7533
      %v7535 = vpop.f32.mrf.mxu0
      %7536 = vmatprep.mubr.f32.mxu0 0.0
      %7537 = vmatmul.mubr.f32.gmra.mxu0 %v7354
      %v7538 = vpop.f32.mrf.mxu0
      %v7539 = vadd.f32 0.0, %v7538
      %v7540 = vpop.f32.mrf.mxu0
      %7541 = vmatprep.mubr.f32.mxu0 0.0
      %7542 = vmatmul.mubr.f32.gmra.mxu0 %v7357
      %v7543 = vpop.f32.mrf.mxu0
      %v7544 = vadd.f32 0.0, %v7543
      %v7545 = vpop.f32.mrf.mxu0
      %7546 = vmatprep.mubr.f32.mxu0 0.0
      %7547 = vmatmul.mubr.f32.gmra.mxu0 %v7360
      %v7548 = vpop.f32.mrf.mxu0
      %v7549 = vadd.f32 0.0, %v7548
      %v7550 = vpop.f32.mrf.mxu0
      %7551 = vmatprep.mubr.f32.mxu0 0.0
      %7552 = vmatmul.mubr.f32.gmra.mxu0 %v7363
      %v7553 = vpop.f32.mrf.mxu0
      %v7554 = vadd.f32 0.0, %v7553
      %v7555 = vpop.f32.mrf.mxu0
      %7556 = vmatprep.mubr.f32.mxu0 0.0
      %7557 = vmatmul.mubr.f32.gmra.mxu0 %v7366
      %v7558 = vpop.f32.mrf.mxu0
      %v7559 = vadd.f32 0.0, %v7558
      %v7560 = vpop.f32.mrf.mxu0
      %7561 = vmatprep.mubr.f32.mxu0 0.0
      %7562 = vmatmul.mubr.f32.gmra.mxu0 %v7369
      %v7563 = vpop.f32.mrf.mxu0
      %v7564 = vadd.f32 0.0, %v7563
      %v7565 = vpop.f32.mrf.mxu0
      %7566 = vmatprep.mubr.f32.mxu0 0.0
      %7567 = vmatmul.mubr.f32.gmra.mxu0 %v7372
      %v7568 = vpop.f32.mrf.mxu0
      %v7569 = vadd.f32 0.0, %v7568
      %v7570 = vpop.f32.mrf.mxu0
      %7571 = vmatprep.mubr.f32.mxu0 0.0
      %7572 = vmatmul.mubr.f32.gmra.mxu0 %v7375
      %v7573 = vpop.f32.mrf.mxu0
      %v7574 = vadd.f32 0.0, %v7573
      %v7575 = vpop.f32.mrf.mxu0
      %7576 = vmatprep.mubr.f32.mxu0 0.0
      %7577 = vmatmul.mubr.f32.gmra.mxu0 %v7378
      %v7578 = vpop.f32.mrf.mxu0
      %v7579 = vadd.f32 0.0, %v7578
      %v7580 = vpop.f32.mrf.mxu0
      %7581 = vmatprep.mubr.f32.mxu0 0.0
      %7582 = vmatmul.mubr.f32.gmra.mxu0 %v7381
      %v7583 = vpop.f32.mrf.mxu0
      %v7584 = vadd.f32 0.0, %v7583
      %v7585 = vpop.f32.mrf.mxu0
      %7586 = vmatprep.mubr.f32.mxu0 0.0
      %7587 = vmatmul.mubr.f32.gmra.mxu0 %v7384
      %v7588 = vpop.f32.mrf.mxu0
      %v7589 = vadd.f32 0.0, %v7588
      %v7590 = vpop.f32.mrf.mxu0
      %7591 = vmatprep.mubr.f32.mxu0 0.0
      %7592 = vmatmul.mubr.f32.gmra.mxu0 %v7387
      %v7593 = vpop.f32.mrf.mxu0
      %v7594 = vadd.f32 0.0, %v7593
      %v7595 = vpop.f32.mrf.mxu0
      %7596 = vmatprep.mubr.f32.mxu0 0.0
      %7597 = vmatmul.mubr.f32.gmra.mxu0 %v7390
      %v7598 = vpop.f32.mrf.mxu0
      %v7599 = vadd.f32 0.0, %v7598
      %v7600 = vpop.f32.mrf.mxu0
      %7601 = vmatprep.mubr.f32.mxu0 0.0
      %7602 = vmatmul.mubr.f32.gmra.mxu0 %v7393
      %v7603 = vpop.f32.mrf.mxu0
      %v7604 = vadd.f32 0.0, %v7603
      %v7605 = vpop.f32.mrf.mxu0
      %7606 = vmatprep.mubr.f32.mxu0 0.0
      %7607 = vmatmul.mubr.f32.gmra.mxu0 %v7396
      %v7608 = vpop.f32.mrf.mxu0
      %v7609 = vadd.f32 0.0, %v7608
      %v7610 = vpop.f32.mrf.mxu0
      %7611 = vmatprep.mubr.f32.mxu0 0.0
      %7612 = vmatmul.mubr.f32.gmra.mxu0 %v7399
      %v7613 = vpop.f32.mrf.mxu0
      %v7614 = vadd.f32 0.0, %v7613
      %v7615 = vpop.f32.mrf.mxu0
      %7616 = vmatprep.mubr.f32.mxu0 0.0
      %7617 = vmatmul.mubr.f32.gmra.mxu0 %v7402
      %v7618 = vpop.f32.mrf.mxu0
      %v7619 = vadd.f32 0.0, %v7618
      %v7620 = vpop.f32.mrf.mxu0
      %7621 = vmatprep.mubr.f32.mxu0 0.0
      %7622 = vmatmul.mubr.f32.gmra.mxu0 %v7405
      %v7623 = vpop.f32.mrf.mxu0
      %v7624 = vadd.f32 0.0, %v7623
      %v7625 = vpop.f32.mrf.mxu0
      %7626 = vmatprep.mubr.f32.mxu0 0.0
      %7627 = vmatmul.mubr.f32.gmra.mxu0 %v7408
      %v7628 = vpop.f32.mrf.mxu0
      %v7629 = vadd.f32 0.0, %v7628
      %v7630 = vpop.f32.mrf.mxu0
      %7631 = vmatprep.mubr.f32.mxu0 0.0
      %7632 = vmatmul.mubr.f32.gmra.mxu0 %v7411
      %v7633 = vpop.f32.mrf.mxu0
      %v7634 = vadd.f32 0.0, %v7633
      %v7635 = vpop.f32.mrf.mxu0
      %7636 = vmatprep.mubr.f32.mxu0 0.0
      %7637 = vmatmul.mubr.f32.gmra.mxu0 %v7414
      %v7638 = vpop.f32.mrf.mxu0
      %v7639 = vadd.f32 0.0, %v7638
      %v7640 = vpop.f32.mrf.mxu0
      %7641 = vmatprep.mubr.f32.mxu0 0.0
      %7642 = vmatmul.mubr.f32.gmra.mxu0 %v7417
      %v7643 = vpop.f32.mrf.mxu0
      %v7644 = vadd.f32 0.0, %v7643
      %v7645 = vpop.f32.mrf.mxu0
      %7646 = vdwg.mxu0
      %v7647 = vadd.f32 %v7289, %v7489
      %v7648 = vadd.f32 %v7290, %v7494
      %v7649 = vadd.f32 %v7291, %v7499
      %v7650 = vadd.f32 %v7292, %v7504
      %v7651 = vadd.f32 %v7293, %v7509
      %v7652 = vadd.f32 %v7294, %v7514
      %v7653 = vadd.f32 %v7295, %v7519
      %v7654 = vadd.f32 %v7296, %v7524
      %v7655 = vadd.f32 %v7297, %v7529
      %v7656 = vadd.f32 %v7298, %v7534
      %v7657 = vadd.f32 %v7299, %v7539
      %v7658 = vadd.f32 %v7300, %v7544
      %v7659 = vadd.f32 %v7301, %v7549
      %v7660 = vadd.f32 %v7302, %v7554
      %v7661 = vadd.f32 %v7303, %v7559
      %v7662 = vadd.f32 %v7304, %v7564
      %v7663 = vadd.f32 %v7305, %v7569
      %v7664 = vadd.f32 %v7306, %v7574
      %v7665 = vadd.f32 %v7307, %v7579
      %v7666 = vadd.f32 %v7308, %v7584
      %v7667 = vadd.f32 %v7309, %v7589
      %v7668 = vadd.f32 %v7310, %v7594
      %v7669 = vadd.f32 %v7311, %v7599
      %v7670 = vadd.f32 %v7312, %v7604
      %v7671 = vadd.f32 %v7313, %v7609
      %v7672 = vadd.f32 %v7314, %v7614
      %v7673 = vadd.f32 %v7315, %v7619
      %v7674 = vadd.f32 %v7316, %v7624
      %v7675 = vadd.f32 %v7317, %v7629
      %v7676 = vadd.f32 %v7318, %v7634
      %v7677 = vadd.f32 %v7319, %v7639
      %v7678 = vadd.f32 %v7320, %v7644
      %v7679 = vld [vmem:[%s5] sm:$0xff]
      %v7680 = vld [vmem:[%s5 + $0x8] sm:$0xff]
      %v7681 = vld [vmem:[%s5 + $0x10] sm:$0xff]
      %v7682 = vld [vmem:[%s5 + $0x18] sm:$0xff]
      %v7683 = vld [vmem:[%s5 + $0x20] sm:$0xff]
      %v7684 = vld [vmem:[%s5 + $0x28] sm:$0xff]
      %v7685 = vld [vmem:[%s5 + $0x30] sm:$0xff]
      %v7686 = vld [vmem:[%s5 + $0x38] sm:$0xff]
      %v7687 = vld [vmem:[%s5 + $0x40] sm:$0xff]
      %v7688 = vld [vmem:[%s5 + $0x48] sm:$0xff]
      %v7689 = vld [vmem:[%s5 + $0x50] sm:$0xff]
      %v7690 = vld [vmem:[%s5 + $0x58] sm:$0xff]
      %v7691 = vld [vmem:[%s5 + $0x60] sm:$0xff]
      %v7692 = vld [vmem:[%s5 + $0x68] sm:$0xff]
      %v7693 = vld [vmem:[%s5 + $0x70] sm:$0xff]
      %v7694 = vld [vmem:[%s5 + $0x78] sm:$0xff]
      %v7695 = vld [vmem:[%s5 + $0x80] sm:$0xff]
      %v7696 = vld [vmem:[%s5 + $0x88] sm:$0xff]
      %v7697 = vld [vmem:[%s5 + $0x90] sm:$0xff]
      %v7698 = vld [vmem:[%s5 + $0x98] sm:$0xff]
      %v7699 = vld [vmem:[%s5 + $0xa0] sm:$0xff]
      %v7700 = vld [vmem:[%s5 + $0xa8] sm:$0xff]
      %v7701 = vld [vmem:[%s5 + $0xb0] sm:$0xff]
      %v7702 = vld [vmem:[%s5 + $0xb8] sm:$0xff]
      %v7703 = vld [vmem:[%s5 + $0xc0] sm:$0xff]
      %v7704 = vld [vmem:[%s5 + $0xc8] sm:$0xff]
      %v7705 = vld [vmem:[%s5 + $0xd0] sm:$0xff]
      %v7706 = vld [vmem:[%s5 + $0xd8] sm:$0xff]
      %v7707 = vld [vmem:[%s5 + $0xe0] sm:$0xff]
      %v7708 = vld [vmem:[%s5 + $0xe8] sm:$0xff]
      %v7709 = vld [vmem:[%s5 + $0xf0] sm:$0xff]
      %v7710 = vld [vmem:[%s5 + $0xf8] sm:$0xff]
      %v7711 = vmul.f32 %v7647, 0.5
      %v7712 = vmul.f32 %v7648, 0.5
      %v7713 = vmul.f32 %v7649, 0.5
      %v7714 = vmul.f32 %v7650, 0.5
      %v7715 = vmul.f32 %v7651, 0.5
      %v7716 = vmul.f32 %v7652, 0.5
      %v7717 = vmul.f32 %v7653, 0.5
      %v7718 = vmul.f32 %v7654, 0.5
      %v7719 = vmul.f32 %v7655, 0.5
      %v7720 = vmul.f32 %v7656, 0.5
      %v7721 = vmul.f32 %v7657, 0.5
      %v7722 = vmul.f32 %v7658, 0.5
      %v7723 = vmul.f32 %v7659, 0.5
      %v7724 = vmul.f32 %v7660, 0.5
      %v7725 = vmul.f32 %v7661, 0.5
      %v7726 = vmul.f32 %v7662, 0.5
      %v7727 = vmul.f32 %v7663, 0.5
      %v7728 = vmul.f32 %v7664, 0.5
      %v7729 = vmul.f32 %v7665, 0.5
      %v7730 = vmul.f32 %v7666, 0.5
      %v7731 = vmul.f32 %v7667, 0.5
      %v7732 = vmul.f32 %v7668, 0.5
      %v7733 = vmul.f32 %v7669, 0.5
      %v7734 = vmul.f32 %v7670, 0.5
      %v7735 = vmul.f32 %v7671, 0.5
      %v7736 = vmul.f32 %v7672, 0.5
      %v7737 = vmul.f32 %v7673, 0.5
      %v7738 = vmul.f32 %v7674, 0.5
      %v7739 = vmul.f32 %v7675, 0.5
      %v7740 = vmul.f32 %v7676, 0.5
      %v7741 = vmul.f32 %v7677, 0.5
      %v7742 = vmul.f32 %v7678, 0.5
      %v7743 = vadd.f32 %v7679, %v7711
      %v7744 = vadd.f32 %v7680, %v7712
      %v7745 = vadd.f32 %v7681, %v7713
      %v7746 = vadd.f32 %v7682, %v7714
      %v7747 = vadd.f32 %v7683, %v7715
      %v7748 = vadd.f32 %v7684, %v7716
      %v7749 = vadd.f32 %v7685, %v7717
      %v7750 = vadd.f32 %v7686, %v7718
      %v7751 = vadd.f32 %v7687, %v7719
      %v7752 = vadd.f32 %v7688, %v7720
      %v7753 = vadd.f32 %v7689, %v7721
      %v7754 = vadd.f32 %v7690, %v7722
      %v7755 = vadd.f32 %v7691, %v7723
      %v7756 = vadd.f32 %v7692, %v7724
      %v7757 = vadd.f32 %v7693, %v7725
      %v7758 = vadd.f32 %v7694, %v7726
      %v7759 = vadd.f32 %v7695, %v7727
      %v7760 = vadd.f32 %v7696, %v7728
      %v7761 = vadd.f32 %v7697, %v7729
      %v7762 = vadd.f32 %v7698, %v7730
      %v7763 = vadd.f32 %v7699, %v7731
      %v7764 = vadd.f32 %v7700, %v7732
      %v7765 = vadd.f32 %v7701, %v7733
      %v7766 = vadd.f32 %v7702, %v7734
      %v7767 = vadd.f32 %v7703, %v7735
      %v7768 = vadd.f32 %v7704, %v7736
      %v7769 = vadd.f32 %v7705, %v7737
      %v7770 = vadd.f32 %v7706, %v7738
      %v7771 = vadd.f32 %v7707, %v7739
      %v7772 = vadd.f32 %v7708, %v7740
      %v7773 = vadd.f32 %v7709, %v7741
      %v7774 = vadd.f32 %v7710, %v7742
      %vm7775 = vcmask 15360
      %7776 = vst.msk [vmem:[%s271] sm:$0xff] %vm7775, %v7743
      %7777 = vst.msk [vmem:[%s271 + $0x8] sm:$0xff] %vm7775, %v7744
      %7778 = vst.msk [vmem:[%s271 + $0x10] sm:$0xff] %vm7775, %v7745
      %7779 = vst.msk [vmem:[%s271 + $0x18] sm:$0xff] %vm7775, %v7746
      %7780 = vst.msk [vmem:[%s271 + $0x20] sm:$0xff] %vm7775, %v7747
      %7781 = vst.msk [vmem:[%s271 + $0x28] sm:$0xff] %vm7775, %v7748
      %7782 = vst.msk [vmem:[%s271 + $0x30] sm:$0xff] %vm7775, %v7749
      %7783 = vst.msk [vmem:[%s271 + $0x38] sm:$0xff] %vm7775, %v7750
      %7784 = vst.msk [vmem:[%s271 + $0x40] sm:$0xff] %vm7775, %v7751
      %7785 = vst.msk [vmem:[%s271 + $0x48] sm:$0xff] %vm7775, %v7752
      %7786 = vst.msk [vmem:[%s271 + $0x50] sm:$0xff] %vm7775, %v7753
      %7787 = vst.msk [vmem:[%s271 + $0x58] sm:$0xff] %vm7775, %v7754
      %7788 = vst.msk [vmem:[%s271 + $0x60] sm:$0xff] %vm7775, %v7755
      %7789 = vst.msk [vmem:[%s271 + $0x68] sm:$0xff] %vm7775, %v7756
      %7790 = vst.msk [vmem:[%s271 + $0x70] sm:$0xff] %vm7775, %v7757
      %7791 = vst.msk [vmem:[%s271 + $0x78] sm:$0xff] %vm7775, %v7758
      %7792 = vst.msk [vmem:[%s271 + $0x80] sm:$0xff] %vm7775, %v7759
      %7793 = vst.msk [vmem:[%s271 + $0x88] sm:$0xff] %vm7775, %v7760
      %7794 = vst.msk [vmem:[%s271 + $0x90] sm:$0xff] %vm7775, %v7761
      %7795 = vst.msk [vmem:[%s271 + $0x98] sm:$0xff] %vm7775, %v7762
      %7796 = vst.msk [vmem:[%s271 + $0xa0] sm:$0xff] %vm7775, %v7763
      %7797 = vst.msk [vmem:[%s271 + $0xa8] sm:$0xff] %vm7775, %v7764
      %7798 = vst.msk [vmem:[%s271 + $0xb0] sm:$0xff] %vm7775, %v7765
      %7799 = vst.msk [vmem:[%s271 + $0xb8] sm:$0xff] %vm7775, %v7766
      %7800 = vst.msk [vmem:[%s271 + $0xc0] sm:$0xff] %vm7775, %v7767
      %7801 = vst.msk [vmem:[%s271 + $0xc8] sm:$0xff] %vm7775, %v7768
      %7802 = vst.msk [vmem:[%s271 + $0xd0] sm:$0xff] %vm7775, %v7769
      %7803 = vst.msk [vmem:[%s271 + $0xd8] sm:$0xff] %vm7775, %v7770
      %7804 = vst.msk [vmem:[%s271 + $0xe0] sm:$0xff] %vm7775, %v7771
      %7805 = vst.msk [vmem:[%s271 + $0xe8] sm:$0xff] %vm7775, %v7772
      %7806 = vst.msk [vmem:[%s271 + $0xf0] sm:$0xff] %vm7775, %v7773
      %7807 = vst.msk [vmem:[%s271 + $0xf8] sm:$0xff] %vm7775, %v7774
      %p7808 = scmp.lt.s32.totalorder %s17, 1
      %s7809 = scalar_select %p7808, %s17, 1
      %s7810 = smul.addr %s7809, 32
      %s7811 = smul.addr %s7810, 8
      %s7812 = scalar_lea.vmem %s6, %s7811
      // Predicated region
      $region45: #{squeeze_body_edge_forward.6} parent=43 // pred_check
        %p7813 = pneg %p171
      $region46: #{squeeze_body_edge_forward.6} parent=43 // pred_check_branch
        %7815 = sbr.rel (%p7813) target = $region48
      $region47: #{squeeze_body_edge_forward.6} parent=43 // pred_region
        _
      $region48: #{squeeze_body_edge_forward.6} parent=43 // pred_fallthru
        _
    $region44: #{squeeze_body_edge_forward.6} parent=5 // pred_fallthru
      _
    %p7816 = scmp.le.s32.totalorder 2, %s12
    // Predicated region
    $region49: #{squeeze_body_edge_forward.6} parent=5 // pred_check
      %p7817 = pneg %p7816
    $region50: #{squeeze_body_edge_forward.6} parent=5 // pred_check_branch
      %7819 = sbr.rel (%p7817) target = $region52
    $region51: #{squeeze_body_edge_forward.6} parent=5 // pred_region
      %s7820 = ssub.s32 %s12, 2
      // Predicated region
      $region53: #{squeeze_body_edge_forward.6} parent=51 // pred_check
        %p7821 = pneg %p177
      $region54: #{squeeze_body_edge_forward.6} parent=51 // pred_check_branch
        %7823 = sbr.rel (%p7821) target = $region56
      $region55: #{squeeze_body_edge_forward.6} parent=51 // pred_region
        %p7824 = scmp.lt.s32.totalorder %s18, 1
        %s7825 = scalar_select %p7824, %s18, 1
        %s7826 = smul.addr %s7825, 32
        %s7827 = smul.addr %s7826, 8
        %s7828 = scalar_lea.vmem %s6, %s7827
      $region56: #{squeeze_body_edge_forward.6} parent=51 // pred_fallthru
        _
    $region52: #{squeeze_body_edge_forward.6} parent=5 // pred_fallthru
      _
  $region6: #{squeeze_body_edge_forward.6} parent=0 // loop_footer
    %s16 = sadd.s32 1, %s12
  $region7: #{squeeze_body_edge_forward.6} parent=0 // loop_footer_branch
    %11 = sbr.rel target = $region3
  $region8: #{squeeze_body_edge_forward.6} parent=0 // loop_exit
    _

</llo_original>
